<compile_context>
chip_gen: v7x
topology: tpu7x:2x2x1
jax: 0.10.0
libtpu: 0.0.40
codegen_flags: <defaults>
</compile_context>

<pallas_src>
import jax
import jax.numpy as jnp
import numpy as np
from jax import lax
from jax.experimental import pallas as pl
from jax.experimental.pallas import tpu as pltpu

_LANE = 128     # vreg lane width
_SUBLANE = 8    # vreg sublane count (f32)


def _round_up(x, m):
    return (x + m - 1) // m * m


def _pick_batch_tile(bp):
    """Largest batch tile (multiple of 8, <= 64) dividing the padded batch."""
    for tb in (64, 32, 16, 8):
        if bp % tb == 0:
            return tb
    return bp


# ----------------------------------------------------------------------------
# Kernel (one batch tile per grid step)
# ----------------------------------------------------------------------------
def _prompt_encoder_kernel(
    x_ref,                                    # (S, TB, Hxp) bf16 padded embeddings
    w_ih0f_ref, w_hh0f_ref, b0f_ref,          # layer0 forward  (padded, transposed)
    w_ih0b_ref, w_hh0b_ref, b0b_ref,          # layer0 backward
    w_ih1f_ref, w_hh1f_ref, b1f_ref,          # layer1 forward
    w_ih1b_ref, w_hh1b_ref, b1b_ref,          # layer1 backward
    mlp_w1_ref, mlp_b1_ref, mlp_w2_ref, mlp_b2_ref,
    out_ref,                                  # (S, TB, Hop) f32
    gin_f, gin_b,                             # scratch (S, TB, 4*H2p) f32: x@W_ih + b
    h_buf,                                    # scratch (S, TB, 2*H2p) bf16: bidir outputs
):
    S, TB, Hxp = x_ref.shape
    G = gin_f.shape[-1]                       # 4 * H2p
    H2p = G // 4
    Hc = 2 * H2p
    f32 = jnp.float32
    bf16 = jnp.bfloat16
    unroll = True if S <= 16 else 8           # bound code size / vreg pressure

    def sigm(v):
        # sigmoid via a single EUP tanh: sigmoid(x) == 0.5*tanh(0.5*x) + 0.5
        return 0.5 * jnp.tanh(0.5 * v) + 0.5

    def run_bidir(w_hh_f_ref, w_hh_b_ref, out_buf):
        # Hoisted loop-invariant loads (bf16 weights).
        w_hh_f = w_hh_f_ref[...]              # (H2p, 4*H2p) bf16
        w_hh_b = w_hh_b_ref[...]

        def cell(g, c):
            # PyTorch gate order i, f, g, o — each gate in its own
            # 128-lane-aligned block, so these slices are zero-cost views.
            i_g = sigm(g[:, 0 * H2p:1 * H2p])
            f_g = sigm(g[:, 1 * H2p:2 * H2p])
            g_g = jnp.tanh(g[:, 2 * H2p:3 * H2p])
            o_g = sigm(g[:, 3 * H2p:4 * H2p])
            c_new = f_g * c + i_g * g_g
            h_new = o_g * jnp.tanh(c_new)
            return h_new.astype(bf16), c_new  # h carried bf16 (MXU operand / store)

        def body(i, carry):
            hf, cf, hb, cb = carry            # hf/hb bf16, cf/cb f32
            tb = S - 1 - i
            # Only the recurrent h @ W_hh matmul sits on the serial path; bias
            # is already folded into gin.  The two directions are independent
            # chains and get interleaved by the scheduler.
            gf = gin_f[i] + jnp.dot(hf, w_hh_f, preferred_element_type=f32)
            gb = gin_b[tb] + jnp.dot(hb, w_hh_b, preferred_element_type=f32)
            hf, cf = cell(gf, cf)
            hb, cb = cell(gb, cb)
            # Lane-aligned (TB, H2p) stores into the shared (fwd|bwd) buffer.
            out_buf[i, :, 0:H2p] = hf
            out_buf[tb, :, H2p:Hc] = hb
            return hf, cf, hb, cb

        zh = jnp.zeros((TB, H2p), bf16)
        zc = jnp.zeros((TB, H2p), f32)
        lax.fori_loop(0, S, body, (zh, zc, zh, zc), unroll=unroll)

    # ---------------- layer 0: batched input projections (+ bias fold) -------
    x_flat = x_ref[...].reshape(S * TB, Hxp)              # bf16
    gin_f[...] = (jnp.dot(x_flat, w_ih0f_ref[...], preferred_element_type=f32)
                  + b0f_ref[...]).reshape(S, TB, G)
    gin_b[...] = (jnp.dot(x_flat, w_ih0b_ref[...], preferred_element_type=f32)
                  + b0b_ref[...]).reshape(S, TB, G)
    run_bidir(w_hh0f_ref, w_hh0b_ref, h_buf)

    # ---------------- layer 1: batched input projections ---------------------
    # h_buf holds concat(fwd, bwd) contiguously -> single K=2*H2p matmul.
    # It is fully consumed by these two dots before run_bidir overwrites it
    # with the layer-1 outputs (safe buffer reuse).
    h_flat = h_buf[...].reshape(S * TB, Hc)               # bf16
    gin_f[...] = (jnp.dot(h_flat, w_ih1f_ref[...], preferred_element_type=f32)
                  + b1f_ref[...]).reshape(S, TB, G)
    gin_b[...] = (jnp.dot(h_flat, w_ih1b_ref[...], preferred_element_type=f32)
                  + b1b_ref[...]).reshape(S, TB, G)
    run_bidir(w_hh1f_ref, w_hh1b_ref, h_buf)

    # ---------------- MLP head: fully batched Linear -> ReLU -> Linear -------
    h_flat = h_buf[...].reshape(S * TB, Hc)               # bf16 (layer-1 output)
    z = jnp.dot(h_flat, mlp_w1_ref[...], preferred_element_type=f32) + mlp_b1_ref[...]
    z = jnp.maximum(z, 0.0).astype(bf16)
    y = jnp.dot(z, mlp_w2_ref[...], preferred_element_type=f32) + mlp_b2_ref[...]
    out_ref[...] = y.reshape(S, TB, out_ref.shape[-1])    # single lane-dense store


# ----------------------------------------------------------------------------
# Parameter init (matches torch.nn.LSTM / nn.Linear parameter shapes)
# ----------------------------------------------------------------------------
def init_params(key, vocab_size, hidden_size):
    H = hidden_size
    H2 = H // 2
    keys = iter(jax.random.split(key, 64))

    def rnd(shape, scale=0.1):
        return (scale * jax.random.normal(next(keys), shape)).astype(jnp.float32)

    params = {"embedding": rnd((vocab_size, H), 0.5)}
    lstm = []
    for _layer in range(2):          # layer0 input = H, layer1 input = 2*H2 == H
        for _direction in range(2):  # forward, reverse
            lstm.append(dict(
                w_ih=rnd((4 * H2, H)),
                w_hh=rnd((4 * H2, H2)),
                b_ih=rnd((4 * H2,)),
                b_hh=rnd((4 * H2,)),
            ))
    params["lstm"] = lstm
    params["mlp_w1"] = rnd((H, H))
    params["mlp_b1"] = rnd((H,))
    params["mlp_w2"] = rnd((H, H))
    params["mlp_b2"] = rnd((H,))
    return params


# ----------------------------------------------------------------------------
# One-time weight layout prep (padding, transposition, bf16 casts)
# ----------------------------------------------------------------------------
def _pad_gate_cols(w_t, H2, H2p):
    """(in, 4*H2) -> (in, 4*H2p): gate k's H2 columns start at lane k*H2p."""
    out = jnp.zeros((w_t.shape[0], 4 * H2p), jnp.float32)
    for g in range(4):
        out = out.at[:, g * H2p:g * H2p + H2].set(w_t[:, g * H2:(g + 1) * H2])
    return out


def _pad_split_rows(w, H2, H2p):
    """(2*H2, N) -> (2*H2p, N): fwd-half rows at 0, bwd-half rows at H2p."""
    out = jnp.zeros((2 * H2p, w.shape[1]), jnp.float32)
    out = out.at[0:H2, :].set(w[0:H2, :])
    out = out.at[H2p:H2p + H2, :].set(w[H2:2 * H2, :])
    return out


def _pad_to(w, rows, cols):
    return jnp.pad(w, ((0, rows - w.shape[0]), (0, cols - w.shape[1])))


def prepare_params(params):
    """Pad/transpose/cast parameters once; results are reused every forward."""
    H = params["embedding"].shape[1]
    H2 = H // 2
    H2p = _round_up(H2, _LANE)
    Hxp = _round_up(H, _LANE)
    Hmp = _round_up(H, _LANE)
    Hop = _round_up(H, _LANE)
    G = 4 * H2p
    bf16 = jnp.bfloat16

    def prep_lstm(d, layer):
        w_ih_t = _pad_gate_cols(jnp.transpose(d["w_ih"]).astype(jnp.float32), H2, H2p)
        if layer == 0:
            w_ih_t = _pad_to(w_ih_t, Hxp, G)                 # (Hxp, G)
        else:
            w_ih_t = _pad_split_rows(w_ih_t, H2, H2p)        # (2*H2p, G)
        w_hh_t = _pad_to(
            _pad_gate_cols(jnp.transpose(d["w_hh"]).astype(jnp.float32), H2, H2p),
            H2p, G)                                          # (H2p, G)
        bias = _pad_gate_cols(
            (d["b_ih"] + d["b_hh"]).reshape(1, 4 * H2).astype(jnp.float32), H2, H2p)
        return (w_ih_t.astype(bf16), w_hh_t.astype(bf16), bias)   # bias stays f32

    prepped = {
        "embedding": params["embedding"].astype(jnp.float32),
        "l0f": prep_lstm(params["lstm"][0], 0),
        "l0b": prep_lstm(params["lstm"][1], 0),
        "l1f": prep_lstm(params["lstm"][2], 1),
        "l1b": prep_lstm(params["lstm"][3], 1),
        "mlp_w1": _pad_split_rows(
            _pad_to(jnp.transpose(params["mlp_w1"]).astype(jnp.float32), H, Hmp),
            H2, H2p).astype(bf16),
        "mlp_b1": _pad_to(params["mlp_b1"].reshape(1, H).astype(jnp.float32), 1, Hmp),
        "mlp_w2": _pad_to(jnp.transpose(params["mlp_w2"]).astype(jnp.float32),
                          Hmp, Hop).astype(bf16),
        "mlp_b2": _pad_to(params["mlp_b2"].reshape(1, H).astype(jnp.float32), 1, Hop),
    }
    return prepped


# ----------------------------------------------------------------------------
# Forward wrapper: embedding gather, padding, batch-tiled pallas_call
# ----------------------------------------------------------------------------
@jax.jit
def prompt_encoder_forward(prepped, input_ids):
    emb_tbl = prepped["embedding"]
    H = emb_tbl.shape[1]
    w_ih0f, w_hh0f, b0f = prepped["l0f"]
    w_ih0b, w_hh0b, b0b = prepped["l0b"]
    w_ih1f, w_hh1f, b1f = prepped["l1f"]
    w_ih1b, w_hh1b, b1b = prepped["l1b"]

    # Dims are all static (derived from array shapes).
    Hxp = w_ih0f.shape[0]
    G = w_ih0f.shape[1]
    H2p = G // 4
    Hc = 2 * H2p
    Hmp = prepped["mlp_w1"].shape[1]
    Hop = prepped["mlp_w2"].shape[1]

    # Time-major embedding gather (no extra (B,S,H) transpose on the way in).
    x = jnp.take(emb_tbl, jnp.transpose(input_ids), axis=0)   # (S, B, H) f32
    S, B, _ = x.shape
    Bp = _round_up(B, _SUBLANE)
    TB = _pick_batch_tile(Bp)
    num_tiles = Bp // TB
    x = jnp.pad(x.astype(jnp.bfloat16),
                ((0, 0), (0, Bp - B), (0, Hxp - H)))          # (S, Bp, Hxp) bf16

    kern_args = [
        x,
        w_ih0f, w_hh0f, b0f,
        w_ih0b, w_hh0b, b0b,
        w_ih1f, w_hh1f, b1f,
        w_ih1b, w_hh1b, b1b,
        prepped["mlp_w1"], prepped["mlp_b1"], prepped["mlp_w2"], prepped["mlp_b2"],
    ]

    # x/out tiled over batch; weights resident (constant block index).
    in_specs = [pl.BlockSpec((S, TB, Hxp), lambda b: (0, b, 0))]
    in_specs += [pl.BlockSpec(a.shape, lambda b: (0, 0)) for a in kern_args[1:]]
    out_spec = pl.BlockSpec((S, TB, Hop), lambda b: (0, b, 0))

    # Explicit VMEM budget: 2x (pipelining) the per-tile residency, with
    # headroom, floored at 8 MiB and capped at 64 MiB (v7x physical VMEM).
    weight_bytes = sum(a.size * a.dtype.itemsize for a in kern_args[1:])
    tile_io_bytes = S * TB * Hxp * 2 + S * TB * Hop * 4
    scratch_bytes = 2 * S * TB * G * 4 + S * TB * Hc * 2
    needed = 2 * (weight_bytes + tile_io_bytes) + scratch_bytes
    vmem_limit = int(min(max(2 * needed, 8 * 2**20), 64 * 2**20))

    # Advisory cost estimate (flops = 2*M*K*N per matmul).
    n = S * Bp
    flops = int(
        2 * 2 * n * Hxp * G                       # layer-0 input proj (2 dirs)
        + 2 * 2 * n * Hc * G                      # layer-1 input proj (2 dirs)
        + 2 * 2 * S * (2 * Bp * H2p * G)          # recurrent h @ W_hh (2 layers x 2 dirs)
        + 2 * n * Hc * Hmp + 2 * n * Hmp * Hop)   # MLP
    transcendentals = int(2 * 2 * S * Bp * 5 * H2p)
    bytes_accessed = int(sum(a.size * a.dtype.itemsize for a in kern_args)
                         + S * Bp * Hop * 4)

    out = pl.pallas_call(
        _prompt_encoder_kernel,
        out_shape=jax.ShapeDtypeStruct((S, Bp, Hop), jnp.float32),
        grid_spec=pltpu.PrefetchScalarGridSpec(
            num_scalar_prefetch=0,
            grid=(num_tiles,),
            in_specs=in_specs,
            out_specs=out_spec,
            scratch_shapes=[
                pltpu.VMEM((S, TB, G), jnp.float32),    # gin_f (reused layer0/1)
                pltpu.VMEM((S, TB, G), jnp.float32),    # gin_b
                pltpu.VMEM((S, TB, Hc), jnp.bfloat16),  # h_buf (layer0 then layer1 out)
            ]),
        compiler_params=pltpu.CompilerParams(
            dimension_semantics=("parallel",),          # batch tiles across v7x TCs
            vmem_limit_bytes=vmem_limit),
        cost_estimate=pl.CostEstimate(flops=flops,
                                      transcendentals=transcendentals,
                                      bytes_accessed=bytes_accessed),
    )(*kern_args)

    out = jnp.transpose(out[:, :B, :H], (1, 0, 2))            # back to (B, S, H)
    return jnp.squeeze(out)                                   # matches torch .squeeze()


# ----------------------------------------------------------------------------
# Pure-JAX f32 reference (same math as torch.nn.LSTM + nn.Sequential)
# ----------------------------------------------------------------------------
def reference_forward(params, input_ids):
    emb = jnp.take(params["embedding"], input_ids, axis=0)   # (B, S, H)
    H = emb.shape[-1]
    H2 = H // 2

    def lstm_dir(x, p, reverse):
        B = x.shape[0]
        xs = jnp.transpose(x, (1, 0, 2))                     # (S, B, in)

        def step(carry, x_t):
            h, c = carry
            g = x_t @ p["w_ih"].T + h @ p["w_hh"].T + p["b_ih"] + p["b_hh"]
            i_g = jax.nn.sigmoid(g[:, :H2])
            f_g = jax.nn.sigmoid(g[:, H2:2 * H2])
            g_g = jnp.tanh(g[:, 2 * H2:3 * H2])
            o_g = jax.nn.sigmoid(g[:, 3 * H2:])
            c = f_g * c + i_g * g_g
            h = o_g * jnp.tanh(c)
            return (h, c), h

        init = (jnp.zeros((B, H2), jnp.float32), jnp.zeros((B, H2), jnp.float32))
        _, hs = lax.scan(step, init, xs, reverse=reverse)
        return jnp.transpose(hs, (1, 0, 2))                  # (B, S, H2)

    h = emb
    for layer in range(2):
        f = lstm_dir(h, params["lstm"][2 * layer + 0], reverse=False)
        b = lstm_dir(h, params["lstm"][2 * layer + 1], reverse=True)
        h = jnp.concatenate([f, b], axis=-1)
    z = jnp.maximum(h @ params["mlp_w1"].T + params["mlp_b1"], 0.0)
    y = z @ params["mlp_w2"].T + params["mlp_b2"]
    return jnp.squeeze(y)


if __name__ == "__main__":
    B, S, H, VOCAB = 2, 8, 32, 100
    key = jax.random.PRNGKey(0)
    pkey, ikey = jax.random.split(key)
    params = init_params(pkey, VOCAB, H)
    input_ids = jax.random.randint(ikey, (B, S), 0, VOCAB)

    prepped = prepare_params(params)          # one-time weight layout prep

    out = jax.block_until_ready(prompt_encoder_forward(prepped, input_ids))
    ref = jax.block_until_ready(reference_forward(params, input_ids))

    assert out.shape == (B, S, H), out.shape
    # Tolerance loosened vs. the pure-f32 version: matmul operands are bf16
    # (f32 accumulation + f32 gate math), per the performance review.
    np.testing.assert_allclose(np.asarray(out), np.asarray(ref), atol=1e-2, rtol=1e-2)
    print("KERNEL_OK")
</pallas_src>

<mosaic_0001>
module attributes {stable_mosaic.version = 11 : i64} {
  func.func @_prompt_encoder_kernel(%arg0: i32, %arg1: memref<8x8x128xbf16, #tpu.memory_space<vmem>>, %arg2: memref<128x512xbf16, #tpu.memory_space<vmem>>, %arg3: memref<128x512xbf16, #tpu.memory_space<vmem>>, %arg4: memref<1x512xf32, #tpu.memory_space<vmem>>, %arg5: memref<128x512xbf16, #tpu.memory_space<vmem>>, %arg6: memref<128x512xbf16, #tpu.memory_space<vmem>>, %arg7: memref<1x512xf32, #tpu.memory_space<vmem>>, %arg8: memref<256x512xbf16, #tpu.memory_space<vmem>>, %arg9: memref<128x512xbf16, #tpu.memory_space<vmem>>, %arg10: memref<1x512xf32, #tpu.memory_space<vmem>>, %arg11: memref<256x512xbf16, #tpu.memory_space<vmem>>, %arg12: memref<128x512xbf16, #tpu.memory_space<vmem>>, %arg13: memref<1x512xf32, #tpu.memory_space<vmem>>, %arg14: memref<256x128xbf16, #tpu.memory_space<vmem>>, %arg15: memref<1x128xf32, #tpu.memory_space<vmem>>, %arg16: memref<128x128xbf16, #tpu.memory_space<vmem>>, %arg17: memref<1x128xf32, #tpu.memory_space<vmem>>, %arg18: memref<8x8x128xf32, #tpu.memory_space<vmem>>, %arg19: memref<8x8x512xf32, #tpu.memory_space<vmem>>, %arg20: memref<8x8x512xf32, #tpu.memory_space<vmem>>, %arg21: memref<8x8x256xbf16, #tpu.memory_space<vmem>>) attributes {dimension_semantics = [#tpu.dimension_semantics<parallel>], iteration_bounds = array<i64: 1>, scalar_prefetch = 0 : i64, scratch_operands = 3 : i64, tpu.core_type = #tpu.core_type<tc>, window_params = [{transform_indices = @transform_0, window_bounds = array<i64: 8, 8, 128>}, {pipeline_mode = #tpu.pipeline_mode<synchronous>, transform_indices = @transform_1, window_bounds = array<i64: 128, 512>}, {pipeline_mode = #tpu.pipeline_mode<synchronous>, transform_indices = @transform_2, window_bounds = array<i64: 128, 512>}, {pipeline_mode = #tpu.pipeline_mode<synchronous>, transform_indices = @transform_3, window_bounds = array<i64: 1, 512>}, {pipeline_mode = #tpu.pipeline_mode<synchronous>, transform_indices = @transform_4, window_bounds = array<i64: 128, 512>}, {pipeline_mode = #tpu.pipeline_mode<synchronous>, transform_indices = @transform_5, window_bounds = array<i64: 128, 512>}, {pipeline_mode = #tpu.pipeline_mode<synchronous>, transform_indices = @transform_6, window_bounds = array<i64: 1, 512>}, {pipeline_mode = #tpu.pipeline_mode<synchronous>, transform_indices = @transform_7, window_bounds = array<i64: 256, 512>}, {pipeline_mode = #tpu.pipeline_mode<synchronous>, transform_indices = @transform_8, window_bounds = array<i64: 128, 512>}, {pipeline_mode = #tpu.pipeline_mode<synchronous>, transform_indices = @transform_9, window_bounds = array<i64: 1, 512>}, {pipeline_mode = #tpu.pipeline_mode<synchronous>, transform_indices = @transform_10, window_bounds = array<i64: 256, 512>}, {pipeline_mode = #tpu.pipeline_mode<synchronous>, transform_indices = @transform_11, window_bounds = array<i64: 128, 512>}, {pipeline_mode = #tpu.pipeline_mode<synchronous>, transform_indices = @transform_12, window_bounds = array<i64: 1, 512>}, {pipeline_mode = #tpu.pipeline_mode<synchronous>, transform_indices = @transform_13, window_bounds = array<i64: 256, 128>}, {pipeline_mode = #tpu.pipeline_mode<synchronous>, transform_indices = @transform_14, window_bounds = array<i64: 1, 128>}, {pipeline_mode = #tpu.pipeline_mode<synchronous>, transform_indices = @transform_15, window_bounds = array<i64: 128, 128>}, {pipeline_mode = #tpu.pipeline_mode<synchronous>, transform_indices = @transform_16, window_bounds = array<i64: 1, 128>}, {transform_indices = @transform_17, window_bounds = array<i64: 8, 8, 128>}]} {
    %c0 = arith.constant 0 : index
    %c0_0 = arith.constant 0 : index
    %c0_1 = arith.constant 0 : index
    %0 = vector.load %arg1[%c0, %c0_0, %c0_1] : memref<8x8x128xbf16, #tpu.memory_space<vmem>>, vector<8x8x128xbf16>
    %1 = vector.shape_cast %0 : vector<8x8x128xbf16> to vector<64x128xbf16>
    %c0_2 = arith.constant 0 : index
    %c0_3 = arith.constant 0 : index
    %2 = vector.load %arg2[%c0_2, %c0_3] : memref<128x512xbf16, #tpu.memory_space<vmem>>, vector<128x512xbf16>
    %cst = arith.constant dense<0.000000e+00> : vector<64x512xf32>
    %3 = tpu.matmul %1, %2, %cst {dimension_numbers = #tpu.dot_dimension_numbers<[1], [0], [0], [1], [0, 0, 1, 1], [], []>} : vector<64x128xbf16>, vector<128x512xbf16>, vector<64x512xf32> -> vector<64x512xf32>
    %c0_4 = arith.constant 0 : index
    %c0_5 = arith.constant 0 : index
    %4 = vector.load %arg4[%c0_4, %c0_5] : memref<1x512xf32, #tpu.memory_space<vmem>>, vector<1x512xf32>
    %5 = vector.broadcast %4 : vector<1x512xf32> to vector<64x512xf32>
    %6 = arith.addf %3, %5 : vector<64x512xf32>
    %7 = vector.shape_cast %6 : vector<64x512xf32> to vector<8x8x512xf32>
    %c0_6 = arith.constant 0 : index
    %c0_7 = arith.constant 0 : index
    %c0_8 = arith.constant 0 : index
    %8 = vector.load %arg19[%c0_6, %c0_7, %c0_8] : memref<8x8x512xf32, #tpu.memory_space<vmem>>, vector<8x8x512xf32>
    tpu.vector_store %arg19[%c0_6, %c0_7, %c0_8], %7 {strides = array<i32>} : memref<8x8x512xf32, #tpu.memory_space<vmem>>, vector<8x8x512xf32>,
    %c0_9 = arith.constant 0 : index
    %c0_10 = arith.constant 0 : index
    %9 = vector.load %arg5[%c0_9, %c0_10] : memref<128x512xbf16, #tpu.memory_space<vmem>>, vector<128x512xbf16>
    %cst_11 = arith.constant dense<0.000000e+00> : vector<64x512xf32>
    %10 = tpu.matmul %1, %9, %cst_11 {dimension_numbers = #tpu.dot_dimension_numbers<[1], [0], [0], [1], [0, 0, 1, 1], [], []>} : vector<64x128xbf16>, vector<128x512xbf16>, vector<64x512xf32> -> vector<64x512xf32>
    %c0_12 = arith.constant 0 : index
    %c0_13 = arith.constant 0 : index
    %11 = vector.load %arg7[%c0_12, %c0_13] : memref<1x512xf32, #tpu.memory_space<vmem>>, vector<1x512xf32>
    %12 = vector.broadcast %11 : vector<1x512xf32> to vector<64x512xf32>
    %13 = arith.addf %10, %12 : vector<64x512xf32>
    %14 = vector.shape_cast %13 : vector<64x512xf32> to vector<8x8x512xf32>
    %c0_14 = arith.constant 0 : index
    %c0_15 = arith.constant 0 : index
    %c0_16 = arith.constant 0 : index
    %15 = vector.load %arg20[%c0_14, %c0_15, %c0_16] : memref<8x8x512xf32, #tpu.memory_space<vmem>>, vector<8x8x512xf32>
    tpu.vector_store %arg20[%c0_14, %c0_15, %c0_16], %14 {strides = array<i32>} : memref<8x8x512xf32, #tpu.memory_space<vmem>>, vector<8x8x512xf32>,
    %c0_17 = arith.constant 0 : index
    %c0_18 = arith.constant 0 : index
    %16 = vector.load %arg3[%c0_17, %c0_18] : memref<128x512xbf16, #tpu.memory_space<vmem>>, vector<128x512xbf16>
    %c0_19 = arith.constant 0 : index
    %c0_20 = arith.constant 0 : index
    %17 = vector.load %arg6[%c0_19, %c0_20] : memref<128x512xbf16, #tpu.memory_space<vmem>>, vector<128x512xbf16>
    %cst_21 = arith.constant 0.000000e+00 : bf16
    %18 = vector.broadcast %cst_21 : bf16 to vector<8x128xbf16>
    %cst_22 = arith.constant 0.000000e+00 : f32
    %19 = vector.broadcast %cst_22 : f32 to vector<8x128xf32>
    %c0_i32 = arith.constant 0 : i32
    %c7_i32 = arith.constant 7 : i32
    %20 = arith.subi %c7_i32, %c0_i32 : i32
    %21 = arith.index_cast %c0_i32 : i32 to index
    %c0_23 = arith.constant 0 : index
    %c0_24 = arith.constant 0 : index
    %22 = vector.load %arg19[%21, %c0_23, %c0_24] : memref<8x8x512xf32, #tpu.memory_space<vmem>>, vector<1x8x512xf32>
    %23 = vector.shape_cast %22 : vector<1x8x512xf32> to vector<8x512xf32>
    %cst_25 = arith.constant dense<0.000000e+00> : vector<8x512xf32>
    %24 = tpu.matmul %18, %16, %cst_25 {dimension_numbers = #tpu.dot_dimension_numbers<[1], [0], [0], [1], [0, 0, 1, 1], [], []>} : vector<8x128xbf16>, vector<128x512xbf16>, vector<8x512xf32> -> vector<8x512xf32>
    %25 = arith.addf %23, %24 : vector<8x512xf32>
    %26 = arith.index_cast %20 : i32 to index
    %c0_26 = arith.constant 0 : index
    %c0_27 = arith.constant 0 : index
    %27 = vector.load %arg20[%26, %c0_26, %c0_27] : memref<8x8x512xf32, #tpu.memory_space<vmem>>, vector<1x8x512xf32>
    %28 = vector.shape_cast %27 : vector<1x8x512xf32> to vector<8x512xf32>
    %cst_28 = arith.constant dense<0.000000e+00> : vector<8x512xf32>
    %29 = tpu.matmul %18, %17, %cst_28 {dimension_numbers = #tpu.dot_dimension_numbers<[1], [0], [0], [1], [0, 0, 1, 1], [], []>} : vector<8x128xbf16>, vector<128x512xbf16>, vector<8x512xf32> -> vector<8x512xf32>
    %30 = arith.addf %28, %29 : vector<8x512xf32>
    %31 = vector.extract_strided_slice %25 {offsets = [0, 0], sizes = [8, 128], strides = [1, 1]} : vector<8x512xf32> to vector<8x128xf32>
    %cst_29 = arith.constant 5.000000e-01 : f32
    %32 = vector.broadcast %cst_29 : f32 to vector<8x128xf32>
    %33 = arith.mulf %32, %31 : vector<8x128xf32>
    %34 = math.tanh %33 : vector<8x128xf32>
    %cst_30 = arith.constant 5.000000e-01 : f32
    %35 = vector.broadcast %cst_30 : f32 to vector<8x128xf32>
    %36 = arith.mulf %35, %34 : vector<8x128xf32>
    %cst_31 = arith.constant 5.000000e-01 : f32
    %37 = vector.broadcast %cst_31 : f32 to vector<8x128xf32>
    %38 = arith.addf %36, %37 : vector<8x128xf32>
    %39 = vector.extract_strided_slice %25 {offsets = [0, 128], sizes = [8, 128], strides = [1, 1]} : vector<8x512xf32> to vector<8x128xf32>
    %cst_32 = arith.constant 5.000000e-01 : f32
    %40 = vector.broadcast %cst_32 : f32 to vector<8x128xf32>
    %41 = arith.mulf %40, %39 : vector<8x128xf32>
    %42 = math.tanh %41 : vector<8x128xf32>
    %cst_33 = arith.constant 5.000000e-01 : f32
    %43 = vector.broadcast %cst_33 : f32 to vector<8x128xf32>
    %44 = arith.mulf %43, %42 : vector<8x128xf32>
    %cst_34 = arith.constant 5.000000e-01 : f32
    %45 = vector.broadcast %cst_34 : f32 to vector<8x128xf32>
    %46 = arith.addf %44, %45 : vector<8x128xf32>
    %47 = vector.extract_strided_slice %25 {offsets = [0, 256], sizes = [8, 128], strides = [1, 1]} : vector<8x512xf32> to vector<8x128xf32>
    %48 = math.tanh %47 : vector<8x128xf32>
    %49 = vector.extract_strided_slice %25 {offsets = [0, 384], sizes = [8, 128], strides = [1, 1]} : vector<8x512xf32> to vector<8x128xf32>
    %cst_35 = arith.constant 5.000000e-01 : f32
    %50 = vector.broadcast %cst_35 : f32 to vector<8x128xf32>
    %51 = arith.mulf %50, %49 : vector<8x128xf32>
    %52 = math.tanh %51 : vector<8x128xf32>
    %cst_36 = arith.constant 5.000000e-01 : f32
    %53 = vector.broadcast %cst_36 : f32 to vector<8x128xf32>
    %54 = arith.mulf %53, %52 : vector<8x128xf32>
    %cst_37 = arith.constant 5.000000e-01 : f32
    %55 = vector.broadcast %cst_37 : f32 to vector<8x128xf32>
    %56 = arith.addf %54, %55 : vector<8x128xf32>
    %57 = arith.mulf %46, %19 : vector<8x128xf32>
    %58 = arith.mulf %38, %48 : vector<8x128xf32>
    %59 = arith.addf %57, %58 : vector<8x128xf32>
    %60 = math.tanh %59 : vector<8x128xf32>
    %61 = arith.mulf %56, %60 : vector<8x128xf32>
    %62 = arith.truncf %61 : vector<8x128xf32> to vector<8x128xbf16>
    %63 = vector.extract_strided_slice %30 {offsets = [0, 0], sizes = [8, 128], strides = [1, 1]} : vector<8x512xf32> to vector<8x128xf32>
    %cst_38 = arith.constant 5.000000e-01 : f32
    %64 = vector.broadcast %cst_38 : f32 to vector<8x128xf32>
    %65 = arith.mulf %64, %63 : vector<8x128xf32>
    %66 = math.tanh %65 : vector<8x128xf32>
    %cst_39 = arith.constant 5.000000e-01 : f32
    %67 = vector.broadcast %cst_39 : f32 to vector<8x128xf32>
    %68 = arith.mulf %67, %66 : vector<8x128xf32>
    %cst_40 = arith.constant 5.000000e-01 : f32
    %69 = vector.broadcast %cst_40 : f32 to vector<8x128xf32>
    %70 = arith.addf %68, %69 : vector<8x128xf32>
    %71 = vector.extract_strided_slice %30 {offsets = [0, 128], sizes = [8, 128], strides = [1, 1]} : vector<8x512xf32> to vector<8x128xf32>
    %cst_41 = arith.constant 5.000000e-01 : f32
    %72 = vector.broadcast %cst_41 : f32 to vector<8x128xf32>
    %73 = arith.mulf %72, %71 : vector<8x128xf32>
    %74 = math.tanh %73 : vector<8x128xf32>
    %cst_42 = arith.constant 5.000000e-01 : f32
    %75 = vector.broadcast %cst_42 : f32 to vector<8x128xf32>
    %76 = arith.mulf %75, %74 : vector<8x128xf32>
    %cst_43 = arith.constant 5.000000e-01 : f32
    %77 = vector.broadcast %cst_43 : f32 to vector<8x128xf32>
    %78 = arith.addf %76, %77 : vector<8x128xf32>
    %79 = vector.extract_strided_slice %30 {offsets = [0, 256], sizes = [8, 128], strides = [1, 1]} : vector<8x512xf32> to vector<8x128xf32>
    %80 = math.tanh %79 : vector<8x128xf32>
    %81 = vector.extract_strided_slice %30 {offsets = [0, 384], sizes = [8, 128], strides = [1, 1]} : vector<8x512xf32> to vector<8x128xf32>
    %cst_44 = arith.constant 5.000000e-01 : f32
    %82 = vector.broadcast %cst_44 : f32 to vector<8x128xf32>
    %83 = arith.mulf %82, %81 : vector<8x128xf32>
    %84 = math.tanh %83 : vector<8x128xf32>
    %cst_45 = arith.constant 5.000000e-01 : f32
    %85 = vector.broadcast %cst_45 : f32 to vector<8x128xf32>
    %86 = arith.mulf %85, %84 : vector<8x128xf32>
    %cst_46 = arith.constant 5.000000e-01 : f32
    %87 = vector.broadcast %cst_46 : f32 to vector<8x128xf32>
    %88 = arith.addf %86, %87 : vector<8x128xf32>
    %89 = arith.mulf %78, %19 : vector<8x128xf32>
    %90 = arith.mulf %70, %80 : vector<8x128xf32>
    %91 = arith.addf %89, %90 : vector<8x128xf32>
    %92 = math.tanh %91 : vector<8x128xf32>
    %93 = arith.mulf %88, %92 : vector<8x128xf32>
    %94 = arith.truncf %93 : vector<8x128xf32> to vector<8x128xbf16>
    %95 = arith.index_cast %c0_i32 : i32 to index
    %c0_47 = arith.constant 0 : index
    %c0_48 = arith.constant 0 : index
    %96 = vector.load %arg21[%95, %c0_47, %c0_48] : memref<8x8x256xbf16, #tpu.memory_space<vmem>>, vector<1x8x128xbf16>
    %97 = vector.shape_cast %96 : vector<1x8x128xbf16> to vector<8x128xbf16>
    %98 = vector.shape_cast %62 : vector<8x128xbf16> to vector<1x8x128xbf16>
    tpu.vector_store %arg21[%95, %c0_47, %c0_48], %98 {strides = array<i32>} : memref<8x8x256xbf16, #tpu.memory_space<vmem>>, vector<1x8x128xbf16>,
    %99 = arith.index_cast %20 : i32 to index
    %c0_49 = arith.constant 0 : index
    %c128 = arith.constant 128 : index
    %100 = vector.load %arg21[%99, %c0_49, %c128] : memref<8x8x256xbf16, #tpu.memory_space<vmem>>, vector<1x8x128xbf16>
    %101 = vector.shape_cast %100 : vector<1x8x128xbf16> to vector<8x128xbf16>
    %102 = vector.shape_cast %94 : vector<8x128xbf16> to vector<1x8x128xbf16>
    tpu.vector_store %arg21[%99, %c0_49, %c128], %102 {strides = array<i32>} : memref<8x8x256xbf16, #tpu.memory_space<vmem>>, vector<1x8x128xbf16>,
    %c1_i32 = arith.constant 1 : i32
    %c7_i32_50 = arith.constant 7 : i32
    %103 = arith.subi %c7_i32_50, %c1_i32 : i32
    %104 = arith.index_cast %c1_i32 : i32 to index
    %c0_51 = arith.constant 0 : index
    %c0_52 = arith.constant 0 : index
    %105 = vector.load %arg19[%104, %c0_51, %c0_52] : memref<8x8x512xf32, #tpu.memory_space<vmem>>, vector<1x8x512xf32>
    %106 = vector.shape_cast %105 : vector<1x8x512xf32> to vector<8x512xf32>
    %cst_53 = arith.constant dense<0.000000e+00> : vector<8x512xf32>
    %107 = tpu.matmul %62, %16, %cst_53 {dimension_numbers = #tpu.dot_dimension_numbers<[1], [0], [0], [1], [0, 0, 1, 1], [], []>} : vector<8x128xbf16>, vector<128x512xbf16>, vector<8x512xf32> -> vector<8x512xf32>
    %108 = arith.addf %106, %107 : vector<8x512xf32>
    %109 = arith.index_cast %103 : i32 to index
    %c0_54 = arith.constant 0 : index
    %c0_55 = arith.constant 0 : index
    %110 = vector.load %arg20[%109, %c0_54, %c0_55] : memref<8x8x512xf32, #tpu.memory_space<vmem>>, vector<1x8x512xf32>
    %111 = vector.shape_cast %110 : vector<1x8x512xf32> to vector<8x512xf32>
    %cst_56 = arith.constant dense<0.000000e+00> : vector<8x512xf32>
    %112 = tpu.matmul %94, %17, %cst_56 {dimension_numbers = #tpu.dot_dimension_numbers<[1], [0], [0], [1], [0, 0, 1, 1], [], []>} : vector<8x128xbf16>, vector<128x512xbf16>, vector<8x512xf32> -> vector<8x512xf32>
    %113 = arith.addf %111, %112 : vector<8x512xf32>
    %114 = vector.extract_strided_slice %108 {offsets = [0, 0], sizes = [8, 128], strides = [1, 1]} : vector<8x512xf32> to vector<8x128xf32>
    %cst_57 = arith.constant 5.000000e-01 : f32
    %115 = vector.broadcast %cst_57 : f32 to vector<8x128xf32>
    %116 = arith.mulf %115, %114 : vector<8x128xf32>
    %117 = math.tanh %116 : vector<8x128xf32>
    %cst_58 = arith.constant 5.000000e-01 : f32
    %118 = vector.broadcast %cst_58 : f32 to vector<8x128xf32>
    %119 = arith.mulf %118, %117 : vector<8x128xf32>
    %cst_59 = arith.constant 5.000000e-01 : f32
    %120 = vector.broadcast %cst_59 : f32 to vector<8x128xf32>
    %121 = arith.addf %119, %120 : vector<8x128xf32>
    %122 = vector.extract_strided_slice %108 {offsets = [0, 128], sizes = [8, 128], strides = [1, 1]} : vector<8x512xf32> to vector<8x128xf32>
    %cst_60 = arith.constant 5.000000e-01 : f32
    %123 = vector.broadcast %cst_60 : f32 to vector<8x128xf32>
    %124 = arith.mulf %123, %122 : vector<8x128xf32>
    %125 = math.tanh %124 : vector<8x128xf32>
    %cst_61 = arith.constant 5.000000e-01 : f32
    %126 = vector.broadcast %cst_61 : f32 to vector<8x128xf32>
    %127 = arith.mulf %126, %125 : vector<8x128xf32>
    %cst_62 = arith.constant 5.000000e-01 : f32
    %128 = vector.broadcast %cst_62 : f32 to vector<8x128xf32>
    %129 = arith.addf %127, %128 : vector<8x128xf32>
    %130 = vector.extract_strided_slice %108 {offsets = [0, 256], sizes = [8, 128], strides = [1, 1]} : vector<8x512xf32> to vector<8x128xf32>
    %131 = math.tanh %130 : vector<8x128xf32>
    %132 = vector.extract_strided_slice %108 {offsets = [0, 384], sizes = [8, 128], strides = [1, 1]} : vector<8x512xf32> to vector<8x128xf32>
    %cst_63 = arith.constant 5.000000e-01 : f32
    %133 = vector.broadcast %cst_63 : f32 to vector<8x128xf32>
    %134 = arith.mulf %133, %132 : vector<8x128xf32>
    %135 = math.tanh %134 : vector<8x128xf32>
    %cst_64 = arith.constant 5.000000e-01 : f32
    %136 = vector.broadcast %cst_64 : f32 to vector<8x128xf32>
    %137 = arith.mulf %136, %135 : vector<8x128xf32>
    %cst_65 = arith.constant 5.000000e-01 : f32
    %138 = vector.broadcast %cst_65 : f32 to vector<8x128xf32>
    %139 = arith.addf %137, %138 : vector<8x128xf32>
    %140 = arith.mulf %129, %59 : vector<8x128xf32>
    %141 = arith.mulf %121, %131 : vector<8x128xf32>
    %142 = arith.addf %140, %141 : vector<8x128xf32>
    %143 = math.tanh %142 : vector<8x128xf32>
    %144 = arith.mulf %139, %143 : vector<8x128xf32>
    %145 = arith.truncf %144 : vector<8x128xf32> to vector<8x128xbf16>
    %146 = vector.extract_strided_slice %113 {offsets = [0, 0], sizes = [8, 128], strides = [1, 1]} : vector<8x512xf32> to vector<8x128xf32>
    %cst_66 = arith.constant 5.000000e-01 : f32
    %147 = vector.broadcast %cst_66 : f32 to vector<8x128xf32>
    %148 = arith.mulf %147, %146 : vector<8x128xf32>
    %149 = math.tanh %148 : vector<8x128xf32>
    %cst_67 = arith.constant 5.000000e-01 : f32
    %150 = vector.broadcast %cst_67 : f32 to vector<8x128xf32>
    %151 = arith.mulf %150, %149 : vector<8x128xf32>
    %cst_68 = arith.constant 5.000000e-01 : f32
    %152 = vector.broadcast %cst_68 : f32 to vector<8x128xf32>
    %153 = arith.addf %151, %152 : vector<8x128xf32>
    %154 = vector.extract_strided_slice %113 {offsets = [0, 128], sizes = [8, 128], strides = [1, 1]} : vector<8x512xf32> to vector<8x128xf32>
    %cst_69 = arith.constant 5.000000e-01 : f32
    %155 = vector.broadcast %cst_69 : f32 to vector<8x128xf32>
    %156 = arith.mulf %155, %154 : vector<8x128xf32>
    %157 = math.tanh %156 : vector<8x128xf32>
    %cst_70 = arith.constant 5.000000e-01 : f32
    %158 = vector.broadcast %cst_70 : f32 to vector<8x128xf32>
    %159 = arith.mulf %158, %157 : vector<8x128xf32>
    %cst_71 = arith.constant 5.000000e-01 : f32
    %160 = vector.broadcast %cst_71 : f32 to vector<8x128xf32>
    %161 = arith.addf %159, %160 : vector<8x128xf32>
    %162 = vector.extract_strided_slice %113 {offsets = [0, 256], sizes = [8, 128], strides = [1, 1]} : vector<8x512xf32> to vector<8x128xf32>
    %163 = math.tanh %162 : vector<8x128xf32>
    %164 = vector.extract_strided_slice %113 {offsets = [0, 384], sizes = [8, 128], strides = [1, 1]} : vector<8x512xf32> to vector<8x128xf32>
    %cst_72 = arith.constant 5.000000e-01 : f32
    %165 = vector.broadcast %cst_72 : f32 to vector<8x128xf32>
    %166 = arith.mulf %165, %164 : vector<8x128xf32>
    %167 = math.tanh %166 : vector<8x128xf32>
    %cst_73 = arith.constant 5.000000e-01 : f32
    %168 = vector.broadcast %cst_73 : f32 to vector<8x128xf32>
    %169 = arith.mulf %168, %167 : vector<8x128xf32>
    %cst_74 = arith.constant 5.000000e-01 : f32
    %170 = vector.broadcast %cst_74 : f32 to vector<8x128xf32>
    %171 = arith.addf %169, %170 : vector<8x128xf32>
    %172 = arith.mulf %161, %91 : vector<8x128xf32>
    %173 = arith.mulf %153, %163 : vector<8x128xf32>
    %174 = arith.addf %172, %173 : vector<8x128xf32>
    %175 = math.tanh %174 : vector<8x128xf32>
    %176 = arith.mulf %171, %175 : vector<8x128xf32>
    %177 = arith.truncf %176 : vector<8x128xf32> to vector<8x128xbf16>
    %178 = arith.index_cast %c1_i32 : i32 to index
    %c0_75 = arith.constant 0 : index
    %c0_76 = arith.constant 0 : index
    %179 = vector.load %arg21[%178, %c0_75, %c0_76] : memref<8x8x256xbf16, #tpu.memory_space<vmem>>, vector<1x8x128xbf16>
    %180 = vector.shape_cast %179 : vector<1x8x128xbf16> to vector<8x128xbf16>
    %181 = vector.shape_cast %145 : vector<8x128xbf16> to vector<1x8x128xbf16>
    tpu.vector_store %arg21[%178, %c0_75, %c0_76], %181 {strides = array<i32>} : memref<8x8x256xbf16, #tpu.memory_space<vmem>>, vector<1x8x128xbf16>,
    %182 = arith.index_cast %103 : i32 to index
    %c0_77 = arith.constant 0 : index
    %c128_78 = arith.constant 128 : index
    %183 = vector.load %arg21[%182, %c0_77, %c128_78] : memref<8x8x256xbf16, #tpu.memory_space<vmem>>, vector<1x8x128xbf16>
    %184 = vector.shape_cast %183 : vector<1x8x128xbf16> to vector<8x128xbf16>
    %185 = vector.shape_cast %177 : vector<8x128xbf16> to vector<1x8x128xbf16>
    tpu.vector_store %arg21[%182, %c0_77, %c128_78], %185 {strides = array<i32>} : memref<8x8x256xbf16, #tpu.memory_space<vmem>>, vector<1x8x128xbf16>,
    %c2_i32 = arith.constant 2 : i32
    %c7_i32_79 = arith.constant 7 : i32
    %186 = arith.subi %c7_i32_79, %c2_i32 : i32
    %187 = arith.index_cast %c2_i32 : i32 to index
    %c0_80 = arith.constant 0 : index
    %c0_81 = arith.constant 0 : index
    %188 = vector.load %arg19[%187, %c0_80, %c0_81] : memref<8x8x512xf32, #tpu.memory_space<vmem>>, vector<1x8x512xf32>
    %189 = vector.shape_cast %188 : vector<1x8x512xf32> to vector<8x512xf32>
    %cst_82 = arith.constant dense<0.000000e+00> : vector<8x512xf32>
    %190 = tpu.matmul %145, %16, %cst_82 {dimension_numbers = #tpu.dot_dimension_numbers<[1], [0], [0], [1], [0, 0, 1, 1], [], []>} : vector<8x128xbf16>, vector<128x512xbf16>, vector<8x512xf32> -> vector<8x512xf32>
    %191 = arith.addf %189, %190 : vector<8x512xf32>
    %192 = arith.index_cast %186 : i32 to index
    %c0_83 = arith.constant 0 : index
    %c0_84 = arith.constant 0 : index
    %193 = vector.load %arg20[%192, %c0_83, %c0_84] : memref<8x8x512xf32, #tpu.memory_space<vmem>>, vector<1x8x512xf32>
    %194 = vector.shape_cast %193 : vector<1x8x512xf32> to vector<8x512xf32>
    %cst_85 = arith.constant dense<0.000000e+00> : vector<8x512xf32>
    %195 = tpu.matmul %177, %17, %cst_85 {dimension_numbers = #tpu.dot_dimension_numbers<[1], [0], [0], [1], [0, 0, 1, 1], [], []>} : vector<8x128xbf16>, vector<128x512xbf16>, vector<8x512xf32> -> vector<8x512xf32>
    %196 = arith.addf %194, %195 : vector<8x512xf32>
    %197 = vector.extract_strided_slice %191 {offsets = [0, 0], sizes = [8, 128], strides = [1, 1]} : vector<8x512xf32> to vector<8x128xf32>
    %cst_86 = arith.constant 5.000000e-01 : f32
    %198 = vector.broadcast %cst_86 : f32 to vector<8x128xf32>
    %199 = arith.mulf %198, %197 : vector<8x128xf32>
    %200 = math.tanh %199 : vector<8x128xf32>
    %cst_87 = arith.constant 5.000000e-01 : f32
    %201 = vector.broadcast %cst_87 : f32 to vector<8x128xf32>
    %202 = arith.mulf %201, %200 : vector<8x128xf32>
    %cst_88 = arith.constant 5.000000e-01 : f32
    %203 = vector.broadcast %cst_88 : f32 to vector<8x128xf32>
    %204 = arith.addf %202, %203 : vector<8x128xf32>
    %205 = vector.extract_strided_slice %191 {offsets = [0, 128], sizes = [8, 128], strides = [1, 1]} : vector<8x512xf32> to vector<8x128xf32>
    %cst_89 = arith.constant 5.000000e-01 : f32
    %206 = vector.broadcast %cst_89 : f32 to vector<8x128xf32>
    %207 = arith.mulf %206, %205 : vector<8x128xf32>
    %208 = math.tanh %207 : vector<8x128xf32>
    %cst_90 = arith.constant 5.000000e-01 : f32
    %209 = vector.broadcast %cst_90 : f32 to vector<8x128xf32>
    %210 = arith.mulf %209, %208 : vector<8x128xf32>
    %cst_91 = arith.constant 5.000000e-01 : f32
    %211 = vector.broadcast %cst_91 : f32 to vector<8x128xf32>
    %212 = arith.addf %210, %211 : vector<8x128xf32>
    %213 = vector.extract_strided_slice %191 {offsets = [0, 256], sizes = [8, 128], strides = [1, 1]} : vector<8x512xf32> to vector<8x128xf32>
    %214 = math.tanh %213 : vector<8x128xf32>
    %215 = vector.extract_strided_slice %191 {offsets = [0, 384], sizes = [8, 128], strides = [1, 1]} : vector<8x512xf32> to vector<8x128xf32>
    %cst_92 = arith.constant 5.000000e-01 : f32
    %216 = vector.broadcast %cst_92 : f32 to vector<8x128xf32>
    %217 = arith.mulf %216, %215 : vector<8x128xf32>
    %218 = math.tanh %217 : vector<8x128xf32>
    %cst_93 = arith.constant 5.000000e-01 : f32
    %219 = vector.broadcast %cst_93 : f32 to vector<8x128xf32>
    %220 = arith.mulf %219, %218 : vector<8x128xf32>
    %cst_94 = arith.constant 5.000000e-01 : f32
    %221 = vector.broadcast %cst_94 : f32 to vector<8x128xf32>
    %222 = arith.addf %220, %221 : vector<8x128xf32>
    %223 = arith.mulf %212, %142 : vector<8x128xf32>
    %224 = arith.mulf %204, %214 : vector<8x128xf32>
    %225 = arith.addf %223, %224 : vector<8x128xf32>
    %226 = math.tanh %225 : vector<8x128xf32>
    %227 = arith.mulf %222, %226 : vector<8x128xf32>
    %228 = arith.truncf %227 : vector<8x128xf32> to vector<8x128xbf16>
    %229 = vector.extract_strided_slice %196 {offsets = [0, 0], sizes = [8, 128], strides = [1, 1]} : vector<8x512xf32> to vector<8x128xf32>
    %cst_95 = arith.constant 5.000000e-01 : f32
    %230 = vector.broadcast %cst_95 : f32 to vector<8x128xf32>
    %231 = arith.mulf %230, %229 : vector<8x128xf32>
    %232 = math.tanh %231 : vector<8x128xf32>
    %cst_96 = arith.constant 5.000000e-01 : f32
    %233 = vector.broadcast %cst_96 : f32 to vector<8x128xf32>
    %234 = arith.mulf %233, %232 : vector<8x128xf32>
    %cst_97 = arith.constant 5.000000e-01 : f32
    %235 = vector.broadcast %cst_97 : f32 to vector<8x128xf32>
    %236 = arith.addf %234, %235 : vector<8x128xf32>
    %237 = vector.extract_strided_slice %196 {offsets = [0, 128], sizes = [8, 128], strides = [1, 1]} : vector<8x512xf32> to vector<8x128xf32>
    %cst_98 = arith.constant 5.000000e-01 : f32
    %238 = vector.broadcast %cst_98 : f32 to vector<8x128xf32>
    %239 = arith.mulf %238, %237 : vector<8x128xf32>
    %240 = math.tanh %239 : vector<8x128xf32>
    %cst_99 = arith.constant 5.000000e-01 : f32
    %241 = vector.broadcast %cst_99 : f32 to vector<8x128xf32>
    %242 = arith.mulf %241, %240 : vector<8x128xf32>
    %cst_100 = arith.constant 5.000000e-01 : f32
    %243 = vector.broadcast %cst_100 : f32 to vector<8x128xf32>
    %244 = arith.addf %242, %243 : vector<8x128xf32>
    %245 = vector.extract_strided_slice %196 {offsets = [0, 256], sizes = [8, 128], strides = [1, 1]} : vector<8x512xf32> to vector<8x128xf32>
    %246 = math.tanh %245 : vector<8x128xf32>
    %247 = vector.extract_strided_slice %196 {offsets = [0, 384], sizes = [8, 128], strides = [1, 1]} : vector<8x512xf32> to vector<8x128xf32>
    %cst_101 = arith.constant 5.000000e-01 : f32
    %248 = vector.broadcast %cst_101 : f32 to vector<8x128xf32>
    %249 = arith.mulf %248, %247 : vector<8x128xf32>
    %250 = math.tanh %249 : vector<8x128xf32>
    %cst_102 = arith.constant 5.000000e-01 : f32
    %251 = vector.broadcast %cst_102 : f32 to vector<8x128xf32>
    %252 = arith.mulf %251, %250 : vector<8x128xf32>
    %cst_103 = arith.constant 5.000000e-01 : f32
    %253 = vector.broadcast %cst_103 : f32 to vector<8x128xf32>
    %254 = arith.addf %252, %253 : vector<8x128xf32>
    %255 = arith.mulf %244, %174 : vector<8x128xf32>
    %256 = arith.mulf %236, %246 : vector<8x128xf32>
    %257 = arith.addf %255, %256 : vector<8x128xf32>
    %258 = math.tanh %257 : vector<8x128xf32>
    %259 = arith.mulf %254, %258 : vector<8x128xf32>
    %260 = arith.truncf %259 : vector<8x128xf32> to vector<8x128xbf16>
    %261 = arith.index_cast %c2_i32 : i32 to index
    %c0_104 = arith.constant 0 : index
    %c0_105 = arith.constant 0 : index
    %262 = vector.load %arg21[%261, %c0_104, %c0_105] : memref<8x8x256xbf16, #tpu.memory_space<vmem>>, vector<1x8x128xbf16>
    %263 = vector.shape_cast %262 : vector<1x8x128xbf16> to vector<8x128xbf16>
    %264 = vector.shape_cast %228 : vector<8x128xbf16> to vector<1x8x128xbf16>
    tpu.vector_store %arg21[%261, %c0_104, %c0_105], %264 {strides = array<i32>} : memref<8x8x256xbf16, #tpu.memory_space<vmem>>, vector<1x8x128xbf16>,
    %265 = arith.index_cast %186 : i32 to index
    %c0_106 = arith.constant 0 : index
    %c128_107 = arith.constant 128 : index
    %266 = vector.load %arg21[%265, %c0_106, %c128_107] : memref<8x8x256xbf16, #tpu.memory_space<vmem>>, vector<1x8x128xbf16>
    %267 = vector.shape_cast %266 : vector<1x8x128xbf16> to vector<8x128xbf16>
    %268 = vector.shape_cast %260 : vector<8x128xbf16> to vector<1x8x128xbf16>
    tpu.vector_store %arg21[%265, %c0_106, %c128_107], %268 {strides = array<i32>} : memref<8x8x256xbf16, #tpu.memory_space<vmem>>, vector<1x8x128xbf16>,
    %c3_i32 = arith.constant 3 : i32
    %c7_i32_108 = arith.constant 7 : i32
    %269 = arith.subi %c7_i32_108, %c3_i32 : i32
    %270 = arith.index_cast %c3_i32 : i32 to index
    %c0_109 = arith.constant 0 : index
    %c0_110 = arith.constant 0 : index
    %271 = vector.load %arg19[%270, %c0_109, %c0_110] : memref<8x8x512xf32, #tpu.memory_space<vmem>>, vector<1x8x512xf32>
    %272 = vector.shape_cast %271 : vector<1x8x512xf32> to vector<8x512xf32>
    %cst_111 = arith.constant dense<0.000000e+00> : vector<8x512xf32>
    %273 = tpu.matmul %228, %16, %cst_111 {dimension_numbers = #tpu.dot_dimension_numbers<[1], [0], [0], [1], [0, 0, 1, 1], [], []>} : vector<8x128xbf16>, vector<128x512xbf16>, vector<8x512xf32> -> vector<8x512xf32>
    %274 = arith.addf %272, %273 : vector<8x512xf32>
    %275 = arith.index_cast %269 : i32 to index
    %c0_112 = arith.constant 0 : index
    %c0_113 = arith.constant 0 : index
    %276 = vector.load %arg20[%275, %c0_112, %c0_113] : memref<8x8x512xf32, #tpu.memory_space<vmem>>, vector<1x8x512xf32>
    %277 = vector.shape_cast %276 : vector<1x8x512xf32> to vector<8x512xf32>
    %cst_114 = arith.constant dense<0.000000e+00> : vector<8x512xf32>
    %278 = tpu.matmul %260, %17, %cst_114 {dimension_numbers = #tpu.dot_dimension_numbers<[1], [0], [0], [1], [0, 0, 1, 1], [], []>} : vector<8x128xbf16>, vector<128x512xbf16>, vector<8x512xf32> -> vector<8x512xf32>
    %279 = arith.addf %277, %278 : vector<8x512xf32>
    %280 = vector.extract_strided_slice %274 {offsets = [0, 0], sizes = [8, 128], strides = [1, 1]} : vector<8x512xf32> to vector<8x128xf32>
    %cst_115 = arith.constant 5.000000e-01 : f32
    %281 = vector.broadcast %cst_115 : f32 to vector<8x128xf32>
    %282 = arith.mulf %281, %280 : vector<8x128xf32>
    %283 = math.tanh %282 : vector<8x128xf32>
    %cst_116 = arith.constant 5.000000e-01 : f32
    %284 = vector.broadcast %cst_116 : f32 to vector<8x128xf32>
    %285 = arith.mulf %284, %283 : vector<8x128xf32>
    %cst_117 = arith.constant 5.000000e-01 : f32
    %286 = vector.broadcast %cst_117 : f32 to vector<8x128xf32>
    %287 = arith.addf %285, %286 : vector<8x128xf32>
    %288 = vector.extract_strided_slice %274 {offsets = [0, 128], sizes = [8, 128], strides = [1, 1]} : vector<8x512xf32> to vector<8x128xf32>
    %cst_118 = arith.constant 5.000000e-01 : f32
    %289 = vector.broadcast %cst_118 : f32 to vector<8x128xf32>
    %290 = arith.mulf %289, %288 : vector<8x128xf32>
    %291 = math.tanh %290 : vector<8x128xf32>
    %cst_119 = arith.constant 5.000000e-01 : f32
    %292 = vector.broadcast %cst_119 : f32 to vector<8x128xf32>
    %293 = arith.mulf %292, %291 : vector<8x128xf32>
    %cst_120 = arith.constant 5.000000e-01 : f32
    %294 = vector.broadcast %cst_120 : f32 to vector<8x128xf32>
    %295 = arith.addf %293, %294 : vector<8x128xf32>
    %296 = vector.extract_strided_slice %274 {offsets = [0, 256], sizes = [8, 128], strides = [1, 1]} : vector<8x512xf32> to vector<8x128xf32>
    %297 = math.tanh %296 : vector<8x128xf32>
    %298 = vector.extract_strided_slice %274 {offsets = [0, 384], sizes = [8, 128], strides = [1, 1]} : vector<8x512xf32> to vector<8x128xf32>
    %cst_121 = arith.constant 5.000000e-01 : f32
    %299 = vector.broadcast %cst_121 : f32 to vector<8x128xf32>
    %300 = arith.mulf %299, %298 : vector<8x128xf32>
    %301 = math.tanh %300 : vector<8x128xf32>
    %cst_122 = arith.constant 5.000000e-01 : f32
    %302 = vector.broadcast %cst_122 : f32 to vector<8x128xf32>
    %303 = arith.mulf %302, %301 : vector<8x128xf32>
    %cst_123 = arith.constant 5.000000e-01 : f32
    %304 = vector.broadcast %cst_123 : f32 to vector<8x128xf32>
    %305 = arith.addf %303, %304 : vector<8x128xf32>
    %306 = arith.mulf %295, %225 : vector<8x128xf32>
    %307 = arith.mulf %287, %297 : vector<8x128xf32>
    %308 = arith.addf %306, %307 : vector<8x128xf32>
    %309 = math.tanh %308 : vector<8x128xf32>
    %310 = arith.mulf %305, %309 : vector<8x128xf32>
    %311 = arith.truncf %310 : vector<8x128xf32> to vector<8x128xbf16>
    %312 = vector.extract_strided_slice %279 {offsets = [0, 0], sizes = [8, 128], strides = [1, 1]} : vector<8x512xf32> to vector<8x128xf32>
    %cst_124 = arith.constant 5.000000e-01 : f32
    %313 = vector.broadcast %cst_124 : f32 to vector<8x128xf32>
    %314 = arith.mulf %313, %312 : vector<8x128xf32>
    %315 = math.tanh %314 : vector<8x128xf32>
    %cst_125 = arith.constant 5.000000e-01 : f32
    %316 = vector.broadcast %cst_125 : f32 to vector<8x128xf32>
    %317 = arith.mulf %316, %315 : vector<8x128xf32>
    %cst_126 = arith.constant 5.000000e-01 : f32
    %318 = vector.broadcast %cst_126 : f32 to vector<8x128xf32>
    %319 = arith.addf %317, %318 : vector<8x128xf32>
    %320 = vector.extract_strided_slice %279 {offsets = [0, 128], sizes = [8, 128], strides = [1, 1]} : vector<8x512xf32> to vector<8x128xf32>
    %cst_127 = arith.constant 5.000000e-01 : f32
    %321 = vector.broadcast %cst_127 : f32 to vector<8x128xf32>
    %322 = arith.mulf %321, %320 : vector<8x128xf32>
    %323 = math.tanh %322 : vector<8x128xf32>
    %cst_128 = arith.constant 5.000000e-01 : f32
    %324 = vector.broadcast %cst_128 : f32 to vector<8x128xf32>
    %325 = arith.mulf %324, %323 : vector<8x128xf32>
    %cst_129 = arith.constant 5.000000e-01 : f32
    %326 = vector.broadcast %cst_129 : f32 to vector<8x128xf32>
    %327 = arith.addf %325, %326 : vector<8x128xf32>
    %328 = vector.extract_strided_slice %279 {offsets = [0, 256], sizes = [8, 128], strides = [1, 1]} : vector<8x512xf32> to vector<8x128xf32>
    %329 = math.tanh %328 : vector<8x128xf32>
    %330 = vector.extract_strided_slice %279 {offsets = [0, 384], sizes = [8, 128], strides = [1, 1]} : vector<8x512xf32> to vector<8x128xf32>
    %cst_130 = arith.constant 5.000000e-01 : f32
    %331 = vector.broadcast %cst_130 : f32 to vector<8x128xf32>
    %332 = arith.mulf %331, %330 : vector<8x128xf32>
    %333 = math.tanh %332 : vector<8x128xf32>
    %cst_131 = arith.constant 5.000000e-01 : f32
    %334 = vector.broadcast %cst_131 : f32 to vector<8x128xf32>
    %335 = arith.mulf %334, %333 : vector<8x128xf32>
    %cst_132 = arith.constant 5.000000e-01 : f32
    %336 = vector.broadcast %cst_132 : f32 to vector<8x128xf32>
    %337 = arith.addf %335, %336 : vector<8x128xf32>
    %338 = arith.mulf %327, %257 : vector<8x128xf32>
    %339 = arith.mulf %319, %329 : vector<8x128xf32>
    %340 = arith.addf %338, %339 : vector<8x128xf32>
    %341 = math.tanh %340 : vector<8x128xf32>
    %342 = arith.mulf %337, %341 : vector<8x128xf32>
    %343 = arith.truncf %342 : vector<8x128xf32> to vector<8x128xbf16>
    %344 = arith.index_cast %c3_i32 : i32 to index
    %c0_133 = arith.constant 0 : index
    %c0_134 = arith.constant 0 : index
    %345 = vector.load %arg21[%344, %c0_133, %c0_134] : memref<8x8x256xbf16, #tpu.memory_space<vmem>>, vector<1x8x128xbf16>
    %346 = vector.shape_cast %345 : vector<1x8x128xbf16> to vector<8x128xbf16>
    %347 = vector.shape_cast %311 : vector<8x128xbf16> to vector<1x8x128xbf16>
    tpu.vector_store %arg21[%344, %c0_133, %c0_134], %347 {strides = array<i32>} : memref<8x8x256xbf16, #tpu.memory_space<vmem>>, vector<1x8x128xbf16>,
    %348 = arith.index_cast %269 : i32 to index
    %c0_135 = arith.constant 0 : index
    %c128_136 = arith.constant 128 : index
    %349 = vector.load %arg21[%348, %c0_135, %c128_136] : memref<8x8x256xbf16, #tpu.memory_space<vmem>>, vector<1x8x128xbf16>
    %350 = vector.shape_cast %349 : vector<1x8x128xbf16> to vector<8x128xbf16>
    %351 = vector.shape_cast %343 : vector<8x128xbf16> to vector<1x8x128xbf16>
    tpu.vector_store %arg21[%348, %c0_135, %c128_136], %351 {strides = array<i32>} : memref<8x8x256xbf16, #tpu.memory_space<vmem>>, vector<1x8x128xbf16>,
    %c4_i32 = arith.constant 4 : i32
    %c7_i32_137 = arith.constant 7 : i32
    %352 = arith.subi %c7_i32_137, %c4_i32 : i32
    %353 = arith.index_cast %c4_i32 : i32 to index
    %c0_138 = arith.constant 0 : index
    %c0_139 = arith.constant 0 : index
    %354 = vector.load %arg19[%353, %c0_138, %c0_139] : memref<8x8x512xf32, #tpu.memory_space<vmem>>, vector<1x8x512xf32>
    %355 = vector.shape_cast %354 : vector<1x8x512xf32> to vector<8x512xf32>
    %cst_140 = arith.constant dense<0.000000e+00> : vector<8x512xf32>
    %356 = tpu.matmul %311, %16, %cst_140 {dimension_numbers = #tpu.dot_dimension_numbers<[1], [0], [0], [1], [0, 0, 1, 1], [], []>} : vector<8x128xbf16>, vector<128x512xbf16>, vector<8x512xf32> -> vector<8x512xf32>
    %357 = arith.addf %355, %356 : vector<8x512xf32>
    %358 = arith.index_cast %352 : i32 to index
    %c0_141 = arith.constant 0 : index
    %c0_142 = arith.constant 0 : index
    %359 = vector.load %arg20[%358, %c0_141, %c0_142] : memref<8x8x512xf32, #tpu.memory_space<vmem>>, vector<1x8x512xf32>
    %360 = vector.shape_cast %359 : vector<1x8x512xf32> to vector<8x512xf32>
    %cst_143 = arith.constant dense<0.000000e+00> : vector<8x512xf32>
    %361 = tpu.matmul %343, %17, %cst_143 {dimension_numbers = #tpu.dot_dimension_numbers<[1], [0], [0], [1], [0, 0, 1, 1], [], []>} : vector<8x128xbf16>, vector<128x512xbf16>, vector<8x512xf32> -> vector<8x512xf32>
    %362 = arith.addf %360, %361 : vector<8x512xf32>
    %363 = vector.extract_strided_slice %357 {offsets = [0, 0], sizes = [8, 128], strides = [1, 1]} : vector<8x512xf32> to vector<8x128xf32>
    %cst_144 = arith.constant 5.000000e-01 : f32
    %364 = vector.broadcast %cst_144 : f32 to vector<8x128xf32>
    %365 = arith.mulf %364, %363 : vector<8x128xf32>
    %366 = math.tanh %365 : vector<8x128xf32>
    %cst_145 = arith.constant 5.000000e-01 : f32
    %367 = vector.broadcast %cst_145 : f32 to vector<8x128xf32>
    %368 = arith.mulf %367, %366 : vector<8x128xf32>
    %cst_146 = arith.constant 5.000000e-01 : f32
    %369 = vector.broadcast %cst_146 : f32 to vector<8x128xf32>
    %370 = arith.addf %368, %369 : vector<8x128xf32>
    %371 = vector.extract_strided_slice %357 {offsets = [0, 128], sizes = [8, 128], strides = [1, 1]} : vector<8x512xf32> to vector<8x128xf32>
    %cst_147 = arith.constant 5.000000e-01 : f32
    %372 = vector.broadcast %cst_147 : f32 to vector<8x128xf32>
    %373 = arith.mulf %372, %371 : vector<8x128xf32>
    %374 = math.tanh %373 : vector<8x128xf32>
    %cst_148 = arith.constant 5.000000e-01 : f32
    %375 = vector.broadcast %cst_148 : f32 to vector<8x128xf32>
    %376 = arith.mulf %375, %374 : vector<8x128xf32>
    %cst_149 = arith.constant 5.000000e-01 : f32
    %377 = vector.broadcast %cst_149 : f32 to vector<8x128xf32>
    %378 = arith.addf %376, %377 : vector<8x128xf32>
    %379 = vector.extract_strided_slice %357 {offsets = [0, 256], sizes = [8, 128], strides = [1, 1]} : vector<8x512xf32> to vector<8x128xf32>
    %380 = math.tanh %379 : vector<8x128xf32>
    %381 = vector.extract_strided_slice %357 {offsets = [0, 384], sizes = [8, 128], strides = [1, 1]} : vector<8x512xf32> to vector<8x128xf32>
    %cst_150 = arith.constant 5.000000e-01 : f32
    %382 = vector.broadcast %cst_150 : f32 to vector<8x128xf32>
    %383 = arith.mulf %382, %381 : vector<8x128xf32>
    %384 = math.tanh %383 : vector<8x128xf32>
    %cst_151 = arith.constant 5.000000e-01 : f32
    %385 = vector.broadcast %cst_151 : f32 to vector<8x128xf32>
    %386 = arith.mulf %385, %384 : vector<8x128xf32>
    %cst_152 = arith.constant 5.000000e-01 : f32
    %387 = vector.broadcast %cst_152 : f32 to vector<8x128xf32>
    %388 = arith.addf %386, %387 : vector<8x128xf32>
    %389 = arith.mulf %378, %308 : vector<8x128xf32>
    %390 = arith.mulf %370, %380 : vector<8x128xf32>
    %391 = arith.addf %389, %390 : vector<8x128xf32>
    %392 = math.tanh %391 : vector<8x128xf32>
    %393 = arith.mulf %388, %392 : vector<8x128xf32>
    %394 = arith.truncf %393 : vector<8x128xf32> to vector<8x128xbf16>
    %395 = vector.extract_strided_slice %362 {offsets = [0, 0], sizes = [8, 128], strides = [1, 1]} : vector<8x512xf32> to vector<8x128xf32>
    %cst_153 = arith.constant 5.000000e-01 : f32
    %396 = vector.broadcast %cst_153 : f32 to vector<8x128xf32>
    %397 = arith.mulf %396, %395 : vector<8x128xf32>
    %398 = math.tanh %397 : vector<8x128xf32>
    %cst_154 = arith.constant 5.000000e-01 : f32
    %399 = vector.broadcast %cst_154 : f32 to vector<8x128xf32>
    %400 = arith.mulf %399, %398 : vector<8x128xf32>
    %cst_155 = arith.constant 5.000000e-01 : f32
    %401 = vector.broadcast %cst_155 : f32 to vector<8x128xf32>
    %402 = arith.addf %400, %401 : vector<8x128xf32>
    %403 = vector.extract_strided_slice %362 {offsets = [0, 128], sizes = [8, 128], strides = [1, 1]} : vector<8x512xf32> to vector<8x128xf32>
    %cst_156 = arith.constant 5.000000e-01 : f32
    %404 = vector.broadcast %cst_156 : f32 to vector<8x128xf32>
    %405 = arith.mulf %404, %403 : vector<8x128xf32>
    %406 = math.tanh %405 : vector<8x128xf32>
    %cst_157 = arith.constant 5.000000e-01 : f32
    %407 = vector.broadcast %cst_157 : f32 to vector<8x128xf32>
    %408 = arith.mulf %407, %406 : vector<8x128xf32>
    %cst_158 = arith.constant 5.000000e-01 : f32
    %409 = vector.broadcast %cst_158 : f32 to vector<8x128xf32>
    %410 = arith.addf %408, %409 : vector<8x128xf32>
    %411 = vector.extract_strided_slice %362 {offsets = [0, 256], sizes = [8, 128], strides = [1, 1]} : vector<8x512xf32> to vector<8x128xf32>
    %412 = math.tanh %411 : vector<8x128xf32>
    %413 = vector.extract_strided_slice %362 {offsets = [0, 384], sizes = [8, 128], strides = [1, 1]} : vector<8x512xf32> to vector<8x128xf32>
    %cst_159 = arith.constant 5.000000e-01 : f32
    %414 = vector.broadcast %cst_159 : f32 to vector<8x128xf32>
    %415 = arith.mulf %414, %413 : vector<8x128xf32>
    %416 = math.tanh %415 : vector<8x128xf32>
    %cst_160 = arith.constant 5.000000e-01 : f32
    %417 = vector.broadcast %cst_160 : f32 to vector<8x128xf32>
    %418 = arith.mulf %417, %416 : vector<8x128xf32>
    %cst_161 = arith.constant 5.000000e-01 : f32
    %419 = vector.broadcast %cst_161 : f32 to vector<8x128xf32>
    %420 = arith.addf %418, %419 : vector<8x128xf32>
    %421 = arith.mulf %410, %340 : vector<8x128xf32>
    %422 = arith.mulf %402, %412 : vector<8x128xf32>
    %423 = arith.addf %421, %422 : vector<8x128xf32>
    %424 = math.tanh %423 : vector<8x128xf32>
    %425 = arith.mulf %420, %424 : vector<8x128xf32>
    %426 = arith.truncf %425 : vector<8x128xf32> to vector<8x128xbf16>
    %427 = arith.index_cast %c4_i32 : i32 to index
    %c0_162 = arith.constant 0 : index
    %c0_163 = arith.constant 0 : index
    %428 = vector.load %arg21[%427, %c0_162, %c0_163] : memref<8x8x256xbf16, #tpu.memory_space<vmem>>, vector<1x8x128xbf16>
    %429 = vector.shape_cast %428 : vector<1x8x128xbf16> to vector<8x128xbf16>
    %430 = vector.shape_cast %394 : vector<8x128xbf16> to vector<1x8x128xbf16>
    tpu.vector_store %arg21[%427, %c0_162, %c0_163], %430 {strides = array<i32>} : memref<8x8x256xbf16, #tpu.memory_space<vmem>>, vector<1x8x128xbf16>,
    %431 = arith.index_cast %352 : i32 to index
    %c0_164 = arith.constant 0 : index
    %c128_165 = arith.constant 128 : index
    %432 = vector.load %arg21[%431, %c0_164, %c128_165] : memref<8x8x256xbf16, #tpu.memory_space<vmem>>, vector<1x8x128xbf16>
    %433 = vector.shape_cast %432 : vector<1x8x128xbf16> to vector<8x128xbf16>
    %434 = vector.shape_cast %426 : vector<8x128xbf16> to vector<1x8x128xbf16>
    tpu.vector_store %arg21[%431, %c0_164, %c128_165], %434 {strides = array<i32>} : memref<8x8x256xbf16, #tpu.memory_space<vmem>>, vector<1x8x128xbf16>,
    %c5_i32 = arith.constant 5 : i32
    %c7_i32_166 = arith.constant 7 : i32
    %435 = arith.subi %c7_i32_166, %c5_i32 : i32
    %436 = arith.index_cast %c5_i32 : i32 to index
    %c0_167 = arith.constant 0 : index
    %c0_168 = arith.constant 0 : index
    %437 = vector.load %arg19[%436, %c0_167, %c0_168] : memref<8x8x512xf32, #tpu.memory_space<vmem>>, vector<1x8x512xf32>
    %438 = vector.shape_cast %437 : vector<1x8x512xf32> to vector<8x512xf32>
    %cst_169 = arith.constant dense<0.000000e+00> : vector<8x512xf32>
    %439 = tpu.matmul %394, %16, %cst_169 {dimension_numbers = #tpu.dot_dimension_numbers<[1], [0], [0], [1], [0, 0, 1, 1], [], []>} : vector<8x128xbf16>, vector<128x512xbf16>, vector<8x512xf32> -> vector<8x512xf32>
    %440 = arith.addf %438, %439 : vector<8x512xf32>
    %441 = arith.index_cast %435 : i32 to index
    %c0_170 = arith.constant 0 : index
    %c0_171 = arith.constant 0 : index
    %442 = vector.load %arg20[%441, %c0_170, %c0_171] : memref<8x8x512xf32, #tpu.memory_space<vmem>>, vector<1x8x512xf32>
    %443 = vector.shape_cast %442 : vector<1x8x512xf32> to vector<8x512xf32>
    %cst_172 = arith.constant dense<0.000000e+00> : vector<8x512xf32>
    %444 = tpu.matmul %426, %17, %cst_172 {dimension_numbers = #tpu.dot_dimension_numbers<[1], [0], [0], [1], [0, 0, 1, 1], [], []>} : vector<8x128xbf16>, vector<128x512xbf16>, vector<8x512xf32> -> vector<8x512xf32>
    %445 = arith.addf %443, %444 : vector<8x512xf32>
    %446 = vector.extract_strided_slice %440 {offsets = [0, 0], sizes = [8, 128], strides = [1, 1]} : vector<8x512xf32> to vector<8x128xf32>
    %cst_173 = arith.constant 5.000000e-01 : f32
    %447 = vector.broadcast %cst_173 : f32 to vector<8x128xf32>
    %448 = arith.mulf %447, %446 : vector<8x128xf32>
    %449 = math.tanh %448 : vector<8x128xf32>
    %cst_174 = arith.constant 5.000000e-01 : f32
    %450 = vector.broadcast %cst_174 : f32 to vector<8x128xf32>
    %451 = arith.mulf %450, %449 : vector<8x128xf32>
    %cst_175 = arith.constant 5.000000e-01 : f32
    %452 = vector.broadcast %cst_175 : f32 to vector<8x128xf32>
    %453 = arith.addf %451, %452 : vector<8x128xf32>
    %454 = vector.extract_strided_slice %440 {offsets = [0, 128], sizes = [8, 128], strides = [1, 1]} : vector<8x512xf32> to vector<8x128xf32>
    %cst_176 = arith.constant 5.000000e-01 : f32
    %455 = vector.broadcast %cst_176 : f32 to vector<8x128xf32>
    %456 = arith.mulf %455, %454 : vector<8x128xf32>
    %457 = math.tanh %456 : vector<8x128xf32>
    %cst_177 = arith.constant 5.000000e-01 : f32
    %458 = vector.broadcast %cst_177 : f32 to vector<8x128xf32>
    %459 = arith.mulf %458, %457 : vector<8x128xf32>
    %cst_178 = arith.constant 5.000000e-01 : f32
    %460 = vector.broadcast %cst_178 : f32 to vector<8x128xf32>
    %461 = arith.addf %459, %460 : vector<8x128xf32>
    %462 = vector.extract_strided_slice %440 {offsets = [0, 256], sizes = [8, 128], strides = [1, 1]} : vector<8x512xf32> to vector<8x128xf32>
    %463 = math.tanh %462 : vector<8x128xf32>
    %464 = vector.extract_strided_slice %440 {offsets = [0, 384], sizes = [8, 128], strides = [1, 1]} : vector<8x512xf32> to vector<8x128xf32>
    %cst_179 = arith.constant 5.000000e-01 : f32
    %465 = vector.broadcast %cst_179 : f32 to vector<8x128xf32>
    %466 = arith.mulf %465, %464 : vector<8x128xf32>
    %467 = math.tanh %466 : vector<8x128xf32>
    %cst_180 = arith.constant 5.000000e-01 : f32
    %468 = vector.broadcast %cst_180 : f32 to vector<8x128xf32>
    %469 = arith.mulf %468, %467 : vector<8x128xf32>
    %cst_181 = arith.constant 5.000000e-01 : f32
    %470 = vector.broadcast %cst_181 : f32 to vector<8x128xf32>
    %471 = arith.addf %469, %470 : vector<8x128xf32>
    %472 = arith.mulf %461, %391 : vector<8x128xf32>
    %473 = arith.mulf %453, %463 : vector<8x128xf32>
    %474 = arith.addf %472, %473 : vector<8x128xf32>
    %475 = math.tanh %474 : vector<8x128xf32>
    %476 = arith.mulf %471, %475 : vector<8x128xf32>
    %477 = arith.truncf %476 : vector<8x128xf32> to vector<8x128xbf16>
    %478 = vector.extract_strided_slice %445 {offsets = [0, 0], sizes = [8, 128], strides = [1, 1]} : vector<8x512xf32> to vector<8x128xf32>
    %cst_182 = arith.constant 5.000000e-01 : f32
    %479 = vector.broadcast %cst_182 : f32 to vector<8x128xf32>
    %480 = arith.mulf %479, %478 : vector<8x128xf32>
    %481 = math.tanh %480 : vector<8x128xf32>
    %cst_183 = arith.constant 5.000000e-01 : f32
    %482 = vector.broadcast %cst_183 : f32 to vector<8x128xf32>
    %483 = arith.mulf %482, %481 : vector<8x128xf32>
    %cst_184 = arith.constant 5.000000e-01 : f32
    %484 = vector.broadcast %cst_184 : f32 to vector<8x128xf32>
    %485 = arith.addf %483, %484 : vector<8x128xf32>
    %486 = vector.extract_strided_slice %445 {offsets = [0, 128], sizes = [8, 128], strides = [1, 1]} : vector<8x512xf32> to vector<8x128xf32>
    %cst_185 = arith.constant 5.000000e-01 : f32
    %487 = vector.broadcast %cst_185 : f32 to vector<8x128xf32>
    %488 = arith.mulf %487, %486 : vector<8x128xf32>
    %489 = math.tanh %488 : vector<8x128xf32>
    %cst_186 = arith.constant 5.000000e-01 : f32
    %490 = vector.broadcast %cst_186 : f32 to vector<8x128xf32>
    %491 = arith.mulf %490, %489 : vector<8x128xf32>
    %cst_187 = arith.constant 5.000000e-01 : f32
    %492 = vector.broadcast %cst_187 : f32 to vector<8x128xf32>
    %493 = arith.addf %491, %492 : vector<8x128xf32>
    %494 = vector.extract_strided_slice %445 {offsets = [0, 256], sizes = [8, 128], strides = [1, 1]} : vector<8x512xf32> to vector<8x128xf32>
    %495 = math.tanh %494 : vector<8x128xf32>
    %496 = vector.extract_strided_slice %445 {offsets = [0, 384], sizes = [8, 128], strides = [1, 1]} : vector<8x512xf32> to vector<8x128xf32>
    %cst_188 = arith.constant 5.000000e-01 : f32
    %497 = vector.broadcast %cst_188 : f32 to vector<8x128xf32>
    %498 = arith.mulf %497, %496 : vector<8x128xf32>
    %499 = math.tanh %498 : vector<8x128xf32>
    %cst_189 = arith.constant 5.000000e-01 : f32
    %500 = vector.broadcast %cst_189 : f32 to vector<8x128xf32>
    %501 = arith.mulf %500, %499 : vector<8x128xf32>
    %cst_190 = arith.constant 5.000000e-01 : f32
    %502 = vector.broadcast %cst_190 : f32 to vector<8x128xf32>
    %503 = arith.addf %501, %502 : vector<8x128xf32>
    %504 = arith.mulf %493, %423 : vector<8x128xf32>
    %505 = arith.mulf %485, %495 : vector<8x128xf32>
    %506 = arith.addf %504, %505 : vector<8x128xf32>
    %507 = math.tanh %506 : vector<8x128xf32>
    %508 = arith.mulf %503, %507 : vector<8x128xf32>
    %509 = arith.truncf %508 : vector<8x128xf32> to vector<8x128xbf16>
    %510 = arith.index_cast %c5_i32 : i32 to index
    %c0_191 = arith.constant 0 : index
    %c0_192 = arith.constant 0 : index
    %511 = vector.load %arg21[%510, %c0_191, %c0_192] : memref<8x8x256xbf16, #tpu.memory_space<vmem>>, vector<1x8x128xbf16>
    %512 = vector.shape_cast %511 : vector<1x8x128xbf16> to vector<8x128xbf16>
    %513 = vector.shape_cast %477 : vector<8x128xbf16> to vector<1x8x128xbf16>
    tpu.vector_store %arg21[%510, %c0_191, %c0_192], %513 {strides = array<i32>} : memref<8x8x256xbf16, #tpu.memory_space<vmem>>, vector<1x8x128xbf16>,
    %514 = arith.index_cast %435 : i32 to index
    %c0_193 = arith.constant 0 : index
    %c128_194 = arith.constant 128 : index
    %515 = vector.load %arg21[%514, %c0_193, %c128_194] : memref<8x8x256xbf16, #tpu.memory_space<vmem>>, vector<1x8x128xbf16>
    %516 = vector.shape_cast %515 : vector<1x8x128xbf16> to vector<8x128xbf16>
    %517 = vector.shape_cast %509 : vector<8x128xbf16> to vector<1x8x128xbf16>
    tpu.vector_store %arg21[%514, %c0_193, %c128_194], %517 {strides = array<i32>} : memref<8x8x256xbf16, #tpu.memory_space<vmem>>, vector<1x8x128xbf16>,
    %c6_i32 = arith.constant 6 : i32
    %c7_i32_195 = arith.constant 7 : i32
    %518 = arith.subi %c7_i32_195, %c6_i32 : i32
    %519 = arith.index_cast %c6_i32 : i32 to index
    %c0_196 = arith.constant 0 : index
    %c0_197 = arith.constant 0 : index
    %520 = vector.load %arg19[%519, %c0_196, %c0_197] : memref<8x8x512xf32, #tpu.memory_space<vmem>>, vector<1x8x512xf32>
    %521 = vector.shape_cast %520 : vector<1x8x512xf32> to vector<8x512xf32>
    %cst_198 = arith.constant dense<0.000000e+00> : vector<8x512xf32>
    %522 = tpu.matmul %477, %16, %cst_198 {dimension_numbers = #tpu.dot_dimension_numbers<[1], [0], [0], [1], [0, 0, 1, 1], [], []>} : vector<8x128xbf16>, vector<128x512xbf16>, vector<8x512xf32> -> vector<8x512xf32>
    %523 = arith.addf %521, %522 : vector<8x512xf32>
    %524 = arith.index_cast %518 : i32 to index
    %c0_199 = arith.constant 0 : index
    %c0_200 = arith.constant 0 : index
    %525 = vector.load %arg20[%524, %c0_199, %c0_200] : memref<8x8x512xf32, #tpu.memory_space<vmem>>, vector<1x8x512xf32>
    %526 = vector.shape_cast %525 : vector<1x8x512xf32> to vector<8x512xf32>
    %cst_201 = arith.constant dense<0.000000e+00> : vector<8x512xf32>
    %527 = tpu.matmul %509, %17, %cst_201 {dimension_numbers = #tpu.dot_dimension_numbers<[1], [0], [0], [1], [0, 0, 1, 1], [], []>} : vector<8x128xbf16>, vector<128x512xbf16>, vector<8x512xf32> -> vector<8x512xf32>
    %528 = arith.addf %526, %527 : vector<8x512xf32>
    %529 = vector.extract_strided_slice %523 {offsets = [0, 0], sizes = [8, 128], strides = [1, 1]} : vector<8x512xf32> to vector<8x128xf32>
    %cst_202 = arith.constant 5.000000e-01 : f32
    %530 = vector.broadcast %cst_202 : f32 to vector<8x128xf32>
    %531 = arith.mulf %530, %529 : vector<8x128xf32>
    %532 = math.tanh %531 : vector<8x128xf32>
    %cst_203 = arith.constant 5.000000e-01 : f32
    %533 = vector.broadcast %cst_203 : f32 to vector<8x128xf32>
    %534 = arith.mulf %533, %532 : vector<8x128xf32>
    %cst_204 = arith.constant 5.000000e-01 : f32
    %535 = vector.broadcast %cst_204 : f32 to vector<8x128xf32>
    %536 = arith.addf %534, %535 : vector<8x128xf32>
    %537 = vector.extract_strided_slice %523 {offsets = [0, 128], sizes = [8, 128], strides = [1, 1]} : vector<8x512xf32> to vector<8x128xf32>
    %cst_205 = arith.constant 5.000000e-01 : f32
    %538 = vector.broadcast %cst_205 : f32 to vector<8x128xf32>
    %539 = arith.mulf %538, %537 : vector<8x128xf32>
    %540 = math.tanh %539 : vector<8x128xf32>
    %cst_206 = arith.constant 5.000000e-01 : f32
    %541 = vector.broadcast %cst_206 : f32 to vector<8x128xf32>
    %542 = arith.mulf %541, %540 : vector<8x128xf32>
    %cst_207 = arith.constant 5.000000e-01 : f32
    %543 = vector.broadcast %cst_207 : f32 to vector<8x128xf32>
    %544 = arith.addf %542, %543 : vector<8x128xf32>
    %545 = vector.extract_strided_slice %523 {offsets = [0, 256], sizes = [8, 128], strides = [1, 1]} : vector<8x512xf32> to vector<8x128xf32>
    %546 = math.tanh %545 : vector<8x128xf32>
    %547 = vector.extract_strided_slice %523 {offsets = [0, 384], sizes = [8, 128], strides = [1, 1]} : vector<8x512xf32> to vector<8x128xf32>
    %cst_208 = arith.constant 5.000000e-01 : f32
    %548 = vector.broadcast %cst_208 : f32 to vector<8x128xf32>
    %549 = arith.mulf %548, %547 : vector<8x128xf32>
    %550 = math.tanh %549 : vector<8x128xf32>
    %cst_209 = arith.constant 5.000000e-01 : f32
    %551 = vector.broadcast %cst_209 : f32 to vector<8x128xf32>
    %552 = arith.mulf %551, %550 : vector<8x128xf32>
    %cst_210 = arith.constant 5.000000e-01 : f32
    %553 = vector.broadcast %cst_210 : f32 to vector<8x128xf32>
    %554 = arith.addf %552, %553 : vector<8x128xf32>
    %555 = arith.mulf %544, %474 : vector<8x128xf32>
    %556 = arith.mulf %536, %546 : vector<8x128xf32>
    %557 = arith.addf %555, %556 : vector<8x128xf32>
    %558 = math.tanh %557 : vector<8x128xf32>
    %559 = arith.mulf %554, %558 : vector<8x128xf32>
    %560 = arith.truncf %559 : vector<8x128xf32> to vector<8x128xbf16>
    %561 = vector.extract_strided_slice %528 {offsets = [0, 0], sizes = [8, 128], strides = [1, 1]} : vector<8x512xf32> to vector<8x128xf32>
    %cst_211 = arith.constant 5.000000e-01 : f32
    %562 = vector.broadcast %cst_211 : f32 to vector<8x128xf32>
    %563 = arith.mulf %562, %561 : vector<8x128xf32>
    %564 = math.tanh %563 : vector<8x128xf32>
    %cst_212 = arith.constant 5.000000e-01 : f32
    %565 = vector.broadcast %cst_212 : f32 to vector<8x128xf32>
    %566 = arith.mulf %565, %564 : vector<8x128xf32>
    %cst_213 = arith.constant 5.000000e-01 : f32
    %567 = vector.broadcast %cst_213 : f32 to vector<8x128xf32>
    %568 = arith.addf %566, %567 : vector<8x128xf32>
    %569 = vector.extract_strided_slice %528 {offsets = [0, 128], sizes = [8, 128], strides = [1, 1]} : vector<8x512xf32> to vector<8x128xf32>
    %cst_214 = arith.constant 5.000000e-01 : f32
    %570 = vector.broadcast %cst_214 : f32 to vector<8x128xf32>
    %571 = arith.mulf %570, %569 : vector<8x128xf32>
    %572 = math.tanh %571 : vector<8x128xf32>
    %cst_215 = arith.constant 5.000000e-01 : f32
    %573 = vector.broadcast %cst_215 : f32 to vector<8x128xf32>
    %574 = arith.mulf %573, %572 : vector<8x128xf32>
    %cst_216 = arith.constant 5.000000e-01 : f32
    %575 = vector.broadcast %cst_216 : f32 to vector<8x128xf32>
    %576 = arith.addf %574, %575 : vector<8x128xf32>
    %577 = vector.extract_strided_slice %528 {offsets = [0, 256], sizes = [8, 128], strides = [1, 1]} : vector<8x512xf32> to vector<8x128xf32>
    %578 = math.tanh %577 : vector<8x128xf32>
    %579 = vector.extract_strided_slice %528 {offsets = [0, 384], sizes = [8, 128], strides = [1, 1]} : vector<8x512xf32> to vector<8x128xf32>
    %cst_217 = arith.constant 5.000000e-01 : f32
    %580 = vector.broadcast %cst_217 : f32 to vector<8x128xf32>
    %581 = arith.mulf %580, %579 : vector<8x128xf32>
    %582 = math.tanh %581 : vector<8x128xf32>
    %cst_218 = arith.constant 5.000000e-01 : f32
    %583 = vector.broadcast %cst_218 : f32 to vector<8x128xf32>
    %584 = arith.mulf %583, %582 : vector<8x128xf32>
    %cst_219 = arith.constant 5.000000e-01 : f32
    %585 = vector.broadcast %cst_219 : f32 to vector<8x128xf32>
    %586 = arith.addf %584, %585 : vector<8x128xf32>
    %587 = arith.mulf %576, %506 : vector<8x128xf32>
    %588 = arith.mulf %568, %578 : vector<8x128xf32>
    %589 = arith.addf %587, %588 : vector<8x128xf32>
    %590 = math.tanh %589 : vector<8x128xf32>
    %591 = arith.mulf %586, %590 : vector<8x128xf32>
    %592 = arith.truncf %591 : vector<8x128xf32> to vector<8x128xbf16>
    %593 = arith.index_cast %c6_i32 : i32 to index
    %c0_220 = arith.constant 0 : index
    %c0_221 = arith.constant 0 : index
    %594 = vector.load %arg21[%593, %c0_220, %c0_221] : memref<8x8x256xbf16, #tpu.memory_space<vmem>>, vector<1x8x128xbf16>
    %595 = vector.shape_cast %594 : vector<1x8x128xbf16> to vector<8x128xbf16>
    %596 = vector.shape_cast %560 : vector<8x128xbf16> to vector<1x8x128xbf16>
    tpu.vector_store %arg21[%593, %c0_220, %c0_221], %596 {strides = array<i32>} : memref<8x8x256xbf16, #tpu.memory_space<vmem>>, vector<1x8x128xbf16>,
    %597 = arith.index_cast %518 : i32 to index
    %c0_222 = arith.constant 0 : index
    %c128_223 = arith.constant 128 : index
    %598 = vector.load %arg21[%597, %c0_222, %c128_223] : memref<8x8x256xbf16, #tpu.memory_space<vmem>>, vector<1x8x128xbf16>
    %599 = vector.shape_cast %598 : vector<1x8x128xbf16> to vector<8x128xbf16>
    %600 = vector.shape_cast %592 : vector<8x128xbf16> to vector<1x8x128xbf16>
    tpu.vector_store %arg21[%597, %c0_222, %c128_223], %600 {strides = array<i32>} : memref<8x8x256xbf16, #tpu.memory_space<vmem>>, vector<1x8x128xbf16>,
    %c7_i32_224 = arith.constant 7 : i32
    %c7_i32_225 = arith.constant 7 : i32
    %601 = arith.subi %c7_i32_225, %c7_i32_224 : i32
    %602 = arith.index_cast %c7_i32_224 : i32 to index
    %c0_226 = arith.constant 0 : index
    %c0_227 = arith.constant 0 : index
    %603 = vector.load %arg19[%602, %c0_226, %c0_227] : memref<8x8x512xf32, #tpu.memory_space<vmem>>, vector<1x8x512xf32>
    %604 = vector.shape_cast %603 : vector<1x8x512xf32> to vector<8x512xf32>
    %cst_228 = arith.constant dense<0.000000e+00> : vector<8x512xf32>
    %605 = tpu.matmul %560, %16, %cst_228 {dimension_numbers = #tpu.dot_dimension_numbers<[1], [0], [0], [1], [0, 0, 1, 1], [], []>} : vector<8x128xbf16>, vector<128x512xbf16>, vector<8x512xf32> -> vector<8x512xf32>
    %606 = arith.addf %604, %605 : vector<8x512xf32>
    %607 = arith.index_cast %601 : i32 to index
    %c0_229 = arith.constant 0 : index
    %c0_230 = arith.constant 0 : index
    %608 = vector.load %arg20[%607, %c0_229, %c0_230] : memref<8x8x512xf32, #tpu.memory_space<vmem>>, vector<1x8x512xf32>
    %609 = vector.shape_cast %608 : vector<1x8x512xf32> to vector<8x512xf32>
    %cst_231 = arith.constant dense<0.000000e+00> : vector<8x512xf32>
    %610 = tpu.matmul %592, %17, %cst_231 {dimension_numbers = #tpu.dot_dimension_numbers<[1], [0], [0], [1], [0, 0, 1, 1], [], []>} : vector<8x128xbf16>, vector<128x512xbf16>, vector<8x512xf32> -> vector<8x512xf32>
    %611 = arith.addf %609, %610 : vector<8x512xf32>
    %612 = vector.extract_strided_slice %606 {offsets = [0, 0], sizes = [8, 128], strides = [1, 1]} : vector<8x512xf32> to vector<8x128xf32>
    %cst_232 = arith.constant 5.000000e-01 : f32
    %613 = vector.broadcast %cst_232 : f32 to vector<8x128xf32>
    %614 = arith.mulf %613, %612 : vector<8x128xf32>
    %615 = math.tanh %614 : vector<8x128xf32>
    %cst_233 = arith.constant 5.000000e-01 : f32
    %616 = vector.broadcast %cst_233 : f32 to vector<8x128xf32>
    %617 = arith.mulf %616, %615 : vector<8x128xf32>
    %cst_234 = arith.constant 5.000000e-01 : f32
    %618 = vector.broadcast %cst_234 : f32 to vector<8x128xf32>
    %619 = arith.addf %617, %618 : vector<8x128xf32>
    %620 = vector.extract_strided_slice %606 {offsets = [0, 128], sizes = [8, 128], strides = [1, 1]} : vector<8x512xf32> to vector<8x128xf32>
    %cst_235 = arith.constant 5.000000e-01 : f32
    %621 = vector.broadcast %cst_235 : f32 to vector<8x128xf32>
    %622 = arith.mulf %621, %620 : vector<8x128xf32>
    %623 = math.tanh %622 : vector<8x128xf32>
    %cst_236 = arith.constant 5.000000e-01 : f32
    %624 = vector.broadcast %cst_236 : f32 to vector<8x128xf32>
    %625 = arith.mulf %624, %623 : vector<8x128xf32>
    %cst_237 = arith.constant 5.000000e-01 : f32
    %626 = vector.broadcast %cst_237 : f32 to vector<8x128xf32>
    %627 = arith.addf %625, %626 : vector<8x128xf32>
    %628 = vector.extract_strided_slice %606 {offsets = [0, 256], sizes = [8, 128], strides = [1, 1]} : vector<8x512xf32> to vector<8x128xf32>
    %629 = math.tanh %628 : vector<8x128xf32>
    %630 = vector.extract_strided_slice %606 {offsets = [0, 384], sizes = [8, 128], strides = [1, 1]} : vector<8x512xf32> to vector<8x128xf32>
    %cst_238 = arith.constant 5.000000e-01 : f32
    %631 = vector.broadcast %cst_238 : f32 to vector<8x128xf32>
    %632 = arith.mulf %631, %630 : vector<8x128xf32>
    %633 = math.tanh %632 : vector<8x128xf32>
    %cst_239 = arith.constant 5.000000e-01 : f32
    %634 = vector.broadcast %cst_239 : f32 to vector<8x128xf32>
    %635 = arith.mulf %634, %633 : vector<8x128xf32>
    %cst_240 = arith.constant 5.000000e-01 : f32
    %636 = vector.broadcast %cst_240 : f32 to vector<8x128xf32>
    %637 = arith.addf %635, %636 : vector<8x128xf32>
    %638 = arith.mulf %627, %557 : vector<8x128xf32>
    %639 = arith.mulf %619, %629 : vector<8x128xf32>
    %640 = arith.addf %638, %639 : vector<8x128xf32>
    %641 = math.tanh %640 : vector<8x128xf32>
    %642 = arith.mulf %637, %641 : vector<8x128xf32>
    %643 = arith.truncf %642 : vector<8x128xf32> to vector<8x128xbf16>
    %644 = vector.extract_strided_slice %611 {offsets = [0, 0], sizes = [8, 128], strides = [1, 1]} : vector<8x512xf32> to vector<8x128xf32>
    %cst_241 = arith.constant 5.000000e-01 : f32
    %645 = vector.broadcast %cst_241 : f32 to vector<8x128xf32>
    %646 = arith.mulf %645, %644 : vector<8x128xf32>
    %647 = math.tanh %646 : vector<8x128xf32>
    %cst_242 = arith.constant 5.000000e-01 : f32
    %648 = vector.broadcast %cst_242 : f32 to vector<8x128xf32>
    %649 = arith.mulf %648, %647 : vector<8x128xf32>
    %cst_243 = arith.constant 5.000000e-01 : f32
    %650 = vector.broadcast %cst_243 : f32 to vector<8x128xf32>
    %651 = arith.addf %649, %650 : vector<8x128xf32>
    %652 = vector.extract_strided_slice %611 {offsets = [0, 128], sizes = [8, 128], strides = [1, 1]} : vector<8x512xf32> to vector<8x128xf32>
    %cst_244 = arith.constant 5.000000e-01 : f32
    %653 = vector.broadcast %cst_244 : f32 to vector<8x128xf32>
    %654 = arith.mulf %653, %652 : vector<8x128xf32>
    %655 = math.tanh %654 : vector<8x128xf32>
    %cst_245 = arith.constant 5.000000e-01 : f32
    %656 = vector.broadcast %cst_245 : f32 to vector<8x128xf32>
    %657 = arith.mulf %656, %655 : vector<8x128xf32>
    %cst_246 = arith.constant 5.000000e-01 : f32
    %658 = vector.broadcast %cst_246 : f32 to vector<8x128xf32>
    %659 = arith.addf %657, %658 : vector<8x128xf32>
    %660 = vector.extract_strided_slice %611 {offsets = [0, 256], sizes = [8, 128], strides = [1, 1]} : vector<8x512xf32> to vector<8x128xf32>
    %661 = math.tanh %660 : vector<8x128xf32>
    %662 = vector.extract_strided_slice %611 {offsets = [0, 384], sizes = [8, 128], strides = [1, 1]} : vector<8x512xf32> to vector<8x128xf32>
    %cst_247 = arith.constant 5.000000e-01 : f32
    %663 = vector.broadcast %cst_247 : f32 to vector<8x128xf32>
    %664 = arith.mulf %663, %662 : vector<8x128xf32>
    %665 = math.tanh %664 : vector<8x128xf32>
    %cst_248 = arith.constant 5.000000e-01 : f32
    %666 = vector.broadcast %cst_248 : f32 to vector<8x128xf32>
    %667 = arith.mulf %666, %665 : vector<8x128xf32>
    %cst_249 = arith.constant 5.000000e-01 : f32
    %668 = vector.broadcast %cst_249 : f32 to vector<8x128xf32>
    %669 = arith.addf %667, %668 : vector<8x128xf32>
    %670 = arith.mulf %659, %589 : vector<8x128xf32>
    %671 = arith.mulf %651, %661 : vector<8x128xf32>
    %672 = arith.addf %670, %671 : vector<8x128xf32>
    %673 = math.tanh %672 : vector<8x128xf32>
    %674 = arith.mulf %669, %673 : vector<8x128xf32>
    %675 = arith.truncf %674 : vector<8x128xf32> to vector<8x128xbf16>
    %676 = arith.index_cast %c7_i32_224 : i32 to index
    %c0_250 = arith.constant 0 : index
    %c0_251 = arith.constant 0 : index
    %677 = vector.load %arg21[%676, %c0_250, %c0_251] : memref<8x8x256xbf16, #tpu.memory_space<vmem>>, vector<1x8x128xbf16>
    %678 = vector.shape_cast %677 : vector<1x8x128xbf16> to vector<8x128xbf16>
    %679 = vector.shape_cast %643 : vector<8x128xbf16> to vector<1x8x128xbf16>
    tpu.vector_store %arg21[%676, %c0_250, %c0_251], %679 {strides = array<i32>} : memref<8x8x256xbf16, #tpu.memory_space<vmem>>, vector<1x8x128xbf16>,
    %680 = arith.index_cast %601 : i32 to index
    %c0_252 = arith.constant 0 : index
    %c128_253 = arith.constant 128 : index
    %681 = vector.load %arg21[%680, %c0_252, %c128_253] : memref<8x8x256xbf16, #tpu.memory_space<vmem>>, vector<1x8x128xbf16>
    %682 = vector.shape_cast %681 : vector<1x8x128xbf16> to vector<8x128xbf16>
    %683 = vector.shape_cast %675 : vector<8x128xbf16> to vector<1x8x128xbf16>
    tpu.vector_store %arg21[%680, %c0_252, %c128_253], %683 {strides = array<i32>} : memref<8x8x256xbf16, #tpu.memory_space<vmem>>, vector<1x8x128xbf16>,
    %c8_i32 = arith.constant 8 : i32
    %c0_254 = arith.constant 0 : index
    %c0_255 = arith.constant 0 : index
    %c0_256 = arith.constant 0 : index
    %684 = vector.load %arg21[%c0_254, %c0_255, %c0_256] : memref<8x8x256xbf16, #tpu.memory_space<vmem>>, vector<8x8x256xbf16>
    %685 = vector.shape_cast %684 : vector<8x8x256xbf16> to vector<64x256xbf16>
    %c0_257 = arith.constant 0 : index
    %c0_258 = arith.constant 0 : index
    %686 = vector.load %arg8[%c0_257, %c0_258] : memref<256x512xbf16, #tpu.memory_space<vmem>>, vector<256x512xbf16>
    %cst_259 = arith.constant dense<0.000000e+00> : vector<64x512xf32>
    %687 = tpu.matmul %685, %686, %cst_259 {dimension_numbers = #tpu.dot_dimension_numbers<[1], [0], [0], [1], [0, 0, 1, 1], [], []>} : vector<64x256xbf16>, vector<256x512xbf16>, vector<64x512xf32> -> vector<64x512xf32>
    %c0_260 = arith.constant 0 : index
    %c0_261 = arith.constant 0 : index
    %688 = vector.load %arg10[%c0_260, %c0_261] : memref<1x512xf32, #tpu.memory_space<vmem>>, vector<1x512xf32>
    %689 = vector.broadcast %688 : vector<1x512xf32> to vector<64x512xf32>
    %690 = arith.addf %687, %689 : vector<64x512xf32>
    %691 = vector.shape_cast %690 : vector<64x512xf32> to vector<8x8x512xf32>
    %c0_262 = arith.constant 0 : index
    %c0_263 = arith.constant 0 : index
    %c0_264 = arith.constant 0 : index
    %692 = vector.load %arg19[%c0_262, %c0_263, %c0_264] : memref<8x8x512xf32, #tpu.memory_space<vmem>>, vector<8x8x512xf32>
    tpu.vector_store %arg19[%c0_262, %c0_263, %c0_264], %691 {strides = array<i32>} : memref<8x8x512xf32, #tpu.memory_space<vmem>>, vector<8x8x512xf32>,
    %c0_265 = arith.constant 0 : index
    %c0_266 = arith.constant 0 : index
    %693 = vector.load %arg11[%c0_265, %c0_266] : memref<256x512xbf16, #tpu.memory_space<vmem>>, vector<256x512xbf16>
    %cst_267 = arith.constant dense<0.000000e+00> : vector<64x512xf32>
    %694 = tpu.matmul %685, %693, %cst_267 {dimension_numbers = #tpu.dot_dimension_numbers<[1], [0], [0], [1], [0, 0, 1, 1], [], []>} : vector<64x256xbf16>, vector<256x512xbf16>, vector<64x512xf32> -> vector<64x512xf32>
    %c0_268 = arith.constant 0 : index
    %c0_269 = arith.constant 0 : index
    %695 = vector.load %arg13[%c0_268, %c0_269] : memref<1x512xf32, #tpu.memory_space<vmem>>, vector<1x512xf32>
    %696 = vector.broadcast %695 : vector<1x512xf32> to vector<64x512xf32>
    %697 = arith.addf %694, %696 : vector<64x512xf32>
    %698 = vector.shape_cast %697 : vector<64x512xf32> to vector<8x8x512xf32>
    %c0_270 = arith.constant 0 : index
    %c0_271 = arith.constant 0 : index
    %c0_272 = arith.constant 0 : index
    %699 = vector.load %arg20[%c0_270, %c0_271, %c0_272] : memref<8x8x512xf32, #tpu.memory_space<vmem>>, vector<8x8x512xf32>
    tpu.vector_store %arg20[%c0_270, %c0_271, %c0_272], %698 {strides = array<i32>} : memref<8x8x512xf32, #tpu.memory_space<vmem>>, vector<8x8x512xf32>,
    %c0_273 = arith.constant 0 : index
    %c0_274 = arith.constant 0 : index
    %700 = vector.load %arg9[%c0_273, %c0_274] : memref<128x512xbf16, #tpu.memory_space<vmem>>, vector<128x512xbf16>
    %c0_275 = arith.constant 0 : index
    %c0_276 = arith.constant 0 : index
    %701 = vector.load %arg12[%c0_275, %c0_276] : memref<128x512xbf16, #tpu.memory_space<vmem>>, vector<128x512xbf16>
    %cst_277 = arith.constant 0.000000e+00 : bf16
    %702 = vector.broadcast %cst_277 : bf16 to vector<8x128xbf16>
    %cst_278 = arith.constant 0.000000e+00 : f32
    %703 = vector.broadcast %cst_278 : f32 to vector<8x128xf32>
    %c0_i32_279 = arith.constant 0 : i32
    %c7_i32_280 = arith.constant 7 : i32
    %704 = arith.subi %c7_i32_280, %c0_i32_279 : i32
    %705 = arith.index_cast %c0_i32_279 : i32 to index
    %c0_281 = arith.constant 0 : index
    %c0_282 = arith.constant 0 : index
    %706 = vector.load %arg19[%705, %c0_281, %c0_282] : memref<8x8x512xf32, #tpu.memory_space<vmem>>, vector<1x8x512xf32>
    %707 = vector.shape_cast %706 : vector<1x8x512xf32> to vector<8x512xf32>
    %cst_283 = arith.constant dense<0.000000e+00> : vector<8x512xf32>
    %708 = tpu.matmul %702, %700, %cst_283 {dimension_numbers = #tpu.dot_dimension_numbers<[1], [0], [0], [1], [0, 0, 1, 1], [], []>} : vector<8x128xbf16>, vector<128x512xbf16>, vector<8x512xf32> -> vector<8x512xf32>
    %709 = arith.addf %707, %708 : vector<8x512xf32>
    %710 = arith.index_cast %704 : i32 to index
    %c0_284 = arith.constant 0 : index
    %c0_285 = arith.constant 0 : index
    %711 = vector.load %arg20[%710, %c0_284, %c0_285] : memref<8x8x512xf32, #tpu.memory_space<vmem>>, vector<1x8x512xf32>
    %712 = vector.shape_cast %711 : vector<1x8x512xf32> to vector<8x512xf32>
    %cst_286 = arith.constant dense<0.000000e+00> : vector<8x512xf32>
    %713 = tpu.matmul %702, %701, %cst_286 {dimension_numbers = #tpu.dot_dimension_numbers<[1], [0], [0], [1], [0, 0, 1, 1], [], []>} : vector<8x128xbf16>, vector<128x512xbf16>, vector<8x512xf32> -> vector<8x512xf32>
    %714 = arith.addf %712, %713 : vector<8x512xf32>
    %715 = vector.extract_strided_slice %709 {offsets = [0, 0], sizes = [8, 128], strides = [1, 1]} : vector<8x512xf32> to vector<8x128xf32>
    %cst_287 = arith.constant 5.000000e-01 : f32
    %716 = vector.broadcast %cst_287 : f32 to vector<8x128xf32>
    %717 = arith.mulf %716, %715 : vector<8x128xf32>
    %718 = math.tanh %717 : vector<8x128xf32>
    %cst_288 = arith.constant 5.000000e-01 : f32
    %719 = vector.broadcast %cst_288 : f32 to vector<8x128xf32>
    %720 = arith.mulf %719, %718 : vector<8x128xf32>
    %cst_289 = arith.constant 5.000000e-01 : f32
    %721 = vector.broadcast %cst_289 : f32 to vector<8x128xf32>
    %722 = arith.addf %720, %721 : vector<8x128xf32>
    %723 = vector.extract_strided_slice %709 {offsets = [0, 128], sizes = [8, 128], strides = [1, 1]} : vector<8x512xf32> to vector<8x128xf32>
    %cst_290 = arith.constant 5.000000e-01 : f32
    %724 = vector.broadcast %cst_290 : f32 to vector<8x128xf32>
    %725 = arith.mulf %724, %723 : vector<8x128xf32>
    %726 = math.tanh %725 : vector<8x128xf32>
    %cst_291 = arith.constant 5.000000e-01 : f32
    %727 = vector.broadcast %cst_291 : f32 to vector<8x128xf32>
    %728 = arith.mulf %727, %726 : vector<8x128xf32>
    %cst_292 = arith.constant 5.000000e-01 : f32
    %729 = vector.broadcast %cst_292 : f32 to vector<8x128xf32>
    %730 = arith.addf %728, %729 : vector<8x128xf32>
    %731 = vector.extract_strided_slice %709 {offsets = [0, 256], sizes = [8, 128], strides = [1, 1]} : vector<8x512xf32> to vector<8x128xf32>
    %732 = math.tanh %731 : vector<8x128xf32>
    %733 = vector.extract_strided_slice %709 {offsets = [0, 384], sizes = [8, 128], strides = [1, 1]} : vector<8x512xf32> to vector<8x128xf32>
    %cst_293 = arith.constant 5.000000e-01 : f32
    %734 = vector.broadcast %cst_293 : f32 to vector<8x128xf32>
    %735 = arith.mulf %734, %733 : vector<8x128xf32>
    %736 = math.tanh %735 : vector<8x128xf32>
    %cst_294 = arith.constant 5.000000e-01 : f32
    %737 = vector.broadcast %cst_294 : f32 to vector<8x128xf32>
    %738 = arith.mulf %737, %736 : vector<8x128xf32>
    %cst_295 = arith.constant 5.000000e-01 : f32
    %739 = vector.broadcast %cst_295 : f32 to vector<8x128xf32>
    %740 = arith.addf %738, %739 : vector<8x128xf32>
    %741 = arith.mulf %730, %703 : vector<8x128xf32>
    %742 = arith.mulf %722, %732 : vector<8x128xf32>
    %743 = arith.addf %741, %742 : vector<8x128xf32>
    %744 = math.tanh %743 : vector<8x128xf32>
    %745 = arith.mulf %740, %744 : vector<8x128xf32>
    %746 = arith.truncf %745 : vector<8x128xf32> to vector<8x128xbf16>
    %747 = vector.extract_strided_slice %714 {offsets = [0, 0], sizes = [8, 128], strides = [1, 1]} : vector<8x512xf32> to vector<8x128xf32>
    %cst_296 = arith.constant 5.000000e-01 : f32
    %748 = vector.broadcast %cst_296 : f32 to vector<8x128xf32>
    %749 = arith.mulf %748, %747 : vector<8x128xf32>
    %750 = math.tanh %749 : vector<8x128xf32>
    %cst_297 = arith.constant 5.000000e-01 : f32
    %751 = vector.broadcast %cst_297 : f32 to vector<8x128xf32>
    %752 = arith.mulf %751, %750 : vector<8x128xf32>
    %cst_298 = arith.constant 5.000000e-01 : f32
    %753 = vector.broadcast %cst_298 : f32 to vector<8x128xf32>
    %754 = arith.addf %752, %753 : vector<8x128xf32>
    %755 = vector.extract_strided_slice %714 {offsets = [0, 128], sizes = [8, 128], strides = [1, 1]} : vector<8x512xf32> to vector<8x128xf32>
    %cst_299 = arith.constant 5.000000e-01 : f32
    %756 = vector.broadcast %cst_299 : f32 to vector<8x128xf32>
    %757 = arith.mulf %756, %755 : vector<8x128xf32>
    %758 = math.tanh %757 : vector<8x128xf32>
    %cst_300 = arith.constant 5.000000e-01 : f32
    %759 = vector.broadcast %cst_300 : f32 to vector<8x128xf32>
    %760 = arith.mulf %759, %758 : vector<8x128xf32>
    %cst_301 = arith.constant 5.000000e-01 : f32
    %761 = vector.broadcast %cst_301 : f32 to vector<8x128xf32>
    %762 = arith.addf %760, %761 : vector<8x128xf32>
    %763 = vector.extract_strided_slice %714 {offsets = [0, 256], sizes = [8, 128], strides = [1, 1]} : vector<8x512xf32> to vector<8x128xf32>
    %764 = math.tanh %763 : vector<8x128xf32>
    %765 = vector.extract_strided_slice %714 {offsets = [0, 384], sizes = [8, 128], strides = [1, 1]} : vector<8x512xf32> to vector<8x128xf32>
    %cst_302 = arith.constant 5.000000e-01 : f32
    %766 = vector.broadcast %cst_302 : f32 to vector<8x128xf32>
    %767 = arith.mulf %766, %765 : vector<8x128xf32>
    %768 = math.tanh %767 : vector<8x128xf32>
    %cst_303 = arith.constant 5.000000e-01 : f32
    %769 = vector.broadcast %cst_303 : f32 to vector<8x128xf32>
    %770 = arith.mulf %769, %768 : vector<8x128xf32>
    %cst_304 = arith.constant 5.000000e-01 : f32
    %771 = vector.broadcast %cst_304 : f32 to vector<8x128xf32>
    %772 = arith.addf %770, %771 : vector<8x128xf32>
    %773 = arith.mulf %762, %703 : vector<8x128xf32>
    %774 = arith.mulf %754, %764 : vector<8x128xf32>
    %775 = arith.addf %773, %774 : vector<8x128xf32>
    %776 = math.tanh %775 : vector<8x128xf32>
    %777 = arith.mulf %772, %776 : vector<8x128xf32>
    %778 = arith.truncf %777 : vector<8x128xf32> to vector<8x128xbf16>
    %779 = arith.index_cast %c0_i32_279 : i32 to index
    %c0_305 = arith.constant 0 : index
    %c0_306 = arith.constant 0 : index
    %780 = vector.load %arg21[%779, %c0_305, %c0_306] : memref<8x8x256xbf16, #tpu.memory_space<vmem>>, vector<1x8x128xbf16>
    %781 = vector.shape_cast %780 : vector<1x8x128xbf16> to vector<8x128xbf16>
    %782 = vector.shape_cast %746 : vector<8x128xbf16> to vector<1x8x128xbf16>
    tpu.vector_store %arg21[%779, %c0_305, %c0_306], %782 {strides = array<i32>} : memref<8x8x256xbf16, #tpu.memory_space<vmem>>, vector<1x8x128xbf16>,
    %783 = arith.index_cast %704 : i32 to index
    %c0_307 = arith.constant 0 : index
    %c128_308 = arith.constant 128 : index
    %784 = vector.load %arg21[%783, %c0_307, %c128_308] : memref<8x8x256xbf16, #tpu.memory_space<vmem>>, vector<1x8x128xbf16>
    %785 = vector.shape_cast %784 : vector<1x8x128xbf16> to vector<8x128xbf16>
    %786 = vector.shape_cast %778 : vector<8x128xbf16> to vector<1x8x128xbf16>
    tpu.vector_store %arg21[%783, %c0_307, %c128_308], %786 {strides = array<i32>} : memref<8x8x256xbf16, #tpu.memory_space<vmem>>, vector<1x8x128xbf16>,
    %c1_i32_309 = arith.constant 1 : i32
    %c7_i32_310 = arith.constant 7 : i32
    %787 = arith.subi %c7_i32_310, %c1_i32_309 : i32
    %788 = arith.index_cast %c1_i32_309 : i32 to index
    %c0_311 = arith.constant 0 : index
    %c0_312 = arith.constant 0 : index
    %789 = vector.load %arg19[%788, %c0_311, %c0_312] : memref<8x8x512xf32, #tpu.memory_space<vmem>>, vector<1x8x512xf32>
    %790 = vector.shape_cast %789 : vector<1x8x512xf32> to vector<8x512xf32>
    %cst_313 = arith.constant dense<0.000000e+00> : vector<8x512xf32>
    %791 = tpu.matmul %746, %700, %cst_313 {dimension_numbers = #tpu.dot_dimension_numbers<[1], [0], [0], [1], [0, 0, 1, 1], [], []>} : vector<8x128xbf16>, vector<128x512xbf16>, vector<8x512xf32> -> vector<8x512xf32>
    %792 = arith.addf %790, %791 : vector<8x512xf32>
    %793 = arith.index_cast %787 : i32 to index
    %c0_314 = arith.constant 0 : index
    %c0_315 = arith.constant 0 : index
    %794 = vector.load %arg20[%793, %c0_314, %c0_315] : memref<8x8x512xf32, #tpu.memory_space<vmem>>, vector<1x8x512xf32>
    %795 = vector.shape_cast %794 : vector<1x8x512xf32> to vector<8x512xf32>
    %cst_316 = arith.constant dense<0.000000e+00> : vector<8x512xf32>
    %796 = tpu.matmul %778, %701, %cst_316 {dimension_numbers = #tpu.dot_dimension_numbers<[1], [0], [0], [1], [0, 0, 1, 1], [], []>} : vector<8x128xbf16>, vector<128x512xbf16>, vector<8x512xf32> -> vector<8x512xf32>
    %797 = arith.addf %795, %796 : vector<8x512xf32>
    %798 = vector.extract_strided_slice %792 {offsets = [0, 0], sizes = [8, 128], strides = [1, 1]} : vector<8x512xf32> to vector<8x128xf32>
    %cst_317 = arith.constant 5.000000e-01 : f32
    %799 = vector.broadcast %cst_317 : f32 to vector<8x128xf32>
    %800 = arith.mulf %799, %798 : vector<8x128xf32>
    %801 = math.tanh %800 : vector<8x128xf32>
    %cst_318 = arith.constant 5.000000e-01 : f32
    %802 = vector.broadcast %cst_318 : f32 to vector<8x128xf32>
    %803 = arith.mulf %802, %801 : vector<8x128xf32>
    %cst_319 = arith.constant 5.000000e-01 : f32
    %804 = vector.broadcast %cst_319 : f32 to vector<8x128xf32>
    %805 = arith.addf %803, %804 : vector<8x128xf32>
    %806 = vector.extract_strided_slice %792 {offsets = [0, 128], sizes = [8, 128], strides = [1, 1]} : vector<8x512xf32> to vector<8x128xf32>
    %cst_320 = arith.constant 5.000000e-01 : f32
    %807 = vector.broadcast %cst_320 : f32 to vector<8x128xf32>
    %808 = arith.mulf %807, %806 : vector<8x128xf32>
    %809 = math.tanh %808 : vector<8x128xf32>
    %cst_321 = arith.constant 5.000000e-01 : f32
    %810 = vector.broadcast %cst_321 : f32 to vector<8x128xf32>
    %811 = arith.mulf %810, %809 : vector<8x128xf32>
    %cst_322 = arith.constant 5.000000e-01 : f32
    %812 = vector.broadcast %cst_322 : f32 to vector<8x128xf32>
    %813 = arith.addf %811, %812 : vector<8x128xf32>
    %814 = vector.extract_strided_slice %792 {offsets = [0, 256], sizes = [8, 128], strides = [1, 1]} : vector<8x512xf32> to vector<8x128xf32>
    %815 = math.tanh %814 : vector<8x128xf32>
    %816 = vector.extract_strided_slice %792 {offsets = [0, 384], sizes = [8, 128], strides = [1, 1]} : vector<8x512xf32> to vector<8x128xf32>
    %cst_323 = arith.constant 5.000000e-01 : f32
    %817 = vector.broadcast %cst_323 : f32 to vector<8x128xf32>
    %818 = arith.mulf %817, %816 : vector<8x128xf32>
    %819 = math.tanh %818 : vector<8x128xf32>
    %cst_324 = arith.constant 5.000000e-01 : f32
    %820 = vector.broadcast %cst_324 : f32 to vector<8x128xf32>
    %821 = arith.mulf %820, %819 : vector<8x128xf32>
    %cst_325 = arith.constant 5.000000e-01 : f32
    %822 = vector.broadcast %cst_325 : f32 to vector<8x128xf32>
    %823 = arith.addf %821, %822 : vector<8x128xf32>
    %824 = arith.mulf %813, %743 : vector<8x128xf32>
    %825 = arith.mulf %805, %815 : vector<8x128xf32>
    %826 = arith.addf %824, %825 : vector<8x128xf32>
    %827 = math.tanh %826 : vector<8x128xf32>
    %828 = arith.mulf %823, %827 : vector<8x128xf32>
    %829 = arith.truncf %828 : vector<8x128xf32> to vector<8x128xbf16>
    %830 = vector.extract_strided_slice %797 {offsets = [0, 0], sizes = [8, 128], strides = [1, 1]} : vector<8x512xf32> to vector<8x128xf32>
    %cst_326 = arith.constant 5.000000e-01 : f32
    %831 = vector.broadcast %cst_326 : f32 to vector<8x128xf32>
    %832 = arith.mulf %831, %830 : vector<8x128xf32>
    %833 = math.tanh %832 : vector<8x128xf32>
    %cst_327 = arith.constant 5.000000e-01 : f32
    %834 = vector.broadcast %cst_327 : f32 to vector<8x128xf32>
    %835 = arith.mulf %834, %833 : vector<8x128xf32>
    %cst_328 = arith.constant 5.000000e-01 : f32
    %836 = vector.broadcast %cst_328 : f32 to vector<8x128xf32>
    %837 = arith.addf %835, %836 : vector<8x128xf32>
    %838 = vector.extract_strided_slice %797 {offsets = [0, 128], sizes = [8, 128], strides = [1, 1]} : vector<8x512xf32> to vector<8x128xf32>
    %cst_329 = arith.constant 5.000000e-01 : f32
    %839 = vector.broadcast %cst_329 : f32 to vector<8x128xf32>
    %840 = arith.mulf %839, %838 : vector<8x128xf32>
    %841 = math.tanh %840 : vector<8x128xf32>
    %cst_330 = arith.constant 5.000000e-01 : f32
    %842 = vector.broadcast %cst_330 : f32 to vector<8x128xf32>
    %843 = arith.mulf %842, %841 : vector<8x128xf32>
    %cst_331 = arith.constant 5.000000e-01 : f32
    %844 = vector.broadcast %cst_331 : f32 to vector<8x128xf32>
    %845 = arith.addf %843, %844 : vector<8x128xf32>
    %846 = vector.extract_strided_slice %797 {offsets = [0, 256], sizes = [8, 128], strides = [1, 1]} : vector<8x512xf32> to vector<8x128xf32>
    %847 = math.tanh %846 : vector<8x128xf32>
    %848 = vector.extract_strided_slice %797 {offsets = [0, 384], sizes = [8, 128], strides = [1, 1]} : vector<8x512xf32> to vector<8x128xf32>
    %cst_332 = arith.constant 5.000000e-01 : f32
    %849 = vector.broadcast %cst_332 : f32 to vector<8x128xf32>
    %850 = arith.mulf %849, %848 : vector<8x128xf32>
    %851 = math.tanh %850 : vector<8x128xf32>
    %cst_333 = arith.constant 5.000000e-01 : f32
    %852 = vector.broadcast %cst_333 : f32 to vector<8x128xf32>
    %853 = arith.mulf %852, %851 : vector<8x128xf32>
    %cst_334 = arith.constant 5.000000e-01 : f32
    %854 = vector.broadcast %cst_334 : f32 to vector<8x128xf32>
    %855 = arith.addf %853, %854 : vector<8x128xf32>
    %856 = arith.mulf %845, %775 : vector<8x128xf32>
    %857 = arith.mulf %837, %847 : vector<8x128xf32>
    %858 = arith.addf %856, %857 : vector<8x128xf32>
    %859 = math.tanh %858 : vector<8x128xf32>
    %860 = arith.mulf %855, %859 : vector<8x128xf32>
    %861 = arith.truncf %860 : vector<8x128xf32> to vector<8x128xbf16>
    %862 = arith.index_cast %c1_i32_309 : i32 to index
    %c0_335 = arith.constant 0 : index
    %c0_336 = arith.constant 0 : index
    %863 = vector.load %arg21[%862, %c0_335, %c0_336] : memref<8x8x256xbf16, #tpu.memory_space<vmem>>, vector<1x8x128xbf16>
    %864 = vector.shape_cast %863 : vector<1x8x128xbf16> to vector<8x128xbf16>
    %865 = vector.shape_cast %829 : vector<8x128xbf16> to vector<1x8x128xbf16>
    tpu.vector_store %arg21[%862, %c0_335, %c0_336], %865 {strides = array<i32>} : memref<8x8x256xbf16, #tpu.memory_space<vmem>>, vector<1x8x128xbf16>,
    %866 = arith.index_cast %787 : i32 to index
    %c0_337 = arith.constant 0 : index
    %c128_338 = arith.constant 128 : index
    %867 = vector.load %arg21[%866, %c0_337, %c128_338] : memref<8x8x256xbf16, #tpu.memory_space<vmem>>, vector<1x8x128xbf16>
    %868 = vector.shape_cast %867 : vector<1x8x128xbf16> to vector<8x128xbf16>
    %869 = vector.shape_cast %861 : vector<8x128xbf16> to vector<1x8x128xbf16>
    tpu.vector_store %arg21[%866, %c0_337, %c128_338], %869 {strides = array<i32>} : memref<8x8x256xbf16, #tpu.memory_space<vmem>>, vector<1x8x128xbf16>,
    %c2_i32_339 = arith.constant 2 : i32
    %c7_i32_340 = arith.constant 7 : i32
    %870 = arith.subi %c7_i32_340, %c2_i32_339 : i32
    %871 = arith.index_cast %c2_i32_339 : i32 to index
    %c0_341 = arith.constant 0 : index
    %c0_342 = arith.constant 0 : index
    %872 = vector.load %arg19[%871, %c0_341, %c0_342] : memref<8x8x512xf32, #tpu.memory_space<vmem>>, vector<1x8x512xf32>
    %873 = vector.shape_cast %872 : vector<1x8x512xf32> to vector<8x512xf32>
    %cst_343 = arith.constant dense<0.000000e+00> : vector<8x512xf32>
    %874 = tpu.matmul %829, %700, %cst_343 {dimension_numbers = #tpu.dot_dimension_numbers<[1], [0], [0], [1], [0, 0, 1, 1], [], []>} : vector<8x128xbf16>, vector<128x512xbf16>, vector<8x512xf32> -> vector<8x512xf32>
    %875 = arith.addf %873, %874 : vector<8x512xf32>
    %876 = arith.index_cast %870 : i32 to index
    %c0_344 = arith.constant 0 : index
    %c0_345 = arith.constant 0 : index
    %877 = vector.load %arg20[%876, %c0_344, %c0_345] : memref<8x8x512xf32, #tpu.memory_space<vmem>>, vector<1x8x512xf32>
    %878 = vector.shape_cast %877 : vector<1x8x512xf32> to vector<8x512xf32>
    %cst_346 = arith.constant dense<0.000000e+00> : vector<8x512xf32>
    %879 = tpu.matmul %861, %701, %cst_346 {dimension_numbers = #tpu.dot_dimension_numbers<[1], [0], [0], [1], [0, 0, 1, 1], [], []>} : vector<8x128xbf16>, vector<128x512xbf16>, vector<8x512xf32> -> vector<8x512xf32>
    %880 = arith.addf %878, %879 : vector<8x512xf32>
    %881 = vector.extract_strided_slice %875 {offsets = [0, 0], sizes = [8, 128], strides = [1, 1]} : vector<8x512xf32> to vector<8x128xf32>
    %cst_347 = arith.constant 5.000000e-01 : f32
    %882 = vector.broadcast %cst_347 : f32 to vector<8x128xf32>
    %883 = arith.mulf %882, %881 : vector<8x128xf32>
    %884 = math.tanh %883 : vector<8x128xf32>
    %cst_348 = arith.constant 5.000000e-01 : f32
    %885 = vector.broadcast %cst_348 : f32 to vector<8x128xf32>
    %886 = arith.mulf %885, %884 : vector<8x128xf32>
    %cst_349 = arith.constant 5.000000e-01 : f32
    %887 = vector.broadcast %cst_349 : f32 to vector<8x128xf32>
    %888 = arith.addf %886, %887 : vector<8x128xf32>
    %889 = vector.extract_strided_slice %875 {offsets = [0, 128], sizes = [8, 128], strides = [1, 1]} : vector<8x512xf32> to vector<8x128xf32>
    %cst_350 = arith.constant 5.000000e-01 : f32
    %890 = vector.broadcast %cst_350 : f32 to vector<8x128xf32>
    %891 = arith.mulf %890, %889 : vector<8x128xf32>
    %892 = math.tanh %891 : vector<8x128xf32>
    %cst_351 = arith.constant 5.000000e-01 : f32
    %893 = vector.broadcast %cst_351 : f32 to vector<8x128xf32>
    %894 = arith.mulf %893, %892 : vector<8x128xf32>
    %cst_352 = arith.constant 5.000000e-01 : f32
    %895 = vector.broadcast %cst_352 : f32 to vector<8x128xf32>
    %896 = arith.addf %894, %895 : vector<8x128xf32>
    %897 = vector.extract_strided_slice %875 {offsets = [0, 256], sizes = [8, 128], strides = [1, 1]} : vector<8x512xf32> to vector<8x128xf32>
    %898 = math.tanh %897 : vector<8x128xf32>
    %899 = vector.extract_strided_slice %875 {offsets = [0, 384], sizes = [8, 128], strides = [1, 1]} : vector<8x512xf32> to vector<8x128xf32>
    %cst_353 = arith.constant 5.000000e-01 : f32
    %900 = vector.broadcast %cst_353 : f32 to vector<8x128xf32>
    %901 = arith.mulf %900, %899 : vector<8x128xf32>
    %902 = math.tanh %901 : vector<8x128xf32>
    %cst_354 = arith.constant 5.000000e-01 : f32
    %903 = vector.broadcast %cst_354 : f32 to vector<8x128xf32>
    %904 = arith.mulf %903, %902 : vector<8x128xf32>
    %cst_355 = arith.constant 5.000000e-01 : f32
    %905 = vector.broadcast %cst_355 : f32 to vector<8x128xf32>
    %906 = arith.addf %904, %905 : vector<8x128xf32>
    %907 = arith.mulf %896, %826 : vector<8x128xf32>
    %908 = arith.mulf %888, %898 : vector<8x128xf32>
    %909 = arith.addf %907, %908 : vector<8x128xf32>
    %910 = math.tanh %909 : vector<8x128xf32>
    %911 = arith.mulf %906, %910 : vector<8x128xf32>
    %912 = arith.truncf %911 : vector<8x128xf32> to vector<8x128xbf16>
    %913 = vector.extract_strided_slice %880 {offsets = [0, 0], sizes = [8, 128], strides = [1, 1]} : vector<8x512xf32> to vector<8x128xf32>
    %cst_356 = arith.constant 5.000000e-01 : f32
    %914 = vector.broadcast %cst_356 : f32 to vector<8x128xf32>
    %915 = arith.mulf %914, %913 : vector<8x128xf32>
    %916 = math.tanh %915 : vector<8x128xf32>
    %cst_357 = arith.constant 5.000000e-01 : f32
    %917 = vector.broadcast %cst_357 : f32 to vector<8x128xf32>
    %918 = arith.mulf %917, %916 : vector<8x128xf32>
    %cst_358 = arith.constant 5.000000e-01 : f32
    %919 = vector.broadcast %cst_358 : f32 to vector<8x128xf32>
    %920 = arith.addf %918, %919 : vector<8x128xf32>
    %921 = vector.extract_strided_slice %880 {offsets = [0, 128], sizes = [8, 128], strides = [1, 1]} : vector<8x512xf32> to vector<8x128xf32>
    %cst_359 = arith.constant 5.000000e-01 : f32
    %922 = vector.broadcast %cst_359 : f32 to vector<8x128xf32>
    %923 = arith.mulf %922, %921 : vector<8x128xf32>
    %924 = math.tanh %923 : vector<8x128xf32>
    %cst_360 = arith.constant 5.000000e-01 : f32
    %925 = vector.broadcast %cst_360 : f32 to vector<8x128xf32>
    %926 = arith.mulf %925, %924 : vector<8x128xf32>
    %cst_361 = arith.constant 5.000000e-01 : f32
    %927 = vector.broadcast %cst_361 : f32 to vector<8x128xf32>
    %928 = arith.addf %926, %927 : vector<8x128xf32>
    %929 = vector.extract_strided_slice %880 {offsets = [0, 256], sizes = [8, 128], strides = [1, 1]} : vector<8x512xf32> to vector<8x128xf32>
    %930 = math.tanh %929 : vector<8x128xf32>
    %931 = vector.extract_strided_slice %880 {offsets = [0, 384], sizes = [8, 128], strides = [1, 1]} : vector<8x512xf32> to vector<8x128xf32>
    %cst_362 = arith.constant 5.000000e-01 : f32
    %932 = vector.broadcast %cst_362 : f32 to vector<8x128xf32>
    %933 = arith.mulf %932, %931 : vector<8x128xf32>
    %934 = math.tanh %933 : vector<8x128xf32>
    %cst_363 = arith.constant 5.000000e-01 : f32
    %935 = vector.broadcast %cst_363 : f32 to vector<8x128xf32>
    %936 = arith.mulf %935, %934 : vector<8x128xf32>
    %cst_364 = arith.constant 5.000000e-01 : f32
    %937 = vector.broadcast %cst_364 : f32 to vector<8x128xf32>
    %938 = arith.addf %936, %937 : vector<8x128xf32>
    %939 = arith.mulf %928, %858 : vector<8x128xf32>
    %940 = arith.mulf %920, %930 : vector<8x128xf32>
    %941 = arith.addf %939, %940 : vector<8x128xf32>
    %942 = math.tanh %941 : vector<8x128xf32>
    %943 = arith.mulf %938, %942 : vector<8x128xf32>
    %944 = arith.truncf %943 : vector<8x128xf32> to vector<8x128xbf16>
    %945 = arith.index_cast %c2_i32_339 : i32 to index
    %c0_365 = arith.constant 0 : index
    %c0_366 = arith.constant 0 : index
    %946 = vector.load %arg21[%945, %c0_365, %c0_366] : memref<8x8x256xbf16, #tpu.memory_space<vmem>>, vector<1x8x128xbf16>
    %947 = vector.shape_cast %946 : vector<1x8x128xbf16> to vector<8x128xbf16>
    %948 = vector.shape_cast %912 : vector<8x128xbf16> to vector<1x8x128xbf16>
    tpu.vector_store %arg21[%945, %c0_365, %c0_366], %948 {strides = array<i32>} : memref<8x8x256xbf16, #tpu.memory_space<vmem>>, vector<1x8x128xbf16>,
    %949 = arith.index_cast %870 : i32 to index
    %c0_367 = arith.constant 0 : index
    %c128_368 = arith.constant 128 : index
    %950 = vector.load %arg21[%949, %c0_367, %c128_368] : memref<8x8x256xbf16, #tpu.memory_space<vmem>>, vector<1x8x128xbf16>
    %951 = vector.shape_cast %950 : vector<1x8x128xbf16> to vector<8x128xbf16>
    %952 = vector.shape_cast %944 : vector<8x128xbf16> to vector<1x8x128xbf16>
    tpu.vector_store %arg21[%949, %c0_367, %c128_368], %952 {strides = array<i32>} : memref<8x8x256xbf16, #tpu.memory_space<vmem>>, vector<1x8x128xbf16>,
    %c3_i32_369 = arith.constant 3 : i32
    %c7_i32_370 = arith.constant 7 : i32
    %953 = arith.subi %c7_i32_370, %c3_i32_369 : i32
    %954 = arith.index_cast %c3_i32_369 : i32 to index
    %c0_371 = arith.constant 0 : index
    %c0_372 = arith.constant 0 : index
    %955 = vector.load %arg19[%954, %c0_371, %c0_372] : memref<8x8x512xf32, #tpu.memory_space<vmem>>, vector<1x8x512xf32>
    %956 = vector.shape_cast %955 : vector<1x8x512xf32> to vector<8x512xf32>
    %cst_373 = arith.constant dense<0.000000e+00> : vector<8x512xf32>
    %957 = tpu.matmul %912, %700, %cst_373 {dimension_numbers = #tpu.dot_dimension_numbers<[1], [0], [0], [1], [0, 0, 1, 1], [], []>} : vector<8x128xbf16>, vector<128x512xbf16>, vector<8x512xf32> -> vector<8x512xf32>
    %958 = arith.addf %956, %957 : vector<8x512xf32>
    %959 = arith.index_cast %953 : i32 to index
    %c0_374 = arith.constant 0 : index
    %c0_375 = arith.constant 0 : index
    %960 = vector.load %arg20[%959, %c0_374, %c0_375] : memref<8x8x512xf32, #tpu.memory_space<vmem>>, vector<1x8x512xf32>
    %961 = vector.shape_cast %960 : vector<1x8x512xf32> to vector<8x512xf32>
    %cst_376 = arith.constant dense<0.000000e+00> : vector<8x512xf32>
    %962 = tpu.matmul %944, %701, %cst_376 {dimension_numbers = #tpu.dot_dimension_numbers<[1], [0], [0], [1], [0, 0, 1, 1], [], []>} : vector<8x128xbf16>, vector<128x512xbf16>, vector<8x512xf32> -> vector<8x512xf32>
    %963 = arith.addf %961, %962 : vector<8x512xf32>
    %964 = vector.extract_strided_slice %958 {offsets = [0, 0], sizes = [8, 128], strides = [1, 1]} : vector<8x512xf32> to vector<8x128xf32>
    %cst_377 = arith.constant 5.000000e-01 : f32
    %965 = vector.broadcast %cst_377 : f32 to vector<8x128xf32>
    %966 = arith.mulf %965, %964 : vector<8x128xf32>
    %967 = math.tanh %966 : vector<8x128xf32>
    %cst_378 = arith.constant 5.000000e-01 : f32
    %968 = vector.broadcast %cst_378 : f32 to vector<8x128xf32>
    %969 = arith.mulf %968, %967 : vector<8x128xf32>
    %cst_379 = arith.constant 5.000000e-01 : f32
    %970 = vector.broadcast %cst_379 : f32 to vector<8x128xf32>
    %971 = arith.addf %969, %970 : vector<8x128xf32>
    %972 = vector.extract_strided_slice %958 {offsets = [0, 128], sizes = [8, 128], strides = [1, 1]} : vector<8x512xf32> to vector<8x128xf32>
    %cst_380 = arith.constant 5.000000e-01 : f32
    %973 = vector.broadcast %cst_380 : f32 to vector<8x128xf32>
    %974 = arith.mulf %973, %972 : vector<8x128xf32>
    %975 = math.tanh %974 : vector<8x128xf32>
    %cst_381 = arith.constant 5.000000e-01 : f32
    %976 = vector.broadcast %cst_381 : f32 to vector<8x128xf32>
    %977 = arith.mulf %976, %975 : vector<8x128xf32>
    %cst_382 = arith.constant 5.000000e-01 : f32
    %978 = vector.broadcast %cst_382 : f32 to vector<8x128xf32>
    %979 = arith.addf %977, %978 : vector<8x128xf32>
    %980 = vector.extract_strided_slice %958 {offsets = [0, 256], sizes = [8, 128], strides = [1, 1]} : vector<8x512xf32> to vector<8x128xf32>
    %981 = math.tanh %980 : vector<8x128xf32>
    %982 = vector.extract_strided_slice %958 {offsets = [0, 384], sizes = [8, 128], strides = [1, 1]} : vector<8x512xf32> to vector<8x128xf32>
    %cst_383 = arith.constant 5.000000e-01 : f32
    %983 = vector.broadcast %cst_383 : f32 to vector<8x128xf32>
    %984 = arith.mulf %983, %982 : vector<8x128xf32>
    %985 = math.tanh %984 : vector<8x128xf32>
    %cst_384 = arith.constant 5.000000e-01 : f32
    %986 = vector.broadcast %cst_384 : f32 to vector<8x128xf32>
    %987 = arith.mulf %986, %985 : vector<8x128xf32>
    %cst_385 = arith.constant 5.000000e-01 : f32
    %988 = vector.broadcast %cst_385 : f32 to vector<8x128xf32>
    %989 = arith.addf %987, %988 : vector<8x128xf32>
    %990 = arith.mulf %979, %909 : vector<8x128xf32>
    %991 = arith.mulf %971, %981 : vector<8x128xf32>
    %992 = arith.addf %990, %991 : vector<8x128xf32>
    %993 = math.tanh %992 : vector<8x128xf32>
    %994 = arith.mulf %989, %993 : vector<8x128xf32>
    %995 = arith.truncf %994 : vector<8x128xf32> to vector<8x128xbf16>
    %996 = vector.extract_strided_slice %963 {offsets = [0, 0], sizes = [8, 128], strides = [1, 1]} : vector<8x512xf32> to vector<8x128xf32>
    %cst_386 = arith.constant 5.000000e-01 : f32
    %997 = vector.broadcast %cst_386 : f32 to vector<8x128xf32>
    %998 = arith.mulf %997, %996 : vector<8x128xf32>
    %999 = math.tanh %998 : vector<8x128xf32>
    %cst_387 = arith.constant 5.000000e-01 : f32
    %1000 = vector.broadcast %cst_387 : f32 to vector<8x128xf32>
    %1001 = arith.mulf %1000, %999 : vector<8x128xf32>
    %cst_388 = arith.constant 5.000000e-01 : f32
    %1002 = vector.broadcast %cst_388 : f32 to vector<8x128xf32>
    %1003 = arith.addf %1001, %1002 : vector<8x128xf32>
    %1004 = vector.extract_strided_slice %963 {offsets = [0, 128], sizes = [8, 128], strides = [1, 1]} : vector<8x512xf32> to vector<8x128xf32>
    %cst_389 = arith.constant 5.000000e-01 : f32
    %1005 = vector.broadcast %cst_389 : f32 to vector<8x128xf32>
    %1006 = arith.mulf %1005, %1004 : vector<8x128xf32>
    %1007 = math.tanh %1006 : vector<8x128xf32>
    %cst_390 = arith.constant 5.000000e-01 : f32
    %1008 = vector.broadcast %cst_390 : f32 to vector<8x128xf32>
    %1009 = arith.mulf %1008, %1007 : vector<8x128xf32>
    %cst_391 = arith.constant 5.000000e-01 : f32
    %1010 = vector.broadcast %cst_391 : f32 to vector<8x128xf32>
    %1011 = arith.addf %1009, %1010 : vector<8x128xf32>
    %1012 = vector.extract_strided_slice %963 {offsets = [0, 256], sizes = [8, 128], strides = [1, 1]} : vector<8x512xf32> to vector<8x128xf32>
    %1013 = math.tanh %1012 : vector<8x128xf32>
    %1014 = vector.extract_strided_slice %963 {offsets = [0, 384], sizes = [8, 128], strides = [1, 1]} : vector<8x512xf32> to vector<8x128xf32>
    %cst_392 = arith.constant 5.000000e-01 : f32
    %1015 = vector.broadcast %cst_392 : f32 to vector<8x128xf32>
    %1016 = arith.mulf %1015, %1014 : vector<8x128xf32>
    %1017 = math.tanh %1016 : vector<8x128xf32>
    %cst_393 = arith.constant 5.000000e-01 : f32
    %1018 = vector.broadcast %cst_393 : f32 to vector<8x128xf32>
    %1019 = arith.mulf %1018, %1017 : vector<8x128xf32>
    %cst_394 = arith.constant 5.000000e-01 : f32
    %1020 = vector.broadcast %cst_394 : f32 to vector<8x128xf32>
    %1021 = arith.addf %1019, %1020 : vector<8x128xf32>
    %1022 = arith.mulf %1011, %941 : vector<8x128xf32>
    %1023 = arith.mulf %1003, %1013 : vector<8x128xf32>
    %1024 = arith.addf %1022, %1023 : vector<8x128xf32>
    %1025 = math.tanh %1024 : vector<8x128xf32>
    %1026 = arith.mulf %1021, %1025 : vector<8x128xf32>
    %1027 = arith.truncf %1026 : vector<8x128xf32> to vector<8x128xbf16>
    %1028 = arith.index_cast %c3_i32_369 : i32 to index
    %c0_395 = arith.constant 0 : index
    %c0_396 = arith.constant 0 : index
    %1029 = vector.load %arg21[%1028, %c0_395, %c0_396] : memref<8x8x256xbf16, #tpu.memory_space<vmem>>, vector<1x8x128xbf16>
    %1030 = vector.shape_cast %1029 : vector<1x8x128xbf16> to vector<8x128xbf16>
    %1031 = vector.shape_cast %995 : vector<8x128xbf16> to vector<1x8x128xbf16>
    tpu.vector_store %arg21[%1028, %c0_395, %c0_396], %1031 {strides = array<i32>} : memref<8x8x256xbf16, #tpu.memory_space<vmem>>, vector<1x8x128xbf16>,
    %1032 = arith.index_cast %953 : i32 to index
    %c0_397 = arith.constant 0 : index
    %c128_398 = arith.constant 128 : index
    %1033 = vector.load %arg21[%1032, %c0_397, %c128_398] : memref<8x8x256xbf16, #tpu.memory_space<vmem>>, vector<1x8x128xbf16>
    %1034 = vector.shape_cast %1033 : vector<1x8x128xbf16> to vector<8x128xbf16>
    %1035 = vector.shape_cast %1027 : vector<8x128xbf16> to vector<1x8x128xbf16>
    tpu.vector_store %arg21[%1032, %c0_397, %c128_398], %1035 {strides = array<i32>} : memref<8x8x256xbf16, #tpu.memory_space<vmem>>, vector<1x8x128xbf16>,
    %c4_i32_399 = arith.constant 4 : i32
    %c7_i32_400 = arith.constant 7 : i32
    %1036 = arith.subi %c7_i32_400, %c4_i32_399 : i32
    %1037 = arith.index_cast %c4_i32_399 : i32 to index
    %c0_401 = arith.constant 0 : index
    %c0_402 = arith.constant 0 : index
    %1038 = vector.load %arg19[%1037, %c0_401, %c0_402] : memref<8x8x512xf32, #tpu.memory_space<vmem>>, vector<1x8x512xf32>
    %1039 = vector.shape_cast %1038 : vector<1x8x512xf32> to vector<8x512xf32>
    %cst_403 = arith.constant dense<0.000000e+00> : vector<8x512xf32>
    %1040 = tpu.matmul %995, %700, %cst_403 {dimension_numbers = #tpu.dot_dimension_numbers<[1], [0], [0], [1], [0, 0, 1, 1], [], []>} : vector<8x128xbf16>, vector<128x512xbf16>, vector<8x512xf32> -> vector<8x512xf32>
    %1041 = arith.addf %1039, %1040 : vector<8x512xf32>
    %1042 = arith.index_cast %1036 : i32 to index
    %c0_404 = arith.constant 0 : index
    %c0_405 = arith.constant 0 : index
    %1043 = vector.load %arg20[%1042, %c0_404, %c0_405] : memref<8x8x512xf32, #tpu.memory_space<vmem>>, vector<1x8x512xf32>
    %1044 = vector.shape_cast %1043 : vector<1x8x512xf32> to vector<8x512xf32>
    %cst_406 = arith.constant dense<0.000000e+00> : vector<8x512xf32>
    %1045 = tpu.matmul %1027, %701, %cst_406 {dimension_numbers = #tpu.dot_dimension_numbers<[1], [0], [0], [1], [0, 0, 1, 1], [], []>} : vector<8x128xbf16>, vector<128x512xbf16>, vector<8x512xf32> -> vector<8x512xf32>
    %1046 = arith.addf %1044, %1045 : vector<8x512xf32>
    %1047 = vector.extract_strided_slice %1041 {offsets = [0, 0], sizes = [8, 128], strides = [1, 1]} : vector<8x512xf32> to vector<8x128xf32>
    %cst_407 = arith.constant 5.000000e-01 : f32
    %1048 = vector.broadcast %cst_407 : f32 to vector<8x128xf32>
    %1049 = arith.mulf %1048, %1047 : vector<8x128xf32>
    %1050 = math.tanh %1049 : vector<8x128xf32>
    %cst_408 = arith.constant 5.000000e-01 : f32
    %1051 = vector.broadcast %cst_408 : f32 to vector<8x128xf32>
    %1052 = arith.mulf %1051, %1050 : vector<8x128xf32>
    %cst_409 = arith.constant 5.000000e-01 : f32
    %1053 = vector.broadcast %cst_409 : f32 to vector<8x128xf32>
    %1054 = arith.addf %1052, %1053 : vector<8x128xf32>
    %1055 = vector.extract_strided_slice %1041 {offsets = [0, 128], sizes = [8, 128], strides = [1, 1]} : vector<8x512xf32> to vector<8x128xf32>
    %cst_410 = arith.constant 5.000000e-01 : f32
    %1056 = vector.broadcast %cst_410 : f32 to vector<8x128xf32>
    %1057 = arith.mulf %1056, %1055 : vector<8x128xf32>
    %1058 = math.tanh %1057 : vector<8x128xf32>
    %cst_411 = arith.constant 5.000000e-01 : f32
    %1059 = vector.broadcast %cst_411 : f32 to vector<8x128xf32>
    %1060 = arith.mulf %1059, %1058 : vector<8x128xf32>
    %cst_412 = arith.constant 5.000000e-01 : f32
    %1061 = vector.broadcast %cst_412 : f32 to vector<8x128xf32>
    %1062 = arith.addf %1060, %1061 : vector<8x128xf32>
    %1063 = vector.extract_strided_slice %1041 {offsets = [0, 256], sizes = [8, 128], strides = [1, 1]} : vector<8x512xf32> to vector<8x128xf32>
    %1064 = math.tanh %1063 : vector<8x128xf32>
    %1065 = vector.extract_strided_slice %1041 {offsets = [0, 384], sizes = [8, 128], strides = [1, 1]} : vector<8x512xf32> to vector<8x128xf32>
    %cst_413 = arith.constant 5.000000e-01 : f32
    %1066 = vector.broadcast %cst_413 : f32 to vector<8x128xf32>
    %1067 = arith.mulf %1066, %1065 : vector<8x128xf32>
    %1068 = math.tanh %1067 : vector<8x128xf32>
    %cst_414 = arith.constant 5.000000e-01 : f32
    %1069 = vector.broadcast %cst_414 : f32 to vector<8x128xf32>
    %1070 = arith.mulf %1069, %1068 : vector<8x128xf32>
    %cst_415 = arith.constant 5.000000e-01 : f32
    %1071 = vector.broadcast %cst_415 : f32 to vector<8x128xf32>
    %1072 = arith.addf %1070, %1071 : vector<8x128xf32>
    %1073 = arith.mulf %1062, %992 : vector<8x128xf32>
    %1074 = arith.mulf %1054, %1064 : vector<8x128xf32>
    %1075 = arith.addf %1073, %1074 : vector<8x128xf32>
    %1076 = math.tanh %1075 : vector<8x128xf32>
    %1077 = arith.mulf %1072, %1076 : vector<8x128xf32>
    %1078 = arith.truncf %1077 : vector<8x128xf32> to vector<8x128xbf16>
    %1079 = vector.extract_strided_slice %1046 {offsets = [0, 0], sizes = [8, 128], strides = [1, 1]} : vector<8x512xf32> to vector<8x128xf32>
    %cst_416 = arith.constant 5.000000e-01 : f32
    %1080 = vector.broadcast %cst_416 : f32 to vector<8x128xf32>
    %1081 = arith.mulf %1080, %1079 : vector<8x128xf32>
    %1082 = math.tanh %1081 : vector<8x128xf32>
    %cst_417 = arith.constant 5.000000e-01 : f32
    %1083 = vector.broadcast %cst_417 : f32 to vector<8x128xf32>
    %1084 = arith.mulf %1083, %1082 : vector<8x128xf32>
    %cst_418 = arith.constant 5.000000e-01 : f32
    %1085 = vector.broadcast %cst_418 : f32 to vector<8x128xf32>
    %1086 = arith.addf %1084, %1085 : vector<8x128xf32>
    %1087 = vector.extract_strided_slice %1046 {offsets = [0, 128], sizes = [8, 128], strides = [1, 1]} : vector<8x512xf32> to vector<8x128xf32>
    %cst_419 = arith.constant 5.000000e-01 : f32
    %1088 = vector.broadcast %cst_419 : f32 to vector<8x128xf32>
    %1089 = arith.mulf %1088, %1087 : vector<8x128xf32>
    %1090 = math.tanh %1089 : vector<8x128xf32>
    %cst_420 = arith.constant 5.000000e-01 : f32
    %1091 = vector.broadcast %cst_420 : f32 to vector<8x128xf32>
    %1092 = arith.mulf %1091, %1090 : vector<8x128xf32>
    %cst_421 = arith.constant 5.000000e-01 : f32
    %1093 = vector.broadcast %cst_421 : f32 to vector<8x128xf32>
    %1094 = arith.addf %1092, %1093 : vector<8x128xf32>
    %1095 = vector.extract_strided_slice %1046 {offsets = [0, 256], sizes = [8, 128], strides = [1, 1]} : vector<8x512xf32> to vector<8x128xf32>
    %1096 = math.tanh %1095 : vector<8x128xf32>
    %1097 = vector.extract_strided_slice %1046 {offsets = [0, 384], sizes = [8, 128], strides = [1, 1]} : vector<8x512xf32> to vector<8x128xf32>
    %cst_422 = arith.constant 5.000000e-01 : f32
    %1098 = vector.broadcast %cst_422 : f32 to vector<8x128xf32>
    %1099 = arith.mulf %1098, %1097 : vector<8x128xf32>
    %1100 = math.tanh %1099 : vector<8x128xf32>
    %cst_423 = arith.constant 5.000000e-01 : f32
    %1101 = vector.broadcast %cst_423 : f32 to vector<8x128xf32>
    %1102 = arith.mulf %1101, %1100 : vector<8x128xf32>
    %cst_424 = arith.constant 5.000000e-01 : f32
    %1103 = vector.broadcast %cst_424 : f32 to vector<8x128xf32>
    %1104 = arith.addf %1102, %1103 : vector<8x128xf32>
    %1105 = arith.mulf %1094, %1024 : vector<8x128xf32>
    %1106 = arith.mulf %1086, %1096 : vector<8x128xf32>
    %1107 = arith.addf %1105, %1106 : vector<8x128xf32>
    %1108 = math.tanh %1107 : vector<8x128xf32>
    %1109 = arith.mulf %1104, %1108 : vector<8x128xf32>
    %1110 = arith.truncf %1109 : vector<8x128xf32> to vector<8x128xbf16>
    %1111 = arith.index_cast %c4_i32_399 : i32 to index
    %c0_425 = arith.constant 0 : index
    %c0_426 = arith.constant 0 : index
    %1112 = vector.load %arg21[%1111, %c0_425, %c0_426] : memref<8x8x256xbf16, #tpu.memory_space<vmem>>, vector<1x8x128xbf16>
    %1113 = vector.shape_cast %1112 : vector<1x8x128xbf16> to vector<8x128xbf16>
    %1114 = vector.shape_cast %1078 : vector<8x128xbf16> to vector<1x8x128xbf16>
    tpu.vector_store %arg21[%1111, %c0_425, %c0_426], %1114 {strides = array<i32>} : memref<8x8x256xbf16, #tpu.memory_space<vmem>>, vector<1x8x128xbf16>,
    %1115 = arith.index_cast %1036 : i32 to index
    %c0_427 = arith.constant 0 : index
    %c128_428 = arith.constant 128 : index
    %1116 = vector.load %arg21[%1115, %c0_427, %c128_428] : memref<8x8x256xbf16, #tpu.memory_space<vmem>>, vector<1x8x128xbf16>
    %1117 = vector.shape_cast %1116 : vector<1x8x128xbf16> to vector<8x128xbf16>
    %1118 = vector.shape_cast %1110 : vector<8x128xbf16> to vector<1x8x128xbf16>
    tpu.vector_store %arg21[%1115, %c0_427, %c128_428], %1118 {strides = array<i32>} : memref<8x8x256xbf16, #tpu.memory_space<vmem>>, vector<1x8x128xbf16>,
    %c5_i32_429 = arith.constant 5 : i32
    %c7_i32_430 = arith.constant 7 : i32
    %1119 = arith.subi %c7_i32_430, %c5_i32_429 : i32
    %1120 = arith.index_cast %c5_i32_429 : i32 to index
    %c0_431 = arith.constant 0 : index
    %c0_432 = arith.constant 0 : index
    %1121 = vector.load %arg19[%1120, %c0_431, %c0_432] : memref<8x8x512xf32, #tpu.memory_space<vmem>>, vector<1x8x512xf32>
    %1122 = vector.shape_cast %1121 : vector<1x8x512xf32> to vector<8x512xf32>
    %cst_433 = arith.constant dense<0.000000e+00> : vector<8x512xf32>
    %1123 = tpu.matmul %1078, %700, %cst_433 {dimension_numbers = #tpu.dot_dimension_numbers<[1], [0], [0], [1], [0, 0, 1, 1], [], []>} : vector<8x128xbf16>, vector<128x512xbf16>, vector<8x512xf32> -> vector<8x512xf32>
    %1124 = arith.addf %1122, %1123 : vector<8x512xf32>
    %1125 = arith.index_cast %1119 : i32 to index
    %c0_434 = arith.constant 0 : index
    %c0_435 = arith.constant 0 : index
    %1126 = vector.load %arg20[%1125, %c0_434, %c0_435] : memref<8x8x512xf32, #tpu.memory_space<vmem>>, vector<1x8x512xf32>
    %1127 = vector.shape_cast %1126 : vector<1x8x512xf32> to vector<8x512xf32>
    %cst_436 = arith.constant dense<0.000000e+00> : vector<8x512xf32>
    %1128 = tpu.matmul %1110, %701, %cst_436 {dimension_numbers = #tpu.dot_dimension_numbers<[1], [0], [0], [1], [0, 0, 1, 1], [], []>} : vector<8x128xbf16>, vector<128x512xbf16>, vector<8x512xf32> -> vector<8x512xf32>
    %1129 = arith.addf %1127, %1128 : vector<8x512xf32>
    %1130 = vector.extract_strided_slice %1124 {offsets = [0, 0], sizes = [8, 128], strides = [1, 1]} : vector<8x512xf32> to vector<8x128xf32>
    %cst_437 = arith.constant 5.000000e-01 : f32
    %1131 = vector.broadcast %cst_437 : f32 to vector<8x128xf32>
    %1132 = arith.mulf %1131, %1130 : vector<8x128xf32>
    %1133 = math.tanh %1132 : vector<8x128xf32>
    %cst_438 = arith.constant 5.000000e-01 : f32
    %1134 = vector.broadcast %cst_438 : f32 to vector<8x128xf32>
    %1135 = arith.mulf %1134, %1133 : vector<8x128xf32>
    %cst_439 = arith.constant 5.000000e-01 : f32
    %1136 = vector.broadcast %cst_439 : f32 to vector<8x128xf32>
    %1137 = arith.addf %1135, %1136 : vector<8x128xf32>
    %1138 = vector.extract_strided_slice %1124 {offsets = [0, 128], sizes = [8, 128], strides = [1, 1]} : vector<8x512xf32> to vector<8x128xf32>
    %cst_440 = arith.constant 5.000000e-01 : f32
    %1139 = vector.broadcast %cst_440 : f32 to vector<8x128xf32>
    %1140 = arith.mulf %1139, %1138 : vector<8x128xf32>
    %1141 = math.tanh %1140 : vector<8x128xf32>
    %cst_441 = arith.constant 5.000000e-01 : f32
    %1142 = vector.broadcast %cst_441 : f32 to vector<8x128xf32>
    %1143 = arith.mulf %1142, %1141 : vector<8x128xf32>
    %cst_442 = arith.constant 5.000000e-01 : f32
    %1144 = vector.broadcast %cst_442 : f32 to vector<8x128xf32>
    %1145 = arith.addf %1143, %1144 : vector<8x128xf32>
    %1146 = vector.extract_strided_slice %1124 {offsets = [0, 256], sizes = [8, 128], strides = [1, 1]} : vector<8x512xf32> to vector<8x128xf32>
    %1147 = math.tanh %1146 : vector<8x128xf32>
    %1148 = vector.extract_strided_slice %1124 {offsets = [0, 384], sizes = [8, 128], strides = [1, 1]} : vector<8x512xf32> to vector<8x128xf32>
    %cst_443 = arith.constant 5.000000e-01 : f32
    %1149 = vector.broadcast %cst_443 : f32 to vector<8x128xf32>
    %1150 = arith.mulf %1149, %1148 : vector<8x128xf32>
    %1151 = math.tanh %1150 : vector<8x128xf32>
    %cst_444 = arith.constant 5.000000e-01 : f32
    %1152 = vector.broadcast %cst_444 : f32 to vector<8x128xf32>
    %1153 = arith.mulf %1152, %1151 : vector<8x128xf32>
    %cst_445 = arith.constant 5.000000e-01 : f32
    %1154 = vector.broadcast %cst_445 : f32 to vector<8x128xf32>
    %1155 = arith.addf %1153, %1154 : vector<8x128xf32>
    %1156 = arith.mulf %1145, %1075 : vector<8x128xf32>
    %1157 = arith.mulf %1137, %1147 : vector<8x128xf32>
    %1158 = arith.addf %1156, %1157 : vector<8x128xf32>
    %1159 = math.tanh %1158 : vector<8x128xf32>
    %1160 = arith.mulf %1155, %1159 : vector<8x128xf32>
    %1161 = arith.truncf %1160 : vector<8x128xf32> to vector<8x128xbf16>
    %1162 = vector.extract_strided_slice %1129 {offsets = [0, 0], sizes = [8, 128], strides = [1, 1]} : vector<8x512xf32> to vector<8x128xf32>
    %cst_446 = arith.constant 5.000000e-01 : f32
    %1163 = vector.broadcast %cst_446 : f32 to vector<8x128xf32>
    %1164 = arith.mulf %1163, %1162 : vector<8x128xf32>
    %1165 = math.tanh %1164 : vector<8x128xf32>
    %cst_447 = arith.constant 5.000000e-01 : f32
    %1166 = vector.broadcast %cst_447 : f32 to vector<8x128xf32>
    %1167 = arith.mulf %1166, %1165 : vector<8x128xf32>
    %cst_448 = arith.constant 5.000000e-01 : f32
    %1168 = vector.broadcast %cst_448 : f32 to vector<8x128xf32>
    %1169 = arith.addf %1167, %1168 : vector<8x128xf32>
    %1170 = vector.extract_strided_slice %1129 {offsets = [0, 128], sizes = [8, 128], strides = [1, 1]} : vector<8x512xf32> to vector<8x128xf32>
    %cst_449 = arith.constant 5.000000e-01 : f32
    %1171 = vector.broadcast %cst_449 : f32 to vector<8x128xf32>
    %1172 = arith.mulf %1171, %1170 : vector<8x128xf32>
    %1173 = math.tanh %1172 : vector<8x128xf32>
    %cst_450 = arith.constant 5.000000e-01 : f32
    %1174 = vector.broadcast %cst_450 : f32 to vector<8x128xf32>
    %1175 = arith.mulf %1174, %1173 : vector<8x128xf32>
    %cst_451 = arith.constant 5.000000e-01 : f32
    %1176 = vector.broadcast %cst_451 : f32 to vector<8x128xf32>
    %1177 = arith.addf %1175, %1176 : vector<8x128xf32>
    %1178 = vector.extract_strided_slice %1129 {offsets = [0, 256], sizes = [8, 128], strides = [1, 1]} : vector<8x512xf32> to vector<8x128xf32>
    %1179 = math.tanh %1178 : vector<8x128xf32>
    %1180 = vector.extract_strided_slice %1129 {offsets = [0, 384], sizes = [8, 128], strides = [1, 1]} : vector<8x512xf32> to vector<8x128xf32>
    %cst_452 = arith.constant 5.000000e-01 : f32
    %1181 = vector.broadcast %cst_452 : f32 to vector<8x128xf32>
    %1182 = arith.mulf %1181, %1180 : vector<8x128xf32>
    %1183 = math.tanh %1182 : vector<8x128xf32>
    %cst_453 = arith.constant 5.000000e-01 : f32
    %1184 = vector.broadcast %cst_453 : f32 to vector<8x128xf32>
    %1185 = arith.mulf %1184, %1183 : vector<8x128xf32>
    %cst_454 = arith.constant 5.000000e-01 : f32
    %1186 = vector.broadcast %cst_454 : f32 to vector<8x128xf32>
    %1187 = arith.addf %1185, %1186 : vector<8x128xf32>
    %1188 = arith.mulf %1177, %1107 : vector<8x128xf32>
    %1189 = arith.mulf %1169, %1179 : vector<8x128xf32>
    %1190 = arith.addf %1188, %1189 : vector<8x128xf32>
    %1191 = math.tanh %1190 : vector<8x128xf32>
    %1192 = arith.mulf %1187, %1191 : vector<8x128xf32>
    %1193 = arith.truncf %1192 : vector<8x128xf32> to vector<8x128xbf16>
    %1194 = arith.index_cast %c5_i32_429 : i32 to index
    %c0_455 = arith.constant 0 : index
    %c0_456 = arith.constant 0 : index
    %1195 = vector.load %arg21[%1194, %c0_455, %c0_456] : memref<8x8x256xbf16, #tpu.memory_space<vmem>>, vector<1x8x128xbf16>
    %1196 = vector.shape_cast %1195 : vector<1x8x128xbf16> to vector<8x128xbf16>
    %1197 = vector.shape_cast %1161 : vector<8x128xbf16> to vector<1x8x128xbf16>
    tpu.vector_store %arg21[%1194, %c0_455, %c0_456], %1197 {strides = array<i32>} : memref<8x8x256xbf16, #tpu.memory_space<vmem>>, vector<1x8x128xbf16>,
    %1198 = arith.index_cast %1119 : i32 to index
    %c0_457 = arith.constant 0 : index
    %c128_458 = arith.constant 128 : index
    %1199 = vector.load %arg21[%1198, %c0_457, %c128_458] : memref<8x8x256xbf16, #tpu.memory_space<vmem>>, vector<1x8x128xbf16>
    %1200 = vector.shape_cast %1199 : vector<1x8x128xbf16> to vector<8x128xbf16>
    %1201 = vector.shape_cast %1193 : vector<8x128xbf16> to vector<1x8x128xbf16>
    tpu.vector_store %arg21[%1198, %c0_457, %c128_458], %1201 {strides = array<i32>} : memref<8x8x256xbf16, #tpu.memory_space<vmem>>, vector<1x8x128xbf16>,
    %c6_i32_459 = arith.constant 6 : i32
    %c7_i32_460 = arith.constant 7 : i32
    %1202 = arith.subi %c7_i32_460, %c6_i32_459 : i32
    %1203 = arith.index_cast %c6_i32_459 : i32 to index
    %c0_461 = arith.constant 0 : index
    %c0_462 = arith.constant 0 : index
    %1204 = vector.load %arg19[%1203, %c0_461, %c0_462] : memref<8x8x512xf32, #tpu.memory_space<vmem>>, vector<1x8x512xf32>
    %1205 = vector.shape_cast %1204 : vector<1x8x512xf32> to vector<8x512xf32>
    %cst_463 = arith.constant dense<0.000000e+00> : vector<8x512xf32>
    %1206 = tpu.matmul %1161, %700, %cst_463 {dimension_numbers = #tpu.dot_dimension_numbers<[1], [0], [0], [1], [0, 0, 1, 1], [], []>} : vector<8x128xbf16>, vector<128x512xbf16>, vector<8x512xf32> -> vector<8x512xf32>
    %1207 = arith.addf %1205, %1206 : vector<8x512xf32>
    %1208 = arith.index_cast %1202 : i32 to index
    %c0_464 = arith.constant 0 : index
    %c0_465 = arith.constant 0 : index
    %1209 = vector.load %arg20[%1208, %c0_464, %c0_465] : memref<8x8x512xf32, #tpu.memory_space<vmem>>, vector<1x8x512xf32>
    %1210 = vector.shape_cast %1209 : vector<1x8x512xf32> to vector<8x512xf32>
    %cst_466 = arith.constant dense<0.000000e+00> : vector<8x512xf32>
    %1211 = tpu.matmul %1193, %701, %cst_466 {dimension_numbers = #tpu.dot_dimension_numbers<[1], [0], [0], [1], [0, 0, 1, 1], [], []>} : vector<8x128xbf16>, vector<128x512xbf16>, vector<8x512xf32> -> vector<8x512xf32>
    %1212 = arith.addf %1210, %1211 : vector<8x512xf32>
    %1213 = vector.extract_strided_slice %1207 {offsets = [0, 0], sizes = [8, 128], strides = [1, 1]} : vector<8x512xf32> to vector<8x128xf32>
    %cst_467 = arith.constant 5.000000e-01 : f32
    %1214 = vector.broadcast %cst_467 : f32 to vector<8x128xf32>
    %1215 = arith.mulf %1214, %1213 : vector<8x128xf32>
    %1216 = math.tanh %1215 : vector<8x128xf32>
    %cst_468 = arith.constant 5.000000e-01 : f32
    %1217 = vector.broadcast %cst_468 : f32 to vector<8x128xf32>
    %1218 = arith.mulf %1217, %1216 : vector<8x128xf32>
    %cst_469 = arith.constant 5.000000e-01 : f32
    %1219 = vector.broadcast %cst_469 : f32 to vector<8x128xf32>
    %1220 = arith.addf %1218, %1219 : vector<8x128xf32>
    %1221 = vector.extract_strided_slice %1207 {offsets = [0, 128], sizes = [8, 128], strides = [1, 1]} : vector<8x512xf32> to vector<8x128xf32>
    %cst_470 = arith.constant 5.000000e-01 : f32
    %1222 = vector.broadcast %cst_470 : f32 to vector<8x128xf32>
    %1223 = arith.mulf %1222, %1221 : vector<8x128xf32>
    %1224 = math.tanh %1223 : vector<8x128xf32>
    %cst_471 = arith.constant 5.000000e-01 : f32
    %1225 = vector.broadcast %cst_471 : f32 to vector<8x128xf32>
    %1226 = arith.mulf %1225, %1224 : vector<8x128xf32>
    %cst_472 = arith.constant 5.000000e-01 : f32
    %1227 = vector.broadcast %cst_472 : f32 to vector<8x128xf32>
    %1228 = arith.addf %1226, %1227 : vector<8x128xf32>
    %1229 = vector.extract_strided_slice %1207 {offsets = [0, 256], sizes = [8, 128], strides = [1, 1]} : vector<8x512xf32> to vector<8x128xf32>
    %1230 = math.tanh %1229 : vector<8x128xf32>
    %1231 = vector.extract_strided_slice %1207 {offsets = [0, 384], sizes = [8, 128], strides = [1, 1]} : vector<8x512xf32> to vector<8x128xf32>
    %cst_473 = arith.constant 5.000000e-01 : f32
    %1232 = vector.broadcast %cst_473 : f32 to vector<8x128xf32>
    %1233 = arith.mulf %1232, %1231 : vector<8x128xf32>
    %1234 = math.tanh %1233 : vector<8x128xf32>
    %cst_474 = arith.constant 5.000000e-01 : f32
    %1235 = vector.broadcast %cst_474 : f32 to vector<8x128xf32>
    %1236 = arith.mulf %1235, %1234 : vector<8x128xf32>
    %cst_475 = arith.constant 5.000000e-01 : f32
    %1237 = vector.broadcast %cst_475 : f32 to vector<8x128xf32>
    %1238 = arith.addf %1236, %1237 : vector<8x128xf32>
    %1239 = arith.mulf %1228, %1158 : vector<8x128xf32>
    %1240 = arith.mulf %1220, %1230 : vector<8x128xf32>
    %1241 = arith.addf %1239, %1240 : vector<8x128xf32>
    %1242 = math.tanh %1241 : vector<8x128xf32>
    %1243 = arith.mulf %1238, %1242 : vector<8x128xf32>
    %1244 = arith.truncf %1243 : vector<8x128xf32> to vector<8x128xbf16>
    %1245 = vector.extract_strided_slice %1212 {offsets = [0, 0], sizes = [8, 128], strides = [1, 1]} : vector<8x512xf32> to vector<8x128xf32>
    %cst_476 = arith.constant 5.000000e-01 : f32
    %1246 = vector.broadcast %cst_476 : f32 to vector<8x128xf32>
    %1247 = arith.mulf %1246, %1245 : vector<8x128xf32>
    %1248 = math.tanh %1247 : vector<8x128xf32>
    %cst_477 = arith.constant 5.000000e-01 : f32
    %1249 = vector.broadcast %cst_477 : f32 to vector<8x128xf32>
    %1250 = arith.mulf %1249, %1248 : vector<8x128xf32>
    %cst_478 = arith.constant 5.000000e-01 : f32
    %1251 = vector.broadcast %cst_478 : f32 to vector<8x128xf32>
    %1252 = arith.addf %1250, %1251 : vector<8x128xf32>
    %1253 = vector.extract_strided_slice %1212 {offsets = [0, 128], sizes = [8, 128], strides = [1, 1]} : vector<8x512xf32> to vector<8x128xf32>
    %cst_479 = arith.constant 5.000000e-01 : f32
    %1254 = vector.broadcast %cst_479 : f32 to vector<8x128xf32>
    %1255 = arith.mulf %1254, %1253 : vector<8x128xf32>
    %1256 = math.tanh %1255 : vector<8x128xf32>
    %cst_480 = arith.constant 5.000000e-01 : f32
    %1257 = vector.broadcast %cst_480 : f32 to vector<8x128xf32>
    %1258 = arith.mulf %1257, %1256 : vector<8x128xf32>
    %cst_481 = arith.constant 5.000000e-01 : f32
    %1259 = vector.broadcast %cst_481 : f32 to vector<8x128xf32>
    %1260 = arith.addf %1258, %1259 : vector<8x128xf32>
    %1261 = vector.extract_strided_slice %1212 {offsets = [0, 256], sizes = [8, 128], strides = [1, 1]} : vector<8x512xf32> to vector<8x128xf32>
    %1262 = math.tanh %1261 : vector<8x128xf32>
    %1263 = vector.extract_strided_slice %1212 {offsets = [0, 384], sizes = [8, 128], strides = [1, 1]} : vector<8x512xf32> to vector<8x128xf32>
    %cst_482 = arith.constant 5.000000e-01 : f32
    %1264 = vector.broadcast %cst_482 : f32 to vector<8x128xf32>
    %1265 = arith.mulf %1264, %1263 : vector<8x128xf32>
    %1266 = math.tanh %1265 : vector<8x128xf32>
    %cst_483 = arith.constant 5.000000e-01 : f32
    %1267 = vector.broadcast %cst_483 : f32 to vector<8x128xf32>
    %1268 = arith.mulf %1267, %1266 : vector<8x128xf32>
    %cst_484 = arith.constant 5.000000e-01 : f32
    %1269 = vector.broadcast %cst_484 : f32 to vector<8x128xf32>
    %1270 = arith.addf %1268, %1269 : vector<8x128xf32>
    %1271 = arith.mulf %1260, %1190 : vector<8x128xf32>
    %1272 = arith.mulf %1252, %1262 : vector<8x128xf32>
    %1273 = arith.addf %1271, %1272 : vector<8x128xf32>
    %1274 = math.tanh %1273 : vector<8x128xf32>
    %1275 = arith.mulf %1270, %1274 : vector<8x128xf32>
    %1276 = arith.truncf %1275 : vector<8x128xf32> to vector<8x128xbf16>
    %1277 = arith.index_cast %c6_i32_459 : i32 to index
    %c0_485 = arith.constant 0 : index
    %c0_486 = arith.constant 0 : index
    %1278 = vector.load %arg21[%1277, %c0_485, %c0_486] : memref<8x8x256xbf16, #tpu.memory_space<vmem>>, vector<1x8x128xbf16>
    %1279 = vector.shape_cast %1278 : vector<1x8x128xbf16> to vector<8x128xbf16>
    %1280 = vector.shape_cast %1244 : vector<8x128xbf16> to vector<1x8x128xbf16>
    tpu.vector_store %arg21[%1277, %c0_485, %c0_486], %1280 {strides = array<i32>} : memref<8x8x256xbf16, #tpu.memory_space<vmem>>, vector<1x8x128xbf16>,
    %1281 = arith.index_cast %1202 : i32 to index
    %c0_487 = arith.constant 0 : index
    %c128_488 = arith.constant 128 : index
    %1282 = vector.load %arg21[%1281, %c0_487, %c128_488] : memref<8x8x256xbf16, #tpu.memory_space<vmem>>, vector<1x8x128xbf16>
    %1283 = vector.shape_cast %1282 : vector<1x8x128xbf16> to vector<8x128xbf16>
    %1284 = vector.shape_cast %1276 : vector<8x128xbf16> to vector<1x8x128xbf16>
    tpu.vector_store %arg21[%1281, %c0_487, %c128_488], %1284 {strides = array<i32>} : memref<8x8x256xbf16, #tpu.memory_space<vmem>>, vector<1x8x128xbf16>,
    %c7_i32_489 = arith.constant 7 : i32
    %c7_i32_490 = arith.constant 7 : i32
    %1285 = arith.subi %c7_i32_490, %c7_i32_489 : i32
    %1286 = arith.index_cast %c7_i32_489 : i32 to index
    %c0_491 = arith.constant 0 : index
    %c0_492 = arith.constant 0 : index
    %1287 = vector.load %arg19[%1286, %c0_491, %c0_492] : memref<8x8x512xf32, #tpu.memory_space<vmem>>, vector<1x8x512xf32>
    %1288 = vector.shape_cast %1287 : vector<1x8x512xf32> to vector<8x512xf32>
    %cst_493 = arith.constant dense<0.000000e+00> : vector<8x512xf32>
    %1289 = tpu.matmul %1244, %700, %cst_493 {dimension_numbers = #tpu.dot_dimension_numbers<[1], [0], [0], [1], [0, 0, 1, 1], [], []>} : vector<8x128xbf16>, vector<128x512xbf16>, vector<8x512xf32> -> vector<8x512xf32>
    %1290 = arith.addf %1288, %1289 : vector<8x512xf32>
    %1291 = arith.index_cast %1285 : i32 to index
    %c0_494 = arith.constant 0 : index
    %c0_495 = arith.constant 0 : index
    %1292 = vector.load %arg20[%1291, %c0_494, %c0_495] : memref<8x8x512xf32, #tpu.memory_space<vmem>>, vector<1x8x512xf32>
    %1293 = vector.shape_cast %1292 : vector<1x8x512xf32> to vector<8x512xf32>
    %cst_496 = arith.constant dense<0.000000e+00> : vector<8x512xf32>
    %1294 = tpu.matmul %1276, %701, %cst_496 {dimension_numbers = #tpu.dot_dimension_numbers<[1], [0], [0], [1], [0, 0, 1, 1], [], []>} : vector<8x128xbf16>, vector<128x512xbf16>, vector<8x512xf32> -> vector<8x512xf32>
    %1295 = arith.addf %1293, %1294 : vector<8x512xf32>
    %1296 = vector.extract_strided_slice %1290 {offsets = [0, 0], sizes = [8, 128], strides = [1, 1]} : vector<8x512xf32> to vector<8x128xf32>
    %cst_497 = arith.constant 5.000000e-01 : f32
    %1297 = vector.broadcast %cst_497 : f32 to vector<8x128xf32>
    %1298 = arith.mulf %1297, %1296 : vector<8x128xf32>
    %1299 = math.tanh %1298 : vector<8x128xf32>
    %cst_498 = arith.constant 5.000000e-01 : f32
    %1300 = vector.broadcast %cst_498 : f32 to vector<8x128xf32>
    %1301 = arith.mulf %1300, %1299 : vector<8x128xf32>
    %cst_499 = arith.constant 5.000000e-01 : f32
    %1302 = vector.broadcast %cst_499 : f32 to vector<8x128xf32>
    %1303 = arith.addf %1301, %1302 : vector<8x128xf32>
    %1304 = vector.extract_strided_slice %1290 {offsets = [0, 128], sizes = [8, 128], strides = [1, 1]} : vector<8x512xf32> to vector<8x128xf32>
    %cst_500 = arith.constant 5.000000e-01 : f32
    %1305 = vector.broadcast %cst_500 : f32 to vector<8x128xf32>
    %1306 = arith.mulf %1305, %1304 : vector<8x128xf32>
    %1307 = math.tanh %1306 : vector<8x128xf32>
    %cst_501 = arith.constant 5.000000e-01 : f32
    %1308 = vector.broadcast %cst_501 : f32 to vector<8x128xf32>
    %1309 = arith.mulf %1308, %1307 : vector<8x128xf32>
    %cst_502 = arith.constant 5.000000e-01 : f32
    %1310 = vector.broadcast %cst_502 : f32 to vector<8x128xf32>
    %1311 = arith.addf %1309, %1310 : vector<8x128xf32>
    %1312 = vector.extract_strided_slice %1290 {offsets = [0, 256], sizes = [8, 128], strides = [1, 1]} : vector<8x512xf32> to vector<8x128xf32>
    %1313 = math.tanh %1312 : vector<8x128xf32>
    %1314 = vector.extract_strided_slice %1290 {offsets = [0, 384], sizes = [8, 128], strides = [1, 1]} : vector<8x512xf32> to vector<8x128xf32>
    %cst_503 = arith.constant 5.000000e-01 : f32
    %1315 = vector.broadcast %cst_503 : f32 to vector<8x128xf32>
    %1316 = arith.mulf %1315, %1314 : vector<8x128xf32>
    %1317 = math.tanh %1316 : vector<8x128xf32>
    %cst_504 = arith.constant 5.000000e-01 : f32
    %1318 = vector.broadcast %cst_504 : f32 to vector<8x128xf32>
    %1319 = arith.mulf %1318, %1317 : vector<8x128xf32>
    %cst_505 = arith.constant 5.000000e-01 : f32
    %1320 = vector.broadcast %cst_505 : f32 to vector<8x128xf32>
    %1321 = arith.addf %1319, %1320 : vector<8x128xf32>
    %1322 = arith.mulf %1311, %1241 : vector<8x128xf32>
    %1323 = arith.mulf %1303, %1313 : vector<8x128xf32>
    %1324 = arith.addf %1322, %1323 : vector<8x128xf32>
    %1325 = math.tanh %1324 : vector<8x128xf32>
    %1326 = arith.mulf %1321, %1325 : vector<8x128xf32>
    %1327 = arith.truncf %1326 : vector<8x128xf32> to vector<8x128xbf16>
    %1328 = vector.extract_strided_slice %1295 {offsets = [0, 0], sizes = [8, 128], strides = [1, 1]} : vector<8x512xf32> to vector<8x128xf32>
    %cst_506 = arith.constant 5.000000e-01 : f32
    %1329 = vector.broadcast %cst_506 : f32 to vector<8x128xf32>
    %1330 = arith.mulf %1329, %1328 : vector<8x128xf32>
    %1331 = math.tanh %1330 : vector<8x128xf32>
    %cst_507 = arith.constant 5.000000e-01 : f32
    %1332 = vector.broadcast %cst_507 : f32 to vector<8x128xf32>
    %1333 = arith.mulf %1332, %1331 : vector<8x128xf32>
    %cst_508 = arith.constant 5.000000e-01 : f32
    %1334 = vector.broadcast %cst_508 : f32 to vector<8x128xf32>
    %1335 = arith.addf %1333, %1334 : vector<8x128xf32>
    %1336 = vector.extract_strided_slice %1295 {offsets = [0, 128], sizes = [8, 128], strides = [1, 1]} : vector<8x512xf32> to vector<8x128xf32>
    %cst_509 = arith.constant 5.000000e-01 : f32
    %1337 = vector.broadcast %cst_509 : f32 to vector<8x128xf32>
    %1338 = arith.mulf %1337, %1336 : vector<8x128xf32>
    %1339 = math.tanh %1338 : vector<8x128xf32>
    %cst_510 = arith.constant 5.000000e-01 : f32
    %1340 = vector.broadcast %cst_510 : f32 to vector<8x128xf32>
    %1341 = arith.mulf %1340, %1339 : vector<8x128xf32>
    %cst_511 = arith.constant 5.000000e-01 : f32
    %1342 = vector.broadcast %cst_511 : f32 to vector<8x128xf32>
    %1343 = arith.addf %1341, %1342 : vector<8x128xf32>
    %1344 = vector.extract_strided_slice %1295 {offsets = [0, 256], sizes = [8, 128], strides = [1, 1]} : vector<8x512xf32> to vector<8x128xf32>
    %1345 = math.tanh %1344 : vector<8x128xf32>
    %1346 = vector.extract_strided_slice %1295 {offsets = [0, 384], sizes = [8, 128], strides = [1, 1]} : vector<8x512xf32> to vector<8x128xf32>
    %cst_512 = arith.constant 5.000000e-01 : f32
    %1347 = vector.broadcast %cst_512 : f32 to vector<8x128xf32>
    %1348 = arith.mulf %1347, %1346 : vector<8x128xf32>
    %1349 = math.tanh %1348 : vector<8x128xf32>
    %cst_513 = arith.constant 5.000000e-01 : f32
    %1350 = vector.broadcast %cst_513 : f32 to vector<8x128xf32>
    %1351 = arith.mulf %1350, %1349 : vector<8x128xf32>
    %cst_514 = arith.constant 5.000000e-01 : f32
    %1352 = vector.broadcast %cst_514 : f32 to vector<8x128xf32>
    %1353 = arith.addf %1351, %1352 : vector<8x128xf32>
    %1354 = arith.mulf %1343, %1273 : vector<8x128xf32>
    %1355 = arith.mulf %1335, %1345 : vector<8x128xf32>
    %1356 = arith.addf %1354, %1355 : vector<8x128xf32>
    %1357 = math.tanh %1356 : vector<8x128xf32>
    %1358 = arith.mulf %1353, %1357 : vector<8x128xf32>
    %1359 = arith.truncf %1358 : vector<8x128xf32> to vector<8x128xbf16>
    %1360 = arith.index_cast %c7_i32_489 : i32 to index
    %c0_515 = arith.constant 0 : index
    %c0_516 = arith.constant 0 : index
    %1361 = vector.load %arg21[%1360, %c0_515, %c0_516] : memref<8x8x256xbf16, #tpu.memory_space<vmem>>, vector<1x8x128xbf16>
    %1362 = vector.shape_cast %1361 : vector<1x8x128xbf16> to vector<8x128xbf16>
    %1363 = vector.shape_cast %1327 : vector<8x128xbf16> to vector<1x8x128xbf16>
    tpu.vector_store %arg21[%1360, %c0_515, %c0_516], %1363 {strides = array<i32>} : memref<8x8x256xbf16, #tpu.memory_space<vmem>>, vector<1x8x128xbf16>,
    %1364 = arith.index_cast %1285 : i32 to index
    %c0_517 = arith.constant 0 : index
    %c128_518 = arith.constant 128 : index
    %1365 = vector.load %arg21[%1364, %c0_517, %c128_518] : memref<8x8x256xbf16, #tpu.memory_space<vmem>>, vector<1x8x128xbf16>
    %1366 = vector.shape_cast %1365 : vector<1x8x128xbf16> to vector<8x128xbf16>
    %1367 = vector.shape_cast %1359 : vector<8x128xbf16> to vector<1x8x128xbf16>
    tpu.vector_store %arg21[%1364, %c0_517, %c128_518], %1367 {strides = array<i32>} : memref<8x8x256xbf16, #tpu.memory_space<vmem>>, vector<1x8x128xbf16>,
    %c8_i32_519 = arith.constant 8 : i32
    %c0_520 = arith.constant 0 : index
    %c0_521 = arith.constant 0 : index
    %c0_522 = arith.constant 0 : index
    %1368 = vector.load %arg21[%c0_520, %c0_521, %c0_522] : memref<8x8x256xbf16, #tpu.memory_space<vmem>>, vector<8x8x256xbf16>
    %1369 = vector.shape_cast %1368 : vector<8x8x256xbf16> to vector<64x256xbf16>
    %c0_523 = arith.constant 0 : index
    %c0_524 = arith.constant 0 : index
    %1370 = vector.load %arg14[%c0_523, %c0_524] : memref<256x128xbf16, #tpu.memory_space<vmem>>, vector<256x128xbf16>
    %cst_525 = arith.constant dense<0.000000e+00> : vector<64x128xf32>
    %1371 = tpu.matmul %1369, %1370, %cst_525 {dimension_numbers = #tpu.dot_dimension_numbers<[1], [0], [0], [1], [0, 0, 1, 1], [], []>} : vector<64x256xbf16>, vector<256x128xbf16>, vector<64x128xf32> -> vector<64x128xf32>
    %c0_526 = arith.constant 0 : index
    %c0_527 = arith.constant 0 : index
    %1372 = vector.load %arg15[%c0_526, %c0_527] : memref<1x128xf32, #tpu.memory_space<vmem>>, vector<1x128xf32>
    %1373 = vector.broadcast %1372 : vector<1x128xf32> to vector<64x128xf32>
    %1374 = arith.addf %1371, %1373 : vector<64x128xf32>
    %cst_528 = arith.constant 0.000000e+00 : f32
    %1375 = vector.broadcast %cst_528 : f32 to vector<64x128xf32>
    %1376 = arith.maximumf %1374, %1375 : vector<64x128xf32>
    %1377 = arith.truncf %1376 : vector<64x128xf32> to vector<64x128xbf16>
    %c0_529 = arith.constant 0 : index
    %c0_530 = arith.constant 0 : index
    %1378 = vector.load %arg16[%c0_529, %c0_530] : memref<128x128xbf16, #tpu.memory_space<vmem>>, vector<128x128xbf16>
    %cst_531 = arith.constant dense<0.000000e+00> : vector<64x128xf32>
    %1379 = tpu.matmul %1377, %1378, %cst_531 {dimension_numbers = #tpu.dot_dimension_numbers<[1], [0], [0], [1], [0, 0, 1, 1], [], []>} : vector<64x128xbf16>, vector<128x128xbf16>, vector<64x128xf32> -> vector<64x128xf32>
    %c0_532 = arith.constant 0 : index
    %c0_533 = arith.constant 0 : index
    %1380 = vector.load %arg17[%c0_532, %c0_533] : memref<1x128xf32, #tpu.memory_space<vmem>>, vector<1x128xf32>
    %1381 = vector.broadcast %1380 : vector<1x128xf32> to vector<64x128xf32>
    %1382 = arith.addf %1379, %1381 : vector<64x128xf32>
    %1383 = vector.shape_cast %1382 : vector<64x128xf32> to vector<8x8x128xf32>
    %c0_534 = arith.constant 0 : index
    %c0_535 = arith.constant 0 : index
    %c0_536 = arith.constant 0 : index
    %1384 = vector.load %arg18[%c0_534, %c0_535, %c0_536] : memref<8x8x128xf32, #tpu.memory_space<vmem>>, vector<8x8x128xf32>
    tpu.vector_store %arg18[%c0_534, %c0_535, %c0_536], %1383 {strides = array<i32>} : memref<8x8x128xf32, #tpu.memory_space<vmem>>, vector<8x8x128xf32>,
    return
  }
  func.func @transform_0(%arg0: i32) -> (i32, i32, i32) {
    %c0_i32 = arith.constant 0 : i32
    %c0_i32_0 = arith.constant 0 : i32
    %c0_i32_1 = arith.constant 0 : i32
    return %c0_i32, %arg0, %c0_i32_0 : i32, i32, i32
  }
  func.func @transform_1(%arg0: i32) -> (i32, i32) {
    %c0_i32 = arith.constant 0 : i32
    %c0_i32_0 = arith.constant 0 : i32
    %c0_i32_1 = arith.constant 0 : i32
    return %c0_i32, %c0_i32_0 : i32, i32
  }
  func.func @transform_2(%arg0: i32) -> (i32, i32) {
    %c0_i32 = arith.constant 0 : i32
    %c0_i32_0 = arith.constant 0 : i32
    %c0_i32_1 = arith.constant 0 : i32
    return %c0_i32, %c0_i32_0 : i32, i32
  }
  func.func @transform_3(%arg0: i32) -> (i32, i32) {
    %c0_i32 = arith.constant 0 : i32
    %c0_i32_0 = arith.constant 0 : i32
    %c0_i32_1 = arith.constant 0 : i32
    return %c0_i32, %c0_i32_0 : i32, i32
  }
  func.func @transform_4(%arg0: i32) -> (i32, i32) {
    %c0_i32 = arith.constant 0 : i32
    %c0_i32_0 = arith.constant 0 : i32
    %c0_i32_1 = arith.constant 0 : i32
    return %c0_i32, %c0_i32_0 : i32, i32
  }
  func.func @transform_5(%arg0: i32) -> (i32, i32) {
    %c0_i32 = arith.constant 0 : i32
    %c0_i32_0 = arith.constant 0 : i32
    %c0_i32_1 = arith.constant 0 : i32
    return %c0_i32, %c0_i32_0 : i32, i32
  }
  func.func @transform_6(%arg0: i32) -> (i32, i32) {
    %c0_i32 = arith.constant 0 : i32
    %c0_i32_0 = arith.constant 0 : i32
    %c0_i32_1 = arith.constant 0 : i32
    return %c0_i32, %c0_i32_0 : i32, i32
  }
  func.func @transform_7(%arg0: i32) -> (i32, i32) {
    %c0_i32 = arith.constant 0 : i32
    %c0_i32_0 = arith.constant 0 : i32
    %c0_i32_1 = arith.constant 0 : i32
    return %c0_i32, %c0_i32_0 : i32, i32
  }
  func.func @transform_8(%arg0: i32) -> (i32, i32) {
    %c0_i32 = arith.constant 0 : i32
    %c0_i32_0 = arith.constant 0 : i32
    %c0_i32_1 = arith.constant 0 : i32
    return %c0_i32, %c0_i32_0 : i32, i32
  }
  func.func @transform_9(%arg0: i32) -> (i32, i32) {
    %c0_i32 = arith.constant 0 : i32
    %c0_i32_0 = arith.constant 0 : i32
    %c0_i32_1 = arith.constant 0 : i32
    return %c0_i32, %c0_i32_0 : i32, i32
  }
  func.func @transform_10(%arg0: i32) -> (i32, i32) {
    %c0_i32 = arith.constant 0 : i32
    %c0_i32_0 = arith.constant 0 : i32
    %c0_i32_1 = arith.constant 0 : i32
    return %c0_i32, %c0_i32_0 : i32, i32
  }
  func.func @transform_11(%arg0: i32) -> (i32, i32) {
    %c0_i32 = arith.constant 0 : i32
    %c0_i32_0 = arith.constant 0 : i32
    %c0_i32_1 = arith.constant 0 : i32
    return %c0_i32, %c0_i32_0 : i32, i32
  }
  func.func @transform_12(%arg0: i32) -> (i32, i32) {
    %c0_i32 = arith.constant 0 : i32
    %c0_i32_0 = arith.constant 0 : i32
    %c0_i32_1 = arith.constant 0 : i32
    return %c0_i32, %c0_i32_0 : i32, i32
  }
  func.func @transform_13(%arg0: i32) -> (i32, i32) {
    %c0_i32 = arith.constant 0 : i32
    %c0_i32_0 = arith.constant 0 : i32
    %c0_i32_1 = arith.constant 0 : i32
    return %c0_i32, %c0_i32_0 : i32, i32
  }
  func.func @transform_14(%arg0: i32) -> (i32, i32) {
    %c0_i32 = arith.constant 0 : i32
    %c0_i32_0 = arith.constant 0 : i32
    %c0_i32_1 = arith.constant 0 : i32
    return %c0_i32, %c0_i32_0 : i32, i32
  }
  func.func @transform_15(%arg0: i32) -> (i32, i32) {
    %c0_i32 = arith.constant 0 : i32
    %c0_i32_0 = arith.constant 0 : i32
    %c0_i32_1 = arith.constant 0 : i32
    return %c0_i32, %c0_i32_0 : i32, i32
  }
  func.func @transform_16(%arg0: i32) -> (i32, i32) {
    %c0_i32 = arith.constant 0 : i32
    %c0_i32_0 = arith.constant 0 : i32
    %c0_i32_1 = arith.constant 0 : i32
    return %c0_i32, %c0_i32_0 : i32, i32
  }
  func.func @transform_17(%arg0: i32) -> (i32, i32, i32) {
    %c0_i32 = arith.constant 0 : i32
    %c0_i32_0 = arith.constant 0 : i32
    %c0_i32_1 = arith.constant 0 : i32
    return %c0_i32, %arg0, %c0_i32_0 : i32, i32, i32
  }
}

</mosaic_0001>

<llo_original>
// kernel: prompt_encoder_forward.1
$region0: #{prompt_encoder_forward.1}
  #allocation0 [shape = 'u32[]', space=smem, size = 0x4, offset = 0x4, fixed_abs, tag = 'smem constant byte address 0x4 - core index']
  #allocation1 [shape = 'u32[144,128]{1,0:T(1,128)}', space=vmem, size = 0x12000, scoped, tag = 'internal scratch']
  #allocation2 [shape = 'f32[8,8,512]{2,1,0:T(8,128)}', space=vmem, size = 0x20000, scoped, tag = 'scratch operand']
  #allocation3 [shape = 'f32[8,8,512]{2,1,0:T(8,128)}', space=vmem, size = 0x20000, scoped, tag = 'scratch operand']
  #allocation4 [shape = 'bf16[8,8,256]{2,1,0:T(8,128)(2,1)}', space=vmem, size = 0x8000, scoped, tag = 'scratch operand']
  %s0 = inlined_call_operand.vmem [shape: bf16[8,8,128], index: 0, kind: input, shape index: {}]
  %s1 = inlined_call_operand.vmem [shape: bf16[128,512], index: 1, kind: input, shape index: {}]
  %s2 = inlined_call_operand.hbm [shape: bf16[128,512], index: 2, kind: input, shape index: {}]
  %s3 = inlined_call_operand.hbm [shape: f32[1,512], index: 3, kind: input, shape index: {}]
  %s4 = inlined_call_operand.hbm [shape: bf16[128,512], index: 4, kind: input, shape index: {}]
  %s5 = inlined_call_operand.hbm [shape: bf16[128,512], index: 5, kind: input, shape index: {}]
  %s6 = inlined_call_operand.hbm [shape: f32[1,512], index: 6, kind: input, shape index: {}]
  %s7 = inlined_call_operand.hbm [shape: bf16[256,512], index: 7, kind: input, shape index: {}]
  %s8 = inlined_call_operand.hbm [shape: bf16[128,512], index: 8, kind: input, shape index: {}]
  %s9 = inlined_call_operand.hbm [shape: f32[1,512], index: 9, kind: input, shape index: {}]
  %s10 = inlined_call_operand.hbm [shape: bf16[256,512], index: 10, kind: input, shape index: {}]
  %s11 = inlined_call_operand.hbm [shape: bf16[128,512], index: 11, kind: input, shape index: {}]
  %s12 = inlined_call_operand.hbm [shape: f32[1,512], index: 12, kind: input, shape index: {}]
  %s13 = inlined_call_operand.hbm [shape: bf16[256,128], index: 13, kind: input, shape index: {}]
  %s14 = inlined_call_operand.vmem [shape: f32[1,128], index: 14, kind: input, shape index: {}]
  %s15 = inlined_call_operand.vmem [shape: bf16[128,128], index: 15, kind: input, shape index: {}]
  %s16 = inlined_call_operand.vmem [shape: f32[1,128], index: 16, kind: input, shape index: {}]
  %s17 = inlined_call_operand.vmem [shape: f32[8,8,128], index: 17, kind: output, shape index: {}]
  %s18 = sld [smem:[#allocation0]]
  $region126: #{prompt_encoder_forward.1} parent=0
    _
  %s20 = ssub.s32 1, %s18
  %s21 = scalar_select 0, %s20, %s18
  $region1: #{prompt_encoder_forward.1} parent=0
    #allocation5 [shape = 'u8[131072]{0}', space=vmem, size = 0x20000, scoped, tag = 'input window, operand 2, single buffered']
    #allocation6 [shape = 's32[1]{0}', space=sflag, size = 0x4, scoped, tag = 'scoped memory for prompt_encoder_forward.1']
    #allocation7 [shape = 'u8[2048]{0}', space=vmem, size = 0x800, scoped, tag = 'input window, operand 3, single buffered']
    #allocation8 [shape = 's32[1]{0}', space=sflag, size = 0x4, scoped, tag = 'scoped memory for prompt_encoder_forward.1']
    #allocation9 [shape = 'u8[131072]{0}', space=vmem, size = 0x20000, scoped, tag = 'input window, operand 4, single buffered']
    #allocation10 [shape = 'u8[131072]{0}', space=vmem, size = 0x20000, scoped, tag = 'input window, operand 5, single buffered']
    #allocation11 [shape = 's32[1]{0}', space=sflag, size = 0x4, scoped, tag = 'scoped memory for prompt_encoder_forward.1']
    #allocation12 [shape = 'u8[2048]{0}', space=vmem, size = 0x800, scoped, tag = 'input window, operand 6, single buffered']
    #allocation13 [shape = 'u8[262144]{0}', space=vmem, size = 0x40000, scoped, tag = 'input window, operand 7, single buffered']
    #allocation14 [shape = 's32[1]{0}', space=sflag, size = 0x4, scoped, tag = 'scoped memory for prompt_encoder_forward.1']
    #allocation15 [shape = 'u8[131072]{0}', space=vmem, size = 0x20000, scoped, tag = 'input window, operand 8, single buffered']
    #allocation16 [shape = 'u8[2048]{0}', space=vmem, size = 0x800, scoped, tag = 'input window, operand 9, single buffered']
    #allocation17 [shape = 's32[1]{0}', space=sflag, size = 0x4, scoped, tag = 'scoped memory for prompt_encoder_forward.1']
    #allocation18 [shape = 'u8[262144]{0}', space=vmem, size = 0x40000, scoped, tag = 'input window, operand 10, single buffered']
    #allocation19 [shape = 'u8[131072]{0}', space=vmem, size = 0x20000, scoped, tag = 'input window, operand 11, single buffered']
    #allocation20 [shape = 's32[1]{0}', space=sflag, size = 0x4, scoped, tag = 'scoped memory for prompt_encoder_forward.1']
    #allocation21 [shape = 'u8[2048]{0}', space=vmem, size = 0x800, scoped, tag = 'input window, operand 12, single buffered']
    #allocation22 [shape = 'u8[65536]{0}', space=vmem, size = 0x10000, scoped, tag = 'input window, operand 13, single buffered']
    #allocation23 [shape = 's32[1]{0}', space=sflag, size = 0x4, scoped, tag = 'scoped memory for prompt_encoder_forward.1']
    %22 = vsyncpa [#allocation6], 0
    %23 = vsyncpa [#allocation8], 0
    %24 = vsyncpa [#allocation11], 0
    %25 = vsyncpa [#allocation14], 0
    %26 = vsyncpa [#allocation17], 0
    %27 = vsyncpa [#allocation20], 0
    %28 = vsyncpa [#allocation23], 0
    // Predicated region
    $region2: #{prompt_encoder_forward.1} parent=1 // pred_check
      _
    $region3: #{prompt_encoder_forward.1} parent=1 // pred_check_branch
      %30 = sbr.rel (0) target = $region5
    $region4: #{prompt_encoder_forward.1} parent=1 // pred_region
      _
    $region5: #{prompt_encoder_forward.1} parent=1 // pred_fallthru
      _
    // Predicated region
    $region6: #{prompt_encoder_forward.1} parent=1 // pred_check
      _
    $region7: #{prompt_encoder_forward.1} parent=1 // pred_check_branch
      %32 = sbr.rel (0) target = $region9
    $region8: #{prompt_encoder_forward.1} parent=1 // pred_region
      _
    $region9: #{prompt_encoder_forward.1} parent=1 // pred_fallthru
      _
    // Predicated region
    $region10: #{prompt_encoder_forward.1} parent=1 // pred_check
      _
    $region11: #{prompt_encoder_forward.1} parent=1 // pred_check_branch
      %34 = sbr.rel (0) target = $region13
    $region12: #{prompt_encoder_forward.1} parent=1 // pred_region
      %s36 = ssub.s32 4096, 4096
      %37 = vsyncadd [#allocation6], %s36
      %s38 = sshll.u32 [#allocation5], 4
      %s39 = int_to_ptr.vmem [resolvable:$true] %s38
      %44 = dma.hbm_to_vmem [thread:$0]  %s2, 4096, %s39, [#allocation6], 256, 256, 16
    $region13: #{prompt_encoder_forward.1} parent=1 // pred_fallthru
      _
    // Predicated region
    $region14: #{prompt_encoder_forward.1} parent=1 // pred_check
      _
    $region15: #{prompt_encoder_forward.1} parent=1 // pred_check_branch
      %46 = sbr.rel (0) target = $region17
    $region16: #{prompt_encoder_forward.1} parent=1 // pred_region
      %s48 = ssub.s32 64, 64
      %49 = vsyncadd [#allocation8], %s48
      %s51 = sshll.u32 [#allocation7], 4
      %s52 = int_to_ptr.vmem [resolvable:$true] %s51
      %54 = dma.hbm_to_vmem [thread:$0]  %s3, 64, %s52, [#allocation8]
    $region17: #{prompt_encoder_forward.1} parent=1 // pred_fallthru
      _
    // Predicated region
    $region18: #{prompt_encoder_forward.1} parent=1 // pred_check
      _
    $region19: #{prompt_encoder_forward.1} parent=1 // pred_check_branch
      %56 = sbr.rel (0) target = $region21
    $region20: #{prompt_encoder_forward.1} parent=1 // pred_region
      %s58 = ssub.s32 4096, 4096
      %59 = vsyncadd [#allocation8], %s58
      %s60 = sshll.u32 [#allocation9], 4
      %s61 = int_to_ptr.vmem [resolvable:$true] %s60
      %66 = dma.hbm_to_vmem [thread:$0]  %s4, 4096, %s61, [#allocation8], 256, 256, 16
    $region21: #{prompt_encoder_forward.1} parent=1 // pred_fallthru
      _
    // Predicated region
    $region22: #{prompt_encoder_forward.1} parent=1 // pred_check
      _
    $region23: #{prompt_encoder_forward.1} parent=1 // pred_check_branch
      %68 = sbr.rel (0) target = $region25
    $region24: #{prompt_encoder_forward.1} parent=1 // pred_region
      %s70 = ssub.s32 4096, 4096
      %71 = vsyncadd [#allocation11], %s70
      %s72 = sshll.u32 [#allocation10], 4
      %s73 = int_to_ptr.vmem [resolvable:$true] %s72
      %78 = dma.hbm_to_vmem [thread:$0]  %s5, 4096, %s73, [#allocation11], 256, 256, 16
    $region25: #{prompt_encoder_forward.1} parent=1 // pred_fallthru
      _
    // Predicated region
    $region26: #{prompt_encoder_forward.1} parent=1 // pred_check
      _
    $region27: #{prompt_encoder_forward.1} parent=1 // pred_check_branch
      %80 = sbr.rel (0) target = $region29
    $region28: #{prompt_encoder_forward.1} parent=1 // pred_region
      %s82 = ssub.s32 64, 64
      %83 = vsyncadd [#allocation11], %s82
      %s85 = sshll.u32 [#allocation12], 4
      %s86 = int_to_ptr.vmem [resolvable:$true] %s85
      %88 = dma.hbm_to_vmem [thread:$0]  %s6, 64, %s86, [#allocation11]
    $region29: #{prompt_encoder_forward.1} parent=1 // pred_fallthru
      _
    // Predicated region
    $region30: #{prompt_encoder_forward.1} parent=1 // pred_check
      _
    $region31: #{prompt_encoder_forward.1} parent=1 // pred_check_branch
      %90 = sbr.rel (0) target = $region33
    $region32: #{prompt_encoder_forward.1} parent=1 // pred_region
      %s92 = ssub.s32 8192, 8192
      %93 = vsyncadd [#allocation14], %s92
      %s94 = sshll.u32 [#allocation13], 4
      %s95 = int_to_ptr.vmem [resolvable:$true] %s94
      %100 = dma.hbm_to_vmem [thread:$0]  %s7, 8192, %s95, [#allocation14], 256, 256, 16
    $region33: #{prompt_encoder_forward.1} parent=1 // pred_fallthru
      _
    // Predicated region
    $region34: #{prompt_encoder_forward.1} parent=1 // pred_check
      _
    $region35: #{prompt_encoder_forward.1} parent=1 // pred_check_branch
      %102 = sbr.rel (0) target = $region37
    $region36: #{prompt_encoder_forward.1} parent=1 // pred_region
      %s104 = ssub.s32 4096, 4096
      %105 = vsyncadd [#allocation14], %s104
      %s106 = sshll.u32 [#allocation15], 4
      %s107 = int_to_ptr.vmem [resolvable:$true] %s106
      %112 = dma.hbm_to_vmem [thread:$0]  %s8, 4096, %s107, [#allocation14], 256, 256, 16
    $region37: #{prompt_encoder_forward.1} parent=1 // pred_fallthru
      _
    // Predicated region
    $region38: #{prompt_encoder_forward.1} parent=1 // pred_check
      _
    $region39: #{prompt_encoder_forward.1} parent=1 // pred_check_branch
      %114 = sbr.rel (0) target = $region41
    $region40: #{prompt_encoder_forward.1} parent=1 // pred_region
      %s116 = ssub.s32 64, 64
      %117 = vsyncadd [#allocation17], %s116
      %s119 = sshll.u32 [#allocation16], 4
      %s120 = int_to_ptr.vmem [resolvable:$true] %s119
      %122 = dma.hbm_to_vmem [thread:$0]  %s9, 64, %s120, [#allocation17]
    $region41: #{prompt_encoder_forward.1} parent=1 // pred_fallthru
      _
    // Predicated region
    $region42: #{prompt_encoder_forward.1} parent=1 // pred_check
      _
    $region43: #{prompt_encoder_forward.1} parent=1 // pred_check_branch
      %124 = sbr.rel (0) target = $region45
    $region44: #{prompt_encoder_forward.1} parent=1 // pred_region
      %s126 = ssub.s32 8192, 8192
      %127 = vsyncadd [#allocation17], %s126
      %s128 = sshll.u32 [#allocation18], 4
      %s129 = int_to_ptr.vmem [resolvable:$true] %s128
      %134 = dma.hbm_to_vmem [thread:$0]  %s10, 8192, %s129, [#allocation17], 256, 256, 16
    $region45: #{prompt_encoder_forward.1} parent=1 // pred_fallthru
      _
    // Predicated region
    $region46: #{prompt_encoder_forward.1} parent=1 // pred_check
      _
    $region47: #{prompt_encoder_forward.1} parent=1 // pred_check_branch
      %136 = sbr.rel (0) target = $region49
    $region48: #{prompt_encoder_forward.1} parent=1 // pred_region
      %s138 = ssub.s32 4096, 4096
      %139 = vsyncadd [#allocation20], %s138
      %s140 = sshll.u32 [#allocation19], 4
      %s141 = int_to_ptr.vmem [resolvable:$true] %s140
      %146 = dma.hbm_to_vmem [thread:$0]  %s11, 4096, %s141, [#allocation20], 256, 256, 16
    $region49: #{prompt_encoder_forward.1} parent=1 // pred_fallthru
      _
    // Predicated region
    $region50: #{prompt_encoder_forward.1} parent=1 // pred_check
      _
    $region51: #{prompt_encoder_forward.1} parent=1 // pred_check_branch
      %148 = sbr.rel (0) target = $region53
    $region52: #{prompt_encoder_forward.1} parent=1 // pred_region
      %s150 = ssub.s32 64, 64
      %151 = vsyncadd [#allocation20], %s150
      %s153 = sshll.u32 [#allocation21], 4
      %s154 = int_to_ptr.vmem [resolvable:$true] %s153
      %156 = dma.hbm_to_vmem [thread:$0]  %s12, 64, %s154, [#allocation20]
    $region53: #{prompt_encoder_forward.1} parent=1 // pred_fallthru
      _
    // Predicated region
    $region54: #{prompt_encoder_forward.1} parent=1 // pred_check
      _
    $region55: #{prompt_encoder_forward.1} parent=1 // pred_check_branch
      %158 = sbr.rel (0) target = $region57
    $region56: #{prompt_encoder_forward.1} parent=1 // pred_region
      %s160 = ssub.s32 2048, 2048
      %161 = vsyncadd [#allocation23], %s160
      %s162 = sshll.u32 [#allocation22], 4
      %s163 = int_to_ptr.vmem [resolvable:$true] %s162
      %168 = dma.hbm_to_vmem [thread:$0]  %s13, 2048, %s163, [#allocation23], 64, 64, 4
    $region57: #{prompt_encoder_forward.1} parent=1 // pred_fallthru
      _
    // Predicated region
    $region58: #{prompt_encoder_forward.1} parent=1 // pred_check
      _
    $region59: #{prompt_encoder_forward.1} parent=1 // pred_check_branch
      %170 = sbr.rel (0) target = $region61
    $region60: #{prompt_encoder_forward.1} parent=1 // pred_region
      _
    $region61: #{prompt_encoder_forward.1} parent=1 // pred_fallthru
      _
    // Predicated region
    $region62: #{prompt_encoder_forward.1} parent=1 // pred_check
      _
    $region63: #{prompt_encoder_forward.1} parent=1 // pred_check_branch
      %172 = sbr.rel (0) target = $region65
    $region64: #{prompt_encoder_forward.1} parent=1 // pred_region
      _
    $region65: #{prompt_encoder_forward.1} parent=1 // pred_fallthru
      _
    // Predicated region
    $region66: #{prompt_encoder_forward.1} parent=1 // pred_check
      _
    $region67: #{prompt_encoder_forward.1} parent=1 // pred_check_branch
      %174 = sbr.rel (0) target = $region69
    $region68: #{prompt_encoder_forward.1} parent=1 // pred_region
      _
    $region69: #{prompt_encoder_forward.1} parent=1 // pred_fallthru
      _
    // Predicated region
    $region70: #{prompt_encoder_forward.1} parent=1 // pred_check
      _
    $region71: #{prompt_encoder_forward.1} parent=1 // pred_check_branch
      %176 = sbr.rel (0) target = $region73
    $region72: #{prompt_encoder_forward.1} parent=1 // pred_region
      %177 = dma.done [#allocation6], 4096
    $region73: #{prompt_encoder_forward.1} parent=1 // pred_fallthru
      _
    // Predicated region
    $region74: #{prompt_encoder_forward.1} parent=1 // pred_check
      _
    $region75: #{prompt_encoder_forward.1} parent=1 // pred_check_branch
      %179 = sbr.rel (0) target = $region77
    $region76: #{prompt_encoder_forward.1} parent=1 // pred_region
      %180 = dma.done [#allocation8], 64
    $region77: #{prompt_encoder_forward.1} parent=1 // pred_fallthru
      _
    // Predicated region
    $region78: #{prompt_encoder_forward.1} parent=1 // pred_check
      _
    $region79: #{prompt_encoder_forward.1} parent=1 // pred_check_branch
      %182 = sbr.rel (0) target = $region81
    $region80: #{prompt_encoder_forward.1} parent=1 // pred_region
      %183 = dma.done [#allocation8], 4096
    $region81: #{prompt_encoder_forward.1} parent=1 // pred_fallthru
      _
    // Predicated region
    $region82: #{prompt_encoder_forward.1} parent=1 // pred_check
      _
    $region83: #{prompt_encoder_forward.1} parent=1 // pred_check_branch
      %185 = sbr.rel (0) target = $region85
    $region84: #{prompt_encoder_forward.1} parent=1 // pred_region
      %186 = dma.done [#allocation11], 4096
    $region85: #{prompt_encoder_forward.1} parent=1 // pred_fallthru
      _
    // Predicated region
    $region86: #{prompt_encoder_forward.1} parent=1 // pred_check
      _
    $region87: #{prompt_encoder_forward.1} parent=1 // pred_check_branch
      %188 = sbr.rel (0) target = $region89
    $region88: #{prompt_encoder_forward.1} parent=1 // pred_region
      %189 = dma.done [#allocation11], 64
    $region89: #{prompt_encoder_forward.1} parent=1 // pred_fallthru
      _
    // Predicated region
    $region90: #{prompt_encoder_forward.1} parent=1 // pred_check
      _
    $region91: #{prompt_encoder_forward.1} parent=1 // pred_check_branch
      %191 = sbr.rel (0) target = $region93
    $region92: #{prompt_encoder_forward.1} parent=1 // pred_region
      %192 = dma.done [#allocation14], 8192
    $region93: #{prompt_encoder_forward.1} parent=1 // pred_fallthru
      _
    // Predicated region
    $region94: #{prompt_encoder_forward.1} parent=1 // pred_check
      _
    $region95: #{prompt_encoder_forward.1} parent=1 // pred_check_branch
      %194 = sbr.rel (0) target = $region97
    $region96: #{prompt_encoder_forward.1} parent=1 // pred_region
      %195 = dma.done [#allocation14], 4096
    $region97: #{prompt_encoder_forward.1} parent=1 // pred_fallthru
      _
    // Predicated region
    $region98: #{prompt_encoder_forward.1} parent=1 // pred_check
      _
    $region99: #{prompt_encoder_forward.1} parent=1 // pred_check_branch
      %197 = sbr.rel (0) target = $region101
    $region100: #{prompt_encoder_forward.1} parent=1 // pred_region
      %198 = dma.done [#allocation17], 64
    $region101: #{prompt_encoder_forward.1} parent=1 // pred_fallthru
      _
    // Predicated region
    $region102: #{prompt_encoder_forward.1} parent=1 // pred_check
      _
    $region103: #{prompt_encoder_forward.1} parent=1 // pred_check_branch
      %200 = sbr.rel (0) target = $region105
    $region104: #{prompt_encoder_forward.1} parent=1 // pred_region
      %201 = dma.done [#allocation17], 8192
    $region105: #{prompt_encoder_forward.1} parent=1 // pred_fallthru
      _
    // Predicated region
    $region106: #{prompt_encoder_forward.1} parent=1 // pred_check
      _
    $region107: #{prompt_encoder_forward.1} parent=1 // pred_check_branch
      %203 = sbr.rel (0) target = $region109
    $region108: #{prompt_encoder_forward.1} parent=1 // pred_region
      %204 = dma.done [#allocation20], 4096
    $region109: #{prompt_encoder_forward.1} parent=1 // pred_fallthru
      _
    // Predicated region
    $region110: #{prompt_encoder_forward.1} parent=1 // pred_check
      _
    $region111: #{prompt_encoder_forward.1} parent=1 // pred_check_branch
      %206 = sbr.rel (0) target = $region113
    $region112: #{prompt_encoder_forward.1} parent=1 // pred_region
      %207 = dma.done [#allocation20], 64
    $region113: #{prompt_encoder_forward.1} parent=1 // pred_fallthru
      _
    // Predicated region
    $region114: #{prompt_encoder_forward.1} parent=1 // pred_check
      _
    $region115: #{prompt_encoder_forward.1} parent=1 // pred_check_branch
      %209 = sbr.rel (0) target = $region117
    $region116: #{prompt_encoder_forward.1} parent=1 // pred_region
      %210 = dma.done [#allocation23], 2048
    $region117: #{prompt_encoder_forward.1} parent=1 // pred_fallthru
      _
    %v212 = vld [vmem:[%s0] sm:$0xf]
    %v213 = vld [vmem:[%s0 + $0x4] sm:$0xf]
    %v214 = vld [vmem:[%s0 + $0x8] sm:$0xf]
    %v215 = vld [vmem:[%s0 + $0xc] sm:$0xf]
    %v216 = vld [vmem:[%s0 + $0x10] sm:$0xf]
    %v217 = vld [vmem:[%s0 + $0x14] sm:$0xf]
    %v218 = vld [vmem:[%s0 + $0x18] sm:$0xf]
    %v219 = vld [vmem:[%s0 + $0x1c] sm:$0xf]
    %v220 = vld [vmem:[%s1] sm:$0xff]
    %v221 = vld [vmem:[%s1 + $0x8] sm:$0xff]
    %v222 = vld [vmem:[%s1 + $0x10] sm:$0xff]
    %v223 = vld [vmem:[%s1 + $0x18] sm:$0xff]
    %v224 = vld [vmem:[%s1 + $0x20] sm:$0xff]
    %v225 = vld [vmem:[%s1 + $0x28] sm:$0xff]
    %v226 = vld [vmem:[%s1 + $0x30] sm:$0xff]
    %v227 = vld [vmem:[%s1 + $0x38] sm:$0xff]
    %v228 = vld [vmem:[%s1 + $0x40] sm:$0xff]
    %v229 = vld [vmem:[%s1 + $0x48] sm:$0xff]
    %v230 = vld [vmem:[%s1 + $0x50] sm:$0xff]
    %v231 = vld [vmem:[%s1 + $0x58] sm:$0xff]
    %v232 = vld [vmem:[%s1 + $0x60] sm:$0xff]
    %v233 = vld [vmem:[%s1 + $0x68] sm:$0xff]
    %v234 = vld [vmem:[%s1 + $0x70] sm:$0xff]
    %v235 = vld [vmem:[%s1 + $0x78] sm:$0xff]
    %v236 = vld [vmem:[%s1 + $0x80] sm:$0xff]
    %v237 = vld [vmem:[%s1 + $0x88] sm:$0xff]
    %v238 = vld [vmem:[%s1 + $0x90] sm:$0xff]
    %v239 = vld [vmem:[%s1 + $0x98] sm:$0xff]
    %v240 = vld [vmem:[%s1 + $0xa0] sm:$0xff]
    %v241 = vld [vmem:[%s1 + $0xa8] sm:$0xff]
    %v242 = vld [vmem:[%s1 + $0xb0] sm:$0xff]
    %v243 = vld [vmem:[%s1 + $0xb8] sm:$0xff]
    %v244 = vld [vmem:[%s1 + $0xc0] sm:$0xff]
    %v245 = vld [vmem:[%s1 + $0xc8] sm:$0xff]
    %v246 = vld [vmem:[%s1 + $0xd0] sm:$0xff]
    %v247 = vld [vmem:[%s1 + $0xd8] sm:$0xff]
    %v248 = vld [vmem:[%s1 + $0xe0] sm:$0xff]
    %v249 = vld [vmem:[%s1 + $0xe8] sm:$0xff]
    %v250 = vld [vmem:[%s1 + $0xf0] sm:$0xff]
    %v251 = vld [vmem:[%s1 + $0xf8] sm:$0xff]
    %v252 = vld [vmem:[#allocation7] sm:$0xf]
    %v254 = vlaneseq
    %v255 = vshrl.u32 %v254, 7
    %v256 = vsub.s32 0, %v255
    %v257 = vrot.slane %v252, %v256
    %v258 = vlaneseq
    %v259 = vshrl.u32 %v258, 7
    %v260 = vsub.s32 1, %v259
    %v261 = vrot.slane %v252, %v260
    %v262 = vlaneseq
    %v263 = vshrl.u32 %v262, 7
    %v264 = vsub.s32 2, %v263
    %v265 = vrot.slane %v252, %v264
    %v266 = vlaneseq
    %v267 = vshrl.u32 %v266, 7
    %v268 = vsub.s32 3, %v267
    %v269 = vrot.slane %v252, %v268
    %v282 = vunpack.c.l.b16 %v212
    %v283 = vunpack.c.l.b16 %v213
    %v284 = vunpack.c.l.b16 %v214
    %v285 = vunpack.c.l.b16 %v215
    %v286 = vunpack.c.l.b16 %v216
    %v287 = vunpack.c.l.b16 %v217
    %v288 = vunpack.c.l.b16 %v218
    %v289 = vunpack.c.l.b16 %v219
    %v290 = vpack.c.b16 %v283, %v282
    %v291 = vpack.c.b16 %v285, %v284
    %v292 = vpack.c.b16 %v287, %v286
    %v293 = vpack.c.b16 %v289, %v288
    %v330 = vunpack.c.l.b16 %v220
    %v331 = vunpack.c.h.b16 %v220
    %v332 = vunpack.c.l.b16 %v221
    %v333 = vunpack.c.h.b16 %v221
    %v334 = vunpack.c.l.b16 %v222
    %v335 = vunpack.c.h.b16 %v222
    %v336 = vunpack.c.l.b16 %v223
    %v337 = vunpack.c.h.b16 %v223
    %v338 = vunpack.c.l.b16 %v224
    %v339 = vunpack.c.h.b16 %v224
    %v340 = vunpack.c.l.b16 %v225
    %v341 = vunpack.c.h.b16 %v225
    %v342 = vunpack.c.l.b16 %v226
    %v343 = vunpack.c.h.b16 %v226
    %v344 = vunpack.c.l.b16 %v227
    %v345 = vunpack.c.h.b16 %v227
    %v346 = vunpack.c.l.b16 %v228
    %v347 = vunpack.c.h.b16 %v228
    %v348 = vunpack.c.l.b16 %v229
    %v349 = vunpack.c.h.b16 %v229
    %v350 = vunpack.c.l.b16 %v230
    %v351 = vunpack.c.h.b16 %v230
    %v352 = vunpack.c.l.b16 %v231
    %v353 = vunpack.c.h.b16 %v231
    %v354 = vunpack.c.l.b16 %v232
    %v355 = vunpack.c.h.b16 %v232
    %v356 = vunpack.c.l.b16 %v233
    %v357 = vunpack.c.h.b16 %v233
    %v358 = vunpack.c.l.b16 %v234
    %v359 = vunpack.c.h.b16 %v234
    %v360 = vunpack.c.l.b16 %v235
    %v361 = vunpack.c.h.b16 %v235
    %v362 = vunpack.c.l.b16 %v236
    %v363 = vunpack.c.h.b16 %v236
    %v364 = vunpack.c.l.b16 %v237
    %v365 = vunpack.c.h.b16 %v237
    %v366 = vunpack.c.l.b16 %v238
    %v367 = vunpack.c.h.b16 %v238
    %v368 = vunpack.c.l.b16 %v239
    %v369 = vunpack.c.h.b16 %v239
    %v370 = vunpack.c.l.b16 %v240
    %v371 = vunpack.c.h.b16 %v240
    %v372 = vunpack.c.l.b16 %v241
    %v373 = vunpack.c.h.b16 %v241
    %v374 = vunpack.c.l.b16 %v242
    %v375 = vunpack.c.h.b16 %v242
    %v376 = vunpack.c.l.b16 %v243
    %v377 = vunpack.c.h.b16 %v243
    %v378 = vunpack.c.l.b16 %v244
    %v379 = vunpack.c.h.b16 %v244
    %v380 = vunpack.c.l.b16 %v245
    %v381 = vunpack.c.h.b16 %v245
    %v382 = vunpack.c.l.b16 %v246
    %v383 = vunpack.c.h.b16 %v246
    %v384 = vunpack.c.l.b16 %v247
    %v385 = vunpack.c.h.b16 %v247
    %v386 = vunpack.c.l.b16 %v248
    %v387 = vunpack.c.h.b16 %v248
    %v388 = vunpack.c.l.b16 %v249
    %v389 = vunpack.c.h.b16 %v249
    %v390 = vunpack.c.l.b16 %v250
    %v391 = vunpack.c.h.b16 %v250
    %v392 = vunpack.c.l.b16 %v251
    %v393 = vunpack.c.h.b16 %v251
    %v394 = vpack.c.b16 %v334, %v330
    %v395 = vpack.c.b16 %v335, %v331
    %v396 = vpack.c.b16 %v336, %v332
    %v397 = vpack.c.b16 %v337, %v333
    %v398 = vpack.c.b16 %v342, %v338
    %v399 = vpack.c.b16 %v343, %v339
    %v400 = vpack.c.b16 %v344, %v340
    %v401 = vpack.c.b16 %v345, %v341
    %v402 = vpack.c.b16 %v350, %v346
    %v403 = vpack.c.b16 %v351, %v347
    %v404 = vpack.c.b16 %v352, %v348
    %v405 = vpack.c.b16 %v353, %v349
    %v406 = vpack.c.b16 %v358, %v354
    %v407 = vpack.c.b16 %v359, %v355
    %v408 = vpack.c.b16 %v360, %v356
    %v409 = vpack.c.b16 %v361, %v357
    %v410 = vpack.c.b16 %v366, %v362
    %v411 = vpack.c.b16 %v367, %v363
    %v412 = vpack.c.b16 %v368, %v364
    %v413 = vpack.c.b16 %v369, %v365
    %v414 = vpack.c.b16 %v374, %v370
    %v415 = vpack.c.b16 %v375, %v371
    %v416 = vpack.c.b16 %v376, %v372
    %v417 = vpack.c.b16 %v377, %v373
    %v418 = vpack.c.b16 %v382, %v378
    %v419 = vpack.c.b16 %v383, %v379
    %v420 = vpack.c.b16 %v384, %v380
    %v421 = vpack.c.b16 %v385, %v381
    %v422 = vpack.c.b16 %v390, %v386
    %v423 = vpack.c.b16 %v391, %v387
    %v424 = vpack.c.b16 %v392, %v388
    %v425 = vpack.c.b16 %v393, %v389
    %458 = vmatprep.subr.bf16.mxu0 %v395
    %459 = vmatpush1.bf16.msra.mxu0 %v394
    %460 = vmatprep.subr.bf16.mxu0 %v399
    %461 = vmatpush1.bf16.msra.mxu0 %v398
    %462 = vmatprep.subr.bf16.mxu0 %v403
    %463 = vmatpush1.bf16.msra.mxu0 %v402
    %464 = vmatprep.subr.bf16.mxu0 %v407
    %465 = vmatpush1.bf16.msra.mxu0 %v406
    %466 = vmatprep.subr.bf16.mxu0 %v411
    %467 = vmatpush1.bf16.msra.mxu0 %v410
    %468 = vmatprep.subr.bf16.mxu0 %v415
    %469 = vmatpush1.bf16.msra.mxu0 %v414
    %470 = vmatprep.subr.bf16.mxu0 %v419
    %471 = vmatpush1.bf16.msra.mxu0 %v418
    %472 = vmatprep.subr.bf16.mxu0 %v423
    %473 = vmatpush1.bf16.msra.mxu0 %v422
    %474 = vmatprep.subr.bf16.mxu0 0
    %475 = vmatpush1.bf16.msra.mxu0 0
    %476 = vmatprep.subr.bf16.mxu0 0
    %477 = vmatpush1.bf16.msra.mxu0 0
    %478 = vmatprep.subr.bf16.mxu0 0
    %479 = vmatpush1.bf16.msra.mxu0 0
    %480 = vmatprep.subr.bf16.mxu0 0
    %481 = vmatpush1.bf16.msra.mxu0 0
    %482 = vmatprep.subr.bf16.mxu0 0
    %483 = vmatpush1.bf16.msra.mxu0 0
    %484 = vmatprep.subr.bf16.mxu0 0
    %485 = vmatpush1.bf16.msra.mxu0 0
    %486 = vmatprep.subr.bf16.mxu0 0
    %487 = vmatpush1.bf16.msra.mxu0 0
    %488 = vmatprep.subr.bf16.mxu0 0
    %489 = vmatpush1.bf16.msra.mxu0 0
    %490 = vmatprep.mubr.bf16.mxu0 0
    %491 = vmatmul.mubr.bf16.gmra.mrb[0].mxu0 %v290
    %v492 = vpop.f32.mrb[0].mxu0
    %v493 = vadd.f32 %v257, %v492
    %v494 = vpop.f32.mrb[0].mxu0
    %v495 = vadd.f32 %v261, %v494
    %v496 = vpop.f32.mrb[0].mxu0
    %v497 = vadd.f32 %v257, %v496
    %v498 = vpop.f32.mrb[0].mxu0
    %v499 = vadd.f32 %v261, %v498
    %500 = vmatprep.mubr.bf16.mxu0 0
    %501 = vmatmul.mubr.bf16.gmra.mrb[0].mxu0 %v291
    %v502 = vpop.f32.mrb[0].mxu0
    %v503 = vadd.f32 %v257, %v502
    %v504 = vpop.f32.mrb[0].mxu0
    %v505 = vadd.f32 %v261, %v504
    %v506 = vpop.f32.mrb[0].mxu0
    %v507 = vadd.f32 %v257, %v506
    %v508 = vpop.f32.mrb[0].mxu0
    %v509 = vadd.f32 %v261, %v508
    %510 = vmatprep.mubr.bf16.mxu0 0
    %511 = vmatmul.mubr.bf16.gmra.mrb[0].mxu0 %v292
    %v512 = vpop.f32.mrb[0].mxu0
    %v513 = vadd.f32 %v257, %v512
    %v514 = vpop.f32.mrb[0].mxu0
    %v515 = vadd.f32 %v261, %v514
    %v516 = vpop.f32.mrb[0].mxu0
    %v517 = vadd.f32 %v257, %v516
    %v518 = vpop.f32.mrb[0].mxu0
    %v519 = vadd.f32 %v261, %v518
    %520 = vmatprep.mubr.bf16.mxu0 0
    %521 = vmatmul.mubr.bf16.gmra.mrb[0].mxu0 %v293
    %v522 = vpop.f32.mrb[0].mxu0
    %v523 = vadd.f32 %v257, %v522
    %v524 = vpop.f32.mrb[0].mxu0
    %v525 = vadd.f32 %v261, %v524
    %v526 = vpop.f32.mrb[0].mxu0
    %v527 = vadd.f32 %v257, %v526
    %v528 = vpop.f32.mrb[0].mxu0
    %v529 = vadd.f32 %v261, %v528
    %530 = vdwg.mxu0
    %531 = vmatprep.subr.bf16.mxu0 %v397
    %532 = vmatpush1.bf16.msra.mxu0 %v396
    %533 = vmatprep.subr.bf16.mxu0 %v401
    %534 = vmatpush1.bf16.msra.mxu0 %v400
    %535 = vmatprep.subr.bf16.mxu0 %v405
    %536 = vmatpush1.bf16.msra.mxu0 %v404
    %537 = vmatprep.subr.bf16.mxu0 %v409
    %538 = vmatpush1.bf16.msra.mxu0 %v408
    %539 = vmatprep.subr.bf16.mxu0 %v413
    %540 = vmatpush1.bf16.msra.mxu0 %v412
    %541 = vmatprep.subr.bf16.mxu0 %v417
    %542 = vmatpush1.bf16.msra.mxu0 %v416
    %543 = vmatprep.subr.bf16.mxu0 %v421
    %544 = vmatpush1.bf16.msra.mxu0 %v420
    %545 = vmatprep.subr.bf16.mxu0 %v425
    %546 = vmatpush1.bf16.msra.mxu0 %v424
    %547 = vmatprep.subr.bf16.mxu0 0
    %548 = vmatpush1.bf16.msra.mxu0 0
    %549 = vmatprep.subr.bf16.mxu0 0
    %550 = vmatpush1.bf16.msra.mxu0 0
    %551 = vmatprep.subr.bf16.mxu0 0
    %552 = vmatpush1.bf16.msra.mxu0 0
    %553 = vmatprep.subr.bf16.mxu0 0
    %554 = vmatpush1.bf16.msra.mxu0 0
    %555 = vmatprep.subr.bf16.mxu0 0
    %556 = vmatpush1.bf16.msra.mxu0 0
    %557 = vmatprep.subr.bf16.mxu0 0
    %558 = vmatpush1.bf16.msra.mxu0 0
    %559 = vmatprep.subr.bf16.mxu0 0
    %560 = vmatpush1.bf16.msra.mxu0 0
    %561 = vmatprep.subr.bf16.mxu0 0
    %562 = vmatpush1.bf16.msra.mxu0 0
    %563 = vmatprep.mubr.bf16.mxu0 0
    %564 = vmatmul.mubr.bf16.gmra.mrb[0].mxu0 %v290
    %v565 = vpop.f32.mrb[0].mxu0
    %v566 = vadd.f32 %v265, %v565
    %v567 = vpop.f32.mrb[0].mxu0
    %v568 = vadd.f32 %v269, %v567
    %v569 = vpop.f32.mrb[0].mxu0
    %v570 = vadd.f32 %v265, %v569
    %v571 = vpop.f32.mrb[0].mxu0
    %v572 = vadd.f32 %v269, %v571
    %573 = vmatprep.mubr.bf16.mxu0 0
    %574 = vmatmul.mubr.bf16.gmra.mrb[0].mxu0 %v291
    %v575 = vpop.f32.mrb[0].mxu0
    %v576 = vadd.f32 %v265, %v575
    %v577 = vpop.f32.mrb[0].mxu0
    %v578 = vadd.f32 %v269, %v577
    %v579 = vpop.f32.mrb[0].mxu0
    %v580 = vadd.f32 %v265, %v579
    %v581 = vpop.f32.mrb[0].mxu0
    %v582 = vadd.f32 %v269, %v581
    %583 = vmatprep.mubr.bf16.mxu0 0
    %584 = vmatmul.mubr.bf16.gmra.mrb[0].mxu0 %v292
    %v585 = vpop.f32.mrb[0].mxu0
    %v586 = vadd.f32 %v265, %v585
    %v587 = vpop.f32.mrb[0].mxu0
    %v588 = vadd.f32 %v269, %v587
    %v589 = vpop.f32.mrb[0].mxu0
    %v590 = vadd.f32 %v265, %v589
    %v591 = vpop.f32.mrb[0].mxu0
    %v592 = vadd.f32 %v269, %v591
    %593 = vmatprep.mubr.bf16.mxu0 0
    %594 = vmatmul.mubr.bf16.gmra.mrb[0].mxu0 %v293
    %v595 = vpop.f32.mrb[0].mxu0
    %v596 = vadd.f32 %v265, %v595
    %v597 = vpop.f32.mrb[0].mxu0
    %v598 = vadd.f32 %v269, %v597
    %v599 = vpop.f32.mrb[0].mxu0
    %v600 = vadd.f32 %v265, %v599
    %v601 = vpop.f32.mrb[0].mxu0
    %v602 = vadd.f32 %v269, %v601
    %603 = vdwg.mxu0
    %604 = vst [vmem:[#allocation2] sm:$0xff] %v493
    %605 = vst [vmem:[#allocation2 + $0x8] sm:$0xff] %v495
    %606 = vst [vmem:[#allocation2 + $0x10] sm:$0xff] %v566
    %607 = vst [vmem:[#allocation2 + $0x18] sm:$0xff] %v568
    %608 = vst [vmem:[#allocation2 + $0x20] sm:$0xff] %v497
    %609 = vst [vmem:[#allocation2 + $0x28] sm:$0xff] %v499
    %610 = vst [vmem:[#allocation2 + $0x30] sm:$0xff] %v570
    %611 = vst [vmem:[#allocation2 + $0x38] sm:$0xff] %v572
    %612 = vst [vmem:[#allocation2 + $0x40] sm:$0xff] %v503
    %613 = vst [vmem:[#allocation2 + $0x48] sm:$0xff] %v505
    %614 = vst [vmem:[#allocation2 + $0x50] sm:$0xff] %v576
    %615 = vst [vmem:[#allocation2 + $0x58] sm:$0xff] %v578
    %616 = vst [vmem:[#allocation2 + $0x60] sm:$0xff] %v507
    %617 = vst [vmem:[#allocation2 + $0x68] sm:$0xff] %v509
    %618 = vst [vmem:[#allocation2 + $0x70] sm:$0xff] %v580
    %619 = vst [vmem:[#allocation2 + $0x78] sm:$0xff] %v582
    %620 = vst [vmem:[#allocation2 + $0x80] sm:$0xff] %v513
    %621 = vst [vmem:[#allocation2 + $0x88] sm:$0xff] %v515
    %622 = vst [vmem:[#allocation2 + $0x90] sm:$0xff] %v586
    %623 = vst [vmem:[#allocation2 + $0x98] sm:$0xff] %v588
    %624 = vst [vmem:[#allocation2 + $0xa0] sm:$0xff] %v517
    %625 = vst [vmem:[#allocation2 + $0xa8] sm:$0xff] %v519
    %626 = vst [vmem:[#allocation2 + $0xb0] sm:$0xff] %v590
    %627 = vst [vmem:[#allocation2 + $0xb8] sm:$0xff] %v592
    %628 = vst [vmem:[#allocation2 + $0xc0] sm:$0xff] %v523
    %629 = vst [vmem:[#allocation2 + $0xc8] sm:$0xff] %v525
    %630 = vst [vmem:[#allocation2 + $0xd0] sm:$0xff] %v596
    %631 = vst [vmem:[#allocation2 + $0xd8] sm:$0xff] %v598
    %632 = vst [vmem:[#allocation2 + $0xe0] sm:$0xff] %v527
    %633 = vst [vmem:[#allocation2 + $0xe8] sm:$0xff] %v529
    %634 = vst [vmem:[#allocation2 + $0xf0] sm:$0xff] %v600
    %635 = vst [vmem:[#allocation2 + $0xf8] sm:$0xff] %v602
    %v636 = vld [vmem:[#allocation9] sm:$0xff]
    %v637 = vld [vmem:[#allocation9 + $0x8] sm:$0xff]
    %v638 = vld [vmem:[#allocation9 + $0x10] sm:$0xff]
    %v639 = vld [vmem:[#allocation9 + $0x18] sm:$0xff]
    %v640 = vld [vmem:[#allocation9 + $0x20] sm:$0xff]
    %v641 = vld [vmem:[#allocation9 + $0x28] sm:$0xff]
    %v642 = vld [vmem:[#allocation9 + $0x30] sm:$0xff]
    %v643 = vld [vmem:[#allocation9 + $0x38] sm:$0xff]
    %v644 = vld [vmem:[#allocation9 + $0x40] sm:$0xff]
    %v645 = vld [vmem:[#allocation9 + $0x48] sm:$0xff]
    %v646 = vld [vmem:[#allocation9 + $0x50] sm:$0xff]
    %v647 = vld [vmem:[#allocation9 + $0x58] sm:$0xff]
    %v648 = vld [vmem:[#allocation9 + $0x60] sm:$0xff]
    %v649 = vld [vmem:[#allocation9 + $0x68] sm:$0xff]
    %v650 = vld [vmem:[#allocation9 + $0x70] sm:$0xff]
    %v651 = vld [vmem:[#allocation9 + $0x78] sm:$0xff]
    %v652 = vld [vmem:[#allocation9 + $0x80] sm:$0xff]
    %v653 = vld [vmem:[#allocation9 + $0x88] sm:$0xff]
    %v654 = vld [vmem:[#allocation9 + $0x90] sm:$0xff]
    %v655 = vld [vmem:[#allocation9 + $0x98] sm:$0xff]
    %v656 = vld [vmem:[#allocation9 + $0xa0] sm:$0xff]
    %v657 = vld [vmem:[#allocation9 + $0xa8] sm:$0xff]
    %v658 = vld [vmem:[#allocation9 + $0xb0] sm:$0xff]
    %v659 = vld [vmem:[#allocation9 + $0xb8] sm:$0xff]
    %v660 = vld [vmem:[#allocation9 + $0xc0] sm:$0xff]
    %v661 = vld [vmem:[#allocation9 + $0xc8] sm:$0xff]
    %v662 = vld [vmem:[#allocation9 + $0xd0] sm:$0xff]
    %v663 = vld [vmem:[#allocation9 + $0xd8] sm:$0xff]
    %v664 = vld [vmem:[#allocation9 + $0xe0] sm:$0xff]
    %v665 = vld [vmem:[#allocation9 + $0xe8] sm:$0xff]
    %v666 = vld [vmem:[#allocation9 + $0xf0] sm:$0xff]
    %v667 = vld [vmem:[#allocation9 + $0xf8] sm:$0xff]
    %v668 = vld [vmem:[#allocation12] sm:$0xf]
    %v670 = vlaneseq
    %v671 = vshrl.u32 %v670, 7
    %v672 = vsub.s32 0, %v671
    %v673 = vrot.slane %v668, %v672
    %v674 = vlaneseq
    %v675 = vshrl.u32 %v674, 7
    %v676 = vsub.s32 1, %v675
    %v677 = vrot.slane %v668, %v676
    %v678 = vlaneseq
    %v679 = vshrl.u32 %v678, 7
    %v680 = vsub.s32 2, %v679
    %v681 = vrot.slane %v668, %v680
    %v682 = vlaneseq
    %v683 = vshrl.u32 %v682, 7
    %v684 = vsub.s32 3, %v683
    %v685 = vrot.slane %v668, %v684
    %v722 = vunpack.c.l.b16 %v636
    %v723 = vunpack.c.h.b16 %v636
    %v724 = vunpack.c.l.b16 %v637
    %v725 = vunpack.c.h.b16 %v637
    %v726 = vunpack.c.l.b16 %v638
    %v727 = vunpack.c.h.b16 %v638
    %v728 = vunpack.c.l.b16 %v639
    %v729 = vunpack.c.h.b16 %v639
    %v730 = vunpack.c.l.b16 %v640
    %v731 = vunpack.c.h.b16 %v640
    %v732 = vunpack.c.l.b16 %v641
    %v733 = vunpack.c.h.b16 %v641
    %v734 = vunpack.c.l.b16 %v642
    %v735 = vunpack.c.h.b16 %v642
    %v736 = vunpack.c.l.b16 %v643
    %v737 = vunpack.c.h.b16 %v643
    %v738 = vunpack.c.l.b16 %v644
    %v739 = vunpack.c.h.b16 %v644
    %v740 = vunpack.c.l.b16 %v645
    %v741 = vunpack.c.h.b16 %v645
    %v742 = vunpack.c.l.b16 %v646
    %v743 = vunpack.c.h.b16 %v646
    %v744 = vunpack.c.l.b16 %v647
    %v745 = vunpack.c.h.b16 %v647
    %v746 = vunpack.c.l.b16 %v648
    %v747 = vunpack.c.h.b16 %v648
    %v748 = vunpack.c.l.b16 %v649
    %v749 = vunpack.c.h.b16 %v649
    %v750 = vunpack.c.l.b16 %v650
    %v751 = vunpack.c.h.b16 %v650
    %v752 = vunpack.c.l.b16 %v651
    %v753 = vunpack.c.h.b16 %v651
    %v754 = vunpack.c.l.b16 %v652
    %v755 = vunpack.c.h.b16 %v652
    %v756 = vunpack.c.l.b16 %v653
    %v757 = vunpack.c.h.b16 %v653
    %v758 = vunpack.c.l.b16 %v654
    %v759 = vunpack.c.h.b16 %v654
    %v760 = vunpack.c.l.b16 %v655
    %v761 = vunpack.c.h.b16 %v655
    %v762 = vunpack.c.l.b16 %v656
    %v763 = vunpack.c.h.b16 %v656
    %v764 = vunpack.c.l.b16 %v657
    %v765 = vunpack.c.h.b16 %v657
    %v766 = vunpack.c.l.b16 %v658
    %v767 = vunpack.c.h.b16 %v658
    %v768 = vunpack.c.l.b16 %v659
    %v769 = vunpack.c.h.b16 %v659
    %v770 = vunpack.c.l.b16 %v660
    %v771 = vunpack.c.h.b16 %v660
    %v772 = vunpack.c.l.b16 %v661
    %v773 = vunpack.c.h.b16 %v661
    %v774 = vunpack.c.l.b16 %v662
    %v775 = vunpack.c.h.b16 %v662
    %v776 = vunpack.c.l.b16 %v663
    %v777 = vunpack.c.h.b16 %v663
    %v778 = vunpack.c.l.b16 %v664
    %v779 = vunpack.c.h.b16 %v664
    %v780 = vunpack.c.l.b16 %v665
    %v781 = vunpack.c.h.b16 %v665
    %v782 = vunpack.c.l.b16 %v666
    %v783 = vunpack.c.h.b16 %v666
    %v784 = vunpack.c.l.b16 %v667
    %v785 = vunpack.c.h.b16 %v667
    %v786 = vpack.c.b16 %v726, %v722
    %v787 = vpack.c.b16 %v727, %v723
    %v788 = vpack.c.b16 %v728, %v724
    %v789 = vpack.c.b16 %v729, %v725
    %v790 = vpack.c.b16 %v734, %v730
    %v791 = vpack.c.b16 %v735, %v731
    %v792 = vpack.c.b16 %v736, %v732
    %v793 = vpack.c.b16 %v737, %v733
    %v794 = vpack.c.b16 %v742, %v738
    %v795 = vpack.c.b16 %v743, %v739
    %v796 = vpack.c.b16 %v744, %v740
    %v797 = vpack.c.b16 %v745, %v741
    %v798 = vpack.c.b16 %v750, %v746
    %v799 = vpack.c.b16 %v751, %v747
    %v800 = vpack.c.b16 %v752, %v748
    %v801 = vpack.c.b16 %v753, %v749
    %v802 = vpack.c.b16 %v758, %v754
    %v803 = vpack.c.b16 %v759, %v755
    %v804 = vpack.c.b16 %v760, %v756
    %v805 = vpack.c.b16 %v761, %v757
    %v806 = vpack.c.b16 %v766, %v762
    %v807 = vpack.c.b16 %v767, %v763
    %v808 = vpack.c.b16 %v768, %v764
    %v809 = vpack.c.b16 %v769, %v765
    %v810 = vpack.c.b16 %v774, %v770
    %v811 = vpack.c.b16 %v775, %v771
    %v812 = vpack.c.b16 %v776, %v772
    %v813 = vpack.c.b16 %v777, %v773
    %v814 = vpack.c.b16 %v782, %v778
    %v815 = vpack.c.b16 %v783, %v779
    %v816 = vpack.c.b16 %v784, %v780
    %v817 = vpack.c.b16 %v785, %v781
    %850 = vmatprep.subr.bf16.mxu0 %v787
    %851 = vmatpush1.bf16.msra.mxu0 %v786
    %852 = vmatprep.subr.bf16.mxu0 %v791
    %853 = vmatpush1.bf16.msra.mxu0 %v790
    %854 = vmatprep.subr.bf16.mxu0 %v795
    %855 = vmatpush1.bf16.msra.mxu0 %v794
    %856 = vmatprep.subr.bf16.mxu0 %v799
    %857 = vmatpush1.bf16.msra.mxu0 %v798
    %858 = vmatprep.subr.bf16.mxu0 %v803
    %859 = vmatpush1.bf16.msra.mxu0 %v802
    %860 = vmatprep.subr.bf16.mxu0 %v807
    %861 = vmatpush1.bf16.msra.mxu0 %v806
    %862 = vmatprep.subr.bf16.mxu0 %v811
    %863 = vmatpush1.bf16.msra.mxu0 %v810
    %864 = vmatprep.subr.bf16.mxu0 %v815
    %865 = vmatpush1.bf16.msra.mxu0 %v814
    %866 = vmatprep.subr.bf16.mxu0 0
    %867 = vmatpush1.bf16.msra.mxu0 0
    %868 = vmatprep.subr.bf16.mxu0 0
    %869 = vmatpush1.bf16.msra.mxu0 0
    %870 = vmatprep.subr.bf16.mxu0 0
    %871 = vmatpush1.bf16.msra.mxu0 0
    %872 = vmatprep.subr.bf16.mxu0 0
    %873 = vmatpush1.bf16.msra.mxu0 0
    %874 = vmatprep.subr.bf16.mxu0 0
    %875 = vmatpush1.bf16.msra.mxu0 0
    %876 = vmatprep.subr.bf16.mxu0 0
    %877 = vmatpush1.bf16.msra.mxu0 0
    %878 = vmatprep.subr.bf16.mxu0 0
    %879 = vmatpush1.bf16.msra.mxu0 0
    %880 = vmatprep.subr.bf16.mxu0 0
    %881 = vmatpush1.bf16.msra.mxu0 0
    %882 = vmatprep.mubr.bf16.mxu0 0
    %883 = vmatmul.mubr.bf16.gmra.mrb[0].mxu0 %v290
    %v884 = vpop.f32.mrb[0].mxu0
    %v885 = vadd.f32 %v673, %v884
    %v886 = vpop.f32.mrb[0].mxu0
    %v887 = vadd.f32 %v677, %v886
    %v888 = vpop.f32.mrb[0].mxu0
    %v889 = vadd.f32 %v673, %v888
    %v890 = vpop.f32.mrb[0].mxu0
    %v891 = vadd.f32 %v677, %v890
    %892 = vmatprep.mubr.bf16.mxu0 0
    %893 = vmatmul.mubr.bf16.gmra.mrb[0].mxu0 %v291
    %v894 = vpop.f32.mrb[0].mxu0
    %v895 = vadd.f32 %v673, %v894
    %v896 = vpop.f32.mrb[0].mxu0
    %v897 = vadd.f32 %v677, %v896
    %v898 = vpop.f32.mrb[0].mxu0
    %v899 = vadd.f32 %v673, %v898
    %v900 = vpop.f32.mrb[0].mxu0
    %v901 = vadd.f32 %v677, %v900
    %902 = vmatprep.mubr.bf16.mxu0 0
    %903 = vmatmul.mubr.bf16.gmra.mrb[0].mxu0 %v292
    %v904 = vpop.f32.mrb[0].mxu0
    %v905 = vadd.f32 %v673, %v904
    %v906 = vpop.f32.mrb[0].mxu0
    %v907 = vadd.f32 %v677, %v906
    %v908 = vpop.f32.mrb[0].mxu0
    %v909 = vadd.f32 %v673, %v908
    %v910 = vpop.f32.mrb[0].mxu0
    %v911 = vadd.f32 %v677, %v910
    %912 = vmatprep.mubr.bf16.mxu0 0
    %913 = vmatmul.mubr.bf16.gmra.mrb[0].mxu0 %v293
    %v914 = vpop.f32.mrb[0].mxu0
    %v915 = vadd.f32 %v673, %v914
    %v916 = vpop.f32.mrb[0].mxu0
    %v917 = vadd.f32 %v677, %v916
    %v918 = vpop.f32.mrb[0].mxu0
    %v919 = vadd.f32 %v673, %v918
    %v920 = vpop.f32.mrb[0].mxu0
    %v921 = vadd.f32 %v677, %v920
    %922 = vdwg.mxu0
    %923 = vmatprep.subr.bf16.mxu0 %v789
    %924 = vmatpush1.bf16.msra.mxu0 %v788
    %925 = vmatprep.subr.bf16.mxu0 %v793
    %926 = vmatpush1.bf16.msra.mxu0 %v792
    %927 = vmatprep.subr.bf16.mxu0 %v797
    %928 = vmatpush1.bf16.msra.mxu0 %v796
    %929 = vmatprep.subr.bf16.mxu0 %v801
    %930 = vmatpush1.bf16.msra.mxu0 %v800
    %931 = vmatprep.subr.bf16.mxu0 %v805
    %932 = vmatpush1.bf16.msra.mxu0 %v804
    %933 = vmatprep.subr.bf16.mxu0 %v809
    %934 = vmatpush1.bf16.msra.mxu0 %v808
    %935 = vmatprep.subr.bf16.mxu0 %v813
    %936 = vmatpush1.bf16.msra.mxu0 %v812
    %937 = vmatprep.subr.bf16.mxu0 %v817
    %938 = vmatpush1.bf16.msra.mxu0 %v816
    %939 = vmatprep.subr.bf16.mxu0 0
    %940 = vmatpush1.bf16.msra.mxu0 0
    %941 = vmatprep.subr.bf16.mxu0 0
    %942 = vmatpush1.bf16.msra.mxu0 0
    %943 = vmatprep.subr.bf16.mxu0 0
    %944 = vmatpush1.bf16.msra.mxu0 0
    %945 = vmatprep.subr.bf16.mxu0 0
    %946 = vmatpush1.bf16.msra.mxu0 0
    %947 = vmatprep.subr.bf16.mxu0 0
    %948 = vmatpush1.bf16.msra.mxu0 0
    %949 = vmatprep.subr.bf16.mxu0 0
    %950 = vmatpush1.bf16.msra.mxu0 0
    %951 = vmatprep.subr.bf16.mxu0 0
    %952 = vmatpush1.bf16.msra.mxu0 0
    %953 = vmatprep.subr.bf16.mxu0 0
    %954 = vmatpush1.bf16.msra.mxu0 0
    %955 = vmatprep.mubr.bf16.mxu0 0
    %956 = vmatmul.mubr.bf16.gmra.mrb[0].mxu0 %v290
    %v957 = vpop.f32.mrb[0].mxu0
    %v958 = vadd.f32 %v681, %v957
    %v959 = vpop.f32.mrb[0].mxu0
    %v960 = vadd.f32 %v685, %v959
    %v961 = vpop.f32.mrb[0].mxu0
    %v962 = vadd.f32 %v681, %v961
    %v963 = vpop.f32.mrb[0].mxu0
    %v964 = vadd.f32 %v685, %v963
    %965 = vmatprep.mubr.bf16.mxu0 0
    %966 = vmatmul.mubr.bf16.gmra.mrb[0].mxu0 %v291
    %v967 = vpop.f32.mrb[0].mxu0
    %v968 = vadd.f32 %v681, %v967
    %v969 = vpop.f32.mrb[0].mxu0
    %v970 = vadd.f32 %v685, %v969
    %v971 = vpop.f32.mrb[0].mxu0
    %v972 = vadd.f32 %v681, %v971
    %v973 = vpop.f32.mrb[0].mxu0
    %v974 = vadd.f32 %v685, %v973
    %975 = vmatprep.mubr.bf16.mxu0 0
    %976 = vmatmul.mubr.bf16.gmra.mrb[0].mxu0 %v292
    %v977 = vpop.f32.mrb[0].mxu0
    %v978 = vadd.f32 %v681, %v977
    %v979 = vpop.f32.mrb[0].mxu0
    %v980 = vadd.f32 %v685, %v979
    %v981 = vpop.f32.mrb[0].mxu0
    %v982 = vadd.f32 %v681, %v981
    %v983 = vpop.f32.mrb[0].mxu0
    %v984 = vadd.f32 %v685, %v983
    %985 = vmatprep.mubr.bf16.mxu0 0
    %986 = vmatmul.mubr.bf16.gmra.mrb[0].mxu0 %v293
    %v987 = vpop.f32.mrb[0].mxu0
    %v988 = vadd.f32 %v681, %v987
    %v989 = vpop.f32.mrb[0].mxu0
    %v990 = vadd.f32 %v685, %v989
    %v991 = vpop.f32.mrb[0].mxu0
    %v992 = vadd.f32 %v681, %v991
    %v993 = vpop.f32.mrb[0].mxu0
    %v994 = vadd.f32 %v685, %v993
    %995 = vdwg.mxu0
    %996 = vst [vmem:[#allocation3] sm:$0xff] %v885
    %997 = vst [vmem:[#allocation3 + $0x8] sm:$0xff] %v887
    %998 = vst [vmem:[#allocation3 + $0x10] sm:$0xff] %v958
    %999 = vst [vmem:[#allocation3 + $0x18] sm:$0xff] %v960
    %1000 = vst [vmem:[#allocation3 + $0x20] sm:$0xff] %v889
    %1001 = vst [vmem:[#allocation3 + $0x28] sm:$0xff] %v891
    %1002 = vst [vmem:[#allocation3 + $0x30] sm:$0xff] %v962
    %1003 = vst [vmem:[#allocation3 + $0x38] sm:$0xff] %v964
    %1004 = vst [vmem:[#allocation3 + $0x40] sm:$0xff] %v895
    %1005 = vst [vmem:[#allocation3 + $0x48] sm:$0xff] %v897
    %1006 = vst [vmem:[#allocation3 + $0x50] sm:$0xff] %v968
    %1007 = vst [vmem:[#allocation3 + $0x58] sm:$0xff] %v970
    %1008 = vst [vmem:[#allocation3 + $0x60] sm:$0xff] %v899
    %1009 = vst [vmem:[#allocation3 + $0x68] sm:$0xff] %v901
    %1010 = vst [vmem:[#allocation3 + $0x70] sm:$0xff] %v972
    %1011 = vst [vmem:[#allocation3 + $0x78] sm:$0xff] %v974
    %1012 = vst [vmem:[#allocation3 + $0x80] sm:$0xff] %v905
    %1013 = vst [vmem:[#allocation3 + $0x88] sm:$0xff] %v907
    %1014 = vst [vmem:[#allocation3 + $0x90] sm:$0xff] %v978
    %1015 = vst [vmem:[#allocation3 + $0x98] sm:$0xff] %v980
    %1016 = vst [vmem:[#allocation3 + $0xa0] sm:$0xff] %v909
    %1017 = vst [vmem:[#allocation3 + $0xa8] sm:$0xff] %v911
    %1018 = vst [vmem:[#allocation3 + $0xb0] sm:$0xff] %v982
    %1019 = vst [vmem:[#allocation3 + $0xb8] sm:$0xff] %v984
    %1020 = vst [vmem:[#allocation3 + $0xc0] sm:$0xff] %v915
    %1021 = vst [vmem:[#allocation3 + $0xc8] sm:$0xff] %v917
    %1022 = vst [vmem:[#allocation3 + $0xd0] sm:$0xff] %v988
    %1023 = vst [vmem:[#allocation3 + $0xd8] sm:$0xff] %v990
    %1024 = vst [vmem:[#allocation3 + $0xe0] sm:$0xff] %v919
    %1025 = vst [vmem:[#allocation3 + $0xe8] sm:$0xff] %v921
    %1026 = vst [vmem:[#allocation3 + $0xf0] sm:$0xff] %v992
    %1027 = vst [vmem:[#allocation3 + $0xf8] sm:$0xff] %v994
    %v1028 = vld [vmem:[#allocation5] sm:$0xff]
    %v1029 = vld [vmem:[#allocation5 + $0x8] sm:$0xff]
    %v1030 = vld [vmem:[#allocation5 + $0x10] sm:$0xff]
    %v1031 = vld [vmem:[#allocation5 + $0x18] sm:$0xff]
    %v1032 = vld [vmem:[#allocation5 + $0x20] sm:$0xff]
    %v1033 = vld [vmem:[#allocation5 + $0x28] sm:$0xff]
    %v1034 = vld [vmem:[#allocation5 + $0x30] sm:$0xff]
    %v1035 = vld [vmem:[#allocation5 + $0x38] sm:$0xff]
    %v1036 = vld [vmem:[#allocation5 + $0x40] sm:$0xff]
    %v1037 = vld [vmem:[#allocation5 + $0x48] sm:$0xff]
    %v1038 = vld [vmem:[#allocation5 + $0x50] sm:$0xff]
    %v1039 = vld [vmem:[#allocation5 + $0x58] sm:$0xff]
    %v1040 = vld [vmem:[#allocation5 + $0x60] sm:$0xff]
    %v1041 = vld [vmem:[#allocation5 + $0x68] sm:$0xff]
    %v1042 = vld [vmem:[#allocation5 + $0x70] sm:$0xff]
    %v1043 = vld [vmem:[#allocation5 + $0x78] sm:$0xff]
    %v1044 = vld [vmem:[#allocation5 + $0x80] sm:$0xff]
    %v1045 = vld [vmem:[#allocation5 + $0x88] sm:$0xff]
    %v1046 = vld [vmem:[#allocation5 + $0x90] sm:$0xff]
    %v1047 = vld [vmem:[#allocation5 + $0x98] sm:$0xff]
    %v1048 = vld [vmem:[#allocation5 + $0xa0] sm:$0xff]
    %v1049 = vld [vmem:[#allocation5 + $0xa8] sm:$0xff]
    %v1050 = vld [vmem:[#allocation5 + $0xb0] sm:$0xff]
    %v1051 = vld [vmem:[#allocation5 + $0xb8] sm:$0xff]
    %v1052 = vld [vmem:[#allocation5 + $0xc0] sm:$0xff]
    %v1053 = vld [vmem:[#allocation5 + $0xc8] sm:$0xff]
    %v1054 = vld [vmem:[#allocation5 + $0xd0] sm:$0xff]
    %v1055 = vld [vmem:[#allocation5 + $0xd8] sm:$0xff]
    %v1056 = vld [vmem:[#allocation5 + $0xe0] sm:$0xff]
    %v1057 = vld [vmem:[#allocation5 + $0xe8] sm:$0xff]
    %v1058 = vld [vmem:[#allocation5 + $0xf0] sm:$0xff]
    %v1059 = vld [vmem:[#allocation5 + $0xf8] sm:$0xff]
    %v1060 = vld [vmem:[#allocation10] sm:$0xff]
    %v1061 = vld [vmem:[#allocation10 + $0x8] sm:$0xff]
    %v1062 = vld [vmem:[#allocation10 + $0x10] sm:$0xff]
    %v1063 = vld [vmem:[#allocation10 + $0x18] sm:$0xff]
    %v1064 = vld [vmem:[#allocation10 + $0x20] sm:$0xff]
    %v1065 = vld [vmem:[#allocation10 + $0x28] sm:$0xff]
    %v1066 = vld [vmem:[#allocation10 + $0x30] sm:$0xff]
    %v1067 = vld [vmem:[#allocation10 + $0x38] sm:$0xff]
    %v1068 = vld [vmem:[#allocation10 + $0x40] sm:$0xff]
    %v1069 = vld [vmem:[#allocation10 + $0x48] sm:$0xff]
    %v1070 = vld [vmem:[#allocation10 + $0x50] sm:$0xff]
    %v1071 = vld [vmem:[#allocation10 + $0x58] sm:$0xff]
    %v1072 = vld [vmem:[#allocation10 + $0x60] sm:$0xff]
    %v1073 = vld [vmem:[#allocation10 + $0x68] sm:$0xff]
    %v1074 = vld [vmem:[#allocation10 + $0x70] sm:$0xff]
    %v1075 = vld [vmem:[#allocation10 + $0x78] sm:$0xff]
    %v1076 = vld [vmem:[#allocation10 + $0x80] sm:$0xff]
    %v1077 = vld [vmem:[#allocation10 + $0x88] sm:$0xff]
    %v1078 = vld [vmem:[#allocation10 + $0x90] sm:$0xff]
    %v1079 = vld [vmem:[#allocation10 + $0x98] sm:$0xff]
    %v1080 = vld [vmem:[#allocation10 + $0xa0] sm:$0xff]
    %v1081 = vld [vmem:[#allocation10 + $0xa8] sm:$0xff]
    %v1082 = vld [vmem:[#allocation10 + $0xb0] sm:$0xff]
    %v1083 = vld [vmem:[#allocation10 + $0xb8] sm:$0xff]
    %v1084 = vld [vmem:[#allocation10 + $0xc0] sm:$0xff]
    %v1085 = vld [vmem:[#allocation10 + $0xc8] sm:$0xff]
    %v1086 = vld [vmem:[#allocation10 + $0xd0] sm:$0xff]
    %v1087 = vld [vmem:[#allocation10 + $0xd8] sm:$0xff]
    %v1088 = vld [vmem:[#allocation10 + $0xe0] sm:$0xff]
    %v1089 = vld [vmem:[#allocation10 + $0xe8] sm:$0xff]
    %v1090 = vld [vmem:[#allocation10 + $0xf0] sm:$0xff]
    %v1091 = vld [vmem:[#allocation10 + $0xf8] sm:$0xff]
    %v1092 = vld [vmem:[#allocation2] sm:$0xff]
    %v1093 = vld [vmem:[#allocation2 + $0x8] sm:$0xff]
    %v1094 = vld [vmem:[#allocation2 + $0x10] sm:$0xff]
    %v1095 = vld [vmem:[#allocation2 + $0x18] sm:$0xff]
    %v1128 = vunpack.c.l.b16 %v1028
    %v1129 = vunpack.c.h.b16 %v1028
    %v1130 = vunpack.c.l.b16 %v1029
    %v1131 = vunpack.c.h.b16 %v1029
    %v1132 = vunpack.c.l.b16 %v1030
    %v1133 = vunpack.c.h.b16 %v1030
    %v1134 = vunpack.c.l.b16 %v1031
    %v1135 = vunpack.c.h.b16 %v1031
    %v1136 = vunpack.c.l.b16 %v1032
    %v1137 = vunpack.c.h.b16 %v1032
    %v1138 = vunpack.c.l.b16 %v1033
    %v1139 = vunpack.c.h.b16 %v1033
    %v1140 = vunpack.c.l.b16 %v1034
    %v1141 = vunpack.c.h.b16 %v1034
    %v1142 = vunpack.c.l.b16 %v1035
    %v1143 = vunpack.c.h.b16 %v1035
    %v1144 = vunpack.c.l.b16 %v1036
    %v1145 = vunpack.c.h.b16 %v1036
    %v1146 = vunpack.c.l.b16 %v1037
    %v1147 = vunpack.c.h.b16 %v1037
    %v1148 = vunpack.c.l.b16 %v1038
    %v1149 = vunpack.c.h.b16 %v1038
    %v1150 = vunpack.c.l.b16 %v1039
    %v1151 = vunpack.c.h.b16 %v1039
    %v1152 = vunpack.c.l.b16 %v1040
    %v1153 = vunpack.c.h.b16 %v1040
    %v1154 = vunpack.c.l.b16 %v1041
    %v1155 = vunpack.c.h.b16 %v1041
    %v1156 = vunpack.c.l.b16 %v1042
    %v1157 = vunpack.c.h.b16 %v1042
    %v1158 = vunpack.c.l.b16 %v1043
    %v1159 = vunpack.c.h.b16 %v1043
    %v1160 = vunpack.c.l.b16 %v1044
    %v1161 = vunpack.c.h.b16 %v1044
    %v1162 = vunpack.c.l.b16 %v1045
    %v1163 = vunpack.c.h.b16 %v1045
    %v1164 = vunpack.c.l.b16 %v1046
    %v1165 = vunpack.c.h.b16 %v1046
    %v1166 = vunpack.c.l.b16 %v1047
    %v1167 = vunpack.c.h.b16 %v1047
    %v1168 = vunpack.c.l.b16 %v1048
    %v1169 = vunpack.c.h.b16 %v1048
    %v1170 = vunpack.c.l.b16 %v1049
    %v1171 = vunpack.c.h.b16 %v1049
    %v1172 = vunpack.c.l.b16 %v1050
    %v1173 = vunpack.c.h.b16 %v1050
    %v1174 = vunpack.c.l.b16 %v1051
    %v1175 = vunpack.c.h.b16 %v1051
    %v1176 = vunpack.c.l.b16 %v1052
    %v1177 = vunpack.c.h.b16 %v1052
    %v1178 = vunpack.c.l.b16 %v1053
    %v1179 = vunpack.c.h.b16 %v1053
    %v1180 = vunpack.c.l.b16 %v1054
    %v1181 = vunpack.c.h.b16 %v1054
    %v1182 = vunpack.c.l.b16 %v1055
    %v1183 = vunpack.c.h.b16 %v1055
    %v1184 = vunpack.c.l.b16 %v1056
    %v1185 = vunpack.c.h.b16 %v1056
    %v1186 = vunpack.c.l.b16 %v1057
    %v1187 = vunpack.c.h.b16 %v1057
    %v1188 = vunpack.c.l.b16 %v1058
    %v1189 = vunpack.c.h.b16 %v1058
    %v1190 = vunpack.c.l.b16 %v1059
    %v1191 = vunpack.c.h.b16 %v1059
    %v1192 = vpack.c.b16 %v1132, %v1128
    %v1193 = vpack.c.b16 %v1133, %v1129
    %v1194 = vpack.c.b16 %v1134, %v1130
    %v1195 = vpack.c.b16 %v1135, %v1131
    %v1196 = vpack.c.b16 %v1140, %v1136
    %v1197 = vpack.c.b16 %v1141, %v1137
    %v1198 = vpack.c.b16 %v1142, %v1138
    %v1199 = vpack.c.b16 %v1143, %v1139
    %v1200 = vpack.c.b16 %v1148, %v1144
    %v1201 = vpack.c.b16 %v1149, %v1145
    %v1202 = vpack.c.b16 %v1150, %v1146
    %v1203 = vpack.c.b16 %v1151, %v1147
    %v1204 = vpack.c.b16 %v1156, %v1152
    %v1205 = vpack.c.b16 %v1157, %v1153
    %v1206 = vpack.c.b16 %v1158, %v1154
    %v1207 = vpack.c.b16 %v1159, %v1155
    %v1208 = vpack.c.b16 %v1164, %v1160
    %v1209 = vpack.c.b16 %v1165, %v1161
    %v1210 = vpack.c.b16 %v1166, %v1162
    %v1211 = vpack.c.b16 %v1167, %v1163
    %v1212 = vpack.c.b16 %v1172, %v1168
    %v1213 = vpack.c.b16 %v1173, %v1169
    %v1214 = vpack.c.b16 %v1174, %v1170
    %v1215 = vpack.c.b16 %v1175, %v1171
    %v1216 = vpack.c.b16 %v1180, %v1176
    %v1217 = vpack.c.b16 %v1181, %v1177
    %v1218 = vpack.c.b16 %v1182, %v1178
    %v1219 = vpack.c.b16 %v1183, %v1179
    %v1220 = vpack.c.b16 %v1188, %v1184
    %v1221 = vpack.c.b16 %v1189, %v1185
    %v1222 = vpack.c.b16 %v1190, %v1186
    %v1223 = vpack.c.b16 %v1191, %v1187
    %1256 = vmatprep.subr.bf16.mxu0 %v1193
    %1257 = vmatpush1.bf16.msra.mxu0 %v1192
    %1258 = vmatprep.subr.bf16.mxu0 %v1197
    %1259 = vmatpush1.bf16.msra.mxu0 %v1196
    %1260 = vmatprep.subr.bf16.mxu0 %v1201
    %1261 = vmatpush1.bf16.msra.mxu0 %v1200
    %1262 = vmatprep.subr.bf16.mxu0 %v1205
    %1263 = vmatpush1.bf16.msra.mxu0 %v1204
    %1264 = vmatprep.subr.bf16.mxu0 %v1209
    %1265 = vmatpush1.bf16.msra.mxu0 %v1208
    %1266 = vmatprep.subr.bf16.mxu0 %v1213
    %1267 = vmatpush1.bf16.msra.mxu0 %v1212
    %1268 = vmatprep.subr.bf16.mxu0 %v1217
    %1269 = vmatpush1.bf16.msra.mxu0 %v1216
    %1270 = vmatprep.subr.bf16.mxu0 %v1221
    %1271 = vmatpush1.bf16.msra.mxu0 %v1220
    %1272 = vmatprep.subr.bf16.mxu0 0
    %1273 = vmatpush1.bf16.msra.mxu0 0
    %1274 = vmatprep.subr.bf16.mxu0 0
    %1275 = vmatpush1.bf16.msra.mxu0 0
    %1276 = vmatprep.subr.bf16.mxu0 0
    %1277 = vmatpush1.bf16.msra.mxu0 0
    %1278 = vmatprep.subr.bf16.mxu0 0
    %1279 = vmatpush1.bf16.msra.mxu0 0
    %1280 = vmatprep.subr.bf16.mxu0 0
    %1281 = vmatpush1.bf16.msra.mxu0 0
    %1282 = vmatprep.subr.bf16.mxu0 0
    %1283 = vmatpush1.bf16.msra.mxu0 0
    %1284 = vmatprep.subr.bf16.mxu0 0
    %1285 = vmatpush1.bf16.msra.mxu0 0
    %1286 = vmatprep.subr.bf16.mxu0 0
    %1287 = vmatpush1.bf16.msra.mxu0 0
    %1288 = vmatprep.mubr.bf16.mxu0 0
    %1289 = vmatmul.mubr.bf16.gmra.mrb[0].mxu0 0
    %v1290 = vpop.f32.mrb[0].mxu0
    %v1291 = vadd.f32 0.0, %v1290
    %v1292 = vpop.f32.mrb[0].mxu0
    %v1293 = vadd.f32 0.0, %v1292
    %v1294 = vpop.f32.mrb[0].mxu0
    %v1295 = vpop.f32.mrb[0].mxu0
    %1296 = vdwg.mxu0
    %1297 = vmatprep.subr.bf16.mxu0 %v1195
    %1298 = vmatpush1.bf16.msra.mxu0 %v1194
    %1299 = vmatprep.subr.bf16.mxu0 %v1199
    %1300 = vmatpush1.bf16.msra.mxu0 %v1198
    %1301 = vmatprep.subr.bf16.mxu0 %v1203
    %1302 = vmatpush1.bf16.msra.mxu0 %v1202
    %1303 = vmatprep.subr.bf16.mxu0 %v1207
    %1304 = vmatpush1.bf16.msra.mxu0 %v1206
    %1305 = vmatprep.subr.bf16.mxu0 %v1211
    %1306 = vmatpush1.bf16.msra.mxu0 %v1210
    %1307 = vmatprep.subr.bf16.mxu0 %v1215
    %1308 = vmatpush1.bf16.msra.mxu0 %v1214
    %1309 = vmatprep.subr.bf16.mxu0 %v1219
    %1310 = vmatpush1.bf16.msra.mxu0 %v1218
    %1311 = vmatprep.subr.bf16.mxu0 %v1223
    %1312 = vmatpush1.bf16.msra.mxu0 %v1222
    %1313 = vmatprep.subr.bf16.mxu0 0
    %1314 = vmatpush1.bf16.msra.mxu0 0
    %1315 = vmatprep.subr.bf16.mxu0 0
    %1316 = vmatpush1.bf16.msra.mxu0 0
    %1317 = vmatprep.subr.bf16.mxu0 0
    %1318 = vmatpush1.bf16.msra.mxu0 0
    %1319 = vmatprep.subr.bf16.mxu0 0
    %1320 = vmatpush1.bf16.msra.mxu0 0
    %1321 = vmatprep.subr.bf16.mxu0 0
    %1322 = vmatpush1.bf16.msra.mxu0 0
    %1323 = vmatprep.subr.bf16.mxu0 0
    %1324 = vmatpush1.bf16.msra.mxu0 0
    %1325 = vmatprep.subr.bf16.mxu0 0
    %1326 = vmatpush1.bf16.msra.mxu0 0
    %1327 = vmatprep.subr.bf16.mxu0 0
    %1328 = vmatpush1.bf16.msra.mxu0 0
    %1329 = vmatprep.mubr.bf16.mxu0 0
    %1330 = vmatmul.mubr.bf16.gmra.mrb[0].mxu0 0
    %v1331 = vpop.f32.mrb[0].mxu0
    %v1332 = vadd.f32 0.0, %v1331
    %v1333 = vpop.f32.mrb[0].mxu0
    %v1334 = vadd.f32 0.0, %v1333
    %v1335 = vpop.f32.mrb[0].mxu0
    %v1336 = vpop.f32.mrb[0].mxu0
    %1337 = vdwg.mxu0
    %v1338 = vadd.f32 %v1092, %v1291
    %v1339 = vadd.f32 %v1093, %v1293
    %v1340 = vadd.f32 %v1094, %v1332
    %v1341 = vadd.f32 %v1095, %v1334
    %s1342 = scalar_lea.vmem [#allocation3], 224
    %v1343 = vld [vmem:[%s1342] sm:$0xff]
    %v1344 = vld [vmem:[%s1342 + $0x8] sm:$0xff]
    %v1345 = vld [vmem:[%s1342 + $0x10] sm:$0xff]
    %v1346 = vld [vmem:[%s1342 + $0x18] sm:$0xff]
    %v1379 = vunpack.c.l.b16 %v1060
    %v1380 = vunpack.c.h.b16 %v1060
    %v1381 = vunpack.c.l.b16 %v1061
    %v1382 = vunpack.c.h.b16 %v1061
    %v1383 = vunpack.c.l.b16 %v1062
    %v1384 = vunpack.c.h.b16 %v1062
    %v1385 = vunpack.c.l.b16 %v1063
    %v1386 = vunpack.c.h.b16 %v1063
    %v1387 = vunpack.c.l.b16 %v1064
    %v1388 = vunpack.c.h.b16 %v1064
    %v1389 = vunpack.c.l.b16 %v1065
    %v1390 = vunpack.c.h.b16 %v1065
    %v1391 = vunpack.c.l.b16 %v1066
    %v1392 = vunpack.c.h.b16 %v1066
    %v1393 = vunpack.c.l.b16 %v1067
    %v1394 = vunpack.c.h.b16 %v1067
    %v1395 = vunpack.c.l.b16 %v1068
    %v1396 = vunpack.c.h.b16 %v1068
    %v1397 = vunpack.c.l.b16 %v1069
    %v1398 = vunpack.c.h.b16 %v1069
    %v1399 = vunpack.c.l.b16 %v1070
    %v1400 = vunpack.c.h.b16 %v1070
    %v1401 = vunpack.c.l.b16 %v1071
    %v1402 = vunpack.c.h.b16 %v1071
    %v1403 = vunpack.c.l.b16 %v1072
    %v1404 = vunpack.c.h.b16 %v1072
    %v1405 = vunpack.c.l.b16 %v1073
    %v1406 = vunpack.c.h.b16 %v1073
    %v1407 = vunpack.c.l.b16 %v1074
    %v1408 = vunpack.c.h.b16 %v1074
    %v1409 = vunpack.c.l.b16 %v1075
    %v1410 = vunpack.c.h.b16 %v1075
    %v1411 = vunpack.c.l.b16 %v1076
    %v1412 = vunpack.c.h.b16 %v1076
    %v1413 = vunpack.c.l.b16 %v1077
    %v1414 = vunpack.c.h.b16 %v1077
    %v1415 = vunpack.c.l.b16 %v1078
    %v1416 = vunpack.c.h.b16 %v1078
    %v1417 = vunpack.c.l.b16 %v1079
    %v1418 = vunpack.c.h.b16 %v1079
    %v1419 = vunpack.c.l.b16 %v1080
    %v1420 = vunpack.c.h.b16 %v1080
    %v1421 = vunpack.c.l.b16 %v1081
    %v1422 = vunpack.c.h.b16 %v1081
    %v1423 = vunpack.c.l.b16 %v1082
    %v1424 = vunpack.c.h.b16 %v1082
    %v1425 = vunpack.c.l.b16 %v1083
    %v1426 = vunpack.c.h.b16 %v1083
    %v1427 = vunpack.c.l.b16 %v1084
    %v1428 = vunpack.c.h.b16 %v1084
    %v1429 = vunpack.c.l.b16 %v1085
    %v1430 = vunpack.c.h.b16 %v1085
    %v1431 = vunpack.c.l.b16 %v1086
    %v1432 = vunpack.c.h.b16 %v1086
    %v1433 = vunpack.c.l.b16 %v1087
    %v1434 = vunpack.c.h.b16 %v1087
    %v1435 = vunpack.c.l.b16 %v1088
    %v1436 = vunpack.c.h.b16 %v1088
    %v1437 = vunpack.c.l.b16 %v1089
    %v1438 = vunpack.c.h.b16 %v1089
    %v1439 = vunpack.c.l.b16 %v1090
    %v1440 = vunpack.c.h.b16 %v1090
    %v1441 = vunpack.c.l.b16 %v1091
    %v1442 = vunpack.c.h.b16 %v1091
    %v1443 = vpack.c.b16 %v1383, %v1379
    %v1444 = vpack.c.b16 %v1384, %v1380
    %v1445 = vpack.c.b16 %v1385, %v1381
    %v1446 = vpack.c.b16 %v1386, %v1382
    %v1447 = vpack.c.b16 %v1391, %v1387
    %v1448 = vpack.c.b16 %v1392, %v1388
    %v1449 = vpack.c.b16 %v1393, %v1389
    %v1450 = vpack.c.b16 %v1394, %v1390
    %v1451 = vpack.c.b16 %v1399, %v1395
    %v1452 = vpack.c.b16 %v1400, %v1396
    %v1453 = vpack.c.b16 %v1401, %v1397
    %v1454 = vpack.c.b16 %v1402, %v1398
    %v1455 = vpack.c.b16 %v1407, %v1403
    %v1456 = vpack.c.b16 %v1408, %v1404
    %v1457 = vpack.c.b16 %v1409, %v1405
    %v1458 = vpack.c.b16 %v1410, %v1406
    %v1459 = vpack.c.b16 %v1415, %v1411
    %v1460 = vpack.c.b16 %v1416, %v1412
    %v1461 = vpack.c.b16 %v1417, %v1413
    %v1462 = vpack.c.b16 %v1418, %v1414
    %v1463 = vpack.c.b16 %v1423, %v1419
    %v1464 = vpack.c.b16 %v1424, %v1420
    %v1465 = vpack.c.b16 %v1425, %v1421
    %v1466 = vpack.c.b16 %v1426, %v1422
    %v1467 = vpack.c.b16 %v1431, %v1427
    %v1468 = vpack.c.b16 %v1432, %v1428
    %v1469 = vpack.c.b16 %v1433, %v1429
    %v1470 = vpack.c.b16 %v1434, %v1430
    %v1471 = vpack.c.b16 %v1439, %v1435
    %v1472 = vpack.c.b16 %v1440, %v1436
    %v1473 = vpack.c.b16 %v1441, %v1437
    %v1474 = vpack.c.b16 %v1442, %v1438
    %1507 = vmatprep.subr.bf16.mxu0 %v1444
    %1508 = vmatpush1.bf16.msra.mxu0 %v1443
    %1509 = vmatprep.subr.bf16.mxu0 %v1448
    %1510 = vmatpush1.bf16.msra.mxu0 %v1447
    %1511 = vmatprep.subr.bf16.mxu0 %v1452
    %1512 = vmatpush1.bf16.msra.mxu0 %v1451
    %1513 = vmatprep.subr.bf16.mxu0 %v1456
    %1514 = vmatpush1.bf16.msra.mxu0 %v1455
    %1515 = vmatprep.subr.bf16.mxu0 %v1460
    %1516 = vmatpush1.bf16.msra.mxu0 %v1459
    %1517 = vmatprep.subr.bf16.mxu0 %v1464
    %1518 = vmatpush1.bf16.msra.mxu0 %v1463
    %1519 = vmatprep.subr.bf16.mxu0 %v1468
    %1520 = vmatpush1.bf16.msra.mxu0 %v1467
    %1521 = vmatprep.subr.bf16.mxu0 %v1472
    %1522 = vmatpush1.bf16.msra.mxu0 %v1471
    %1523 = vmatprep.subr.bf16.mxu0 0
    %1524 = vmatpush1.bf16.msra.mxu0 0
    %1525 = vmatprep.subr.bf16.mxu0 0
    %1526 = vmatpush1.bf16.msra.mxu0 0
    %1527 = vmatprep.subr.bf16.mxu0 0
    %1528 = vmatpush1.bf16.msra.mxu0 0
    %1529 = vmatprep.subr.bf16.mxu0 0
    %1530 = vmatpush1.bf16.msra.mxu0 0
    %1531 = vmatprep.subr.bf16.mxu0 0
    %1532 = vmatpush1.bf16.msra.mxu0 0
    %1533 = vmatprep.subr.bf16.mxu0 0
    %1534 = vmatpush1.bf16.msra.mxu0 0
    %1535 = vmatprep.subr.bf16.mxu0 0
    %1536 = vmatpush1.bf16.msra.mxu0 0
    %1537 = vmatprep.subr.bf16.mxu0 0
    %1538 = vmatpush1.bf16.msra.mxu0 0
    %1539 = vmatprep.mubr.bf16.mxu0 0
    %1540 = vmatmul.mubr.bf16.gmra.mrb[0].mxu0 0
    %v1541 = vpop.f32.mrb[0].mxu0
    %v1542 = vadd.f32 0.0, %v1541
    %v1543 = vpop.f32.mrb[0].mxu0
    %v1544 = vadd.f32 0.0, %v1543
    %v1545 = vpop.f32.mrb[0].mxu0
    %v1546 = vpop.f32.mrb[0].mxu0
    %1547 = vdwg.mxu0
    %1548 = vmatprep.subr.bf16.mxu0 %v1446
    %1549 = vmatpush1.bf16.msra.mxu0 %v1445
    %1550 = vmatprep.subr.bf16.mxu0 %v1450
    %1551 = vmatpush1.bf16.msra.mxu0 %v1449
    %1552 = vmatprep.subr.bf16.mxu0 %v1454
    %1553 = vmatpush1.bf16.msra.mxu0 %v1453
    %1554 = vmatprep.subr.bf16.mxu0 %v1458
    %1555 = vmatpush1.bf16.msra.mxu0 %v1457
    %1556 = vmatprep.subr.bf16.mxu0 %v1462
    %1557 = vmatpush1.bf16.msra.mxu0 %v1461
    %1558 = vmatprep.subr.bf16.mxu0 %v1466
    %1559 = vmatpush1.bf16.msra.mxu0 %v1465
    %1560 = vmatprep.subr.bf16.mxu0 %v1470
    %1561 = vmatpush1.bf16.msra.mxu0 %v1469
    %1562 = vmatprep.subr.bf16.mxu0 %v1474
    %1563 = vmatpush1.bf16.msra.mxu0 %v1473
    %1564 = vmatprep.subr.bf16.mxu0 0
    %1565 = vmatpush1.bf16.msra.mxu0 0
    %1566 = vmatprep.subr.bf16.mxu0 0
    %1567 = vmatpush1.bf16.msra.mxu0 0
    %1568 = vmatprep.subr.bf16.mxu0 0
    %1569 = vmatpush1.bf16.msra.mxu0 0
    %1570 = vmatprep.subr.bf16.mxu0 0
    %1571 = vmatpush1.bf16.msra.mxu0 0
    %1572 = vmatprep.subr.bf16.mxu0 0
    %1573 = vmatpush1.bf16.msra.mxu0 0
    %1574 = vmatprep.subr.bf16.mxu0 0
    %1575 = vmatpush1.bf16.msra.mxu0 0
    %1576 = vmatprep.subr.bf16.mxu0 0
    %1577 = vmatpush1.bf16.msra.mxu0 0
    %1578 = vmatprep.subr.bf16.mxu0 0
    %1579 = vmatpush1.bf16.msra.mxu0 0
    %1580 = vmatprep.mubr.bf16.mxu0 0
    %1581 = vmatmul.mubr.bf16.gmra.mrb[0].mxu0 0
    %v1582 = vpop.f32.mrb[0].mxu0
    %v1583 = vadd.f32 0.0, %v1582
    %v1584 = vpop.f32.mrb[0].mxu0
    %v1585 = vadd.f32 0.0, %v1584
    %v1586 = vpop.f32.mrb[0].mxu0
    %v1587 = vpop.f32.mrb[0].mxu0
    %1588 = vdwg.mxu0
    %v1589 = vadd.f32 %v1343, %v1542
    %v1590 = vadd.f32 %v1344, %v1544
    %v1591 = vadd.f32 %v1345, %v1583
    %v1592 = vadd.f32 %v1346, %v1585
    %v1593 = vmul.f32 %v1338, 0.5
    %v1594 = vtanh.pop %v1593
    %v1595 = vmul.f32 %v1594, 0.5
    %v1596 = vadd.f32 %v1595, 0.5
    %v1597 = vmul.f32 %v1339, 0.5
    %v1598 = vtanh.pop %v1597
    %v1599 = vmul.f32 %v1598, 0.5
    %v1600 = vadd.f32 %v1599, 0.5
    %v1601 = vtanh.pop %v1340
    %v1602 = vmul.f32 %v1341, 0.5
    %v1603 = vtanh.pop %v1602
    %v1604 = vmul.f32 %v1603, 0.5
    %v1605 = vadd.f32 %v1604, 0.5
    %v1606 = vmul.f32 %v1600, 0.0
    %v1607 = vmul.f32 %v1596, %v1601
    %v1608 = vadd.f32 %v1606, %v1607
    %v1609 = vtanh.pop %v1608
    %v1610 = vmul.f32 %v1605, %v1609
    %v1611 = vpack.c.bf16 %v1610, %v1610
    %v1612 = vmul.f32 %v1589, 0.5
    %v1613 = vtanh.pop %v1612
    %v1614 = vmul.f32 %v1613, 0.5
    %v1615 = vadd.f32 %v1614, 0.5
    %v1616 = vmul.f32 %v1590, 0.5
    %v1617 = vtanh.pop %v1616
    %v1618 = vmul.f32 %v1617, 0.5
    %v1619 = vadd.f32 %v1618, 0.5
    %v1620 = vtanh.pop %v1591
    %v1621 = vmul.f32 %v1592, 0.5
    %v1622 = vtanh.pop %v1621
    %v1623 = vmul.f32 %v1622, 0.5
    %v1624 = vadd.f32 %v1623, 0.5
    %v1625 = vmul.f32 %v1619, 0.0
    %v1626 = vmul.f32 %v1615, %v1620
    %v1627 = vadd.f32 %v1625, %v1626
    %v1628 = vtanh.pop %v1627
    %v1629 = vmul.f32 %v1624, %v1628
    %v1630 = vpack.c.bf16 %v1629, %v1629
    %1631 = vst [vmem:[#allocation4] sm:$0xf] %v1611
    %s1632 = scalar_lea.vmem [#allocation4], 56
    %1633 = vst [vmem:[%s1632 + $0x4] sm:$0xf] %v1630
    %s1634 = scalar_lea.vmem [#allocation2], 32
    %v1635 = vld [vmem:[%s1634] sm:$0xff]
    %v1636 = vld [vmem:[%s1634 + $0x8] sm:$0xff]
    %v1637 = vld [vmem:[%s1634 + $0x10] sm:$0xff]
    %v1638 = vld [vmem:[%s1634 + $0x18] sm:$0xff]
    %1639 = vmatprep.subr.bf16.mxu0 %v1193
    %1640 = vmatpush1.bf16.msra.mxu0 %v1192
    %1641 = vmatprep.subr.bf16.mxu0 %v1197
    %1642 = vmatpush1.bf16.msra.mxu0 %v1196
    %1643 = vmatprep.subr.bf16.mxu0 %v1201
    %1644 = vmatpush1.bf16.msra.mxu0 %v1200
    %1645 = vmatprep.subr.bf16.mxu0 %v1205
    %1646 = vmatpush1.bf16.msra.mxu0 %v1204
    %1647 = vmatprep.subr.bf16.mxu0 %v1209
    %1648 = vmatpush1.bf16.msra.mxu0 %v1208
    %1649 = vmatprep.subr.bf16.mxu0 %v1213
    %1650 = vmatpush1.bf16.msra.mxu0 %v1212
    %1651 = vmatprep.subr.bf16.mxu0 %v1217
    %1652 = vmatpush1.bf16.msra.mxu0 %v1216
    %1653 = vmatprep.subr.bf16.mxu0 %v1221
    %1654 = vmatpush1.bf16.msra.mxu0 %v1220
    %1655 = vmatprep.subr.bf16.mxu0 0
    %1656 = vmatpush1.bf16.msra.mxu0 0
    %1657 = vmatprep.subr.bf16.mxu0 0
    %1658 = vmatpush1.bf16.msra.mxu0 0
    %1659 = vmatprep.subr.bf16.mxu0 0
    %1660 = vmatpush1.bf16.msra.mxu0 0
    %1661 = vmatprep.subr.bf16.mxu0 0
    %1662 = vmatpush1.bf16.msra.mxu0 0
    %1663 = vmatprep.subr.bf16.mxu0 0
    %1664 = vmatpush1.bf16.msra.mxu0 0
    %1665 = vmatprep.subr.bf16.mxu0 0
    %1666 = vmatpush1.bf16.msra.mxu0 0
    %1667 = vmatprep.subr.bf16.mxu0 0
    %1668 = vmatpush1.bf16.msra.mxu0 0
    %1669 = vmatprep.subr.bf16.mxu0 0
    %1670 = vmatpush1.bf16.msra.mxu0 0
    %1671 = vmatprep.mubr.bf16.mxu0 0
    %1672 = vmatmul.mubr.bf16.gmra.mrb[0].mxu0 %v1611
    %v1673 = vpop.f32.mrb[0].mxu0
    %v1674 = vadd.f32 0.0, %v1673
    %v1675 = vpop.f32.mrb[0].mxu0
    %v1676 = vadd.f32 0.0, %v1675
    %v1677 = vpop.f32.mrb[0].mxu0
    %v1678 = vpop.f32.mrb[0].mxu0
    %1679 = vdwg.mxu0
    %1680 = vmatprep.subr.bf16.mxu0 %v1195
    %1681 = vmatpush1.bf16.msra.mxu0 %v1194
    %1682 = vmatprep.subr.bf16.mxu0 %v1199
    %1683 = vmatpush1.bf16.msra.mxu0 %v1198
    %1684 = vmatprep.subr.bf16.mxu0 %v1203
    %1685 = vmatpush1.bf16.msra.mxu0 %v1202
    %1686 = vmatprep.subr.bf16.mxu0 %v1207
    %1687 = vmatpush1.bf16.msra.mxu0 %v1206
    %1688 = vmatprep.subr.bf16.mxu0 %v1211
    %1689 = vmatpush1.bf16.msra.mxu0 %v1210
    %1690 = vmatprep.subr.bf16.mxu0 %v1215
    %1691 = vmatpush1.bf16.msra.mxu0 %v1214
    %1692 = vmatprep.subr.bf16.mxu0 %v1219
    %1693 = vmatpush1.bf16.msra.mxu0 %v1218
    %1694 = vmatprep.subr.bf16.mxu0 %v1223
    %1695 = vmatpush1.bf16.msra.mxu0 %v1222
    %1696 = vmatprep.subr.bf16.mxu0 0
    %1697 = vmatpush1.bf16.msra.mxu0 0
    %1698 = vmatprep.subr.bf16.mxu0 0
    %1699 = vmatpush1.bf16.msra.mxu0 0
    %1700 = vmatprep.subr.bf16.mxu0 0
    %1701 = vmatpush1.bf16.msra.mxu0 0
    %1702 = vmatprep.subr.bf16.mxu0 0
    %1703 = vmatpush1.bf16.msra.mxu0 0
    %1704 = vmatprep.subr.bf16.mxu0 0
    %1705 = vmatpush1.bf16.msra.mxu0 0
    %1706 = vmatprep.subr.bf16.mxu0 0
    %1707 = vmatpush1.bf16.msra.mxu0 0
    %1708 = vmatprep.subr.bf16.mxu0 0
    %1709 = vmatpush1.bf16.msra.mxu0 0
    %1710 = vmatprep.subr.bf16.mxu0 0
    %1711 = vmatpush1.bf16.msra.mxu0 0
    %1712 = vmatprep.mubr.bf16.mxu0 0
    %1713 = vmatmul.mubr.bf16.gmra.mrb[0].mxu0 %v1611
    %v1714 = vpop.f32.mrb[0].mxu0
    %v1715 = vadd.f32 0.0, %v1714
    %v1716 = vpop.f32.mrb[0].mxu0
    %v1717 = vadd.f32 0.0, %v1716
    %v1718 = vpop.f32.mrb[0].mxu0
    %v1719 = vpop.f32.mrb[0].mxu0
    %1720 = vdwg.mxu0
    %v1721 = vadd.f32 %v1635, %v1674
    %v1722 = vadd.f32 %v1636, %v1676
    %v1723 = vadd.f32 %v1637, %v1715
    %v1724 = vadd.f32 %v1638, %v1717
    %s1725 = scalar_lea.vmem [#allocation3], 192
    %v1726 = vld [vmem:[%s1725] sm:$0xff]
    %v1727 = vld [vmem:[%s1725 + $0x8] sm:$0xff]
    %v1728 = vld [vmem:[%s1725 + $0x10] sm:$0xff]
    %v1729 = vld [vmem:[%s1725 + $0x18] sm:$0xff]
    %1730 = vmatprep.subr.bf16.mxu0 %v1444
    %1731 = vmatpush1.bf16.msra.mxu0 %v1443
    %1732 = vmatprep.subr.bf16.mxu0 %v1448
    %1733 = vmatpush1.bf16.msra.mxu0 %v1447
    %1734 = vmatprep.subr.bf16.mxu0 %v1452
    %1735 = vmatpush1.bf16.msra.mxu0 %v1451
    %1736 = vmatprep.subr.bf16.mxu0 %v1456
    %1737 = vmatpush1.bf16.msra.mxu0 %v1455
    %1738 = vmatprep.subr.bf16.mxu0 %v1460
    %1739 = vmatpush1.bf16.msra.mxu0 %v1459
    %1740 = vmatprep.subr.bf16.mxu0 %v1464
    %1741 = vmatpush1.bf16.msra.mxu0 %v1463
    %1742 = vmatprep.subr.bf16.mxu0 %v1468
    %1743 = vmatpush1.bf16.msra.mxu0 %v1467
    %1744 = vmatprep.subr.bf16.mxu0 %v1472
    %1745 = vmatpush1.bf16.msra.mxu0 %v1471
    %1746 = vmatprep.subr.bf16.mxu0 0
    %1747 = vmatpush1.bf16.msra.mxu0 0
    %1748 = vmatprep.subr.bf16.mxu0 0
    %1749 = vmatpush1.bf16.msra.mxu0 0
    %1750 = vmatprep.subr.bf16.mxu0 0
    %1751 = vmatpush1.bf16.msra.mxu0 0
    %1752 = vmatprep.subr.bf16.mxu0 0
    %1753 = vmatpush1.bf16.msra.mxu0 0
    %1754 = vmatprep.subr.bf16.mxu0 0
    %1755 = vmatpush1.bf16.msra.mxu0 0
    %1756 = vmatprep.subr.bf16.mxu0 0
    %1757 = vmatpush1.bf16.msra.mxu0 0
    %1758 = vmatprep.subr.bf16.mxu0 0
    %1759 = vmatpush1.bf16.msra.mxu0 0
    %1760 = vmatprep.subr.bf16.mxu0 0
    %1761 = vmatpush1.bf16.msra.mxu0 0
    %1762 = vmatprep.mubr.bf16.mxu0 0
    %1763 = vmatmul.mubr.bf16.gmra.mrb[0].mxu0 %v1630
    %v1764 = vpop.f32.mrb[0].mxu0
    %v1765 = vadd.f32 0.0, %v1764
    %v1766 = vpop.f32.mrb[0].mxu0
    %v1767 = vadd.f32 0.0, %v1766
    %v1768 = vpop.f32.mrb[0].mxu0
    %v1769 = vpop.f32.mrb[0].mxu0
    %1770 = vdwg.mxu0
    %1771 = vmatprep.subr.bf16.mxu0 %v1446
    %1772 = vmatpush1.bf16.msra.mxu0 %v1445
    %1773 = vmatprep.subr.bf16.mxu0 %v1450
    %1774 = vmatpush1.bf16.msra.mxu0 %v1449
    %1775 = vmatprep.subr.bf16.mxu0 %v1454
    %1776 = vmatpush1.bf16.msra.mxu0 %v1453
    %1777 = vmatprep.subr.bf16.mxu0 %v1458
    %1778 = vmatpush1.bf16.msra.mxu0 %v1457
    %1779 = vmatprep.subr.bf16.mxu0 %v1462
    %1780 = vmatpush1.bf16.msra.mxu0 %v1461
    %1781 = vmatprep.subr.bf16.mxu0 %v1466
    %1782 = vmatpush1.bf16.msra.mxu0 %v1465
    %1783 = vmatprep.subr.bf16.mxu0 %v1470
    %1784 = vmatpush1.bf16.msra.mxu0 %v1469
    %1785 = vmatprep.subr.bf16.mxu0 %v1474
    %1786 = vmatpush1.bf16.msra.mxu0 %v1473
    %1787 = vmatprep.subr.bf16.mxu0 0
    %1788 = vmatpush1.bf16.msra.mxu0 0
    %1789 = vmatprep.subr.bf16.mxu0 0
    %1790 = vmatpush1.bf16.msra.mxu0 0
    %1791 = vmatprep.subr.bf16.mxu0 0
    %1792 = vmatpush1.bf16.msra.mxu0 0
    %1793 = vmatprep.subr.bf16.mxu0 0
    %1794 = vmatpush1.bf16.msra.mxu0 0
    %1795 = vmatprep.subr.bf16.mxu0 0
    %1796 = vmatpush1.bf16.msra.mxu0 0
    %1797 = vmatprep.subr.bf16.mxu0 0
    %1798 = vmatpush1.bf16.msra.mxu0 0
    %1799 = vmatprep.subr.bf16.mxu0 0
    %1800 = vmatpush1.bf16.msra.mxu0 0
    %1801 = vmatprep.subr.bf16.mxu0 0
    %1802 = vmatpush1.bf16.msra.mxu0 0
    %1803 = vmatprep.mubr.bf16.mxu0 0
    %1804 = vmatmul.mubr.bf16.gmra.mrb[0].mxu0 %v1630
    %v1805 = vpop.f32.mrb[0].mxu0
    %v1806 = vadd.f32 0.0, %v1805
    %v1807 = vpop.f32.mrb[0].mxu0
    %v1808 = vadd.f32 0.0, %v1807
    %v1809 = vpop.f32.mrb[0].mxu0
    %v1810 = vpop.f32.mrb[0].mxu0
    %1811 = vdwg.mxu0
    %v1812 = vadd.f32 %v1726, %v1765
    %v1813 = vadd.f32 %v1727, %v1767
    %v1814 = vadd.f32 %v1728, %v1806
    %v1815 = vadd.f32 %v1729, %v1808
    %v1816 = vmul.f32 %v1721, 0.5
    %v1817 = vtanh.pop %v1816
    %v1818 = vmul.f32 %v1817, 0.5
    %v1819 = vadd.f32 %v1818, 0.5
    %v1820 = vmul.f32 %v1722, 0.5
    %v1821 = vtanh.pop %v1820
    %v1822 = vmul.f32 %v1821, 0.5
    %v1823 = vadd.f32 %v1822, 0.5
    %v1824 = vtanh.pop %v1723
    %v1825 = vmul.f32 %v1724, 0.5
    %v1826 = vtanh.pop %v1825
    %v1827 = vmul.f32 %v1826, 0.5
    %v1828 = vadd.f32 %v1827, 0.5
    %v1829 = vmul.f32 %v1823, %v1608
    %v1830 = vmul.f32 %v1819, %v1824
    %v1831 = vadd.f32 %v1829, %v1830
    %v1832 = vtanh.pop %v1831
    %v1833 = vmul.f32 %v1828, %v1832
    %v1834 = vpack.c.bf16 %v1833, %v1833
    %v1835 = vmul.f32 %v1812, 0.5
    %v1836 = vtanh.pop %v1835
    %v1837 = vmul.f32 %v1836, 0.5
    %v1838 = vadd.f32 %v1837, 0.5
    %v1839 = vmul.f32 %v1813, 0.5
    %v1840 = vtanh.pop %v1839
    %v1841 = vmul.f32 %v1840, 0.5
    %v1842 = vadd.f32 %v1841, 0.5
    %v1843 = vtanh.pop %v1814
    %v1844 = vmul.f32 %v1815, 0.5
    %v1845 = vtanh.pop %v1844
    %v1846 = vmul.f32 %v1845, 0.5
    %v1847 = vadd.f32 %v1846, 0.5
    %v1848 = vmul.f32 %v1842, %v1627
    %v1849 = vmul.f32 %v1838, %v1843
    %v1850 = vadd.f32 %v1848, %v1849
    %v1851 = vtanh.pop %v1850
    %v1852 = vmul.f32 %v1847, %v1851
    %v1853 = vpack.c.bf16 %v1852, %v1852
    %s1854 = scalar_lea.vmem [#allocation4], 8
    %1855 = vst [vmem:[%s1854] sm:$0xf] %v1834
    %s1856 = scalar_lea.vmem [#allocation4], 48
    %1857 = vst [vmem:[%s1856 + $0x4] sm:$0xf] %v1853
    %s1858 = scalar_lea.vmem [#allocation2], 64
    %v1859 = vld [vmem:[%s1858] sm:$0xff]
    %v1860 = vld [vmem:[%s1858 + $0x8] sm:$0xff]
    %v1861 = vld [vmem:[%s1858 + $0x10] sm:$0xff]
    %v1862 = vld [vmem:[%s1858 + $0x18] sm:$0xff]
    %1863 = vmatprep.subr.bf16.mxu0 %v1193
    %1864 = vmatpush1.bf16.msra.mxu0 %v1192
    %1865 = vmatprep.subr.bf16.mxu0 %v1197
    %1866 = vmatpush1.bf16.msra.mxu0 %v1196
    %1867 = vmatprep.subr.bf16.mxu0 %v1201
    %1868 = vmatpush1.bf16.msra.mxu0 %v1200
    %1869 = vmatprep.subr.bf16.mxu0 %v1205
    %1870 = vmatpush1.bf16.msra.mxu0 %v1204
    %1871 = vmatprep.subr.bf16.mxu0 %v1209
    %1872 = vmatpush1.bf16.msra.mxu0 %v1208
    %1873 = vmatprep.subr.bf16.mxu0 %v1213
    %1874 = vmatpush1.bf16.msra.mxu0 %v1212
    %1875 = vmatprep.subr.bf16.mxu0 %v1217
    %1876 = vmatpush1.bf16.msra.mxu0 %v1216
    %1877 = vmatprep.subr.bf16.mxu0 %v1221
    %1878 = vmatpush1.bf16.msra.mxu0 %v1220
    %1879 = vmatprep.subr.bf16.mxu0 0
    %1880 = vmatpush1.bf16.msra.mxu0 0
    %1881 = vmatprep.subr.bf16.mxu0 0
    %1882 = vmatpush1.bf16.msra.mxu0 0
    %1883 = vmatprep.subr.bf16.mxu0 0
    %1884 = vmatpush1.bf16.msra.mxu0 0
    %1885 = vmatprep.subr.bf16.mxu0 0
    %1886 = vmatpush1.bf16.msra.mxu0 0
    %1887 = vmatprep.subr.bf16.mxu0 0
    %1888 = vmatpush1.bf16.msra.mxu0 0
    %1889 = vmatprep.subr.bf16.mxu0 0
    %1890 = vmatpush1.bf16.msra.mxu0 0
    %1891 = vmatprep.subr.bf16.mxu0 0
    %1892 = vmatpush1.bf16.msra.mxu0 0
    %1893 = vmatprep.subr.bf16.mxu0 0
    %1894 = vmatpush1.bf16.msra.mxu0 0
    %1895 = vmatprep.mubr.bf16.mxu0 0
    %1896 = vmatmul.mubr.bf16.gmra.mrb[0].mxu0 %v1834
    %v1897 = vpop.f32.mrb[0].mxu0
    %v1898 = vadd.f32 0.0, %v1897
    %v1899 = vpop.f32.mrb[0].mxu0
    %v1900 = vadd.f32 0.0, %v1899
    %v1901 = vpop.f32.mrb[0].mxu0
    %v1902 = vpop.f32.mrb[0].mxu0
    %1903 = vdwg.mxu0
    %1904 = vmatprep.subr.bf16.mxu0 %v1195
    %1905 = vmatpush1.bf16.msra.mxu0 %v1194
    %1906 = vmatprep.subr.bf16.mxu0 %v1199
    %1907 = vmatpush1.bf16.msra.mxu0 %v1198
    %1908 = vmatprep.subr.bf16.mxu0 %v1203
    %1909 = vmatpush1.bf16.msra.mxu0 %v1202
    %1910 = vmatprep.subr.bf16.mxu0 %v1207
    %1911 = vmatpush1.bf16.msra.mxu0 %v1206
    %1912 = vmatprep.subr.bf16.mxu0 %v1211
    %1913 = vmatpush1.bf16.msra.mxu0 %v1210
    %1914 = vmatprep.subr.bf16.mxu0 %v1215
    %1915 = vmatpush1.bf16.msra.mxu0 %v1214
    %1916 = vmatprep.subr.bf16.mxu0 %v1219
    %1917 = vmatpush1.bf16.msra.mxu0 %v1218
    %1918 = vmatprep.subr.bf16.mxu0 %v1223
    %1919 = vmatpush1.bf16.msra.mxu0 %v1222
    %1920 = vmatprep.subr.bf16.mxu0 0
    %1921 = vmatpush1.bf16.msra.mxu0 0
    %1922 = vmatprep.subr.bf16.mxu0 0
    %1923 = vmatpush1.bf16.msra.mxu0 0
    %1924 = vmatprep.subr.bf16.mxu0 0
    %1925 = vmatpush1.bf16.msra.mxu0 0
    %1926 = vmatprep.subr.bf16.mxu0 0
    %1927 = vmatpush1.bf16.msra.mxu0 0
    %1928 = vmatprep.subr.bf16.mxu0 0
    %1929 = vmatpush1.bf16.msra.mxu0 0
    %1930 = vmatprep.subr.bf16.mxu0 0
    %1931 = vmatpush1.bf16.msra.mxu0 0
    %1932 = vmatprep.subr.bf16.mxu0 0
    %1933 = vmatpush1.bf16.msra.mxu0 0
    %1934 = vmatprep.subr.bf16.mxu0 0
    %1935 = vmatpush1.bf16.msra.mxu0 0
    %1936 = vmatprep.mubr.bf16.mxu0 0
    %1937 = vmatmul.mubr.bf16.gmra.mrb[0].mxu0 %v1834
    %v1938 = vpop.f32.mrb[0].mxu0
    %v1939 = vadd.f32 0.0, %v1938
    %v1940 = vpop.f32.mrb[0].mxu0
    %v1941 = vadd.f32 0.0, %v1940
    %v1942 = vpop.f32.mrb[0].mxu0
    %v1943 = vpop.f32.mrb[0].mxu0
    %1944 = vdwg.mxu0
    %v1945 = vadd.f32 %v1859, %v1898
    %v1946 = vadd.f32 %v1860, %v1900
    %v1947 = vadd.f32 %v1861, %v1939
    %v1948 = vadd.f32 %v1862, %v1941
    %s1949 = scalar_lea.vmem [#allocation3], 160
    %v1950 = vld [vmem:[%s1949] sm:$0xff]
    %v1951 = vld [vmem:[%s1949 + $0x8] sm:$0xff]
    %v1952 = vld [vmem:[%s1949 + $0x10] sm:$0xff]
    %v1953 = vld [vmem:[%s1949 + $0x18] sm:$0xff]
    %1954 = vmatprep.subr.bf16.mxu0 %v1444
    %1955 = vmatpush1.bf16.msra.mxu0 %v1443
    %1956 = vmatprep.subr.bf16.mxu0 %v1448
    %1957 = vmatpush1.bf16.msra.mxu0 %v1447
    %1958 = vmatprep.subr.bf16.mxu0 %v1452
    %1959 = vmatpush1.bf16.msra.mxu0 %v1451
    %1960 = vmatprep.subr.bf16.mxu0 %v1456
    %1961 = vmatpush1.bf16.msra.mxu0 %v1455
    %1962 = vmatprep.subr.bf16.mxu0 %v1460
    %1963 = vmatpush1.bf16.msra.mxu0 %v1459
    %1964 = vmatprep.subr.bf16.mxu0 %v1464
    %1965 = vmatpush1.bf16.msra.mxu0 %v1463
    %1966 = vmatprep.subr.bf16.mxu0 %v1468
    %1967 = vmatpush1.bf16.msra.mxu0 %v1467
    %1968 = vmatprep.subr.bf16.mxu0 %v1472
    %1969 = vmatpush1.bf16.msra.mxu0 %v1471
    %1970 = vmatprep.subr.bf16.mxu0 0
    %1971 = vmatpush1.bf16.msra.mxu0 0
    %1972 = vmatprep.subr.bf16.mxu0 0
    %1973 = vmatpush1.bf16.msra.mxu0 0
    %1974 = vmatprep.subr.bf16.mxu0 0
    %1975 = vmatpush1.bf16.msra.mxu0 0
    %1976 = vmatprep.subr.bf16.mxu0 0
    %1977 = vmatpush1.bf16.msra.mxu0 0
    %1978 = vmatprep.subr.bf16.mxu0 0
    %1979 = vmatpush1.bf16.msra.mxu0 0
    %1980 = vmatprep.subr.bf16.mxu0 0
    %1981 = vmatpush1.bf16.msra.mxu0 0
    %1982 = vmatprep.subr.bf16.mxu0 0
    %1983 = vmatpush1.bf16.msra.mxu0 0
    %1984 = vmatprep.subr.bf16.mxu0 0
    %1985 = vmatpush1.bf16.msra.mxu0 0
    %1986 = vmatprep.mubr.bf16.mxu0 0
    %1987 = vmatmul.mubr.bf16.gmra.mrb[0].mxu0 %v1853
    %v1988 = vpop.f32.mrb[0].mxu0
    %v1989 = vadd.f32 0.0, %v1988
    %v1990 = vpop.f32.mrb[0].mxu0
    %v1991 = vadd.f32 0.0, %v1990
    %v1992 = vpop.f32.mrb[0].mxu0
    %v1993 = vpop.f32.mrb[0].mxu0
    %1994 = vdwg.mxu0
    %1995 = vmatprep.subr.bf16.mxu0 %v1446
    %1996 = vmatpush1.bf16.msra.mxu0 %v1445
    %1997 = vmatprep.subr.bf16.mxu0 %v1450
    %1998 = vmatpush1.bf16.msra.mxu0 %v1449
    %1999 = vmatprep.subr.bf16.mxu0 %v1454
    %2000 = vmatpush1.bf16.msra.mxu0 %v1453
    %2001 = vmatprep.subr.bf16.mxu0 %v1458
    %2002 = vmatpush1.bf16.msra.mxu0 %v1457
    %2003 = vmatprep.subr.bf16.mxu0 %v1462
    %2004 = vmatpush1.bf16.msra.mxu0 %v1461
    %2005 = vmatprep.subr.bf16.mxu0 %v1466
    %2006 = vmatpush1.bf16.msra.mxu0 %v1465
    %2007 = vmatprep.subr.bf16.mxu0 %v1470
    %2008 = vmatpush1.bf16.msra.mxu0 %v1469
    %2009 = vmatprep.subr.bf16.mxu0 %v1474
    %2010 = vmatpush1.bf16.msra.mxu0 %v1473
    %2011 = vmatprep.subr.bf16.mxu0 0
    %2012 = vmatpush1.bf16.msra.mxu0 0
    %2013 = vmatprep.subr.bf16.mxu0 0
    %2014 = vmatpush1.bf16.msra.mxu0 0
    %2015 = vmatprep.subr.bf16.mxu0 0
    %2016 = vmatpush1.bf16.msra.mxu0 0
    %2017 = vmatprep.subr.bf16.mxu0 0
    %2018 = vmatpush1.bf16.msra.mxu0 0
    %2019 = vmatprep.subr.bf16.mxu0 0
    %2020 = vmatpush1.bf16.msra.mxu0 0
    %2021 = vmatprep.subr.bf16.mxu0 0
    %2022 = vmatpush1.bf16.msra.mxu0 0
    %2023 = vmatprep.subr.bf16.mxu0 0
    %2024 = vmatpush1.bf16.msra.mxu0 0
    %2025 = vmatprep.subr.bf16.mxu0 0
    %2026 = vmatpush1.bf16.msra.mxu0 0
    %2027 = vmatprep.mubr.bf16.mxu0 0
    %2028 = vmatmul.mubr.bf16.gmra.mrb[0].mxu0 %v1853
    %v2029 = vpop.f32.mrb[0].mxu0
    %v2030 = vadd.f32 0.0, %v2029
    %v2031 = vpop.f32.mrb[0].mxu0
    %v2032 = vadd.f32 0.0, %v2031
    %v2033 = vpop.f32.mrb[0].mxu0
    %v2034 = vpop.f32.mrb[0].mxu0
    %2035 = vdwg.mxu0
    %v2036 = vadd.f32 %v1950, %v1989
    %v2037 = vadd.f32 %v1951, %v1991
    %v2038 = vadd.f32 %v1952, %v2030
    %v2039 = vadd.f32 %v1953, %v2032
    %v2040 = vmul.f32 %v1945, 0.5
    %v2041 = vtanh.pop %v2040
    %v2042 = vmul.f32 %v2041, 0.5
    %v2043 = vadd.f32 %v2042, 0.5
    %v2044 = vmul.f32 %v1946, 0.5
    %v2045 = vtanh.pop %v2044
    %v2046 = vmul.f32 %v2045, 0.5
    %v2047 = vadd.f32 %v2046, 0.5
    %v2048 = vtanh.pop %v1947
    %v2049 = vmul.f32 %v1948, 0.5
    %v2050 = vtanh.pop %v2049
    %v2051 = vmul.f32 %v2050, 0.5
    %v2052 = vadd.f32 %v2051, 0.5
    %v2053 = vmul.f32 %v2047, %v1831
    %v2054 = vmul.f32 %v2043, %v2048
    %v2055 = vadd.f32 %v2053, %v2054
    %v2056 = vtanh.pop %v2055
    %v2057 = vmul.f32 %v2052, %v2056
    %v2058 = vpack.c.bf16 %v2057, %v2057
    %v2059 = vmul.f32 %v2036, 0.5
    %v2060 = vtanh.pop %v2059
    %v2061 = vmul.f32 %v2060, 0.5
    %v2062 = vadd.f32 %v2061, 0.5
    %v2063 = vmul.f32 %v2037, 0.5
    %v2064 = vtanh.pop %v2063
    %v2065 = vmul.f32 %v2064, 0.5
    %v2066 = vadd.f32 %v2065, 0.5
    %v2067 = vtanh.pop %v2038
    %v2068 = vmul.f32 %v2039, 0.5
    %v2069 = vtanh.pop %v2068
    %v2070 = vmul.f32 %v2069, 0.5
    %v2071 = vadd.f32 %v2070, 0.5
    %v2072 = vmul.f32 %v2066, %v1850
    %v2073 = vmul.f32 %v2062, %v2067
    %v2074 = vadd.f32 %v2072, %v2073
    %v2075 = vtanh.pop %v2074
    %v2076 = vmul.f32 %v2071, %v2075
    %v2077 = vpack.c.bf16 %v2076, %v2076
    %s2078 = scalar_lea.vmem [#allocation4], 16
    %2079 = vst [vmem:[%s2078] sm:$0xf] %v2058
    %s2080 = scalar_lea.vmem [#allocation4], 40
    %2081 = vst [vmem:[%s2080 + $0x4] sm:$0xf] %v2077
    %s2082 = scalar_lea.vmem [#allocation2], 96
    %v2083 = vld [vmem:[%s2082] sm:$0xff]
    %v2084 = vld [vmem:[%s2082 + $0x8] sm:$0xff]
    %v2085 = vld [vmem:[%s2082 + $0x10] sm:$0xff]
    %v2086 = vld [vmem:[%s2082 + $0x18] sm:$0xff]
    %2087 = vmatprep.subr.bf16.mxu0 %v1193
    %2088 = vmatpush1.bf16.msra.mxu0 %v1192
    %2089 = vmatprep.subr.bf16.mxu0 %v1197
    %2090 = vmatpush1.bf16.msra.mxu0 %v1196
    %2091 = vmatprep.subr.bf16.mxu0 %v1201
    %2092 = vmatpush1.bf16.msra.mxu0 %v1200
    %2093 = vmatprep.subr.bf16.mxu0 %v1205
    %2094 = vmatpush1.bf16.msra.mxu0 %v1204
    %2095 = vmatprep.subr.bf16.mxu0 %v1209
    %2096 = vmatpush1.bf16.msra.mxu0 %v1208
    %2097 = vmatprep.subr.bf16.mxu0 %v1213
    %2098 = vmatpush1.bf16.msra.mxu0 %v1212
    %2099 = vmatprep.subr.bf16.mxu0 %v1217
    %2100 = vmatpush1.bf16.msra.mxu0 %v1216
    %2101 = vmatprep.subr.bf16.mxu0 %v1221
    %2102 = vmatpush1.bf16.msra.mxu0 %v1220
    %2103 = vmatprep.subr.bf16.mxu0 0
    %2104 = vmatpush1.bf16.msra.mxu0 0
    %2105 = vmatprep.subr.bf16.mxu0 0
    %2106 = vmatpush1.bf16.msra.mxu0 0
    %2107 = vmatprep.subr.bf16.mxu0 0
    %2108 = vmatpush1.bf16.msra.mxu0 0
    %2109 = vmatprep.subr.bf16.mxu0 0
    %2110 = vmatpush1.bf16.msra.mxu0 0
    %2111 = vmatprep.subr.bf16.mxu0 0
    %2112 = vmatpush1.bf16.msra.mxu0 0
    %2113 = vmatprep.subr.bf16.mxu0 0
    %2114 = vmatpush1.bf16.msra.mxu0 0
    %2115 = vmatprep.subr.bf16.mxu0 0
    %2116 = vmatpush1.bf16.msra.mxu0 0
    %2117 = vmatprep.subr.bf16.mxu0 0
    %2118 = vmatpush1.bf16.msra.mxu0 0
    %2119 = vmatprep.mubr.bf16.mxu0 0
    %2120 = vmatmul.mubr.bf16.gmra.mrb[0].mxu0 %v2058
    %v2121 = vpop.f32.mrb[0].mxu0
    %v2122 = vadd.f32 0.0, %v2121
    %v2123 = vpop.f32.mrb[0].mxu0
    %v2124 = vadd.f32 0.0, %v2123
    %v2125 = vpop.f32.mrb[0].mxu0
    %v2126 = vpop.f32.mrb[0].mxu0
    %2127 = vdwg.mxu0
    %2128 = vmatprep.subr.bf16.mxu0 %v1195
    %2129 = vmatpush1.bf16.msra.mxu0 %v1194
    %2130 = vmatprep.subr.bf16.mxu0 %v1199
    %2131 = vmatpush1.bf16.msra.mxu0 %v1198
    %2132 = vmatprep.subr.bf16.mxu0 %v1203
    %2133 = vmatpush1.bf16.msra.mxu0 %v1202
    %2134 = vmatprep.subr.bf16.mxu0 %v1207
    %2135 = vmatpush1.bf16.msra.mxu0 %v1206
    %2136 = vmatprep.subr.bf16.mxu0 %v1211
    %2137 = vmatpush1.bf16.msra.mxu0 %v1210
    %2138 = vmatprep.subr.bf16.mxu0 %v1215
    %2139 = vmatpush1.bf16.msra.mxu0 %v1214
    %2140 = vmatprep.subr.bf16.mxu0 %v1219
    %2141 = vmatpush1.bf16.msra.mxu0 %v1218
    %2142 = vmatprep.subr.bf16.mxu0 %v1223
    %2143 = vmatpush1.bf16.msra.mxu0 %v1222
    %2144 = vmatprep.subr.bf16.mxu0 0
    %2145 = vmatpush1.bf16.msra.mxu0 0
    %2146 = vmatprep.subr.bf16.mxu0 0
    %2147 = vmatpush1.bf16.msra.mxu0 0
    %2148 = vmatprep.subr.bf16.mxu0 0
    %2149 = vmatpush1.bf16.msra.mxu0 0
    %2150 = vmatprep.subr.bf16.mxu0 0
    %2151 = vmatpush1.bf16.msra.mxu0 0
    %2152 = vmatprep.subr.bf16.mxu0 0
    %2153 = vmatpush1.bf16.msra.mxu0 0
    %2154 = vmatprep.subr.bf16.mxu0 0
    %2155 = vmatpush1.bf16.msra.mxu0 0
    %2156 = vmatprep.subr.bf16.mxu0 0
    %2157 = vmatpush1.bf16.msra.mxu0 0
    %2158 = vmatprep.subr.bf16.mxu0 0
    %2159 = vmatpush1.bf16.msra.mxu0 0
    %2160 = vmatprep.mubr.bf16.mxu0 0
    %2161 = vmatmul.mubr.bf16.gmra.mrb[0].mxu0 %v2058
    %v2162 = vpop.f32.mrb[0].mxu0
    %v2163 = vadd.f32 0.0, %v2162
    %v2164 = vpop.f32.mrb[0].mxu0
    %v2165 = vadd.f32 0.0, %v2164
    %v2166 = vpop.f32.mrb[0].mxu0
    %v2167 = vpop.f32.mrb[0].mxu0
    %2168 = vdwg.mxu0
    %v2169 = vadd.f32 %v2083, %v2122
    %v2170 = vadd.f32 %v2084, %v2124
    %v2171 = vadd.f32 %v2085, %v2163
    %v2172 = vadd.f32 %v2086, %v2165
    %s2173 = scalar_lea.vmem [#allocation3], 128
    %v2174 = vld [vmem:[%s2173] sm:$0xff]
    %v2175 = vld [vmem:[%s2173 + $0x8] sm:$0xff]
    %v2176 = vld [vmem:[%s2173 + $0x10] sm:$0xff]
    %v2177 = vld [vmem:[%s2173 + $0x18] sm:$0xff]
    %2178 = vmatprep.subr.bf16.mxu0 %v1444
    %2179 = vmatpush1.bf16.msra.mxu0 %v1443
    %2180 = vmatprep.subr.bf16.mxu0 %v1448
    %2181 = vmatpush1.bf16.msra.mxu0 %v1447
    %2182 = vmatprep.subr.bf16.mxu0 %v1452
    %2183 = vmatpush1.bf16.msra.mxu0 %v1451
    %2184 = vmatprep.subr.bf16.mxu0 %v1456
    %2185 = vmatpush1.bf16.msra.mxu0 %v1455
    %2186 = vmatprep.subr.bf16.mxu0 %v1460
    %2187 = vmatpush1.bf16.msra.mxu0 %v1459
    %2188 = vmatprep.subr.bf16.mxu0 %v1464
    %2189 = vmatpush1.bf16.msra.mxu0 %v1463
    %2190 = vmatprep.subr.bf16.mxu0 %v1468
    %2191 = vmatpush1.bf16.msra.mxu0 %v1467
    %2192 = vmatprep.subr.bf16.mxu0 %v1472
    %2193 = vmatpush1.bf16.msra.mxu0 %v1471
    %2194 = vmatprep.subr.bf16.mxu0 0
    %2195 = vmatpush1.bf16.msra.mxu0 0
    %2196 = vmatprep.subr.bf16.mxu0 0
    %2197 = vmatpush1.bf16.msra.mxu0 0
    %2198 = vmatprep.subr.bf16.mxu0 0
    %2199 = vmatpush1.bf16.msra.mxu0 0
    %2200 = vmatprep.subr.bf16.mxu0 0
    %2201 = vmatpush1.bf16.msra.mxu0 0
    %2202 = vmatprep.subr.bf16.mxu0 0
    %2203 = vmatpush1.bf16.msra.mxu0 0
    %2204 = vmatprep.subr.bf16.mxu0 0
    %2205 = vmatpush1.bf16.msra.mxu0 0
    %2206 = vmatprep.subr.bf16.mxu0 0
    %2207 = vmatpush1.bf16.msra.mxu0 0
    %2208 = vmatprep.subr.bf16.mxu0 0
    %2209 = vmatpush1.bf16.msra.mxu0 0
    %2210 = vmatprep.mubr.bf16.mxu0 0
    %2211 = vmatmul.mubr.bf16.gmra.mrb[0].mxu0 %v2077
    %v2212 = vpop.f32.mrb[0].mxu0
    %v2213 = vadd.f32 0.0, %v2212
    %v2214 = vpop.f32.mrb[0].mxu0
    %v2215 = vadd.f32 0.0, %v2214
    %v2216 = vpop.f32.mrb[0].mxu0
    %v2217 = vpop.f32.mrb[0].mxu0
    %2218 = vdwg.mxu0
    %2219 = vmatprep.subr.bf16.mxu0 %v1446
    %2220 = vmatpush1.bf16.msra.mxu0 %v1445
    %2221 = vmatprep.subr.bf16.mxu0 %v1450
    %2222 = vmatpush1.bf16.msra.mxu0 %v1449
    %2223 = vmatprep.subr.bf16.mxu0 %v1454
    %2224 = vmatpush1.bf16.msra.mxu0 %v1453
    %2225 = vmatprep.subr.bf16.mxu0 %v1458
    %2226 = vmatpush1.bf16.msra.mxu0 %v1457
    %2227 = vmatprep.subr.bf16.mxu0 %v1462
    %2228 = vmatpush1.bf16.msra.mxu0 %v1461
    %2229 = vmatprep.subr.bf16.mxu0 %v1466
    %2230 = vmatpush1.bf16.msra.mxu0 %v1465
    %2231 = vmatprep.subr.bf16.mxu0 %v1470
    %2232 = vmatpush1.bf16.msra.mxu0 %v1469
    %2233 = vmatprep.subr.bf16.mxu0 %v1474
    %2234 = vmatpush1.bf16.msra.mxu0 %v1473
    %2235 = vmatprep.subr.bf16.mxu0 0
    %2236 = vmatpush1.bf16.msra.mxu0 0
    %2237 = vmatprep.subr.bf16.mxu0 0
    %2238 = vmatpush1.bf16.msra.mxu0 0
    %2239 = vmatprep.subr.bf16.mxu0 0
    %2240 = vmatpush1.bf16.msra.mxu0 0
    %2241 = vmatprep.subr.bf16.mxu0 0
    %2242 = vmatpush1.bf16.msra.mxu0 0
    %2243 = vmatprep.subr.bf16.mxu0 0
    %2244 = vmatpush1.bf16.msra.mxu0 0
    %2245 = vmatprep.subr.bf16.mxu0 0
    %2246 = vmatpush1.bf16.msra.mxu0 0
    %2247 = vmatprep.subr.bf16.mxu0 0
    %2248 = vmatpush1.bf16.msra.mxu0 0
    %2249 = vmatprep.subr.bf16.mxu0 0
    %2250 = vmatpush1.bf16.msra.mxu0 0
    %2251 = vmatprep.mubr.bf16.mxu0 0
    %2252 = vmatmul.mubr.bf16.gmra.mrb[0].mxu0 %v2077
    %v2253 = vpop.f32.mrb[0].mxu0
    %v2254 = vadd.f32 0.0, %v2253
    %v2255 = vpop.f32.mrb[0].mxu0
    %v2256 = vadd.f32 0.0, %v2255
    %v2257 = vpop.f32.mrb[0].mxu0
    %v2258 = vpop.f32.mrb[0].mxu0
    %2259 = vdwg.mxu0
    %v2260 = vadd.f32 %v2174, %v2213
    %v2261 = vadd.f32 %v2175, %v2215
    %v2262 = vadd.f32 %v2176, %v2254
    %v2263 = vadd.f32 %v2177, %v2256
    %v2264 = vmul.f32 %v2169, 0.5
    %v2265 = vtanh.pop %v2264
    %v2266 = vmul.f32 %v2265, 0.5
    %v2267 = vadd.f32 %v2266, 0.5
    %v2268 = vmul.f32 %v2170, 0.5
    %v2269 = vtanh.pop %v2268
    %v2270 = vmul.f32 %v2269, 0.5
    %v2271 = vadd.f32 %v2270, 0.5
    %v2272 = vtanh.pop %v2171
    %v2273 = vmul.f32 %v2172, 0.5
    %v2274 = vtanh.pop %v2273
    %v2275 = vmul.f32 %v2274, 0.5
    %v2276 = vadd.f32 %v2275, 0.5
    %v2277 = vmul.f32 %v2271, %v2055
    %v2278 = vmul.f32 %v2267, %v2272
    %v2279 = vadd.f32 %v2277, %v2278
    %v2280 = vtanh.pop %v2279
    %v2281 = vmul.f32 %v2276, %v2280
    %v2282 = vpack.c.bf16 %v2281, %v2281
    %v2283 = vmul.f32 %v2260, 0.5
    %v2284 = vtanh.pop %v2283
    %v2285 = vmul.f32 %v2284, 0.5
    %v2286 = vadd.f32 %v2285, 0.5
    %v2287 = vmul.f32 %v2261, 0.5
    %v2288 = vtanh.pop %v2287
    %v2289 = vmul.f32 %v2288, 0.5
    %v2290 = vadd.f32 %v2289, 0.5
    %v2291 = vtanh.pop %v2262
    %v2292 = vmul.f32 %v2263, 0.5
    %v2293 = vtanh.pop %v2292
    %v2294 = vmul.f32 %v2293, 0.5
    %v2295 = vadd.f32 %v2294, 0.5
    %v2296 = vmul.f32 %v2290, %v2074
    %v2297 = vmul.f32 %v2286, %v2291
    %v2298 = vadd.f32 %v2296, %v2297
    %v2299 = vtanh.pop %v2298
    %v2300 = vmul.f32 %v2295, %v2299
    %v2301 = vpack.c.bf16 %v2300, %v2300
    %s2302 = scalar_lea.vmem [#allocation4], 24
    %2303 = vst [vmem:[%s2302] sm:$0xf] %v2282
    %s2304 = scalar_lea.vmem [#allocation4], 32
    %2305 = vst [vmem:[%s2304 + $0x4] sm:$0xf] %v2301
    %s2306 = scalar_lea.vmem [#allocation2], 128
    %v2307 = vld [vmem:[%s2306] sm:$0xff]
    %v2308 = vld [vmem:[%s2306 + $0x8] sm:$0xff]
    %v2309 = vld [vmem:[%s2306 + $0x10] sm:$0xff]
    %v2310 = vld [vmem:[%s2306 + $0x18] sm:$0xff]
    %2311 = vmatprep.subr.bf16.mxu0 %v1193
    %2312 = vmatpush1.bf16.msra.mxu0 %v1192
    %2313 = vmatprep.subr.bf16.mxu0 %v1197
    %2314 = vmatpush1.bf16.msra.mxu0 %v1196
    %2315 = vmatprep.subr.bf16.mxu0 %v1201
    %2316 = vmatpush1.bf16.msra.mxu0 %v1200
    %2317 = vmatprep.subr.bf16.mxu0 %v1205
    %2318 = vmatpush1.bf16.msra.mxu0 %v1204
    %2319 = vmatprep.subr.bf16.mxu0 %v1209
    %2320 = vmatpush1.bf16.msra.mxu0 %v1208
    %2321 = vmatprep.subr.bf16.mxu0 %v1213
    %2322 = vmatpush1.bf16.msra.mxu0 %v1212
    %2323 = vmatprep.subr.bf16.mxu0 %v1217
    %2324 = vmatpush1.bf16.msra.mxu0 %v1216
    %2325 = vmatprep.subr.bf16.mxu0 %v1221
    %2326 = vmatpush1.bf16.msra.mxu0 %v1220
    %2327 = vmatprep.subr.bf16.mxu0 0
    %2328 = vmatpush1.bf16.msra.mxu0 0
    %2329 = vmatprep.subr.bf16.mxu0 0
    %2330 = vmatpush1.bf16.msra.mxu0 0
    %2331 = vmatprep.subr.bf16.mxu0 0
    %2332 = vmatpush1.bf16.msra.mxu0 0
    %2333 = vmatprep.subr.bf16.mxu0 0
    %2334 = vmatpush1.bf16.msra.mxu0 0
    %2335 = vmatprep.subr.bf16.mxu0 0
    %2336 = vmatpush1.bf16.msra.mxu0 0
    %2337 = vmatprep.subr.bf16.mxu0 0
    %2338 = vmatpush1.bf16.msra.mxu0 0
    %2339 = vmatprep.subr.bf16.mxu0 0
    %2340 = vmatpush1.bf16.msra.mxu0 0
    %2341 = vmatprep.subr.bf16.mxu0 0
    %2342 = vmatpush1.bf16.msra.mxu0 0
    %2343 = vmatprep.mubr.bf16.mxu0 0
    %2344 = vmatmul.mubr.bf16.gmra.mrb[0].mxu0 %v2282
    %v2345 = vpop.f32.mrb[0].mxu0
    %v2346 = vadd.f32 0.0, %v2345
    %v2347 = vpop.f32.mrb[0].mxu0
    %v2348 = vadd.f32 0.0, %v2347
    %v2349 = vpop.f32.mrb[0].mxu0
    %v2350 = vpop.f32.mrb[0].mxu0
    %2351 = vdwg.mxu0
    %2352 = vmatprep.subr.bf16.mxu0 %v1195
    %2353 = vmatpush1.bf16.msra.mxu0 %v1194
    %2354 = vmatprep.subr.bf16.mxu0 %v1199
    %2355 = vmatpush1.bf16.msra.mxu0 %v1198
    %2356 = vmatprep.subr.bf16.mxu0 %v1203
    %2357 = vmatpush1.bf16.msra.mxu0 %v1202
    %2358 = vmatprep.subr.bf16.mxu0 %v1207
    %2359 = vmatpush1.bf16.msra.mxu0 %v1206
    %2360 = vmatprep.subr.bf16.mxu0 %v1211
    %2361 = vmatpush1.bf16.msra.mxu0 %v1210
    %2362 = vmatprep.subr.bf16.mxu0 %v1215
    %2363 = vmatpush1.bf16.msra.mxu0 %v1214
    %2364 = vmatprep.subr.bf16.mxu0 %v1219
    %2365 = vmatpush1.bf16.msra.mxu0 %v1218
    %2366 = vmatprep.subr.bf16.mxu0 %v1223
    %2367 = vmatpush1.bf16.msra.mxu0 %v1222
    %2368 = vmatprep.subr.bf16.mxu0 0
    %2369 = vmatpush1.bf16.msra.mxu0 0
    %2370 = vmatprep.subr.bf16.mxu0 0
    %2371 = vmatpush1.bf16.msra.mxu0 0
    %2372 = vmatprep.subr.bf16.mxu0 0
    %2373 = vmatpush1.bf16.msra.mxu0 0
    %2374 = vmatprep.subr.bf16.mxu0 0
    %2375 = vmatpush1.bf16.msra.mxu0 0
    %2376 = vmatprep.subr.bf16.mxu0 0
    %2377 = vmatpush1.bf16.msra.mxu0 0
    %2378 = vmatprep.subr.bf16.mxu0 0
    %2379 = vmatpush1.bf16.msra.mxu0 0
    %2380 = vmatprep.subr.bf16.mxu0 0
    %2381 = vmatpush1.bf16.msra.mxu0 0
    %2382 = vmatprep.subr.bf16.mxu0 0
    %2383 = vmatpush1.bf16.msra.mxu0 0
    %2384 = vmatprep.mubr.bf16.mxu0 0
    %2385 = vmatmul.mubr.bf16.gmra.mrb[0].mxu0 %v2282
    %v2386 = vpop.f32.mrb[0].mxu0
    %v2387 = vadd.f32 0.0, %v2386
    %v2388 = vpop.f32.mrb[0].mxu0
    %v2389 = vadd.f32 0.0, %v2388
    %v2390 = vpop.f32.mrb[0].mxu0
    %v2391 = vpop.f32.mrb[0].mxu0
    %2392 = vdwg.mxu0
    %v2393 = vadd.f32 %v2307, %v2346
    %v2394 = vadd.f32 %v2308, %v2348
    %v2395 = vadd.f32 %v2309, %v2387
    %v2396 = vadd.f32 %v2310, %v2389
    %s2397 = scalar_lea.vmem [#allocation3], 96
    %v2398 = vld [vmem:[%s2397] sm:$0xff]
    %v2399 = vld [vmem:[%s2397 + $0x8] sm:$0xff]
    %v2400 = vld [vmem:[%s2397 + $0x10] sm:$0xff]
    %v2401 = vld [vmem:[%s2397 + $0x18] sm:$0xff]
    %2402 = vmatprep.subr.bf16.mxu0 %v1444
    %2403 = vmatpush1.bf16.msra.mxu0 %v1443
    %2404 = vmatprep.subr.bf16.mxu0 %v1448
    %2405 = vmatpush1.bf16.msra.mxu0 %v1447
    %2406 = vmatprep.subr.bf16.mxu0 %v1452
    %2407 = vmatpush1.bf16.msra.mxu0 %v1451
    %2408 = vmatprep.subr.bf16.mxu0 %v1456
    %2409 = vmatpush1.bf16.msra.mxu0 %v1455
    %2410 = vmatprep.subr.bf16.mxu0 %v1460
    %2411 = vmatpush1.bf16.msra.mxu0 %v1459
    %2412 = vmatprep.subr.bf16.mxu0 %v1464
    %2413 = vmatpush1.bf16.msra.mxu0 %v1463
    %2414 = vmatprep.subr.bf16.mxu0 %v1468
    %2415 = vmatpush1.bf16.msra.mxu0 %v1467
    %2416 = vmatprep.subr.bf16.mxu0 %v1472
    %2417 = vmatpush1.bf16.msra.mxu0 %v1471
    %2418 = vmatprep.subr.bf16.mxu0 0
    %2419 = vmatpush1.bf16.msra.mxu0 0
    %2420 = vmatprep.subr.bf16.mxu0 0
    %2421 = vmatpush1.bf16.msra.mxu0 0
    %2422 = vmatprep.subr.bf16.mxu0 0
    %2423 = vmatpush1.bf16.msra.mxu0 0
    %2424 = vmatprep.subr.bf16.mxu0 0
    %2425 = vmatpush1.bf16.msra.mxu0 0
    %2426 = vmatprep.subr.bf16.mxu0 0
    %2427 = vmatpush1.bf16.msra.mxu0 0
    %2428 = vmatprep.subr.bf16.mxu0 0
    %2429 = vmatpush1.bf16.msra.mxu0 0
    %2430 = vmatprep.subr.bf16.mxu0 0
    %2431 = vmatpush1.bf16.msra.mxu0 0
    %2432 = vmatprep.subr.bf16.mxu0 0
    %2433 = vmatpush1.bf16.msra.mxu0 0
    %2434 = vmatprep.mubr.bf16.mxu0 0
    %2435 = vmatmul.mubr.bf16.gmra.mrb[0].mxu0 %v2301
    %v2436 = vpop.f32.mrb[0].mxu0
    %v2437 = vadd.f32 0.0, %v2436
    %v2438 = vpop.f32.mrb[0].mxu0
    %v2439 = vadd.f32 0.0, %v2438
    %v2440 = vpop.f32.mrb[0].mxu0
    %v2441 = vpop.f32.mrb[0].mxu0
    %2442 = vdwg.mxu0
    %2443 = vmatprep.subr.bf16.mxu0 %v1446
    %2444 = vmatpush1.bf16.msra.mxu0 %v1445
    %2445 = vmatprep.subr.bf16.mxu0 %v1450
    %2446 = vmatpush1.bf16.msra.mxu0 %v1449
    %2447 = vmatprep.subr.bf16.mxu0 %v1454
    %2448 = vmatpush1.bf16.msra.mxu0 %v1453
    %2449 = vmatprep.subr.bf16.mxu0 %v1458
    %2450 = vmatpush1.bf16.msra.mxu0 %v1457
    %2451 = vmatprep.subr.bf16.mxu0 %v1462
    %2452 = vmatpush1.bf16.msra.mxu0 %v1461
    %2453 = vmatprep.subr.bf16.mxu0 %v1466
    %2454 = vmatpush1.bf16.msra.mxu0 %v1465
    %2455 = vmatprep.subr.bf16.mxu0 %v1470
    %2456 = vmatpush1.bf16.msra.mxu0 %v1469
    %2457 = vmatprep.subr.bf16.mxu0 %v1474
    %2458 = vmatpush1.bf16.msra.mxu0 %v1473
    %2459 = vmatprep.subr.bf16.mxu0 0
    %2460 = vmatpush1.bf16.msra.mxu0 0
    %2461 = vmatprep.subr.bf16.mxu0 0
    %2462 = vmatpush1.bf16.msra.mxu0 0
    %2463 = vmatprep.subr.bf16.mxu0 0
    %2464 = vmatpush1.bf16.msra.mxu0 0
    %2465 = vmatprep.subr.bf16.mxu0 0
    %2466 = vmatpush1.bf16.msra.mxu0 0
    %2467 = vmatprep.subr.bf16.mxu0 0
    %2468 = vmatpush1.bf16.msra.mxu0 0
    %2469 = vmatprep.subr.bf16.mxu0 0
    %2470 = vmatpush1.bf16.msra.mxu0 0
    %2471 = vmatprep.subr.bf16.mxu0 0
    %2472 = vmatpush1.bf16.msra.mxu0 0
    %2473 = vmatprep.subr.bf16.mxu0 0
    %2474 = vmatpush1.bf16.msra.mxu0 0
    %2475 = vmatprep.mubr.bf16.mxu0 0
    %2476 = vmatmul.mubr.bf16.gmra.mrb[0].mxu0 %v2301
    %v2477 = vpop.f32.mrb[0].mxu0
    %v2478 = vadd.f32 0.0, %v2477
    %v2479 = vpop.f32.mrb[0].mxu0
    %v2480 = vadd.f32 0.0, %v2479
    %v2481 = vpop.f32.mrb[0].mxu0
    %v2482 = vpop.f32.mrb[0].mxu0
    %2483 = vdwg.mxu0
    %v2484 = vadd.f32 %v2398, %v2437
    %v2485 = vadd.f32 %v2399, %v2439
    %v2486 = vadd.f32 %v2400, %v2478
    %v2487 = vadd.f32 %v2401, %v2480
    %v2488 = vmul.f32 %v2393, 0.5
    %v2489 = vtanh.pop %v2488
    %v2490 = vmul.f32 %v2489, 0.5
    %v2491 = vadd.f32 %v2490, 0.5
    %v2492 = vmul.f32 %v2394, 0.5
    %v2493 = vtanh.pop %v2492
    %v2494 = vmul.f32 %v2493, 0.5
    %v2495 = vadd.f32 %v2494, 0.5
    %v2496 = vtanh.pop %v2395
    %v2497 = vmul.f32 %v2396, 0.5
    %v2498 = vtanh.pop %v2497
    %v2499 = vmul.f32 %v2498, 0.5
    %v2500 = vadd.f32 %v2499, 0.5
    %v2501 = vmul.f32 %v2495, %v2279
    %v2502 = vmul.f32 %v2491, %v2496
    %v2503 = vadd.f32 %v2501, %v2502
    %v2504 = vtanh.pop %v2503
    %v2505 = vmul.f32 %v2500, %v2504
    %v2506 = vpack.c.bf16 %v2505, %v2505
    %v2507 = vmul.f32 %v2484, 0.5
    %v2508 = vtanh.pop %v2507
    %v2509 = vmul.f32 %v2508, 0.5
    %v2510 = vadd.f32 %v2509, 0.5
    %v2511 = vmul.f32 %v2485, 0.5
    %v2512 = vtanh.pop %v2511
    %v2513 = vmul.f32 %v2512, 0.5
    %v2514 = vadd.f32 %v2513, 0.5
    %v2515 = vtanh.pop %v2486
    %v2516 = vmul.f32 %v2487, 0.5
    %v2517 = vtanh.pop %v2516
    %v2518 = vmul.f32 %v2517, 0.5
    %v2519 = vadd.f32 %v2518, 0.5
    %v2520 = vmul.f32 %v2514, %v2298
    %v2521 = vmul.f32 %v2510, %v2515
    %v2522 = vadd.f32 %v2520, %v2521
    %v2523 = vtanh.pop %v2522
    %v2524 = vmul.f32 %v2519, %v2523
    %v2525 = vpack.c.bf16 %v2524, %v2524
    %2526 = vst [vmem:[%s2304] sm:$0xf] %v2506
    %2527 = vst [vmem:[%s2302 + $0x4] sm:$0xf] %v2525
    %s2528 = scalar_lea.vmem [#allocation2], 160
    %v2529 = vld [vmem:[%s2528] sm:$0xff]
    %v2530 = vld [vmem:[%s2528 + $0x8] sm:$0xff]
    %v2531 = vld [vmem:[%s2528 + $0x10] sm:$0xff]
    %v2532 = vld [vmem:[%s2528 + $0x18] sm:$0xff]
    %2533 = vmatprep.subr.bf16.mxu0 %v1193
    %2534 = vmatpush1.bf16.msra.mxu0 %v1192
    %2535 = vmatprep.subr.bf16.mxu0 %v1197
    %2536 = vmatpush1.bf16.msra.mxu0 %v1196
    %2537 = vmatprep.subr.bf16.mxu0 %v1201
    %2538 = vmatpush1.bf16.msra.mxu0 %v1200
    %2539 = vmatprep.subr.bf16.mxu0 %v1205
    %2540 = vmatpush1.bf16.msra.mxu0 %v1204
    %2541 = vmatprep.subr.bf16.mxu0 %v1209
    %2542 = vmatpush1.bf16.msra.mxu0 %v1208
    %2543 = vmatprep.subr.bf16.mxu0 %v1213
    %2544 = vmatpush1.bf16.msra.mxu0 %v1212
    %2545 = vmatprep.subr.bf16.mxu0 %v1217
    %2546 = vmatpush1.bf16.msra.mxu0 %v1216
    %2547 = vmatprep.subr.bf16.mxu0 %v1221
    %2548 = vmatpush1.bf16.msra.mxu0 %v1220
    %2549 = vmatprep.subr.bf16.mxu0 0
    %2550 = vmatpush1.bf16.msra.mxu0 0
    %2551 = vmatprep.subr.bf16.mxu0 0
    %2552 = vmatpush1.bf16.msra.mxu0 0
    %2553 = vmatprep.subr.bf16.mxu0 0
    %2554 = vmatpush1.bf16.msra.mxu0 0
    %2555 = vmatprep.subr.bf16.mxu0 0
    %2556 = vmatpush1.bf16.msra.mxu0 0
    %2557 = vmatprep.subr.bf16.mxu0 0
    %2558 = vmatpush1.bf16.msra.mxu0 0
    %2559 = vmatprep.subr.bf16.mxu0 0
    %2560 = vmatpush1.bf16.msra.mxu0 0
    %2561 = vmatprep.subr.bf16.mxu0 0
    %2562 = vmatpush1.bf16.msra.mxu0 0
    %2563 = vmatprep.subr.bf16.mxu0 0
    %2564 = vmatpush1.bf16.msra.mxu0 0
    %2565 = vmatprep.mubr.bf16.mxu0 0
    %2566 = vmatmul.mubr.bf16.gmra.mrb[0].mxu0 %v2506
    %v2567 = vpop.f32.mrb[0].mxu0
    %v2568 = vadd.f32 0.0, %v2567
    %v2569 = vpop.f32.mrb[0].mxu0
    %v2570 = vadd.f32 0.0, %v2569
    %v2571 = vpop.f32.mrb[0].mxu0
    %v2572 = vpop.f32.mrb[0].mxu0
    %2573 = vdwg.mxu0
    %2574 = vmatprep.subr.bf16.mxu0 %v1195
    %2575 = vmatpush1.bf16.msra.mxu0 %v1194
    %2576 = vmatprep.subr.bf16.mxu0 %v1199
    %2577 = vmatpush1.bf16.msra.mxu0 %v1198
    %2578 = vmatprep.subr.bf16.mxu0 %v1203
    %2579 = vmatpush1.bf16.msra.mxu0 %v1202
    %2580 = vmatprep.subr.bf16.mxu0 %v1207
    %2581 = vmatpush1.bf16.msra.mxu0 %v1206
    %2582 = vmatprep.subr.bf16.mxu0 %v1211
    %2583 = vmatpush1.bf16.msra.mxu0 %v1210
    %2584 = vmatprep.subr.bf16.mxu0 %v1215
    %2585 = vmatpush1.bf16.msra.mxu0 %v1214
    %2586 = vmatprep.subr.bf16.mxu0 %v1219
    %2587 = vmatpush1.bf16.msra.mxu0 %v1218
    %2588 = vmatprep.subr.bf16.mxu0 %v1223
    %2589 = vmatpush1.bf16.msra.mxu0 %v1222
    %2590 = vmatprep.subr.bf16.mxu0 0
    %2591 = vmatpush1.bf16.msra.mxu0 0
    %2592 = vmatprep.subr.bf16.mxu0 0
    %2593 = vmatpush1.bf16.msra.mxu0 0
    %2594 = vmatprep.subr.bf16.mxu0 0
    %2595 = vmatpush1.bf16.msra.mxu0 0
    %2596 = vmatprep.subr.bf16.mxu0 0
    %2597 = vmatpush1.bf16.msra.mxu0 0
    %2598 = vmatprep.subr.bf16.mxu0 0
    %2599 = vmatpush1.bf16.msra.mxu0 0
    %2600 = vmatprep.subr.bf16.mxu0 0
    %2601 = vmatpush1.bf16.msra.mxu0 0
    %2602 = vmatprep.subr.bf16.mxu0 0
    %2603 = vmatpush1.bf16.msra.mxu0 0
    %2604 = vmatprep.subr.bf16.mxu0 0
    %2605 = vmatpush1.bf16.msra.mxu0 0
    %2606 = vmatprep.mubr.bf16.mxu0 0
    %2607 = vmatmul.mubr.bf16.gmra.mrb[0].mxu0 %v2506
    %v2608 = vpop.f32.mrb[0].mxu0
    %v2609 = vadd.f32 0.0, %v2608
    %v2610 = vpop.f32.mrb[0].mxu0
    %v2611 = vadd.f32 0.0, %v2610
    %v2612 = vpop.f32.mrb[0].mxu0
    %v2613 = vpop.f32.mrb[0].mxu0
    %2614 = vdwg.mxu0
    %v2615 = vadd.f32 %v2529, %v2568
    %v2616 = vadd.f32 %v2530, %v2570
    %v2617 = vadd.f32 %v2531, %v2609
    %v2618 = vadd.f32 %v2532, %v2611
    %s2619 = scalar_lea.vmem [#allocation3], 64
    %v2620 = vld [vmem:[%s2619] sm:$0xff]
    %v2621 = vld [vmem:[%s2619 + $0x8] sm:$0xff]
    %v2622 = vld [vmem:[%s2619 + $0x10] sm:$0xff]
    %v2623 = vld [vmem:[%s2619 + $0x18] sm:$0xff]
    %2624 = vmatprep.subr.bf16.mxu0 %v1444
    %2625 = vmatpush1.bf16.msra.mxu0 %v1443
    %2626 = vmatprep.subr.bf16.mxu0 %v1448
    %2627 = vmatpush1.bf16.msra.mxu0 %v1447
    %2628 = vmatprep.subr.bf16.mxu0 %v1452
    %2629 = vmatpush1.bf16.msra.mxu0 %v1451
    %2630 = vmatprep.subr.bf16.mxu0 %v1456
    %2631 = vmatpush1.bf16.msra.mxu0 %v1455
    %2632 = vmatprep.subr.bf16.mxu0 %v1460
    %2633 = vmatpush1.bf16.msra.mxu0 %v1459
    %2634 = vmatprep.subr.bf16.mxu0 %v1464
    %2635 = vmatpush1.bf16.msra.mxu0 %v1463
    %2636 = vmatprep.subr.bf16.mxu0 %v1468
    %2637 = vmatpush1.bf16.msra.mxu0 %v1467
    %2638 = vmatprep.subr.bf16.mxu0 %v1472
    %2639 = vmatpush1.bf16.msra.mxu0 %v1471
    %2640 = vmatprep.subr.bf16.mxu0 0
    %2641 = vmatpush1.bf16.msra.mxu0 0
    %2642 = vmatprep.subr.bf16.mxu0 0
    %2643 = vmatpush1.bf16.msra.mxu0 0
    %2644 = vmatprep.subr.bf16.mxu0 0
    %2645 = vmatpush1.bf16.msra.mxu0 0
    %2646 = vmatprep.subr.bf16.mxu0 0
    %2647 = vmatpush1.bf16.msra.mxu0 0
    %2648 = vmatprep.subr.bf16.mxu0 0
    %2649 = vmatpush1.bf16.msra.mxu0 0
    %2650 = vmatprep.subr.bf16.mxu0 0
    %2651 = vmatpush1.bf16.msra.mxu0 0
    %2652 = vmatprep.subr.bf16.mxu0 0
    %2653 = vmatpush1.bf16.msra.mxu0 0
    %2654 = vmatprep.subr.bf16.mxu0 0
    %2655 = vmatpush1.bf16.msra.mxu0 0
    %2656 = vmatprep.mubr.bf16.mxu0 0
    %2657 = vmatmul.mubr.bf16.gmra.mrb[0].mxu0 %v2525
    %v2658 = vpop.f32.mrb[0].mxu0
    %v2659 = vadd.f32 0.0, %v2658
    %v2660 = vpop.f32.mrb[0].mxu0
    %v2661 = vadd.f32 0.0, %v2660
    %v2662 = vpop.f32.mrb[0].mxu0
    %v2663 = vpop.f32.mrb[0].mxu0
    %2664 = vdwg.mxu0
    %2665 = vmatprep.subr.bf16.mxu0 %v1446
    %2666 = vmatpush1.bf16.msra.mxu0 %v1445
    %2667 = vmatprep.subr.bf16.mxu0 %v1450
    %2668 = vmatpush1.bf16.msra.mxu0 %v1449
    %2669 = vmatprep.subr.bf16.mxu0 %v1454
    %2670 = vmatpush1.bf16.msra.mxu0 %v1453
    %2671 = vmatprep.subr.bf16.mxu0 %v1458
    %2672 = vmatpush1.bf16.msra.mxu0 %v1457
    %2673 = vmatprep.subr.bf16.mxu0 %v1462
    %2674 = vmatpush1.bf16.msra.mxu0 %v1461
    %2675 = vmatprep.subr.bf16.mxu0 %v1466
    %2676 = vmatpush1.bf16.msra.mxu0 %v1465
    %2677 = vmatprep.subr.bf16.mxu0 %v1470
    %2678 = vmatpush1.bf16.msra.mxu0 %v1469
    %2679 = vmatprep.subr.bf16.mxu0 %v1474
    %2680 = vmatpush1.bf16.msra.mxu0 %v1473
    %2681 = vmatprep.subr.bf16.mxu0 0
    %2682 = vmatpush1.bf16.msra.mxu0 0
    %2683 = vmatprep.subr.bf16.mxu0 0
    %2684 = vmatpush1.bf16.msra.mxu0 0
    %2685 = vmatprep.subr.bf16.mxu0 0
    %2686 = vmatpush1.bf16.msra.mxu0 0
    %2687 = vmatprep.subr.bf16.mxu0 0
    %2688 = vmatpush1.bf16.msra.mxu0 0
    %2689 = vmatprep.subr.bf16.mxu0 0
    %2690 = vmatpush1.bf16.msra.mxu0 0
    %2691 = vmatprep.subr.bf16.mxu0 0
    %2692 = vmatpush1.bf16.msra.mxu0 0
    %2693 = vmatprep.subr.bf16.mxu0 0
    %2694 = vmatpush1.bf16.msra.mxu0 0
    %2695 = vmatprep.subr.bf16.mxu0 0
    %2696 = vmatpush1.bf16.msra.mxu0 0
    %2697 = vmatprep.mubr.bf16.mxu0 0
    %2698 = vmatmul.mubr.bf16.gmra.mrb[0].mxu0 %v2525
    %v2699 = vpop.f32.mrb[0].mxu0
    %v2700 = vadd.f32 0.0, %v2699
    %v2701 = vpop.f32.mrb[0].mxu0
    %v2702 = vadd.f32 0.0, %v2701
    %v2703 = vpop.f32.mrb[0].mxu0
    %v2704 = vpop.f32.mrb[0].mxu0
    %2705 = vdwg.mxu0
    %v2706 = vadd.f32 %v2620, %v2659
    %v2707 = vadd.f32 %v2621, %v2661
    %v2708 = vadd.f32 %v2622, %v2700
    %v2709 = vadd.f32 %v2623, %v2702
    %v2710 = vmul.f32 %v2615, 0.5
    %v2711 = vtanh.pop %v2710
    %v2712 = vmul.f32 %v2711, 0.5
    %v2713 = vadd.f32 %v2712, 0.5
    %v2714 = vmul.f32 %v2616, 0.5
    %v2715 = vtanh.pop %v2714
    %v2716 = vmul.f32 %v2715, 0.5
    %v2717 = vadd.f32 %v2716, 0.5
    %v2718 = vtanh.pop %v2617
    %v2719 = vmul.f32 %v2618, 0.5
    %v2720 = vtanh.pop %v2719
    %v2721 = vmul.f32 %v2720, 0.5
    %v2722 = vadd.f32 %v2721, 0.5
    %v2723 = vmul.f32 %v2717, %v2503
    %v2724 = vmul.f32 %v2713, %v2718
    %v2725 = vadd.f32 %v2723, %v2724
    %v2726 = vtanh.pop %v2725
    %v2727 = vmul.f32 %v2722, %v2726
    %v2728 = vpack.c.bf16 %v2727, %v2727
    %v2729 = vmul.f32 %v2706, 0.5
    %v2730 = vtanh.pop %v2729
    %v2731 = vmul.f32 %v2730, 0.5
    %v2732 = vadd.f32 %v2731, 0.5
    %v2733 = vmul.f32 %v2707, 0.5
    %v2734 = vtanh.pop %v2733
    %v2735 = vmul.f32 %v2734, 0.5
    %v2736 = vadd.f32 %v2735, 0.5
    %v2737 = vtanh.pop %v2708
    %v2738 = vmul.f32 %v2709, 0.5
    %v2739 = vtanh.pop %v2738
    %v2740 = vmul.f32 %v2739, 0.5
    %v2741 = vadd.f32 %v2740, 0.5
    %v2742 = vmul.f32 %v2736, %v2522
    %v2743 = vmul.f32 %v2732, %v2737
    %v2744 = vadd.f32 %v2742, %v2743
    %v2745 = vtanh.pop %v2744
    %v2746 = vmul.f32 %v2741, %v2745
    %v2747 = vpack.c.bf16 %v2746, %v2746
    %2748 = vst [vmem:[%s2080] sm:$0xf] %v2728
    %2749 = vst [vmem:[%s2078 + $0x4] sm:$0xf] %v2747
    %s2750 = scalar_lea.vmem [#allocation2], 192
    %v2751 = vld [vmem:[%s2750] sm:$0xff]
    %v2752 = vld [vmem:[%s2750 + $0x8] sm:$0xff]
    %v2753 = vld [vmem:[%s2750 + $0x10] sm:$0xff]
    %v2754 = vld [vmem:[%s2750 + $0x18] sm:$0xff]
    %2755 = vmatprep.subr.bf16.mxu0 %v1193
    %2756 = vmatpush1.bf16.msra.mxu0 %v1192
    %2757 = vmatprep.subr.bf16.mxu0 %v1197
    %2758 = vmatpush1.bf16.msra.mxu0 %v1196
    %2759 = vmatprep.subr.bf16.mxu0 %v1201
    %2760 = vmatpush1.bf16.msra.mxu0 %v1200
    %2761 = vmatprep.subr.bf16.mxu0 %v1205
    %2762 = vmatpush1.bf16.msra.mxu0 %v1204
    %2763 = vmatprep.subr.bf16.mxu0 %v1209
    %2764 = vmatpush1.bf16.msra.mxu0 %v1208
    %2765 = vmatprep.subr.bf16.mxu0 %v1213
    %2766 = vmatpush1.bf16.msra.mxu0 %v1212
    %2767 = vmatprep.subr.bf16.mxu0 %v1217
    %2768 = vmatpush1.bf16.msra.mxu0 %v1216
    %2769 = vmatprep.subr.bf16.mxu0 %v1221
    %2770 = vmatpush1.bf16.msra.mxu0 %v1220
    %2771 = vmatprep.subr.bf16.mxu0 0
    %2772 = vmatpush1.bf16.msra.mxu0 0
    %2773 = vmatprep.subr.bf16.mxu0 0
    %2774 = vmatpush1.bf16.msra.mxu0 0
    %2775 = vmatprep.subr.bf16.mxu0 0
    %2776 = vmatpush1.bf16.msra.mxu0 0
    %2777 = vmatprep.subr.bf16.mxu0 0
    %2778 = vmatpush1.bf16.msra.mxu0 0
    %2779 = vmatprep.subr.bf16.mxu0 0
    %2780 = vmatpush1.bf16.msra.mxu0 0
    %2781 = vmatprep.subr.bf16.mxu0 0
    %2782 = vmatpush1.bf16.msra.mxu0 0
    %2783 = vmatprep.subr.bf16.mxu0 0
    %2784 = vmatpush1.bf16.msra.mxu0 0
    %2785 = vmatprep.subr.bf16.mxu0 0
    %2786 = vmatpush1.bf16.msra.mxu0 0
    %2787 = vmatprep.mubr.bf16.mxu0 0
    %2788 = vmatmul.mubr.bf16.gmra.mrb[0].mxu0 %v2728
    %v2789 = vpop.f32.mrb[0].mxu0
    %v2790 = vadd.f32 0.0, %v2789
    %v2791 = vpop.f32.mrb[0].mxu0
    %v2792 = vadd.f32 0.0, %v2791
    %v2793 = vpop.f32.mrb[0].mxu0
    %v2794 = vpop.f32.mrb[0].mxu0
    %2795 = vdwg.mxu0
    %2796 = vmatprep.subr.bf16.mxu0 %v1195
    %2797 = vmatpush1.bf16.msra.mxu0 %v1194
    %2798 = vmatprep.subr.bf16.mxu0 %v1199
    %2799 = vmatpush1.bf16.msra.mxu0 %v1198
    %2800 = vmatprep.subr.bf16.mxu0 %v1203
    %2801 = vmatpush1.bf16.msra.mxu0 %v1202
    %2802 = vmatprep.subr.bf16.mxu0 %v1207
    %2803 = vmatpush1.bf16.msra.mxu0 %v1206
    %2804 = vmatprep.subr.bf16.mxu0 %v1211
    %2805 = vmatpush1.bf16.msra.mxu0 %v1210
    %2806 = vmatprep.subr.bf16.mxu0 %v1215
    %2807 = vmatpush1.bf16.msra.mxu0 %v1214
    %2808 = vmatprep.subr.bf16.mxu0 %v1219
    %2809 = vmatpush1.bf16.msra.mxu0 %v1218
    %2810 = vmatprep.subr.bf16.mxu0 %v1223
    %2811 = vmatpush1.bf16.msra.mxu0 %v1222
    %2812 = vmatprep.subr.bf16.mxu0 0
    %2813 = vmatpush1.bf16.msra.mxu0 0
    %2814 = vmatprep.subr.bf16.mxu0 0
    %2815 = vmatpush1.bf16.msra.mxu0 0
    %2816 = vmatprep.subr.bf16.mxu0 0
    %2817 = vmatpush1.bf16.msra.mxu0 0
    %2818 = vmatprep.subr.bf16.mxu0 0
    %2819 = vmatpush1.bf16.msra.mxu0 0
    %2820 = vmatprep.subr.bf16.mxu0 0
    %2821 = vmatpush1.bf16.msra.mxu0 0
    %2822 = vmatprep.subr.bf16.mxu0 0
    %2823 = vmatpush1.bf16.msra.mxu0 0
    %2824 = vmatprep.subr.bf16.mxu0 0
    %2825 = vmatpush1.bf16.msra.mxu0 0
    %2826 = vmatprep.subr.bf16.mxu0 0
    %2827 = vmatpush1.bf16.msra.mxu0 0
    %2828 = vmatprep.mubr.bf16.mxu0 0
    %2829 = vmatmul.mubr.bf16.gmra.mrb[0].mxu0 %v2728
    %v2830 = vpop.f32.mrb[0].mxu0
    %v2831 = vadd.f32 0.0, %v2830
    %v2832 = vpop.f32.mrb[0].mxu0
    %v2833 = vadd.f32 0.0, %v2832
    %v2834 = vpop.f32.mrb[0].mxu0
    %v2835 = vpop.f32.mrb[0].mxu0
    %2836 = vdwg.mxu0
    %v2837 = vadd.f32 %v2751, %v2790
    %v2838 = vadd.f32 %v2752, %v2792
    %v2839 = vadd.f32 %v2753, %v2831
    %v2840 = vadd.f32 %v2754, %v2833
    %s2841 = scalar_lea.vmem [#allocation3], 32
    %v2842 = vld [vmem:[%s2841] sm:$0xff]
    %v2843 = vld [vmem:[%s2841 + $0x8] sm:$0xff]
    %v2844 = vld [vmem:[%s2841 + $0x10] sm:$0xff]
    %v2845 = vld [vmem:[%s2841 + $0x18] sm:$0xff]
    %2846 = vmatprep.subr.bf16.mxu0 %v1444
    %2847 = vmatpush1.bf16.msra.mxu0 %v1443
    %2848 = vmatprep.subr.bf16.mxu0 %v1448
    %2849 = vmatpush1.bf16.msra.mxu0 %v1447
    %2850 = vmatprep.subr.bf16.mxu0 %v1452
    %2851 = vmatpush1.bf16.msra.mxu0 %v1451
    %2852 = vmatprep.subr.bf16.mxu0 %v1456
    %2853 = vmatpush1.bf16.msra.mxu0 %v1455
    %2854 = vmatprep.subr.bf16.mxu0 %v1460
    %2855 = vmatpush1.bf16.msra.mxu0 %v1459
    %2856 = vmatprep.subr.bf16.mxu0 %v1464
    %2857 = vmatpush1.bf16.msra.mxu0 %v1463
    %2858 = vmatprep.subr.bf16.mxu0 %v1468
    %2859 = vmatpush1.bf16.msra.mxu0 %v1467
    %2860 = vmatprep.subr.bf16.mxu0 %v1472
    %2861 = vmatpush1.bf16.msra.mxu0 %v1471
    %2862 = vmatprep.subr.bf16.mxu0 0
    %2863 = vmatpush1.bf16.msra.mxu0 0
    %2864 = vmatprep.subr.bf16.mxu0 0
    %2865 = vmatpush1.bf16.msra.mxu0 0
    %2866 = vmatprep.subr.bf16.mxu0 0
    %2867 = vmatpush1.bf16.msra.mxu0 0
    %2868 = vmatprep.subr.bf16.mxu0 0
    %2869 = vmatpush1.bf16.msra.mxu0 0
    %2870 = vmatprep.subr.bf16.mxu0 0
    %2871 = vmatpush1.bf16.msra.mxu0 0
    %2872 = vmatprep.subr.bf16.mxu0 0
    %2873 = vmatpush1.bf16.msra.mxu0 0
    %2874 = vmatprep.subr.bf16.mxu0 0
    %2875 = vmatpush1.bf16.msra.mxu0 0
    %2876 = vmatprep.subr.bf16.mxu0 0
    %2877 = vmatpush1.bf16.msra.mxu0 0
    %2878 = vmatprep.mubr.bf16.mxu0 0
    %2879 = vmatmul.mubr.bf16.gmra.mrb[0].mxu0 %v2747
    %v2880 = vpop.f32.mrb[0].mxu0
    %v2881 = vadd.f32 0.0, %v2880
    %v2882 = vpop.f32.mrb[0].mxu0
    %v2883 = vadd.f32 0.0, %v2882
    %v2884 = vpop.f32.mrb[0].mxu0
    %v2885 = vpop.f32.mrb[0].mxu0
    %2886 = vdwg.mxu0
    %2887 = vmatprep.subr.bf16.mxu0 %v1446
    %2888 = vmatpush1.bf16.msra.mxu0 %v1445
    %2889 = vmatprep.subr.bf16.mxu0 %v1450
    %2890 = vmatpush1.bf16.msra.mxu0 %v1449
    %2891 = vmatprep.subr.bf16.mxu0 %v1454
    %2892 = vmatpush1.bf16.msra.mxu0 %v1453
    %2893 = vmatprep.subr.bf16.mxu0 %v1458
    %2894 = vmatpush1.bf16.msra.mxu0 %v1457
    %2895 = vmatprep.subr.bf16.mxu0 %v1462
    %2896 = vmatpush1.bf16.msra.mxu0 %v1461
    %2897 = vmatprep.subr.bf16.mxu0 %v1466
    %2898 = vmatpush1.bf16.msra.mxu0 %v1465
    %2899 = vmatprep.subr.bf16.mxu0 %v1470
    %2900 = vmatpush1.bf16.msra.mxu0 %v1469
    %2901 = vmatprep.subr.bf16.mxu0 %v1474
    %2902 = vmatpush1.bf16.msra.mxu0 %v1473
    %2903 = vmatprep.subr.bf16.mxu0 0
    %2904 = vmatpush1.bf16.msra.mxu0 0
    %2905 = vmatprep.subr.bf16.mxu0 0
    %2906 = vmatpush1.bf16.msra.mxu0 0
    %2907 = vmatprep.subr.bf16.mxu0 0
    %2908 = vmatpush1.bf16.msra.mxu0 0
    %2909 = vmatprep.subr.bf16.mxu0 0
    %2910 = vmatpush1.bf16.msra.mxu0 0
    %2911 = vmatprep.subr.bf16.mxu0 0
    %2912 = vmatpush1.bf16.msra.mxu0 0
    %2913 = vmatprep.subr.bf16.mxu0 0
    %2914 = vmatpush1.bf16.msra.mxu0 0
    %2915 = vmatprep.subr.bf16.mxu0 0
    %2916 = vmatpush1.bf16.msra.mxu0 0
    %2917 = vmatprep.subr.bf16.mxu0 0
    %2918 = vmatpush1.bf16.msra.mxu0 0
    %2919 = vmatprep.mubr.bf16.mxu0 0
    %2920 = vmatmul.mubr.bf16.gmra.mrb[0].mxu0 %v2747
    %v2921 = vpop.f32.mrb[0].mxu0
    %v2922 = vadd.f32 0.0, %v2921
    %v2923 = vpop.f32.mrb[0].mxu0
    %v2924 = vadd.f32 0.0, %v2923
    %v2925 = vpop.f32.mrb[0].mxu0
    %v2926 = vpop.f32.mrb[0].mxu0
    %2927 = vdwg.mxu0
    %v2928 = vadd.f32 %v2842, %v2881
    %v2929 = vadd.f32 %v2843, %v2883
    %v2930 = vadd.f32 %v2844, %v2922
    %v2931 = vadd.f32 %v2845, %v2924
    %v2932 = vmul.f32 %v2837, 0.5
    %v2933 = vtanh.pop %v2932
    %v2934 = vmul.f32 %v2933, 0.5
    %v2935 = vadd.f32 %v2934, 0.5
    %v2936 = vmul.f32 %v2838, 0.5
    %v2937 = vtanh.pop %v2936
    %v2938 = vmul.f32 %v2937, 0.5
    %v2939 = vadd.f32 %v2938, 0.5
    %v2940 = vtanh.pop %v2839
    %v2941 = vmul.f32 %v2840, 0.5
    %v2942 = vtanh.pop %v2941
    %v2943 = vmul.f32 %v2942, 0.5
    %v2944 = vadd.f32 %v2943, 0.5
    %v2945 = vmul.f32 %v2939, %v2725
    %v2946 = vmul.f32 %v2935, %v2940
    %v2947 = vadd.f32 %v2945, %v2946
    %v2948 = vtanh.pop %v2947
    %v2949 = vmul.f32 %v2944, %v2948
    %v2950 = vpack.c.bf16 %v2949, %v2949
    %v2951 = vmul.f32 %v2928, 0.5
    %v2952 = vtanh.pop %v2951
    %v2953 = vmul.f32 %v2952, 0.5
    %v2954 = vadd.f32 %v2953, 0.5
    %v2955 = vmul.f32 %v2929, 0.5
    %v2956 = vtanh.pop %v2955
    %v2957 = vmul.f32 %v2956, 0.5
    %v2958 = vadd.f32 %v2957, 0.5
    %v2959 = vtanh.pop %v2930
    %v2960 = vmul.f32 %v2931, 0.5
    %v2961 = vtanh.pop %v2960
    %v2962 = vmul.f32 %v2961, 0.5
    %v2963 = vadd.f32 %v2962, 0.5
    %v2964 = vmul.f32 %v2958, %v2744
    %v2965 = vmul.f32 %v2954, %v2959
    %v2966 = vadd.f32 %v2964, %v2965
    %v2967 = vtanh.pop %v2966
    %v2968 = vmul.f32 %v2963, %v2967
    %v2969 = vpack.c.bf16 %v2968, %v2968
    %2970 = vst [vmem:[%s1856] sm:$0xf] %v2950
    %2971 = vst [vmem:[%s1854 + $0x4] sm:$0xf] %v2969
    %s2972 = scalar_lea.vmem [#allocation2], 224
    %v2973 = vld [vmem:[%s2972] sm:$0xff]
    %v2974 = vld [vmem:[%s2972 + $0x8] sm:$0xff]
    %v2975 = vld [vmem:[%s2972 + $0x10] sm:$0xff]
    %v2976 = vld [vmem:[%s2972 + $0x18] sm:$0xff]
    %2977 = vmatprep.subr.bf16.mxu0 %v1193
    %2978 = vmatpush1.bf16.msra.mxu0 %v1192
    %2979 = vmatprep.subr.bf16.mxu0 %v1197
    %2980 = vmatpush1.bf16.msra.mxu0 %v1196
    %2981 = vmatprep.subr.bf16.mxu0 %v1201
    %2982 = vmatpush1.bf16.msra.mxu0 %v1200
    %2983 = vmatprep.subr.bf16.mxu0 %v1205
    %2984 = vmatpush1.bf16.msra.mxu0 %v1204
    %2985 = vmatprep.subr.bf16.mxu0 %v1209
    %2986 = vmatpush1.bf16.msra.mxu0 %v1208
    %2987 = vmatprep.subr.bf16.mxu0 %v1213
    %2988 = vmatpush1.bf16.msra.mxu0 %v1212
    %2989 = vmatprep.subr.bf16.mxu0 %v1217
    %2990 = vmatpush1.bf16.msra.mxu0 %v1216
    %2991 = vmatprep.subr.bf16.mxu0 %v1221
    %2992 = vmatpush1.bf16.msra.mxu0 %v1220
    %2993 = vmatprep.subr.bf16.mxu0 0
    %2994 = vmatpush1.bf16.msra.mxu0 0
    %2995 = vmatprep.subr.bf16.mxu0 0
    %2996 = vmatpush1.bf16.msra.mxu0 0
    %2997 = vmatprep.subr.bf16.mxu0 0
    %2998 = vmatpush1.bf16.msra.mxu0 0
    %2999 = vmatprep.subr.bf16.mxu0 0
    %3000 = vmatpush1.bf16.msra.mxu0 0
    %3001 = vmatprep.subr.bf16.mxu0 0
    %3002 = vmatpush1.bf16.msra.mxu0 0
    %3003 = vmatprep.subr.bf16.mxu0 0
    %3004 = vmatpush1.bf16.msra.mxu0 0
    %3005 = vmatprep.subr.bf16.mxu0 0
    %3006 = vmatpush1.bf16.msra.mxu0 0
    %3007 = vmatprep.subr.bf16.mxu0 0
    %3008 = vmatpush1.bf16.msra.mxu0 0
    %3009 = vmatprep.mubr.bf16.mxu0 0
    %3010 = vmatmul.mubr.bf16.gmra.mrb[0].mxu0 %v2950
    %v3011 = vpop.f32.mrb[0].mxu0
    %v3012 = vadd.f32 0.0, %v3011
    %v3013 = vpop.f32.mrb[0].mxu0
    %v3014 = vadd.f32 0.0, %v3013
    %v3015 = vpop.f32.mrb[0].mxu0
    %v3016 = vpop.f32.mrb[0].mxu0
    %3017 = vdwg.mxu0
    %3018 = vmatprep.subr.bf16.mxu0 %v1195
    %3019 = vmatpush1.bf16.msra.mxu0 %v1194
    %3020 = vmatprep.subr.bf16.mxu0 %v1199
    %3021 = vmatpush1.bf16.msra.mxu0 %v1198
    %3022 = vmatprep.subr.bf16.mxu0 %v1203
    %3023 = vmatpush1.bf16.msra.mxu0 %v1202
    %3024 = vmatprep.subr.bf16.mxu0 %v1207
    %3025 = vmatpush1.bf16.msra.mxu0 %v1206
    %3026 = vmatprep.subr.bf16.mxu0 %v1211
    %3027 = vmatpush1.bf16.msra.mxu0 %v1210
    %3028 = vmatprep.subr.bf16.mxu0 %v1215
    %3029 = vmatpush1.bf16.msra.mxu0 %v1214
    %3030 = vmatprep.subr.bf16.mxu0 %v1219
    %3031 = vmatpush1.bf16.msra.mxu0 %v1218
    %3032 = vmatprep.subr.bf16.mxu0 %v1223
    %3033 = vmatpush1.bf16.msra.mxu0 %v1222
    %3034 = vmatprep.subr.bf16.mxu0 0
    %3035 = vmatpush1.bf16.msra.mxu0 0
    %3036 = vmatprep.subr.bf16.mxu0 0
    %3037 = vmatpush1.bf16.msra.mxu0 0
    %3038 = vmatprep.subr.bf16.mxu0 0
    %3039 = vmatpush1.bf16.msra.mxu0 0
    %3040 = vmatprep.subr.bf16.mxu0 0
    %3041 = vmatpush1.bf16.msra.mxu0 0
    %3042 = vmatprep.subr.bf16.mxu0 0
    %3043 = vmatpush1.bf16.msra.mxu0 0
    %3044 = vmatprep.subr.bf16.mxu0 0
    %3045 = vmatpush1.bf16.msra.mxu0 0
    %3046 = vmatprep.subr.bf16.mxu0 0
    %3047 = vmatpush1.bf16.msra.mxu0 0
    %3048 = vmatprep.subr.bf16.mxu0 0
    %3049 = vmatpush1.bf16.msra.mxu0 0
    %3050 = vmatprep.mubr.bf16.mxu0 0
    %3051 = vmatmul.mubr.bf16.gmra.mrb[0].mxu0 %v2950
    %v3052 = vpop.f32.mrb[0].mxu0
    %v3053 = vadd.f32 0.0, %v3052
    %v3054 = vpop.f32.mrb[0].mxu0
    %v3055 = vadd.f32 0.0, %v3054
    %v3056 = vpop.f32.mrb[0].mxu0
    %v3057 = vpop.f32.mrb[0].mxu0
    %3058 = vdwg.mxu0
    %v3059 = vadd.f32 %v2973, %v3012
    %v3060 = vadd.f32 %v2974, %v3014
    %v3061 = vadd.f32 %v2975, %v3053
    %v3062 = vadd.f32 %v2976, %v3055
    %v3063 = vld [vmem:[#allocation3] sm:$0xff]
    %v3064 = vld [vmem:[#allocation3 + $0x8] sm:$0xff]
    %v3065 = vld [vmem:[#allocation3 + $0x10] sm:$0xff]
    %v3066 = vld [vmem:[#allocation3 + $0x18] sm:$0xff]
    %3067 = vmatprep.subr.bf16.mxu0 %v1444
    %3068 = vmatpush1.bf16.msra.mxu0 %v1443
    %3069 = vmatprep.subr.bf16.mxu0 %v1448
    %3070 = vmatpush1.bf16.msra.mxu0 %v1447
    %3071 = vmatprep.subr.bf16.mxu0 %v1452
    %3072 = vmatpush1.bf16.msra.mxu0 %v1451
    %3073 = vmatprep.subr.bf16.mxu0 %v1456
    %3074 = vmatpush1.bf16.msra.mxu0 %v1455
    %3075 = vmatprep.subr.bf16.mxu0 %v1460
    %3076 = vmatpush1.bf16.msra.mxu0 %v1459
    %3077 = vmatprep.subr.bf16.mxu0 %v1464
    %3078 = vmatpush1.bf16.msra.mxu0 %v1463
    %3079 = vmatprep.subr.bf16.mxu0 %v1468
    %3080 = vmatpush1.bf16.msra.mxu0 %v1467
    %3081 = vmatprep.subr.bf16.mxu0 %v1472
    %3082 = vmatpush1.bf16.msra.mxu0 %v1471
    %3083 = vmatprep.subr.bf16.mxu0 0
    %3084 = vmatpush1.bf16.msra.mxu0 0
    %3085 = vmatprep.subr.bf16.mxu0 0
    %3086 = vmatpush1.bf16.msra.mxu0 0
    %3087 = vmatprep.subr.bf16.mxu0 0
    %3088 = vmatpush1.bf16.msra.mxu0 0
    %3089 = vmatprep.subr.bf16.mxu0 0
    %3090 = vmatpush1.bf16.msra.mxu0 0
    %3091 = vmatprep.subr.bf16.mxu0 0
    %3092 = vmatpush1.bf16.msra.mxu0 0
    %3093 = vmatprep.subr.bf16.mxu0 0
    %3094 = vmatpush1.bf16.msra.mxu0 0
    %3095 = vmatprep.subr.bf16.mxu0 0
    %3096 = vmatpush1.bf16.msra.mxu0 0
    %3097 = vmatprep.subr.bf16.mxu0 0
    %3098 = vmatpush1.bf16.msra.mxu0 0
    %3099 = vmatprep.mubr.bf16.mxu0 0
    %3100 = vmatmul.mubr.bf16.gmra.mrb[0].mxu0 %v2969
    %v3101 = vpop.f32.mrb[0].mxu0
    %v3102 = vadd.f32 0.0, %v3101
    %v3103 = vpop.f32.mrb[0].mxu0
    %v3104 = vadd.f32 0.0, %v3103
    %v3105 = vpop.f32.mrb[0].mxu0
    %v3106 = vpop.f32.mrb[0].mxu0
    %3107 = vdwg.mxu0
    %3108 = vmatprep.subr.bf16.mxu0 %v1446
    %3109 = vmatpush1.bf16.msra.mxu0 %v1445
    %3110 = vmatprep.subr.bf16.mxu0 %v1450
    %3111 = vmatpush1.bf16.msra.mxu0 %v1449
    %3112 = vmatprep.subr.bf16.mxu0 %v1454
    %3113 = vmatpush1.bf16.msra.mxu0 %v1453
    %3114 = vmatprep.subr.bf16.mxu0 %v1458
    %3115 = vmatpush1.bf16.msra.mxu0 %v1457
    %3116 = vmatprep.subr.bf16.mxu0 %v1462
    %3117 = vmatpush1.bf16.msra.mxu0 %v1461
    %3118 = vmatprep.subr.bf16.mxu0 %v1466
    %3119 = vmatpush1.bf16.msra.mxu0 %v1465
    %3120 = vmatprep.subr.bf16.mxu0 %v1470
    %3121 = vmatpush1.bf16.msra.mxu0 %v1469
    %3122 = vmatprep.subr.bf16.mxu0 %v1474
    %3123 = vmatpush1.bf16.msra.mxu0 %v1473
    %3124 = vmatprep.subr.bf16.mxu0 0
    %3125 = vmatpush1.bf16.msra.mxu0 0
    %3126 = vmatprep.subr.bf16.mxu0 0
    %3127 = vmatpush1.bf16.msra.mxu0 0
    %3128 = vmatprep.subr.bf16.mxu0 0
    %3129 = vmatpush1.bf16.msra.mxu0 0
    %3130 = vmatprep.subr.bf16.mxu0 0
    %3131 = vmatpush1.bf16.msra.mxu0 0
    %3132 = vmatprep.subr.bf16.mxu0 0
    %3133 = vmatpush1.bf16.msra.mxu0 0
    %3134 = vmatprep.subr.bf16.mxu0 0
    %3135 = vmatpush1.bf16.msra.mxu0 0
    %3136 = vmatprep.subr.bf16.mxu0 0
    %3137 = vmatpush1.bf16.msra.mxu0 0
    %3138 = vmatprep.subr.bf16.mxu0 0
    %3139 = vmatpush1.bf16.msra.mxu0 0
    %3140 = vmatprep.mubr.bf16.mxu0 0
    %3141 = vmatmul.mubr.bf16.gmra.mrb[0].mxu0 %v2969
    %v3142 = vpop.f32.mrb[0].mxu0
    %v3143 = vadd.f32 0.0, %v3142
    %v3144 = vpop.f32.mrb[0].mxu0
    %v3145 = vadd.f32 0.0, %v3144
    %v3146 = vpop.f32.mrb[0].mxu0
    %v3147 = vpop.f32.mrb[0].mxu0
    %3148 = vdwg.mxu0
    %v3149 = vadd.f32 %v3063, %v3102
    %v3150 = vadd.f32 %v3064, %v3104
    %v3151 = vadd.f32 %v3065, %v3143
    %v3152 = vadd.f32 %v3066, %v3145
    %v3153 = vmul.f32 %v3059, 0.5
    %v3154 = vtanh.pop %v3153
    %v3155 = vmul.f32 %v3154, 0.5
    %v3156 = vadd.f32 %v3155, 0.5
    %v3157 = vmul.f32 %v3060, 0.5
    %v3158 = vtanh.pop %v3157
    %v3159 = vmul.f32 %v3158, 0.5
    %v3160 = vadd.f32 %v3159, 0.5
    %v3161 = vtanh.pop %v3061
    %v3162 = vmul.f32 %v3062, 0.5
    %v3163 = vtanh.pop %v3162
    %v3164 = vmul.f32 %v3163, 0.5
    %v3165 = vadd.f32 %v3164, 0.5
    %v3166 = vmul.f32 %v3160, %v2947
    %v3167 = vmul.f32 %v3156, %v3161
    %v3168 = vadd.f32 %v3166, %v3167
    %v3169 = vtanh.pop %v3168
    %v3170 = vmul.f32 %v3165, %v3169
    %v3171 = vpack.c.bf16 %v3170, %v3170
    %v3172 = vmul.f32 %v3149, 0.5
    %v3173 = vtanh.pop %v3172
    %v3174 = vmul.f32 %v3173, 0.5
    %v3175 = vadd.f32 %v3174, 0.5
    %v3176 = vmul.f32 %v3150, 0.5
    %v3177 = vtanh.pop %v3176
    %v3178 = vmul.f32 %v3177, 0.5
    %v3179 = vadd.f32 %v3178, 0.5
    %v3180 = vtanh.pop %v3151
    %v3181 = vmul.f32 %v3152, 0.5
    %v3182 = vtanh.pop %v3181
    %v3183 = vmul.f32 %v3182, 0.5
    %v3184 = vadd.f32 %v3183, 0.5
    %v3185 = vmul.f32 %v3179, %v2966
    %v3186 = vmul.f32 %v3175, %v3180
    %v3187 = vadd.f32 %v3185, %v3186
    %v3188 = vtanh.pop %v3187
    %v3189 = vmul.f32 %v3184, %v3188
    %v3190 = vpack.c.bf16 %v3189, %v3189
    %3191 = vst [vmem:[%s1632] sm:$0xf] %v3171
    %3192 = vst [vmem:[#allocation4 + $0x4] sm:$0xf] %v3190
    %v3193 = vld [vmem:[#allocation4] sm:$0xff]
    %v3194 = vld [vmem:[#allocation4 + $0x8] sm:$0xff]
    %v3195 = vld [vmem:[#allocation4 + $0x10] sm:$0xff]
    %v3196 = vld [vmem:[#allocation4 + $0x18] sm:$0xff]
    %v3197 = vld [vmem:[#allocation4 + $0x20] sm:$0xff]
    %v3198 = vld [vmem:[#allocation4 + $0x28] sm:$0xff]
    %v3199 = vld [vmem:[#allocation4 + $0x30] sm:$0xff]
    %v3200 = vld [vmem:[#allocation4 + $0x38] sm:$0xff]
    %v3201 = vld [vmem:[#allocation13] sm:$0xff]
    %v3202 = vld [vmem:[#allocation13 + $0x8] sm:$0xff]
    %v3203 = vld [vmem:[#allocation13 + $0x10] sm:$0xff]
    %v3204 = vld [vmem:[#allocation13 + $0x18] sm:$0xff]
    %v3205 = vld [vmem:[#allocation13 + $0x20] sm:$0xff]
    %v3206 = vld [vmem:[#allocation13 + $0x28] sm:$0xff]
    %v3207 = vld [vmem:[#allocation13 + $0x30] sm:$0xff]
    %v3208 = vld [vmem:[#allocation13 + $0x38] sm:$0xff]
    %v3209 = vld [vmem:[#allocation13 + $0x40] sm:$0xff]
    %v3210 = vld [vmem:[#allocation13 + $0x48] sm:$0xff]
    %v3211 = vld [vmem:[#allocation13 + $0x50] sm:$0xff]
    %v3212 = vld [vmem:[#allocation13 + $0x58] sm:$0xff]
    %v3213 = vld [vmem:[#allocation13 + $0x60] sm:$0xff]
    %v3214 = vld [vmem:[#allocation13 + $0x68] sm:$0xff]
    %v3215 = vld [vmem:[#allocation13 + $0x70] sm:$0xff]
    %v3216 = vld [vmem:[#allocation13 + $0x78] sm:$0xff]
    %v3217 = vld [vmem:[#allocation13 + $0x80] sm:$0xff]
    %v3218 = vld [vmem:[#allocation13 + $0x88] sm:$0xff]
    %v3219 = vld [vmem:[#allocation13 + $0x90] sm:$0xff]
    %v3220 = vld [vmem:[#allocation13 + $0x98] sm:$0xff]
    %v3221 = vld [vmem:[#allocation13 + $0xa0] sm:$0xff]
    %v3222 = vld [vmem:[#allocation13 + $0xa8] sm:$0xff]
    %v3223 = vld [vmem:[#allocation13 + $0xb0] sm:$0xff]
    %v3224 = vld [vmem:[#allocation13 + $0xb8] sm:$0xff]
    %v3225 = vld [vmem:[#allocation13 + $0xc0] sm:$0xff]
    %v3226 = vld [vmem:[#allocation13 + $0xc8] sm:$0xff]
    %v3227 = vld [vmem:[#allocation13 + $0xd0] sm:$0xff]
    %v3228 = vld [vmem:[#allocation13 + $0xd8] sm:$0xff]
    %v3229 = vld [vmem:[#allocation13 + $0xe0] sm:$0xff]
    %v3230 = vld [vmem:[#allocation13 + $0xe8] sm:$0xff]
    %v3231 = vld [vmem:[#allocation13 + $0xf0] sm:$0xff]
    %v3232 = vld [vmem:[#allocation13 + $0xf8] sm:$0xff]
    %v3233 = vld [vmem:[#allocation13 + $0x100] sm:$0xff]
    %v3234 = vld [vmem:[#allocation13 + $0x108] sm:$0xff]
    %v3235 = vld [vmem:[#allocation13 + $0x110] sm:$0xff]
    %v3236 = vld [vmem:[#allocation13 + $0x118] sm:$0xff]
    %v3237 = vld [vmem:[#allocation13 + $0x120] sm:$0xff]
    %v3238 = vld [vmem:[#allocation13 + $0x128] sm:$0xff]
    %v3239 = vld [vmem:[#allocation13 + $0x130] sm:$0xff]
    %v3240 = vld [vmem:[#allocation13 + $0x138] sm:$0xff]
    %v3241 = vld [vmem:[#allocation13 + $0x140] sm:$0xff]
    %v3242 = vld [vmem:[#allocation13 + $0x148] sm:$0xff]
    %v3243 = vld [vmem:[#allocation13 + $0x150] sm:$0xff]
    %v3244 = vld [vmem:[#allocation13 + $0x158] sm:$0xff]
    %v3245 = vld [vmem:[#allocation13 + $0x160] sm:$0xff]
    %v3246 = vld [vmem:[#allocation13 + $0x168] sm:$0xff]
    %v3247 = vld [vmem:[#allocation13 + $0x170] sm:$0xff]
    %v3248 = vld [vmem:[#allocation13 + $0x178] sm:$0xff]
    %v3249 = vld [vmem:[#allocation13 + $0x180] sm:$0xff]
    %v3250 = vld [vmem:[#allocation13 + $0x188] sm:$0xff]
    %v3251 = vld [vmem:[#allocation13 + $0x190] sm:$0xff]
    %v3252 = vld [vmem:[#allocation13 + $0x198] sm:$0xff]
    %v3253 = vld [vmem:[#allocation13 + $0x1a0] sm:$0xff]
    %v3254 = vld [vmem:[#allocation13 + $0x1a8] sm:$0xff]
    %v3255 = vld [vmem:[#allocation13 + $0x1b0] sm:$0xff]
    %v3256 = vld [vmem:[#allocation13 + $0x1b8] sm:$0xff]
    %v3257 = vld [vmem:[#allocation13 + $0x1c0] sm:$0xff]
    %v3258 = vld [vmem:[#allocation13 + $0x1c8] sm:$0xff]
    %v3259 = vld [vmem:[#allocation13 + $0x1d0] sm:$0xff]
    %v3260 = vld [vmem:[#allocation13 + $0x1d8] sm:$0xff]
    %v3261 = vld [vmem:[#allocation13 + $0x1e0] sm:$0xff]
    %v3262 = vld [vmem:[#allocation13 + $0x1e8] sm:$0xff]
    %v3263 = vld [vmem:[#allocation13 + $0x1f0] sm:$0xff]
    %v3264 = vld [vmem:[#allocation13 + $0x1f8] sm:$0xff]
    %v3265 = vld [vmem:[#allocation16] sm:$0xf]
    %v3267 = vlaneseq
    %v3268 = vshrl.u32 %v3267, 7
    %v3269 = vsub.s32 0, %v3268
    %v3270 = vrot.slane %v3265, %v3269
    %v3271 = vlaneseq
    %v3272 = vshrl.u32 %v3271, 7
    %v3273 = vsub.s32 1, %v3272
    %v3274 = vrot.slane %v3265, %v3273
    %v3275 = vlaneseq
    %v3276 = vshrl.u32 %v3275, 7
    %v3277 = vsub.s32 2, %v3276
    %v3278 = vrot.slane %v3265, %v3277
    %v3279 = vlaneseq
    %v3280 = vshrl.u32 %v3279, 7
    %v3281 = vsub.s32 3, %v3280
    %v3282 = vrot.slane %v3265, %v3281
    %v3295 = vunpack.c.l.b16 %v3193
    %v3296 = vunpack.c.h.b16 %v3193
    %v3297 = vunpack.c.l.b16 %v3194
    %v3298 = vunpack.c.h.b16 %v3194
    %v3299 = vunpack.c.l.b16 %v3195
    %v3300 = vunpack.c.h.b16 %v3195
    %v3301 = vunpack.c.l.b16 %v3196
    %v3302 = vunpack.c.h.b16 %v3196
    %v3303 = vunpack.c.l.b16 %v3197
    %v3304 = vunpack.c.h.b16 %v3197
    %v3305 = vunpack.c.l.b16 %v3198
    %v3306 = vunpack.c.h.b16 %v3198
    %v3307 = vunpack.c.l.b16 %v3199
    %v3308 = vunpack.c.h.b16 %v3199
    %v3309 = vunpack.c.l.b16 %v3200
    %v3310 = vunpack.c.h.b16 %v3200
    %v3311 = vpack.c.b16 %v3297, %v3295
    %v3312 = vpack.c.b16 %v3298, %v3296
    %v3313 = vpack.c.b16 %v3301, %v3299
    %v3314 = vpack.c.b16 %v3302, %v3300
    %v3315 = vpack.c.b16 %v3305, %v3303
    %v3316 = vpack.c.b16 %v3306, %v3304
    %v3317 = vpack.c.b16 %v3309, %v3307
    %v3318 = vpack.c.b16 %v3310, %v3308
    %v3391 = vunpack.c.l.b16 %v3201
    %v3392 = vunpack.c.h.b16 %v3201
    %v3393 = vunpack.c.l.b16 %v3202
    %v3394 = vunpack.c.h.b16 %v3202
    %v3395 = vunpack.c.l.b16 %v3203
    %v3396 = vunpack.c.h.b16 %v3203
    %v3397 = vunpack.c.l.b16 %v3204
    %v3398 = vunpack.c.h.b16 %v3204
    %v3399 = vunpack.c.l.b16 %v3205
    %v3400 = vunpack.c.h.b16 %v3205
    %v3401 = vunpack.c.l.b16 %v3206
    %v3402 = vunpack.c.h.b16 %v3206
    %v3403 = vunpack.c.l.b16 %v3207
    %v3404 = vunpack.c.h.b16 %v3207
    %v3405 = vunpack.c.l.b16 %v3208
    %v3406 = vunpack.c.h.b16 %v3208
    %v3407 = vunpack.c.l.b16 %v3209
    %v3408 = vunpack.c.h.b16 %v3209
    %v3409 = vunpack.c.l.b16 %v3210
    %v3410 = vunpack.c.h.b16 %v3210
    %v3411 = vunpack.c.l.b16 %v3211
    %v3412 = vunpack.c.h.b16 %v3211
    %v3413 = vunpack.c.l.b16 %v3212
    %v3414 = vunpack.c.h.b16 %v3212
    %v3415 = vunpack.c.l.b16 %v3213
    %v3416 = vunpack.c.h.b16 %v3213
    %v3417 = vunpack.c.l.b16 %v3214
    %v3418 = vunpack.c.h.b16 %v3214
    %v3419 = vunpack.c.l.b16 %v3215
    %v3420 = vunpack.c.h.b16 %v3215
    %v3421 = vunpack.c.l.b16 %v3216
    %v3422 = vunpack.c.h.b16 %v3216
    %v3423 = vunpack.c.l.b16 %v3217
    %v3424 = vunpack.c.h.b16 %v3217
    %v3425 = vunpack.c.l.b16 %v3218
    %v3426 = vunpack.c.h.b16 %v3218
    %v3427 = vunpack.c.l.b16 %v3219
    %v3428 = vunpack.c.h.b16 %v3219
    %v3429 = vunpack.c.l.b16 %v3220
    %v3430 = vunpack.c.h.b16 %v3220
    %v3431 = vunpack.c.l.b16 %v3221
    %v3432 = vunpack.c.h.b16 %v3221
    %v3433 = vunpack.c.l.b16 %v3222
    %v3434 = vunpack.c.h.b16 %v3222
    %v3435 = vunpack.c.l.b16 %v3223
    %v3436 = vunpack.c.h.b16 %v3223
    %v3437 = vunpack.c.l.b16 %v3224
    %v3438 = vunpack.c.h.b16 %v3224
    %v3439 = vunpack.c.l.b16 %v3225
    %v3440 = vunpack.c.h.b16 %v3225
    %v3441 = vunpack.c.l.b16 %v3226
    %v3442 = vunpack.c.h.b16 %v3226
    %v3443 = vunpack.c.l.b16 %v3227
    %v3444 = vunpack.c.h.b16 %v3227
    %v3445 = vunpack.c.l.b16 %v3228
    %v3446 = vunpack.c.h.b16 %v3228
    %v3447 = vunpack.c.l.b16 %v3229
    %v3448 = vunpack.c.h.b16 %v3229
    %v3449 = vunpack.c.l.b16 %v3230
    %v3450 = vunpack.c.h.b16 %v3230
    %v3451 = vunpack.c.l.b16 %v3231
    %v3452 = vunpack.c.h.b16 %v3231
    %v3453 = vunpack.c.l.b16 %v3232
    %v3454 = vunpack.c.h.b16 %v3232
    %v3455 = vunpack.c.l.b16 %v3233
    %v3456 = vunpack.c.h.b16 %v3233
    %v3457 = vunpack.c.l.b16 %v3234
    %v3458 = vunpack.c.h.b16 %v3234
    %v3459 = vunpack.c.l.b16 %v3235
    %v3460 = vunpack.c.h.b16 %v3235
    %v3461 = vunpack.c.l.b16 %v3236
    %v3462 = vunpack.c.h.b16 %v3236
    %v3463 = vunpack.c.l.b16 %v3237
    %v3464 = vunpack.c.h.b16 %v3237
    %v3465 = vunpack.c.l.b16 %v3238
    %v3466 = vunpack.c.h.b16 %v3238
    %v3467 = vunpack.c.l.b16 %v3239
    %v3468 = vunpack.c.h.b16 %v3239
    %v3469 = vunpack.c.l.b16 %v3240
    %v3470 = vunpack.c.h.b16 %v3240
    %v3471 = vunpack.c.l.b16 %v3241
    %v3472 = vunpack.c.h.b16 %v3241
    %v3473 = vunpack.c.l.b16 %v3242
    %v3474 = vunpack.c.h.b16 %v3242
    %v3475 = vunpack.c.l.b16 %v3243
    %v3476 = vunpack.c.h.b16 %v3243
    %v3477 = vunpack.c.l.b16 %v3244
    %v3478 = vunpack.c.h.b16 %v3244
    %v3479 = vunpack.c.l.b16 %v3245
    %v3480 = vunpack.c.h.b16 %v3245
    %v3481 = vunpack.c.l.b16 %v3246
    %v3482 = vunpack.c.h.b16 %v3246
    %v3483 = vunpack.c.l.b16 %v3247
    %v3484 = vunpack.c.h.b16 %v3247
    %v3485 = vunpack.c.l.b16 %v3248
    %v3486 = vunpack.c.h.b16 %v3248
    %v3487 = vunpack.c.l.b16 %v3249
    %v3488 = vunpack.c.h.b16 %v3249
    %v3489 = vunpack.c.l.b16 %v3250
    %v3490 = vunpack.c.h.b16 %v3250
    %v3491 = vunpack.c.l.b16 %v3251
    %v3492 = vunpack.c.h.b16 %v3251
    %v3493 = vunpack.c.l.b16 %v3252
    %v3494 = vunpack.c.h.b16 %v3252
    %v3495 = vunpack.c.l.b16 %v3253
    %v3496 = vunpack.c.h.b16 %v3253
    %v3497 = vunpack.c.l.b16 %v3254
    %v3498 = vunpack.c.h.b16 %v3254
    %v3499 = vunpack.c.l.b16 %v3255
    %v3500 = vunpack.c.h.b16 %v3255
    %v3501 = vunpack.c.l.b16 %v3256
    %v3502 = vunpack.c.h.b16 %v3256
    %v3503 = vunpack.c.l.b16 %v3257
    %v3504 = vunpack.c.h.b16 %v3257
    %v3505 = vunpack.c.l.b16 %v3258
    %v3506 = vunpack.c.h.b16 %v3258
    %v3507 = vunpack.c.l.b16 %v3259
    %v3508 = vunpack.c.h.b16 %v3259
    %v3509 = vunpack.c.l.b16 %v3260
    %v3510 = vunpack.c.h.b16 %v3260
    %v3511 = vunpack.c.l.b16 %v3261
    %v3512 = vunpack.c.h.b16 %v3261
    %v3513 = vunpack.c.l.b16 %v3262
    %v3514 = vunpack.c.h.b16 %v3262
    %v3515 = vunpack.c.l.b16 %v3263
    %v3516 = vunpack.c.h.b16 %v3263
    %v3517 = vunpack.c.l.b16 %v3264
    %v3518 = vunpack.c.h.b16 %v3264
    %v3519 = vpack.c.b16 %v3395, %v3391
    %v3520 = vpack.c.b16 %v3396, %v3392
    %v3521 = vpack.c.b16 %v3397, %v3393
    %v3522 = vpack.c.b16 %v3398, %v3394
    %v3523 = vpack.c.b16 %v3403, %v3399
    %v3524 = vpack.c.b16 %v3404, %v3400
    %v3525 = vpack.c.b16 %v3405, %v3401
    %v3526 = vpack.c.b16 %v3406, %v3402
    %v3527 = vpack.c.b16 %v3411, %v3407
    %v3528 = vpack.c.b16 %v3412, %v3408
    %v3529 = vpack.c.b16 %v3413, %v3409
    %v3530 = vpack.c.b16 %v3414, %v3410
    %v3531 = vpack.c.b16 %v3419, %v3415
    %v3532 = vpack.c.b16 %v3420, %v3416
    %v3533 = vpack.c.b16 %v3421, %v3417
    %v3534 = vpack.c.b16 %v3422, %v3418
    %v3535 = vpack.c.b16 %v3427, %v3423
    %v3536 = vpack.c.b16 %v3428, %v3424
    %v3537 = vpack.c.b16 %v3429, %v3425
    %v3538 = vpack.c.b16 %v3430, %v3426
    %v3539 = vpack.c.b16 %v3435, %v3431
    %v3540 = vpack.c.b16 %v3436, %v3432
    %v3541 = vpack.c.b16 %v3437, %v3433
    %v3542 = vpack.c.b16 %v3438, %v3434
    %v3543 = vpack.c.b16 %v3443, %v3439
    %v3544 = vpack.c.b16 %v3444, %v3440
    %v3545 = vpack.c.b16 %v3445, %v3441
    %v3546 = vpack.c.b16 %v3446, %v3442
    %v3547 = vpack.c.b16 %v3451, %v3447
    %v3548 = vpack.c.b16 %v3452, %v3448
    %v3549 = vpack.c.b16 %v3453, %v3449
    %v3550 = vpack.c.b16 %v3454, %v3450
    %v3551 = vpack.c.b16 %v3459, %v3455
    %v3552 = vpack.c.b16 %v3460, %v3456
    %v3553 = vpack.c.b16 %v3461, %v3457
    %v3554 = vpack.c.b16 %v3462, %v3458
    %v3555 = vpack.c.b16 %v3467, %v3463
    %v3556 = vpack.c.b16 %v3468, %v3464
    %v3557 = vpack.c.b16 %v3469, %v3465
    %v3558 = vpack.c.b16 %v3470, %v3466
    %v3559 = vpack.c.b16 %v3475, %v3471
    %v3560 = vpack.c.b16 %v3476, %v3472
    %v3561 = vpack.c.b16 %v3477, %v3473
    %v3562 = vpack.c.b16 %v3478, %v3474
    %v3563 = vpack.c.b16 %v3483, %v3479
    %v3564 = vpack.c.b16 %v3484, %v3480
    %v3565 = vpack.c.b16 %v3485, %v3481
    %v3566 = vpack.c.b16 %v3486, %v3482
    %v3567 = vpack.c.b16 %v3491, %v3487
    %v3568 = vpack.c.b16 %v3492, %v3488
    %v3569 = vpack.c.b16 %v3493, %v3489
    %v3570 = vpack.c.b16 %v3494, %v3490
    %v3571 = vpack.c.b16 %v3499, %v3495
    %v3572 = vpack.c.b16 %v3500, %v3496
    %v3573 = vpack.c.b16 %v3501, %v3497
    %v3574 = vpack.c.b16 %v3502, %v3498
    %v3575 = vpack.c.b16 %v3507, %v3503
    %v3576 = vpack.c.b16 %v3508, %v3504
    %v3577 = vpack.c.b16 %v3509, %v3505
    %v3578 = vpack.c.b16 %v3510, %v3506
    %v3579 = vpack.c.b16 %v3515, %v3511
    %v3580 = vpack.c.b16 %v3516, %v3512
    %v3581 = vpack.c.b16 %v3517, %v3513
    %v3582 = vpack.c.b16 %v3518, %v3514
    %3647 = vmatprep.subr.bf16.mxu0 %v3520
    %3648 = vmatpush1.bf16.msra.mxu0 %v3519
    %3649 = vmatprep.subr.bf16.mxu0 %v3524
    %3650 = vmatpush1.bf16.msra.mxu0 %v3523
    %3651 = vmatprep.subr.bf16.mxu0 %v3528
    %3652 = vmatpush1.bf16.msra.mxu0 %v3527
    %3653 = vmatprep.subr.bf16.mxu0 %v3532
    %3654 = vmatpush1.bf16.msra.mxu0 %v3531
    %3655 = vmatprep.subr.bf16.mxu0 %v3536
    %3656 = vmatpush1.bf16.msra.mxu0 %v3535
    %3657 = vmatprep.subr.bf16.mxu0 %v3540
    %3658 = vmatpush1.bf16.msra.mxu0 %v3539
    %3659 = vmatprep.subr.bf16.mxu0 %v3544
    %3660 = vmatpush1.bf16.msra.mxu0 %v3543
    %3661 = vmatprep.subr.bf16.mxu0 %v3548
    %3662 = vmatpush1.bf16.msra.mxu0 %v3547
    %3663 = vmatprep.subr.bf16.mxu0 %v3552
    %3664 = vmatpush1.bf16.msra.mxu0 %v3551
    %3665 = vmatprep.subr.bf16.mxu0 %v3556
    %3666 = vmatpush1.bf16.msra.mxu0 %v3555
    %3667 = vmatprep.subr.bf16.mxu0 %v3560
    %3668 = vmatpush1.bf16.msra.mxu0 %v3559
    %3669 = vmatprep.subr.bf16.mxu0 %v3564
    %3670 = vmatpush1.bf16.msra.mxu0 %v3563
    %3671 = vmatprep.subr.bf16.mxu0 %v3568
    %3672 = vmatpush1.bf16.msra.mxu0 %v3567
    %3673 = vmatprep.subr.bf16.mxu0 %v3572
    %3674 = vmatpush1.bf16.msra.mxu0 %v3571
    %3675 = vmatprep.subr.bf16.mxu0 %v3576
    %3676 = vmatpush1.bf16.msra.mxu0 %v3575
    %3677 = vmatprep.subr.bf16.mxu0 %v3580
    %3678 = vmatpush1.bf16.msra.mxu0 %v3579
    %3679 = vmatprep.mubr.bf16.mxu0 %v3312
    %3680 = vmatmul.mubr.bf16.gmra.mrb[0].mxu0 %v3311
    %v3681 = vpop.f32.mrb[0].mxu0
    %v3682 = vadd.f32 %v3270, %v3681
    %v3683 = vpop.f32.mrb[0].mxu0
    %v3684 = vadd.f32 %v3274, %v3683
    %v3685 = vpop.f32.mrb[0].mxu0
    %v3686 = vadd.f32 %v3270, %v3685
    %v3687 = vpop.f32.mrb[0].mxu0
    %v3688 = vadd.f32 %v3274, %v3687
    %3689 = vmatprep.mubr.bf16.mxu0 %v3314
    %3690 = vmatmul.mubr.bf16.gmra.mrb[0].mxu0 %v3313
    %v3691 = vpop.f32.mrb[0].mxu0
    %v3692 = vadd.f32 %v3270, %v3691
    %v3693 = vpop.f32.mrb[0].mxu0
    %v3694 = vadd.f32 %v3274, %v3693
    %v3695 = vpop.f32.mrb[0].mxu0
    %v3696 = vadd.f32 %v3270, %v3695
    %v3697 = vpop.f32.mrb[0].mxu0
    %v3698 = vadd.f32 %v3274, %v3697
    %3699 = vmatprep.mubr.bf16.mxu0 %v3316
    %3700 = vmatmul.mubr.bf16.gmra.mrb[0].mxu0 %v3315
    %v3701 = vpop.f32.mrb[0].mxu0
    %v3702 = vadd.f32 %v3270, %v3701
    %v3703 = vpop.f32.mrb[0].mxu0
    %v3704 = vadd.f32 %v3274, %v3703
    %v3705 = vpop.f32.mrb[0].mxu0
    %v3706 = vadd.f32 %v3270, %v3705
    %v3707 = vpop.f32.mrb[0].mxu0
    %v3708 = vadd.f32 %v3274, %v3707
    %3709 = vmatprep.mubr.bf16.mxu0 %v3318
    %3710 = vmatmul.mubr.bf16.gmra.mrb[0].mxu0 %v3317
    %v3711 = vpop.f32.mrb[0].mxu0
    %v3712 = vadd.f32 %v3270, %v3711
    %v3713 = vpop.f32.mrb[0].mxu0
    %v3714 = vadd.f32 %v3274, %v3713
    %v3715 = vpop.f32.mrb[0].mxu0
    %v3716 = vadd.f32 %v3270, %v3715
    %v3717 = vpop.f32.mrb[0].mxu0
    %v3718 = vadd.f32 %v3274, %v3717
    %3719 = vdwg.mxu0
    %3720 = vmatprep.subr.bf16.mxu0 %v3522
    %3721 = vmatpush1.bf16.msra.mxu0 %v3521
    %3722 = vmatprep.subr.bf16.mxu0 %v3526
    %3723 = vmatpush1.bf16.msra.mxu0 %v3525
    %3724 = vmatprep.subr.bf16.mxu0 %v3530
    %3725 = vmatpush1.bf16.msra.mxu0 %v3529
    %3726 = vmatprep.subr.bf16.mxu0 %v3534
    %3727 = vmatpush1.bf16.msra.mxu0 %v3533
    %3728 = vmatprep.subr.bf16.mxu0 %v3538
    %3729 = vmatpush1.bf16.msra.mxu0 %v3537
    %3730 = vmatprep.subr.bf16.mxu0 %v3542
    %3731 = vmatpush1.bf16.msra.mxu0 %v3541
    %3732 = vmatprep.subr.bf16.mxu0 %v3546
    %3733 = vmatpush1.bf16.msra.mxu0 %v3545
    %3734 = vmatprep.subr.bf16.mxu0 %v3550
    %3735 = vmatpush1.bf16.msra.mxu0 %v3549
    %3736 = vmatprep.subr.bf16.mxu0 %v3554
    %3737 = vmatpush1.bf16.msra.mxu0 %v3553
    %3738 = vmatprep.subr.bf16.mxu0 %v3558
    %3739 = vmatpush1.bf16.msra.mxu0 %v3557
    %3740 = vmatprep.subr.bf16.mxu0 %v3562
    %3741 = vmatpush1.bf16.msra.mxu0 %v3561
    %3742 = vmatprep.subr.bf16.mxu0 %v3566
    %3743 = vmatpush1.bf16.msra.mxu0 %v3565
    %3744 = vmatprep.subr.bf16.mxu0 %v3570
    %3745 = vmatpush1.bf16.msra.mxu0 %v3569
    %3746 = vmatprep.subr.bf16.mxu0 %v3574
    %3747 = vmatpush1.bf16.msra.mxu0 %v3573
    %3748 = vmatprep.subr.bf16.mxu0 %v3578
    %3749 = vmatpush1.bf16.msra.mxu0 %v3577
    %3750 = vmatprep.subr.bf16.mxu0 %v3582
    %3751 = vmatpush1.bf16.msra.mxu0 %v3581
    %3752 = vmatprep.mubr.bf16.mxu0 %v3312
    %3753 = vmatmul.mubr.bf16.gmra.mrb[0].mxu0 %v3311
    %v3754 = vpop.f32.mrb[0].mxu0
    %v3755 = vadd.f32 %v3278, %v3754
    %v3756 = vpop.f32.mrb[0].mxu0
    %v3757 = vadd.f32 %v3282, %v3756
    %v3758 = vpop.f32.mrb[0].mxu0
    %v3759 = vadd.f32 %v3278, %v3758
    %v3760 = vpop.f32.mrb[0].mxu0
    %v3761 = vadd.f32 %v3282, %v3760
    %3762 = vmatprep.mubr.bf16.mxu0 %v3314
    %3763 = vmatmul.mubr.bf16.gmra.mrb[0].mxu0 %v3313
    %v3764 = vpop.f32.mrb[0].mxu0
    %v3765 = vadd.f32 %v3278, %v3764
    %v3766 = vpop.f32.mrb[0].mxu0
    %v3767 = vadd.f32 %v3282, %v3766
    %v3768 = vpop.f32.mrb[0].mxu0
    %v3769 = vadd.f32 %v3278, %v3768
    %v3770 = vpop.f32.mrb[0].mxu0
    %v3771 = vadd.f32 %v3282, %v3770
    %3772 = vmatprep.mubr.bf16.mxu0 %v3316
    %3773 = vmatmul.mubr.bf16.gmra.mrb[0].mxu0 %v3315
    %v3774 = vpop.f32.mrb[0].mxu0
    %v3775 = vadd.f32 %v3278, %v3774
    %v3776 = vpop.f32.mrb[0].mxu0
    %v3777 = vadd.f32 %v3282, %v3776
    %v3778 = vpop.f32.mrb[0].mxu0
    %v3779 = vadd.f32 %v3278, %v3778
    %v3780 = vpop.f32.mrb[0].mxu0
    %v3781 = vadd.f32 %v3282, %v3780
    %3782 = vmatprep.mubr.bf16.mxu0 %v3318
    %3783 = vmatmul.mubr.bf16.gmra.mrb[0].mxu0 %v3317
    %v3784 = vpop.f32.mrb[0].mxu0
    %v3785 = vadd.f32 %v3278, %v3784
    %v3786 = vpop.f32.mrb[0].mxu0
    %v3787 = vadd.f32 %v3282, %v3786
    %v3788 = vpop.f32.mrb[0].mxu0
    %v3789 = vadd.f32 %v3278, %v3788
    %v3790 = vpop.f32.mrb[0].mxu0
    %v3791 = vadd.f32 %v3282, %v3790
    %3792 = vdwg.mxu0
    %3793 = vst [vmem:[#allocation2] sm:$0xff] %v3682
    %3794 = vst [vmem:[#allocation2 + $0x8] sm:$0xff] %v3684
    %3795 = vst [vmem:[#allocation2 + $0x10] sm:$0xff] %v3755
    %3796 = vst [vmem:[#allocation2 + $0x18] sm:$0xff] %v3757
    %3797 = vst [vmem:[#allocation2 + $0x20] sm:$0xff] %v3686
    %3798 = vst [vmem:[#allocation2 + $0x28] sm:$0xff] %v3688
    %3799 = vst [vmem:[#allocation2 + $0x30] sm:$0xff] %v3759
    %3800 = vst [vmem:[#allocation2 + $0x38] sm:$0xff] %v3761
    %3801 = vst [vmem:[#allocation2 + $0x40] sm:$0xff] %v3692
    %3802 = vst [vmem:[#allocation2 + $0x48] sm:$0xff] %v3694
    %3803 = vst [vmem:[#allocation2 + $0x50] sm:$0xff] %v3765
    %3804 = vst [vmem:[#allocation2 + $0x58] sm:$0xff] %v3767
    %3805 = vst [vmem:[#allocation2 + $0x60] sm:$0xff] %v3696
    %3806 = vst [vmem:[#allocation2 + $0x68] sm:$0xff] %v3698
    %3807 = vst [vmem:[#allocation2 + $0x70] sm:$0xff] %v3769
    %3808 = vst [vmem:[#allocation2 + $0x78] sm:$0xff] %v3771
    %3809 = vst [vmem:[#allocation2 + $0x80] sm:$0xff] %v3702
    %3810 = vst [vmem:[#allocation2 + $0x88] sm:$0xff] %v3704
    %3811 = vst [vmem:[#allocation2 + $0x90] sm:$0xff] %v3775
    %3812 = vst [vmem:[#allocation2 + $0x98] sm:$0xff] %v3777
    %3813 = vst [vmem:[#allocation2 + $0xa0] sm:$0xff] %v3706
    %3814 = vst [vmem:[#allocation2 + $0xa8] sm:$0xff] %v3708
    %3815 = vst [vmem:[#allocation2 + $0xb0] sm:$0xff] %v3779
    %3816 = vst [vmem:[#allocation2 + $0xb8] sm:$0xff] %v3781
    %3817 = vst [vmem:[#allocation2 + $0xc0] sm:$0xff] %v3712
    %3818 = vst [vmem:[#allocation2 + $0xc8] sm:$0xff] %v3714
    %3819 = vst [vmem:[#allocation2 + $0xd0] sm:$0xff] %v3785
    %3820 = vst [vmem:[#allocation2 + $0xd8] sm:$0xff] %v3787
    %3821 = vst [vmem:[#allocation2 + $0xe0] sm:$0xff] %v3716
    %3822 = vst [vmem:[#allocation2 + $0xe8] sm:$0xff] %v3718
    %3823 = vst [vmem:[#allocation2 + $0xf0] sm:$0xff] %v3789
    %3824 = vst [vmem:[#allocation2 + $0xf8] sm:$0xff] %v3791
    %v3825 = vld [vmem:[#allocation18] sm:$0xff]
    %v3826 = vld [vmem:[#allocation18 + $0x8] sm:$0xff]
    %v3827 = vld [vmem:[#allocation18 + $0x10] sm:$0xff]
    %v3828 = vld [vmem:[#allocation18 + $0x18] sm:$0xff]
    %v3829 = vld [vmem:[#allocation18 + $0x20] sm:$0xff]
    %v3830 = vld [vmem:[#allocation18 + $0x28] sm:$0xff]
    %v3831 = vld [vmem:[#allocation18 + $0x30] sm:$0xff]
    %v3832 = vld [vmem:[#allocation18 + $0x38] sm:$0xff]
    %v3833 = vld [vmem:[#allocation18 + $0x40] sm:$0xff]
    %v3834 = vld [vmem:[#allocation18 + $0x48] sm:$0xff]
    %v3835 = vld [vmem:[#allocation18 + $0x50] sm:$0xff]
    %v3836 = vld [vmem:[#allocation18 + $0x58] sm:$0xff]
    %v3837 = vld [vmem:[#allocation18 + $0x60] sm:$0xff]
    %v3838 = vld [vmem:[#allocation18 + $0x68] sm:$0xff]
    %v3839 = vld [vmem:[#allocation18 + $0x70] sm:$0xff]
    %v3840 = vld [vmem:[#allocation18 + $0x78] sm:$0xff]
    %v3841 = vld [vmem:[#allocation18 + $0x80] sm:$0xff]
    %v3842 = vld [vmem:[#allocation18 + $0x88] sm:$0xff]
    %v3843 = vld [vmem:[#allocation18 + $0x90] sm:$0xff]
    %v3844 = vld [vmem:[#allocation18 + $0x98] sm:$0xff]
    %v3845 = vld [vmem:[#allocation18 + $0xa0] sm:$0xff]
    %v3846 = vld [vmem:[#allocation18 + $0xa8] sm:$0xff]
    %v3847 = vld [vmem:[#allocation18 + $0xb0] sm:$0xff]
    %v3848 = vld [vmem:[#allocation18 + $0xb8] sm:$0xff]
    %v3849 = vld [vmem:[#allocation18 + $0xc0] sm:$0xff]
    %v3850 = vld [vmem:[#allocation18 + $0xc8] sm:$0xff]
    %v3851 = vld [vmem:[#allocation18 + $0xd0] sm:$0xff]
    %v3852 = vld [vmem:[#allocation18 + $0xd8] sm:$0xff]
    %v3853 = vld [vmem:[#allocation18 + $0xe0] sm:$0xff]
    %v3854 = vld [vmem:[#allocation18 + $0xe8] sm:$0xff]
    %v3855 = vld [vmem:[#allocation18 + $0xf0] sm:$0xff]
    %v3856 = vld [vmem:[#allocation18 + $0xf8] sm:$0xff]
    %v3857 = vld [vmem:[#allocation18 + $0x100] sm:$0xff]
    %v3858 = vld [vmem:[#allocation18 + $0x108] sm:$0xff]
    %v3859 = vld [vmem:[#allocation18 + $0x110] sm:$0xff]
    %v3860 = vld [vmem:[#allocation18 + $0x118] sm:$0xff]
    %v3861 = vld [vmem:[#allocation18 + $0x120] sm:$0xff]
    %v3862 = vld [vmem:[#allocation18 + $0x128] sm:$0xff]
    %v3863 = vld [vmem:[#allocation18 + $0x130] sm:$0xff]
    %v3864 = vld [vmem:[#allocation18 + $0x138] sm:$0xff]
    %v3865 = vld [vmem:[#allocation18 + $0x140] sm:$0xff]
    %v3866 = vld [vmem:[#allocation18 + $0x148] sm:$0xff]
    %v3867 = vld [vmem:[#allocation18 + $0x150] sm:$0xff]
    %v3868 = vld [vmem:[#allocation18 + $0x158] sm:$0xff]
    %v3869 = vld [vmem:[#allocation18 + $0x160] sm:$0xff]
    %v3870 = vld [vmem:[#allocation18 + $0x168] sm:$0xff]
    %v3871 = vld [vmem:[#allocation18 + $0x170] sm:$0xff]
    %v3872 = vld [vmem:[#allocation18 + $0x178] sm:$0xff]
    %v3873 = vld [vmem:[#allocation18 + $0x180] sm:$0xff]
    %v3874 = vld [vmem:[#allocation18 + $0x188] sm:$0xff]
    %v3875 = vld [vmem:[#allocation18 + $0x190] sm:$0xff]
    %v3876 = vld [vmem:[#allocation18 + $0x198] sm:$0xff]
    %v3877 = vld [vmem:[#allocation18 + $0x1a0] sm:$0xff]
    %v3878 = vld [vmem:[#allocation18 + $0x1a8] sm:$0xff]
    %v3879 = vld [vmem:[#allocation18 + $0x1b0] sm:$0xff]
    %v3880 = vld [vmem:[#allocation18 + $0x1b8] sm:$0xff]
    %v3881 = vld [vmem:[#allocation18 + $0x1c0] sm:$0xff]
    %v3882 = vld [vmem:[#allocation18 + $0x1c8] sm:$0xff]
    %v3883 = vld [vmem:[#allocation18 + $0x1d0] sm:$0xff]
    %v3884 = vld [vmem:[#allocation18 + $0x1d8] sm:$0xff]
    %v3885 = vld [vmem:[#allocation18 + $0x1e0] sm:$0xff]
    %v3886 = vld [vmem:[#allocation18 + $0x1e8] sm:$0xff]
    %v3887 = vld [vmem:[#allocation18 + $0x1f0] sm:$0xff]
    %v3888 = vld [vmem:[#allocation18 + $0x1f8] sm:$0xff]
    %v3889 = vld [vmem:[#allocation21] sm:$0xf]
    %v3891 = vlaneseq
    %v3892 = vshrl.u32 %v3891, 7
    %v3893 = vsub.s32 0, %v3892
    %v3894 = vrot.slane %v3889, %v3893
    %v3895 = vlaneseq
    %v3896 = vshrl.u32 %v3895, 7
    %v3897 = vsub.s32 1, %v3896
    %v3898 = vrot.slane %v3889, %v3897
    %v3899 = vlaneseq
    %v3900 = vshrl.u32 %v3899, 7
    %v3901 = vsub.s32 2, %v3900
    %v3902 = vrot.slane %v3889, %v3901
    %v3903 = vlaneseq
    %v3904 = vshrl.u32 %v3903, 7
    %v3905 = vsub.s32 3, %v3904
    %v3906 = vrot.slane %v3889, %v3905
    %v3975 = vunpack.c.l.b16 %v3825
    %v3976 = vunpack.c.h.b16 %v3825
    %v3977 = vunpack.c.l.b16 %v3826
    %v3978 = vunpack.c.h.b16 %v3826
    %v3979 = vunpack.c.l.b16 %v3827
    %v3980 = vunpack.c.h.b16 %v3827
    %v3981 = vunpack.c.l.b16 %v3828
    %v3982 = vunpack.c.h.b16 %v3828
    %v3983 = vunpack.c.l.b16 %v3829
    %v3984 = vunpack.c.h.b16 %v3829
    %v3985 = vunpack.c.l.b16 %v3830
    %v3986 = vunpack.c.h.b16 %v3830
    %v3987 = vunpack.c.l.b16 %v3831
    %v3988 = vunpack.c.h.b16 %v3831
    %v3989 = vunpack.c.l.b16 %v3832
    %v3990 = vunpack.c.h.b16 %v3832
    %v3991 = vunpack.c.l.b16 %v3833
    %v3992 = vunpack.c.h.b16 %v3833
    %v3993 = vunpack.c.l.b16 %v3834
    %v3994 = vunpack.c.h.b16 %v3834
    %v3995 = vunpack.c.l.b16 %v3835
    %v3996 = vunpack.c.h.b16 %v3835
    %v3997 = vunpack.c.l.b16 %v3836
    %v3998 = vunpack.c.h.b16 %v3836
    %v3999 = vunpack.c.l.b16 %v3837
    %v4000 = vunpack.c.h.b16 %v3837
    %v4001 = vunpack.c.l.b16 %v3838
    %v4002 = vunpack.c.h.b16 %v3838
    %v4003 = vunpack.c.l.b16 %v3839
    %v4004 = vunpack.c.h.b16 %v3839
    %v4005 = vunpack.c.l.b16 %v3840
    %v4006 = vunpack.c.h.b16 %v3840
    %v4007 = vunpack.c.l.b16 %v3841
    %v4008 = vunpack.c.h.b16 %v3841
    %v4009 = vunpack.c.l.b16 %v3842
    %v4010 = vunpack.c.h.b16 %v3842
    %v4011 = vunpack.c.l.b16 %v3843
    %v4012 = vunpack.c.h.b16 %v3843
    %v4013 = vunpack.c.l.b16 %v3844
    %v4014 = vunpack.c.h.b16 %v3844
    %v4015 = vunpack.c.l.b16 %v3845
    %v4016 = vunpack.c.h.b16 %v3845
    %v4017 = vunpack.c.l.b16 %v3846
    %v4018 = vunpack.c.h.b16 %v3846
    %v4019 = vunpack.c.l.b16 %v3847
    %v4020 = vunpack.c.h.b16 %v3847
    %v4021 = vunpack.c.l.b16 %v3848
    %v4022 = vunpack.c.h.b16 %v3848
    %v4023 = vunpack.c.l.b16 %v3849
    %v4024 = vunpack.c.h.b16 %v3849
    %v4025 = vunpack.c.l.b16 %v3850
    %v4026 = vunpack.c.h.b16 %v3850
    %v4027 = vunpack.c.l.b16 %v3851
    %v4028 = vunpack.c.h.b16 %v3851
    %v4029 = vunpack.c.l.b16 %v3852
    %v4030 = vunpack.c.h.b16 %v3852
    %v4031 = vunpack.c.l.b16 %v3853
    %v4032 = vunpack.c.h.b16 %v3853
    %v4033 = vunpack.c.l.b16 %v3854
    %v4034 = vunpack.c.h.b16 %v3854
    %v4035 = vunpack.c.l.b16 %v3855
    %v4036 = vunpack.c.h.b16 %v3855
    %v4037 = vunpack.c.l.b16 %v3856
    %v4038 = vunpack.c.h.b16 %v3856
    %v4039 = vunpack.c.l.b16 %v3857
    %v4040 = vunpack.c.h.b16 %v3857
    %v4041 = vunpack.c.l.b16 %v3858
    %v4042 = vunpack.c.h.b16 %v3858
    %v4043 = vunpack.c.l.b16 %v3859
    %v4044 = vunpack.c.h.b16 %v3859
    %v4045 = vunpack.c.l.b16 %v3860
    %v4046 = vunpack.c.h.b16 %v3860
    %v4047 = vunpack.c.l.b16 %v3861
    %v4048 = vunpack.c.h.b16 %v3861
    %v4049 = vunpack.c.l.b16 %v3862
    %v4050 = vunpack.c.h.b16 %v3862
    %v4051 = vunpack.c.l.b16 %v3863
    %v4052 = vunpack.c.h.b16 %v3863
    %v4053 = vunpack.c.l.b16 %v3864
    %v4054 = vunpack.c.h.b16 %v3864
    %v4055 = vunpack.c.l.b16 %v3865
    %v4056 = vunpack.c.h.b16 %v3865
    %v4057 = vunpack.c.l.b16 %v3866
    %v4058 = vunpack.c.h.b16 %v3866
    %v4059 = vunpack.c.l.b16 %v3867
    %v4060 = vunpack.c.h.b16 %v3867
    %v4061 = vunpack.c.l.b16 %v3868
    %v4062 = vunpack.c.h.b16 %v3868
    %v4063 = vunpack.c.l.b16 %v3869
    %v4064 = vunpack.c.h.b16 %v3869
    %v4065 = vunpack.c.l.b16 %v3870
    %v4066 = vunpack.c.h.b16 %v3870
    %v4067 = vunpack.c.l.b16 %v3871
    %v4068 = vunpack.c.h.b16 %v3871
    %v4069 = vunpack.c.l.b16 %v3872
    %v4070 = vunpack.c.h.b16 %v3872
    %v4071 = vunpack.c.l.b16 %v3873
    %v4072 = vunpack.c.h.b16 %v3873
    %v4073 = vunpack.c.l.b16 %v3874
    %v4074 = vunpack.c.h.b16 %v3874
    %v4075 = vunpack.c.l.b16 %v3875
    %v4076 = vunpack.c.h.b16 %v3875
    %v4077 = vunpack.c.l.b16 %v3876
    %v4078 = vunpack.c.h.b16 %v3876
    %v4079 = vunpack.c.l.b16 %v3877
    %v4080 = vunpack.c.h.b16 %v3877
    %v4081 = vunpack.c.l.b16 %v3878
    %v4082 = vunpack.c.h.b16 %v3878
    %v4083 = vunpack.c.l.b16 %v3879
    %v4084 = vunpack.c.h.b16 %v3879
    %v4085 = vunpack.c.l.b16 %v3880
    %v4086 = vunpack.c.h.b16 %v3880
    %v4087 = vunpack.c.l.b16 %v3881
    %v4088 = vunpack.c.h.b16 %v3881
    %v4089 = vunpack.c.l.b16 %v3882
    %v4090 = vunpack.c.h.b16 %v3882
    %v4091 = vunpack.c.l.b16 %v3883
    %v4092 = vunpack.c.h.b16 %v3883
    %v4093 = vunpack.c.l.b16 %v3884
    %v4094 = vunpack.c.h.b16 %v3884
    %v4095 = vunpack.c.l.b16 %v3885
    %v4096 = vunpack.c.h.b16 %v3885
    %v4097 = vunpack.c.l.b16 %v3886
    %v4098 = vunpack.c.h.b16 %v3886
    %v4099 = vunpack.c.l.b16 %v3887
    %v4100 = vunpack.c.h.b16 %v3887
    %v4101 = vunpack.c.l.b16 %v3888
    %v4102 = vunpack.c.h.b16 %v3888
    %v4103 = vpack.c.b16 %v3979, %v3975
    %v4104 = vpack.c.b16 %v3980, %v3976
    %v4105 = vpack.c.b16 %v3981, %v3977
    %v4106 = vpack.c.b16 %v3982, %v3978
    %v4107 = vpack.c.b16 %v3987, %v3983
    %v4108 = vpack.c.b16 %v3988, %v3984
    %v4109 = vpack.c.b16 %v3989, %v3985
    %v4110 = vpack.c.b16 %v3990, %v3986
    %v4111 = vpack.c.b16 %v3995, %v3991
    %v4112 = vpack.c.b16 %v3996, %v3992
    %v4113 = vpack.c.b16 %v3997, %v3993
    %v4114 = vpack.c.b16 %v3998, %v3994
    %v4115 = vpack.c.b16 %v4003, %v3999
    %v4116 = vpack.c.b16 %v4004, %v4000
    %v4117 = vpack.c.b16 %v4005, %v4001
    %v4118 = vpack.c.b16 %v4006, %v4002
    %v4119 = vpack.c.b16 %v4011, %v4007
    %v4120 = vpack.c.b16 %v4012, %v4008
    %v4121 = vpack.c.b16 %v4013, %v4009
    %v4122 = vpack.c.b16 %v4014, %v4010
    %v4123 = vpack.c.b16 %v4019, %v4015
    %v4124 = vpack.c.b16 %v4020, %v4016
    %v4125 = vpack.c.b16 %v4021, %v4017
    %v4126 = vpack.c.b16 %v4022, %v4018
    %v4127 = vpack.c.b16 %v4027, %v4023
    %v4128 = vpack.c.b16 %v4028, %v4024
    %v4129 = vpack.c.b16 %v4029, %v4025
    %v4130 = vpack.c.b16 %v4030, %v4026
    %v4131 = vpack.c.b16 %v4035, %v4031
    %v4132 = vpack.c.b16 %v4036, %v4032
    %v4133 = vpack.c.b16 %v4037, %v4033
    %v4134 = vpack.c.b16 %v4038, %v4034
    %v4135 = vpack.c.b16 %v4043, %v4039
    %v4136 = vpack.c.b16 %v4044, %v4040
    %v4137 = vpack.c.b16 %v4045, %v4041
    %v4138 = vpack.c.b16 %v4046, %v4042
    %v4139 = vpack.c.b16 %v4051, %v4047
    %v4140 = vpack.c.b16 %v4052, %v4048
    %v4141 = vpack.c.b16 %v4053, %v4049
    %v4142 = vpack.c.b16 %v4054, %v4050
    %v4143 = vpack.c.b16 %v4059, %v4055
    %v4144 = vpack.c.b16 %v4060, %v4056
    %v4145 = vpack.c.b16 %v4061, %v4057
    %v4146 = vpack.c.b16 %v4062, %v4058
    %v4147 = vpack.c.b16 %v4067, %v4063
    %v4148 = vpack.c.b16 %v4068, %v4064
    %v4149 = vpack.c.b16 %v4069, %v4065
    %v4150 = vpack.c.b16 %v4070, %v4066
    %v4151 = vpack.c.b16 %v4075, %v4071
    %v4152 = vpack.c.b16 %v4076, %v4072
    %v4153 = vpack.c.b16 %v4077, %v4073
    %v4154 = vpack.c.b16 %v4078, %v4074
    %v4155 = vpack.c.b16 %v4083, %v4079
    %v4156 = vpack.c.b16 %v4084, %v4080
    %v4157 = vpack.c.b16 %v4085, %v4081
    %v4158 = vpack.c.b16 %v4086, %v4082
    %v4159 = vpack.c.b16 %v4091, %v4087
    %v4160 = vpack.c.b16 %v4092, %v4088
    %v4161 = vpack.c.b16 %v4093, %v4089
    %v4162 = vpack.c.b16 %v4094, %v4090
    %v4163 = vpack.c.b16 %v4099, %v4095
    %v4164 = vpack.c.b16 %v4100, %v4096
    %v4165 = vpack.c.b16 %v4101, %v4097
    %v4166 = vpack.c.b16 %v4102, %v4098
    %4231 = vmatprep.subr.bf16.mxu0 %v4104
    %4232 = vmatpush1.bf16.msra.mxu0 %v4103
    %4233 = vmatprep.subr.bf16.mxu0 %v4108
    %4234 = vmatpush1.bf16.msra.mxu0 %v4107
    %4235 = vmatprep.subr.bf16.mxu0 %v4112
    %4236 = vmatpush1.bf16.msra.mxu0 %v4111
    %4237 = vmatprep.subr.bf16.mxu0 %v4116
    %4238 = vmatpush1.bf16.msra.mxu0 %v4115
    %4239 = vmatprep.subr.bf16.mxu0 %v4120
    %4240 = vmatpush1.bf16.msra.mxu0 %v4119
    %4241 = vmatprep.subr.bf16.mxu0 %v4124
    %4242 = vmatpush1.bf16.msra.mxu0 %v4123
    %4243 = vmatprep.subr.bf16.mxu0 %v4128
    %4244 = vmatpush1.bf16.msra.mxu0 %v4127
    %4245 = vmatprep.subr.bf16.mxu0 %v4132
    %4246 = vmatpush1.bf16.msra.mxu0 %v4131
    %4247 = vmatprep.subr.bf16.mxu0 %v4136
    %4248 = vmatpush1.bf16.msra.mxu0 %v4135
    %4249 = vmatprep.subr.bf16.mxu0 %v4140
    %4250 = vmatpush1.bf16.msra.mxu0 %v4139
    %4251 = vmatprep.subr.bf16.mxu0 %v4144
    %4252 = vmatpush1.bf16.msra.mxu0 %v4143
    %4253 = vmatprep.subr.bf16.mxu0 %v4148
    %4254 = vmatpush1.bf16.msra.mxu0 %v4147
    %4255 = vmatprep.subr.bf16.mxu0 %v4152
    %4256 = vmatpush1.bf16.msra.mxu0 %v4151
    %4257 = vmatprep.subr.bf16.mxu0 %v4156
    %4258 = vmatpush1.bf16.msra.mxu0 %v4155
    %4259 = vmatprep.subr.bf16.mxu0 %v4160
    %4260 = vmatpush1.bf16.msra.mxu0 %v4159
    %4261 = vmatprep.subr.bf16.mxu0 %v4164
    %4262 = vmatpush1.bf16.msra.mxu0 %v4163
    %4263 = vmatprep.mubr.bf16.mxu0 %v3312
    %4264 = vmatmul.mubr.bf16.gmra.mrb[0].mxu0 %v3311
    %v4265 = vpop.f32.mrb[0].mxu0
    %v4266 = vadd.f32 %v3894, %v4265
    %v4267 = vpop.f32.mrb[0].mxu0
    %v4268 = vadd.f32 %v3898, %v4267
    %v4269 = vpop.f32.mrb[0].mxu0
    %v4270 = vadd.f32 %v3894, %v4269
    %v4271 = vpop.f32.mrb[0].mxu0
    %v4272 = vadd.f32 %v3898, %v4271
    %4273 = vmatprep.mubr.bf16.mxu0 %v3314
    %4274 = vmatmul.mubr.bf16.gmra.mrb[0].mxu0 %v3313
    %v4275 = vpop.f32.mrb[0].mxu0
    %v4276 = vadd.f32 %v3894, %v4275
    %v4277 = vpop.f32.mrb[0].mxu0
    %v4278 = vadd.f32 %v3898, %v4277
    %v4279 = vpop.f32.mrb[0].mxu0
    %v4280 = vadd.f32 %v3894, %v4279
    %v4281 = vpop.f32.mrb[0].mxu0
    %v4282 = vadd.f32 %v3898, %v4281
    %4283 = vmatprep.mubr.bf16.mxu0 %v3316
    %4284 = vmatmul.mubr.bf16.gmra.mrb[0].mxu0 %v3315
    %v4285 = vpop.f32.mrb[0].mxu0
    %v4286 = vadd.f32 %v3894, %v4285
    %v4287 = vpop.f32.mrb[0].mxu0
    %v4288 = vadd.f32 %v3898, %v4287
    %v4289 = vpop.f32.mrb[0].mxu0
    %v4290 = vadd.f32 %v3894, %v4289
    %v4291 = vpop.f32.mrb[0].mxu0
    %v4292 = vadd.f32 %v3898, %v4291
    %4293 = vmatprep.mubr.bf16.mxu0 %v3318
    %4294 = vmatmul.mubr.bf16.gmra.mrb[0].mxu0 %v3317
    %v4295 = vpop.f32.mrb[0].mxu0
    %v4296 = vadd.f32 %v3894, %v4295
    %v4297 = vpop.f32.mrb[0].mxu0
    %v4298 = vadd.f32 %v3898, %v4297
    %v4299 = vpop.f32.mrb[0].mxu0
    %v4300 = vadd.f32 %v3894, %v4299
    %v4301 = vpop.f32.mrb[0].mxu0
    %v4302 = vadd.f32 %v3898, %v4301
    %4303 = vdwg.mxu0
    %4304 = vmatprep.subr.bf16.mxu0 %v4106
    %4305 = vmatpush1.bf16.msra.mxu0 %v4105
    %4306 = vmatprep.subr.bf16.mxu0 %v4110
    %4307 = vmatpush1.bf16.msra.mxu0 %v4109
    %4308 = vmatprep.subr.bf16.mxu0 %v4114
    %4309 = vmatpush1.bf16.msra.mxu0 %v4113
    %4310 = vmatprep.subr.bf16.mxu0 %v4118
    %4311 = vmatpush1.bf16.msra.mxu0 %v4117
    %4312 = vmatprep.subr.bf16.mxu0 %v4122
    %4313 = vmatpush1.bf16.msra.mxu0 %v4121
    %4314 = vmatprep.subr.bf16.mxu0 %v4126
    %4315 = vmatpush1.bf16.msra.mxu0 %v4125
    %4316 = vmatprep.subr.bf16.mxu0 %v4130
    %4317 = vmatpush1.bf16.msra.mxu0 %v4129
    %4318 = vmatprep.subr.bf16.mxu0 %v4134
    %4319 = vmatpush1.bf16.msra.mxu0 %v4133
    %4320 = vmatprep.subr.bf16.mxu0 %v4138
    %4321 = vmatpush1.bf16.msra.mxu0 %v4137
    %4322 = vmatprep.subr.bf16.mxu0 %v4142
    %4323 = vmatpush1.bf16.msra.mxu0 %v4141
    %4324 = vmatprep.subr.bf16.mxu0 %v4146
    %4325 = vmatpush1.bf16.msra.mxu0 %v4145
    %4326 = vmatprep.subr.bf16.mxu0 %v4150
    %4327 = vmatpush1.bf16.msra.mxu0 %v4149
    %4328 = vmatprep.subr.bf16.mxu0 %v4154
    %4329 = vmatpush1.bf16.msra.mxu0 %v4153
    %4330 = vmatprep.subr.bf16.mxu0 %v4158
    %4331 = vmatpush1.bf16.msra.mxu0 %v4157
    %4332 = vmatprep.subr.bf16.mxu0 %v4162
    %4333 = vmatpush1.bf16.msra.mxu0 %v4161
    %4334 = vmatprep.subr.bf16.mxu0 %v4166
    %4335 = vmatpush1.bf16.msra.mxu0 %v4165
    %4336 = vmatprep.mubr.bf16.mxu0 %v3312
    %4337 = vmatmul.mubr.bf16.gmra.mrb[0].mxu0 %v3311
    %v4338 = vpop.f32.mrb[0].mxu0
    %v4339 = vadd.f32 %v3902, %v4338
    %v4340 = vpop.f32.mrb[0].mxu0
    %v4341 = vadd.f32 %v3906, %v4340
    %v4342 = vpop.f32.mrb[0].mxu0
    %v4343 = vadd.f32 %v3902, %v4342
    %v4344 = vpop.f32.mrb[0].mxu0
    %v4345 = vadd.f32 %v3906, %v4344
    %4346 = vmatprep.mubr.bf16.mxu0 %v3314
    %4347 = vmatmul.mubr.bf16.gmra.mrb[0].mxu0 %v3313
    %v4348 = vpop.f32.mrb[0].mxu0
    %v4349 = vadd.f32 %v3902, %v4348
    %v4350 = vpop.f32.mrb[0].mxu0
    %v4351 = vadd.f32 %v3906, %v4350
    %v4352 = vpop.f32.mrb[0].mxu0
    %v4353 = vadd.f32 %v3902, %v4352
    %v4354 = vpop.f32.mrb[0].mxu0
    %v4355 = vadd.f32 %v3906, %v4354
    %4356 = vmatprep.mubr.bf16.mxu0 %v3316
    %4357 = vmatmul.mubr.bf16.gmra.mrb[0].mxu0 %v3315
    %v4358 = vpop.f32.mrb[0].mxu0
    %v4359 = vadd.f32 %v3902, %v4358
    %v4360 = vpop.f32.mrb[0].mxu0
    %v4361 = vadd.f32 %v3906, %v4360
    %v4362 = vpop.f32.mrb[0].mxu0
    %v4363 = vadd.f32 %v3902, %v4362
    %v4364 = vpop.f32.mrb[0].mxu0
    %v4365 = vadd.f32 %v3906, %v4364
    %4366 = vmatprep.mubr.bf16.mxu0 %v3318
    %4367 = vmatmul.mubr.bf16.gmra.mrb[0].mxu0 %v3317
    %v4368 = vpop.f32.mrb[0].mxu0
    %v4369 = vadd.f32 %v3902, %v4368
    %v4370 = vpop.f32.mrb[0].mxu0
    %v4371 = vadd.f32 %v3906, %v4370
    %v4372 = vpop.f32.mrb[0].mxu0
    %v4373 = vadd.f32 %v3902, %v4372
    %v4374 = vpop.f32.mrb[0].mxu0
    %v4375 = vadd.f32 %v3906, %v4374
    %4376 = vdwg.mxu0
    %4377 = vst [vmem:[#allocation3] sm:$0xff] %v4266
    %4378 = vst [vmem:[#allocation3 + $0x8] sm:$0xff] %v4268
    %4379 = vst [vmem:[#allocation3 + $0x10] sm:$0xff] %v4339
    %4380 = vst [vmem:[#allocation3 + $0x18] sm:$0xff] %v4341
    %4381 = vst [vmem:[#allocation3 + $0x20] sm:$0xff] %v4270
    %4382 = vst [vmem:[#allocation3 + $0x28] sm:$0xff] %v4272
    %4383 = vst [vmem:[#allocation3 + $0x30] sm:$0xff] %v4343
    %4384 = vst [vmem:[#allocation3 + $0x38] sm:$0xff] %v4345
    %4385 = vst [vmem:[#allocation3 + $0x40] sm:$0xff] %v4276
    %4386 = vst [vmem:[#allocation3 + $0x48] sm:$0xff] %v4278
    %4387 = vst [vmem:[#allocation3 + $0x50] sm:$0xff] %v4349
    %4388 = vst [vmem:[#allocation3 + $0x58] sm:$0xff] %v4351
    %4389 = vst [vmem:[#allocation3 + $0x60] sm:$0xff] %v4280
    %4390 = vst [vmem:[#allocation3 + $0x68] sm:$0xff] %v4282
    %4391 = vst [vmem:[#allocation3 + $0x70] sm:$0xff] %v4353
    %4392 = vst [vmem:[#allocation3 + $0x78] sm:$0xff] %v4355
    %4393 = vst [vmem:[#allocation3 + $0x80] sm:$0xff] %v4286
    %4394 = vst [vmem:[#allocation3 + $0x88] sm:$0xff] %v4288
    %4395 = vst [vmem:[#allocation3 + $0x90] sm:$0xff] %v4359
    %4396 = vst [vmem:[#allocation3 + $0x98] sm:$0xff] %v4361
    %4397 = vst [vmem:[#allocation3 + $0xa0] sm:$0xff] %v4290
    %4398 = vst [vmem:[#allocation3 + $0xa8] sm:$0xff] %v4292
    %4399 = vst [vmem:[#allocation3 + $0xb0] sm:$0xff] %v4363
    %4400 = vst [vmem:[#allocation3 + $0xb8] sm:$0xff] %v4365
    %4401 = vst [vmem:[#allocation3 + $0xc0] sm:$0xff] %v4296
    %4402 = vst [vmem:[#allocation3 + $0xc8] sm:$0xff] %v4298
    %4403 = vst [vmem:[#allocation3 + $0xd0] sm:$0xff] %v4369
    %4404 = vst [vmem:[#allocation3 + $0xd8] sm:$0xff] %v4371
    %4405 = vst [vmem:[#allocation3 + $0xe0] sm:$0xff] %v4300
    %4406 = vst [vmem:[#allocation3 + $0xe8] sm:$0xff] %v4302
    %4407 = vst [vmem:[#allocation3 + $0xf0] sm:$0xff] %v4373
    %4408 = vst [vmem:[#allocation3 + $0xf8] sm:$0xff] %v4375
    %v4409 = vld [vmem:[#allocation15] sm:$0xff]
    %v4410 = vld [vmem:[#allocation15 + $0x8] sm:$0xff]
    %v4411 = vld [vmem:[#allocation15 + $0x10] sm:$0xff]
    %v4412 = vld [vmem:[#allocation15 + $0x18] sm:$0xff]
    %v4413 = vld [vmem:[#allocation15 + $0x20] sm:$0xff]
    %v4414 = vld [vmem:[#allocation15 + $0x28] sm:$0xff]
    %v4415 = vld [vmem:[#allocation15 + $0x30] sm:$0xff]
    %v4416 = vld [vmem:[#allocation15 + $0x38] sm:$0xff]
    %v4417 = vld [vmem:[#allocation15 + $0x40] sm:$0xff]
    %v4418 = vld [vmem:[#allocation15 + $0x48] sm:$0xff]
    %v4419 = vld [vmem:[#allocation15 + $0x50] sm:$0xff]
    %v4420 = vld [vmem:[#allocation15 + $0x58] sm:$0xff]
    %v4421 = vld [vmem:[#allocation15 + $0x60] sm:$0xff]
    %v4422 = vld [vmem:[#allocation15 + $0x68] sm:$0xff]
    %v4423 = vld [vmem:[#allocation15 + $0x70] sm:$0xff]
    %v4424 = vld [vmem:[#allocation15 + $0x78] sm:$0xff]
    %v4425 = vld [vmem:[#allocation15 + $0x80] sm:$0xff]
    %v4426 = vld [vmem:[#allocation15 + $0x88] sm:$0xff]
    %v4427 = vld [vmem:[#allocation15 + $0x90] sm:$0xff]
    %v4428 = vld [vmem:[#allocation15 + $0x98] sm:$0xff]
    %v4429 = vld [vmem:[#allocation15 + $0xa0] sm:$0xff]
    %v4430 = vld [vmem:[#allocation15 + $0xa8] sm:$0xff]
    %v4431 = vld [vmem:[#allocation15 + $0xb0] sm:$0xff]
    %v4432 = vld [vmem:[#allocation15 + $0xb8] sm:$0xff]
    %v4433 = vld [vmem:[#allocation15 + $0xc0] sm:$0xff]
    %v4434 = vld [vmem:[#allocation15 + $0xc8] sm:$0xff]
    %v4435 = vld [vmem:[#allocation15 + $0xd0] sm:$0xff]
    %v4436 = vld [vmem:[#allocation15 + $0xd8] sm:$0xff]
    %v4437 = vld [vmem:[#allocation15 + $0xe0] sm:$0xff]
    %v4438 = vld [vmem:[#allocation15 + $0xe8] sm:$0xff]
    %v4439 = vld [vmem:[#allocation15 + $0xf0] sm:$0xff]
    %v4440 = vld [vmem:[#allocation15 + $0xf8] sm:$0xff]
    %v4441 = vld [vmem:[#allocation19] sm:$0xff]
    %v4442 = vld [vmem:[#allocation19 + $0x8] sm:$0xff]
    %v4443 = vld [vmem:[#allocation19 + $0x10] sm:$0xff]
    %v4444 = vld [vmem:[#allocation19 + $0x18] sm:$0xff]
    %v4445 = vld [vmem:[#allocation19 + $0x20] sm:$0xff]
    %v4446 = vld [vmem:[#allocation19 + $0x28] sm:$0xff]
    %v4447 = vld [vmem:[#allocation19 + $0x30] sm:$0xff]
    %v4448 = vld [vmem:[#allocation19 + $0x38] sm:$0xff]
    %v4449 = vld [vmem:[#allocation19 + $0x40] sm:$0xff]
    %v4450 = vld [vmem:[#allocation19 + $0x48] sm:$0xff]
    %v4451 = vld [vmem:[#allocation19 + $0x50] sm:$0xff]
    %v4452 = vld [vmem:[#allocation19 + $0x58] sm:$0xff]
    %v4453 = vld [vmem:[#allocation19 + $0x60] sm:$0xff]
    %v4454 = vld [vmem:[#allocation19 + $0x68] sm:$0xff]
    %v4455 = vld [vmem:[#allocation19 + $0x70] sm:$0xff]
    %v4456 = vld [vmem:[#allocation19 + $0x78] sm:$0xff]
    %v4457 = vld [vmem:[#allocation19 + $0x80] sm:$0xff]
    %v4458 = vld [vmem:[#allocation19 + $0x88] sm:$0xff]
    %v4459 = vld [vmem:[#allocation19 + $0x90] sm:$0xff]
    %v4460 = vld [vmem:[#allocation19 + $0x98] sm:$0xff]
    %v4461 = vld [vmem:[#allocation19 + $0xa0] sm:$0xff]
    %v4462 = vld [vmem:[#allocation19 + $0xa8] sm:$0xff]
    %v4463 = vld [vmem:[#allocation19 + $0xb0] sm:$0xff]
    %v4464 = vld [vmem:[#allocation19 + $0xb8] sm:$0xff]
    %v4465 = vld [vmem:[#allocation19 + $0xc0] sm:$0xff]
    %v4466 = vld [vmem:[#allocation19 + $0xc8] sm:$0xff]
    %v4467 = vld [vmem:[#allocation19 + $0xd0] sm:$0xff]
    %v4468 = vld [vmem:[#allocation19 + $0xd8] sm:$0xff]
    %v4469 = vld [vmem:[#allocation19 + $0xe0] sm:$0xff]
    %v4470 = vld [vmem:[#allocation19 + $0xe8] sm:$0xff]
    %v4471 = vld [vmem:[#allocation19 + $0xf0] sm:$0xff]
    %v4472 = vld [vmem:[#allocation19 + $0xf8] sm:$0xff]
    %v4473 = vld [vmem:[#allocation2] sm:$0xff]
    %v4474 = vld [vmem:[#allocation2 + $0x8] sm:$0xff]
    %v4475 = vld [vmem:[#allocation2 + $0x10] sm:$0xff]
    %v4476 = vld [vmem:[#allocation2 + $0x18] sm:$0xff]
    %v4509 = vunpack.c.l.b16 %v4409
    %v4510 = vunpack.c.h.b16 %v4409
    %v4511 = vunpack.c.l.b16 %v4410
    %v4512 = vunpack.c.h.b16 %v4410
    %v4513 = vunpack.c.l.b16 %v4411
    %v4514 = vunpack.c.h.b16 %v4411
    %v4515 = vunpack.c.l.b16 %v4412
    %v4516 = vunpack.c.h.b16 %v4412
    %v4517 = vunpack.c.l.b16 %v4413
    %v4518 = vunpack.c.h.b16 %v4413
    %v4519 = vunpack.c.l.b16 %v4414
    %v4520 = vunpack.c.h.b16 %v4414
    %v4521 = vunpack.c.l.b16 %v4415
    %v4522 = vunpack.c.h.b16 %v4415
    %v4523 = vunpack.c.l.b16 %v4416
    %v4524 = vunpack.c.h.b16 %v4416
    %v4525 = vunpack.c.l.b16 %v4417
    %v4526 = vunpack.c.h.b16 %v4417
    %v4527 = vunpack.c.l.b16 %v4418
    %v4528 = vunpack.c.h.b16 %v4418
    %v4529 = vunpack.c.l.b16 %v4419
    %v4530 = vunpack.c.h.b16 %v4419
    %v4531 = vunpack.c.l.b16 %v4420
    %v4532 = vunpack.c.h.b16 %v4420
    %v4533 = vunpack.c.l.b16 %v4421
    %v4534 = vunpack.c.h.b16 %v4421
    %v4535 = vunpack.c.l.b16 %v4422
    %v4536 = vunpack.c.h.b16 %v4422
    %v4537 = vunpack.c.l.b16 %v4423
    %v4538 = vunpack.c.h.b16 %v4423
    %v4539 = vunpack.c.l.b16 %v4424
    %v4540 = vunpack.c.h.b16 %v4424
    %v4541 = vunpack.c.l.b16 %v4425
    %v4542 = vunpack.c.h.b16 %v4425
    %v4543 = vunpack.c.l.b16 %v4426
    %v4544 = vunpack.c.h.b16 %v4426
    %v4545 = vunpack.c.l.b16 %v4427
    %v4546 = vunpack.c.h.b16 %v4427
    %v4547 = vunpack.c.l.b16 %v4428
    %v4548 = vunpack.c.h.b16 %v4428
    %v4549 = vunpack.c.l.b16 %v4429
    %v4550 = vunpack.c.h.b16 %v4429
    %v4551 = vunpack.c.l.b16 %v4430
    %v4552 = vunpack.c.h.b16 %v4430
    %v4553 = vunpack.c.l.b16 %v4431
    %v4554 = vunpack.c.h.b16 %v4431
    %v4555 = vunpack.c.l.b16 %v4432
    %v4556 = vunpack.c.h.b16 %v4432
    %v4557 = vunpack.c.l.b16 %v4433
    %v4558 = vunpack.c.h.b16 %v4433
    %v4559 = vunpack.c.l.b16 %v4434
    %v4560 = vunpack.c.h.b16 %v4434
    %v4561 = vunpack.c.l.b16 %v4435
    %v4562 = vunpack.c.h.b16 %v4435
    %v4563 = vunpack.c.l.b16 %v4436
    %v4564 = vunpack.c.h.b16 %v4436
    %v4565 = vunpack.c.l.b16 %v4437
    %v4566 = vunpack.c.h.b16 %v4437
    %v4567 = vunpack.c.l.b16 %v4438
    %v4568 = vunpack.c.h.b16 %v4438
    %v4569 = vunpack.c.l.b16 %v4439
    %v4570 = vunpack.c.h.b16 %v4439
    %v4571 = vunpack.c.l.b16 %v4440
    %v4572 = vunpack.c.h.b16 %v4440
    %v4573 = vpack.c.b16 %v4513, %v4509
    %v4574 = vpack.c.b16 %v4514, %v4510
    %v4575 = vpack.c.b16 %v4515, %v4511
    %v4576 = vpack.c.b16 %v4516, %v4512
    %v4577 = vpack.c.b16 %v4521, %v4517
    %v4578 = vpack.c.b16 %v4522, %v4518
    %v4579 = vpack.c.b16 %v4523, %v4519
    %v4580 = vpack.c.b16 %v4524, %v4520
    %v4581 = vpack.c.b16 %v4529, %v4525
    %v4582 = vpack.c.b16 %v4530, %v4526
    %v4583 = vpack.c.b16 %v4531, %v4527
    %v4584 = vpack.c.b16 %v4532, %v4528
    %v4585 = vpack.c.b16 %v4537, %v4533
    %v4586 = vpack.c.b16 %v4538, %v4534
    %v4587 = vpack.c.b16 %v4539, %v4535
    %v4588 = vpack.c.b16 %v4540, %v4536
    %v4589 = vpack.c.b16 %v4545, %v4541
    %v4590 = vpack.c.b16 %v4546, %v4542
    %v4591 = vpack.c.b16 %v4547, %v4543
    %v4592 = vpack.c.b16 %v4548, %v4544
    %v4593 = vpack.c.b16 %v4553, %v4549
    %v4594 = vpack.c.b16 %v4554, %v4550
    %v4595 = vpack.c.b16 %v4555, %v4551
    %v4596 = vpack.c.b16 %v4556, %v4552
    %v4597 = vpack.c.b16 %v4561, %v4557
    %v4598 = vpack.c.b16 %v4562, %v4558
    %v4599 = vpack.c.b16 %v4563, %v4559
    %v4600 = vpack.c.b16 %v4564, %v4560
    %v4601 = vpack.c.b16 %v4569, %v4565
    %v4602 = vpack.c.b16 %v4570, %v4566
    %v4603 = vpack.c.b16 %v4571, %v4567
    %v4604 = vpack.c.b16 %v4572, %v4568
    %4637 = vmatprep.subr.bf16.mxu0 %v4574
    %4638 = vmatpush1.bf16.msra.mxu0 %v4573
    %4639 = vmatprep.subr.bf16.mxu0 %v4578
    %4640 = vmatpush1.bf16.msra.mxu0 %v4577
    %4641 = vmatprep.subr.bf16.mxu0 %v4582
    %4642 = vmatpush1.bf16.msra.mxu0 %v4581
    %4643 = vmatprep.subr.bf16.mxu0 %v4586
    %4644 = vmatpush1.bf16.msra.mxu0 %v4585
    %4645 = vmatprep.subr.bf16.mxu0 %v4590
    %4646 = vmatpush1.bf16.msra.mxu0 %v4589
    %4647 = vmatprep.subr.bf16.mxu0 %v4594
    %4648 = vmatpush1.bf16.msra.mxu0 %v4593
    %4649 = vmatprep.subr.bf16.mxu0 %v4598
    %4650 = vmatpush1.bf16.msra.mxu0 %v4597
    %4651 = vmatprep.subr.bf16.mxu0 %v4602
    %4652 = vmatpush1.bf16.msra.mxu0 %v4601
    %4653 = vmatprep.subr.bf16.mxu0 0
    %4654 = vmatpush1.bf16.msra.mxu0 0
    %4655 = vmatprep.subr.bf16.mxu0 0
    %4656 = vmatpush1.bf16.msra.mxu0 0
    %4657 = vmatprep.subr.bf16.mxu0 0
    %4658 = vmatpush1.bf16.msra.mxu0 0
    %4659 = vmatprep.subr.bf16.mxu0 0
    %4660 = vmatpush1.bf16.msra.mxu0 0
    %4661 = vmatprep.subr.bf16.mxu0 0
    %4662 = vmatpush1.bf16.msra.mxu0 0
    %4663 = vmatprep.subr.bf16.mxu0 0
    %4664 = vmatpush1.bf16.msra.mxu0 0
    %4665 = vmatprep.subr.bf16.mxu0 0
    %4666 = vmatpush1.bf16.msra.mxu0 0
    %4667 = vmatprep.subr.bf16.mxu0 0
    %4668 = vmatpush1.bf16.msra.mxu0 0
    %4669 = vmatprep.mubr.bf16.mxu0 0
    %4670 = vmatmul.mubr.bf16.gmra.mrb[0].mxu0 0
    %v4671 = vpop.f32.mrb[0].mxu0
    %v4672 = vadd.f32 0.0, %v4671
    %v4673 = vpop.f32.mrb[0].mxu0
    %v4674 = vadd.f32 0.0, %v4673
    %v4675 = vpop.f32.mrb[0].mxu0
    %v4676 = vpop.f32.mrb[0].mxu0
    %4677 = vdwg.mxu0
    %4678 = vmatprep.subr.bf16.mxu0 %v4576
    %4679 = vmatpush1.bf16.msra.mxu0 %v4575
    %4680 = vmatprep.subr.bf16.mxu0 %v4580
    %4681 = vmatpush1.bf16.msra.mxu0 %v4579
    %4682 = vmatprep.subr.bf16.mxu0 %v4584
    %4683 = vmatpush1.bf16.msra.mxu0 %v4583
    %4684 = vmatprep.subr.bf16.mxu0 %v4588
    %4685 = vmatpush1.bf16.msra.mxu0 %v4587
    %4686 = vmatprep.subr.bf16.mxu0 %v4592
    %4687 = vmatpush1.bf16.msra.mxu0 %v4591
    %4688 = vmatprep.subr.bf16.mxu0 %v4596
    %4689 = vmatpush1.bf16.msra.mxu0 %v4595
    %4690 = vmatprep.subr.bf16.mxu0 %v4600
    %4691 = vmatpush1.bf16.msra.mxu0 %v4599
    %4692 = vmatprep.subr.bf16.mxu0 %v4604
    %4693 = vmatpush1.bf16.msra.mxu0 %v4603
    %4694 = vmatprep.subr.bf16.mxu0 0
    %4695 = vmatpush1.bf16.msra.mxu0 0
    %4696 = vmatprep.subr.bf16.mxu0 0
    %4697 = vmatpush1.bf16.msra.mxu0 0
    %4698 = vmatprep.subr.bf16.mxu0 0
    %4699 = vmatpush1.bf16.msra.mxu0 0
    %4700 = vmatprep.subr.bf16.mxu0 0
    %4701 = vmatpush1.bf16.msra.mxu0 0
    %4702 = vmatprep.subr.bf16.mxu0 0
    %4703 = vmatpush1.bf16.msra.mxu0 0
    %4704 = vmatprep.subr.bf16.mxu0 0
    %4705 = vmatpush1.bf16.msra.mxu0 0
    %4706 = vmatprep.subr.bf16.mxu0 0
    %4707 = vmatpush1.bf16.msra.mxu0 0
    %4708 = vmatprep.subr.bf16.mxu0 0
    %4709 = vmatpush1.bf16.msra.mxu0 0
    %4710 = vmatprep.mubr.bf16.mxu0 0
    %4711 = vmatmul.mubr.bf16.gmra.mrb[0].mxu0 0
    %v4712 = vpop.f32.mrb[0].mxu0
    %v4713 = vadd.f32 0.0, %v4712
    %v4714 = vpop.f32.mrb[0].mxu0
    %v4715 = vadd.f32 0.0, %v4714
    %v4716 = vpop.f32.mrb[0].mxu0
    %v4717 = vpop.f32.mrb[0].mxu0
    %4718 = vdwg.mxu0
    %v4719 = vadd.f32 %v4473, %v4672
    %v4720 = vadd.f32 %v4474, %v4674
    %v4721 = vadd.f32 %v4475, %v4713
    %v4722 = vadd.f32 %v4476, %v4715
    %v4723 = vld [vmem:[%s1342] sm:$0xff]
    %v4724 = vld [vmem:[%s1342 + $0x8] sm:$0xff]
    %v4725 = vld [vmem:[%s1342 + $0x10] sm:$0xff]
    %v4726 = vld [vmem:[%s1342 + $0x18] sm:$0xff]
    %v4759 = vunpack.c.l.b16 %v4441
    %v4760 = vunpack.c.h.b16 %v4441
    %v4761 = vunpack.c.l.b16 %v4442
    %v4762 = vunpack.c.h.b16 %v4442
    %v4763 = vunpack.c.l.b16 %v4443
    %v4764 = vunpack.c.h.b16 %v4443
    %v4765 = vunpack.c.l.b16 %v4444
    %v4766 = vunpack.c.h.b16 %v4444
    %v4767 = vunpack.c.l.b16 %v4445
    %v4768 = vunpack.c.h.b16 %v4445
    %v4769 = vunpack.c.l.b16 %v4446
    %v4770 = vunpack.c.h.b16 %v4446
    %v4771 = vunpack.c.l.b16 %v4447
    %v4772 = vunpack.c.h.b16 %v4447
    %v4773 = vunpack.c.l.b16 %v4448
    %v4774 = vunpack.c.h.b16 %v4448
    %v4775 = vunpack.c.l.b16 %v4449
    %v4776 = vunpack.c.h.b16 %v4449
    %v4777 = vunpack.c.l.b16 %v4450
    %v4778 = vunpack.c.h.b16 %v4450
    %v4779 = vunpack.c.l.b16 %v4451
    %v4780 = vunpack.c.h.b16 %v4451
    %v4781 = vunpack.c.l.b16 %v4452
    %v4782 = vunpack.c.h.b16 %v4452
    %v4783 = vunpack.c.l.b16 %v4453
    %v4784 = vunpack.c.h.b16 %v4453
    %v4785 = vunpack.c.l.b16 %v4454
    %v4786 = vunpack.c.h.b16 %v4454
    %v4787 = vunpack.c.l.b16 %v4455
    %v4788 = vunpack.c.h.b16 %v4455
    %v4789 = vunpack.c.l.b16 %v4456
    %v4790 = vunpack.c.h.b16 %v4456
    %v4791 = vunpack.c.l.b16 %v4457
    %v4792 = vunpack.c.h.b16 %v4457
    %v4793 = vunpack.c.l.b16 %v4458
    %v4794 = vunpack.c.h.b16 %v4458
    %v4795 = vunpack.c.l.b16 %v4459
    %v4796 = vunpack.c.h.b16 %v4459
    %v4797 = vunpack.c.l.b16 %v4460
    %v4798 = vunpack.c.h.b16 %v4460
    %v4799 = vunpack.c.l.b16 %v4461
    %v4800 = vunpack.c.h.b16 %v4461
    %v4801 = vunpack.c.l.b16 %v4462
    %v4802 = vunpack.c.h.b16 %v4462
    %v4803 = vunpack.c.l.b16 %v4463
    %v4804 = vunpack.c.h.b16 %v4463
    %v4805 = vunpack.c.l.b16 %v4464
    %v4806 = vunpack.c.h.b16 %v4464
    %v4807 = vunpack.c.l.b16 %v4465
    %v4808 = vunpack.c.h.b16 %v4465
    %v4809 = vunpack.c.l.b16 %v4466
    %v4810 = vunpack.c.h.b16 %v4466
    %v4811 = vunpack.c.l.b16 %v4467
    %v4812 = vunpack.c.h.b16 %v4467
    %v4813 = vunpack.c.l.b16 %v4468
    %v4814 = vunpack.c.h.b16 %v4468
    %v4815 = vunpack.c.l.b16 %v4469
    %v4816 = vunpack.c.h.b16 %v4469
    %v4817 = vunpack.c.l.b16 %v4470
    %v4818 = vunpack.c.h.b16 %v4470
    %v4819 = vunpack.c.l.b16 %v4471
    %v4820 = vunpack.c.h.b16 %v4471
    %v4821 = vunpack.c.l.b16 %v4472
    %v4822 = vunpack.c.h.b16 %v4472
    %v4823 = vpack.c.b16 %v4763, %v4759
    %v4824 = vpack.c.b16 %v4764, %v4760
    %v4825 = vpack.c.b16 %v4765, %v4761
    %v4826 = vpack.c.b16 %v4766, %v4762
    %v4827 = vpack.c.b16 %v4771, %v4767
    %v4828 = vpack.c.b16 %v4772, %v4768
    %v4829 = vpack.c.b16 %v4773, %v4769
    %v4830 = vpack.c.b16 %v4774, %v4770
    %v4831 = vpack.c.b16 %v4779, %v4775
    %v4832 = vpack.c.b16 %v4780, %v4776
    %v4833 = vpack.c.b16 %v4781, %v4777
    %v4834 = vpack.c.b16 %v4782, %v4778
    %v4835 = vpack.c.b16 %v4787, %v4783
    %v4836 = vpack.c.b16 %v4788, %v4784
    %v4837 = vpack.c.b16 %v4789, %v4785
    %v4838 = vpack.c.b16 %v4790, %v4786
    %v4839 = vpack.c.b16 %v4795, %v4791
    %v4840 = vpack.c.b16 %v4796, %v4792
    %v4841 = vpack.c.b16 %v4797, %v4793
    %v4842 = vpack.c.b16 %v4798, %v4794
    %v4843 = vpack.c.b16 %v4803, %v4799
    %v4844 = vpack.c.b16 %v4804, %v4800
    %v4845 = vpack.c.b16 %v4805, %v4801
    %v4846 = vpack.c.b16 %v4806, %v4802
    %v4847 = vpack.c.b16 %v4811, %v4807
    %v4848 = vpack.c.b16 %v4812, %v4808
    %v4849 = vpack.c.b16 %v4813, %v4809
    %v4850 = vpack.c.b16 %v4814, %v4810
    %v4851 = vpack.c.b16 %v4819, %v4815
    %v4852 = vpack.c.b16 %v4820, %v4816
    %v4853 = vpack.c.b16 %v4821, %v4817
    %v4854 = vpack.c.b16 %v4822, %v4818
    %4887 = vmatprep.subr.bf16.mxu0 %v4824
    %4888 = vmatpush1.bf16.msra.mxu0 %v4823
    %4889 = vmatprep.subr.bf16.mxu0 %v4828
    %4890 = vmatpush1.bf16.msra.mxu0 %v4827
    %4891 = vmatprep.subr.bf16.mxu0 %v4832
    %4892 = vmatpush1.bf16.msra.mxu0 %v4831
    %4893 = vmatprep.subr.bf16.mxu0 %v4836
    %4894 = vmatpush1.bf16.msra.mxu0 %v4835
    %4895 = vmatprep.subr.bf16.mxu0 %v4840
    %4896 = vmatpush1.bf16.msra.mxu0 %v4839
    %4897 = vmatprep.subr.bf16.mxu0 %v4844
    %4898 = vmatpush1.bf16.msra.mxu0 %v4843
    %4899 = vmatprep.subr.bf16.mxu0 %v4848
    %4900 = vmatpush1.bf16.msra.mxu0 %v4847
    %4901 = vmatprep.subr.bf16.mxu0 %v4852
    %4902 = vmatpush1.bf16.msra.mxu0 %v4851
    %4903 = vmatprep.subr.bf16.mxu0 0
    %4904 = vmatpush1.bf16.msra.mxu0 0
    %4905 = vmatprep.subr.bf16.mxu0 0
    %4906 = vmatpush1.bf16.msra.mxu0 0
    %4907 = vmatprep.subr.bf16.mxu0 0
    %4908 = vmatpush1.bf16.msra.mxu0 0
    %4909 = vmatprep.subr.bf16.mxu0 0
    %4910 = vmatpush1.bf16.msra.mxu0 0
    %4911 = vmatprep.subr.bf16.mxu0 0
    %4912 = vmatpush1.bf16.msra.mxu0 0
    %4913 = vmatprep.subr.bf16.mxu0 0
    %4914 = vmatpush1.bf16.msra.mxu0 0
    %4915 = vmatprep.subr.bf16.mxu0 0
    %4916 = vmatpush1.bf16.msra.mxu0 0
    %4917 = vmatprep.subr.bf16.mxu0 0
    %4918 = vmatpush1.bf16.msra.mxu0 0
    %4919 = vmatprep.mubr.bf16.mxu0 0
    %4920 = vmatmul.mubr.bf16.gmra.mrb[0].mxu0 0
    %v4921 = vpop.f32.mrb[0].mxu0
    %v4922 = vadd.f32 0.0, %v4921
    %v4923 = vpop.f32.mrb[0].mxu0
    %v4924 = vadd.f32 0.0, %v4923
    %v4925 = vpop.f32.mrb[0].mxu0
    %v4926 = vpop.f32.mrb[0].mxu0
    %4927 = vdwg.mxu0
    %4928 = vmatprep.subr.bf16.mxu0 %v4826
    %4929 = vmatpush1.bf16.msra.mxu0 %v4825
    %4930 = vmatprep.subr.bf16.mxu0 %v4830
    %4931 = vmatpush1.bf16.msra.mxu0 %v4829
    %4932 = vmatprep.subr.bf16.mxu0 %v4834
    %4933 = vmatpush1.bf16.msra.mxu0 %v4833
    %4934 = vmatprep.subr.bf16.mxu0 %v4838
    %4935 = vmatpush1.bf16.msra.mxu0 %v4837
    %4936 = vmatprep.subr.bf16.mxu0 %v4842
    %4937 = vmatpush1.bf16.msra.mxu0 %v4841
    %4938 = vmatprep.subr.bf16.mxu0 %v4846
    %4939 = vmatpush1.bf16.msra.mxu0 %v4845
    %4940 = vmatprep.subr.bf16.mxu0 %v4850
    %4941 = vmatpush1.bf16.msra.mxu0 %v4849
    %4942 = vmatprep.subr.bf16.mxu0 %v4854
    %4943 = vmatpush1.bf16.msra.mxu0 %v4853
    %4944 = vmatprep.subr.bf16.mxu0 0
    %4945 = vmatpush1.bf16.msra.mxu0 0
    %4946 = vmatprep.subr.bf16.mxu0 0
    %4947 = vmatpush1.bf16.msra.mxu0 0
    %4948 = vmatprep.subr.bf16.mxu0 0
    %4949 = vmatpush1.bf16.msra.mxu0 0
    %4950 = vmatprep.subr.bf16.mxu0 0
    %4951 = vmatpush1.bf16.msra.mxu0 0
    %4952 = vmatprep.subr.bf16.mxu0 0
    %4953 = vmatpush1.bf16.msra.mxu0 0
    %4954 = vmatprep.subr.bf16.mxu0 0
    %4955 = vmatpush1.bf16.msra.mxu0 0
    %4956 = vmatprep.subr.bf16.mxu0 0
    %4957 = vmatpush1.bf16.msra.mxu0 0
    %4958 = vmatprep.subr.bf16.mxu0 0
    %4959 = vmatpush1.bf16.msra.mxu0 0
    %4960 = vmatprep.mubr.bf16.mxu0 0
    %4961 = vmatmul.mubr.bf16.gmra.mrb[0].mxu0 0
    %v4962 = vpop.f32.mrb[0].mxu0
    %v4963 = vadd.f32 0.0, %v4962
    %v4964 = vpop.f32.mrb[0].mxu0
    %v4965 = vadd.f32 0.0, %v4964
    %v4966 = vpop.f32.mrb[0].mxu0
    %v4967 = vpop.f32.mrb[0].mxu0
    %4968 = vdwg.mxu0
    %v4969 = vadd.f32 %v4723, %v4922
    %v4970 = vadd.f32 %v4724, %v4924
    %v4971 = vadd.f32 %v4725, %v4963
    %v4972 = vadd.f32 %v4726, %v4965
    %v4973 = vmul.f32 %v4719, 0.5
    %v4974 = vtanh.pop %v4973
    %v4975 = vmul.f32 %v4974, 0.5
    %v4976 = vadd.f32 %v4975, 0.5
    %v4977 = vmul.f32 %v4720, 0.5
    %v4978 = vtanh.pop %v4977
    %v4979 = vmul.f32 %v4978, 0.5
    %v4980 = vadd.f32 %v4979, 0.5
    %v4981 = vtanh.pop %v4721
    %v4982 = vmul.f32 %v4722, 0.5
    %v4983 = vtanh.pop %v4982
    %v4984 = vmul.f32 %v4983, 0.5
    %v4985 = vadd.f32 %v4984, 0.5
    %v4986 = vmul.f32 %v4980, 0.0
    %v4987 = vmul.f32 %v4976, %v4981
    %v4988 = vadd.f32 %v4986, %v4987
    %v4989 = vtanh.pop %v4988
    %v4990 = vmul.f32 %v4985, %v4989
    %v4991 = vpack.c.bf16 %v4990, %v4990
    %v4992 = vmul.f32 %v4969, 0.5
    %v4993 = vtanh.pop %v4992
    %v4994 = vmul.f32 %v4993, 0.5
    %v4995 = vadd.f32 %v4994, 0.5
    %v4996 = vmul.f32 %v4970, 0.5
    %v4997 = vtanh.pop %v4996
    %v4998 = vmul.f32 %v4997, 0.5
    %v4999 = vadd.f32 %v4998, 0.5
    %v5000 = vtanh.pop %v4971
    %v5001 = vmul.f32 %v4972, 0.5
    %v5002 = vtanh.pop %v5001
    %v5003 = vmul.f32 %v5002, 0.5
    %v5004 = vadd.f32 %v5003, 0.5
    %v5005 = vmul.f32 %v4999, 0.0
    %v5006 = vmul.f32 %v4995, %v5000
    %v5007 = vadd.f32 %v5005, %v5006
    %v5008 = vtanh.pop %v5007
    %v5009 = vmul.f32 %v5004, %v5008
    %v5010 = vpack.c.bf16 %v5009, %v5009
    %5011 = vst [vmem:[#allocation4] sm:$0xf] %v4991
    %5012 = vst [vmem:[%s1632 + $0x4] sm:$0xf] %v5010
    %v5013 = vld [vmem:[%s1634] sm:$0xff]
    %v5014 = vld [vmem:[%s1634 + $0x8] sm:$0xff]
    %v5015 = vld [vmem:[%s1634 + $0x10] sm:$0xff]
    %v5016 = vld [vmem:[%s1634 + $0x18] sm:$0xff]
    %5017 = vmatprep.subr.bf16.mxu0 %v4574
    %5018 = vmatpush1.bf16.msra.mxu0 %v4573
    %5019 = vmatprep.subr.bf16.mxu0 %v4578
    %5020 = vmatpush1.bf16.msra.mxu0 %v4577
    %5021 = vmatprep.subr.bf16.mxu0 %v4582
    %5022 = vmatpush1.bf16.msra.mxu0 %v4581
    %5023 = vmatprep.subr.bf16.mxu0 %v4586
    %5024 = vmatpush1.bf16.msra.mxu0 %v4585
    %5025 = vmatprep.subr.bf16.mxu0 %v4590
    %5026 = vmatpush1.bf16.msra.mxu0 %v4589
    %5027 = vmatprep.subr.bf16.mxu0 %v4594
    %5028 = vmatpush1.bf16.msra.mxu0 %v4593
    %5029 = vmatprep.subr.bf16.mxu0 %v4598
    %5030 = vmatpush1.bf16.msra.mxu0 %v4597
    %5031 = vmatprep.subr.bf16.mxu0 %v4602
    %5032 = vmatpush1.bf16.msra.mxu0 %v4601
    %5033 = vmatprep.subr.bf16.mxu0 0
    %5034 = vmatpush1.bf16.msra.mxu0 0
    %5035 = vmatprep.subr.bf16.mxu0 0
    %5036 = vmatpush1.bf16.msra.mxu0 0
    %5037 = vmatprep.subr.bf16.mxu0 0
    %5038 = vmatpush1.bf16.msra.mxu0 0
    %5039 = vmatprep.subr.bf16.mxu0 0
    %5040 = vmatpush1.bf16.msra.mxu0 0
    %5041 = vmatprep.subr.bf16.mxu0 0
    %5042 = vmatpush1.bf16.msra.mxu0 0
    %5043 = vmatprep.subr.bf16.mxu0 0
    %5044 = vmatpush1.bf16.msra.mxu0 0
    %5045 = vmatprep.subr.bf16.mxu0 0
    %5046 = vmatpush1.bf16.msra.mxu0 0
    %5047 = vmatprep.subr.bf16.mxu0 0
    %5048 = vmatpush1.bf16.msra.mxu0 0
    %5049 = vmatprep.mubr.bf16.mxu0 0
    %5050 = vmatmul.mubr.bf16.gmra.mrb[0].mxu0 %v4991
    %v5051 = vpop.f32.mrb[0].mxu0
    %v5052 = vadd.f32 0.0, %v5051
    %v5053 = vpop.f32.mrb[0].mxu0
    %v5054 = vadd.f32 0.0, %v5053
    %v5055 = vpop.f32.mrb[0].mxu0
    %v5056 = vpop.f32.mrb[0].mxu0
    %5057 = vdwg.mxu0
    %5058 = vmatprep.subr.bf16.mxu0 %v4576
    %5059 = vmatpush1.bf16.msra.mxu0 %v4575
    %5060 = vmatprep.subr.bf16.mxu0 %v4580
    %5061 = vmatpush1.bf16.msra.mxu0 %v4579
    %5062 = vmatprep.subr.bf16.mxu0 %v4584
    %5063 = vmatpush1.bf16.msra.mxu0 %v4583
    %5064 = vmatprep.subr.bf16.mxu0 %v4588
    %5065 = vmatpush1.bf16.msra.mxu0 %v4587
    %5066 = vmatprep.subr.bf16.mxu0 %v4592
    %5067 = vmatpush1.bf16.msra.mxu0 %v4591
    %5068 = vmatprep.subr.bf16.mxu0 %v4596
    %5069 = vmatpush1.bf16.msra.mxu0 %v4595
    %5070 = vmatprep.subr.bf16.mxu0 %v4600
    %5071 = vmatpush1.bf16.msra.mxu0 %v4599
    %5072 = vmatprep.subr.bf16.mxu0 %v4604
    %5073 = vmatpush1.bf16.msra.mxu0 %v4603
    %5074 = vmatprep.subr.bf16.mxu0 0
    %5075 = vmatpush1.bf16.msra.mxu0 0
    %5076 = vmatprep.subr.bf16.mxu0 0
    %5077 = vmatpush1.bf16.msra.mxu0 0
    %5078 = vmatprep.subr.bf16.mxu0 0
    %5079 = vmatpush1.bf16.msra.mxu0 0
    %5080 = vmatprep.subr.bf16.mxu0 0
    %5081 = vmatpush1.bf16.msra.mxu0 0
    %5082 = vmatprep.subr.bf16.mxu0 0
    %5083 = vmatpush1.bf16.msra.mxu0 0
    %5084 = vmatprep.subr.bf16.mxu0 0
    %5085 = vmatpush1.bf16.msra.mxu0 0
    %5086 = vmatprep.subr.bf16.mxu0 0
    %5087 = vmatpush1.bf16.msra.mxu0 0
    %5088 = vmatprep.subr.bf16.mxu0 0
    %5089 = vmatpush1.bf16.msra.mxu0 0
    %5090 = vmatprep.mubr.bf16.mxu0 0
    %5091 = vmatmul.mubr.bf16.gmra.mrb[0].mxu0 %v4991
    %v5092 = vpop.f32.mrb[0].mxu0
    %v5093 = vadd.f32 0.0, %v5092
    %v5094 = vpop.f32.mrb[0].mxu0
    %v5095 = vadd.f32 0.0, %v5094
    %v5096 = vpop.f32.mrb[0].mxu0
    %v5097 = vpop.f32.mrb[0].mxu0
    %5098 = vdwg.mxu0
    %v5099 = vadd.f32 %v5013, %v5052
    %v5100 = vadd.f32 %v5014, %v5054
    %v5101 = vadd.f32 %v5015, %v5093
    %v5102 = vadd.f32 %v5016, %v5095
    %v5103 = vld [vmem:[%s1725] sm:$0xff]
    %v5104 = vld [vmem:[%s1725 + $0x8] sm:$0xff]
    %v5105 = vld [vmem:[%s1725 + $0x10] sm:$0xff]
    %v5106 = vld [vmem:[%s1725 + $0x18] sm:$0xff]
    %5107 = vmatprep.subr.bf16.mxu0 %v4824
    %5108 = vmatpush1.bf16.msra.mxu0 %v4823
    %5109 = vmatprep.subr.bf16.mxu0 %v4828
    %5110 = vmatpush1.bf16.msra.mxu0 %v4827
    %5111 = vmatprep.subr.bf16.mxu0 %v4832
    %5112 = vmatpush1.bf16.msra.mxu0 %v4831
    %5113 = vmatprep.subr.bf16.mxu0 %v4836
    %5114 = vmatpush1.bf16.msra.mxu0 %v4835
    %5115 = vmatprep.subr.bf16.mxu0 %v4840
    %5116 = vmatpush1.bf16.msra.mxu0 %v4839
    %5117 = vmatprep.subr.bf16.mxu0 %v4844
    %5118 = vmatpush1.bf16.msra.mxu0 %v4843
    %5119 = vmatprep.subr.bf16.mxu0 %v4848
    %5120 = vmatpush1.bf16.msra.mxu0 %v4847
    %5121 = vmatprep.subr.bf16.mxu0 %v4852
    %5122 = vmatpush1.bf16.msra.mxu0 %v4851
    %5123 = vmatprep.subr.bf16.mxu0 0
    %5124 = vmatpush1.bf16.msra.mxu0 0
    %5125 = vmatprep.subr.bf16.mxu0 0
    %5126 = vmatpush1.bf16.msra.mxu0 0
    %5127 = vmatprep.subr.bf16.mxu0 0
    %5128 = vmatpush1.bf16.msra.mxu0 0
    %5129 = vmatprep.subr.bf16.mxu0 0
    %5130 = vmatpush1.bf16.msra.mxu0 0
    %5131 = vmatprep.subr.bf16.mxu0 0
    %5132 = vmatpush1.bf16.msra.mxu0 0
    %5133 = vmatprep.subr.bf16.mxu0 0
    %5134 = vmatpush1.bf16.msra.mxu0 0
    %5135 = vmatprep.subr.bf16.mxu0 0
    %5136 = vmatpush1.bf16.msra.mxu0 0
    %5137 = vmatprep.subr.bf16.mxu0 0
    %5138 = vmatpush1.bf16.msra.mxu0 0
    %5139 = vmatprep.mubr.bf16.mxu0 0
    %5140 = vmatmul.mubr.bf16.gmra.mrb[0].mxu0 %v5010
    %v5141 = vpop.f32.mrb[0].mxu0
    %v5142 = vadd.f32 0.0, %v5141
    %v5143 = vpop.f32.mrb[0].mxu0
    %v5144 = vadd.f32 0.0, %v5143
    %v5145 = vpop.f32.mrb[0].mxu0
    %v5146 = vpop.f32.mrb[0].mxu0
    %5147 = vdwg.mxu0
    %5148 = vmatprep.subr.bf16.mxu0 %v4826
    %5149 = vmatpush1.bf16.msra.mxu0 %v4825
    %5150 = vmatprep.subr.bf16.mxu0 %v4830
    %5151 = vmatpush1.bf16.msra.mxu0 %v4829
    %5152 = vmatprep.subr.bf16.mxu0 %v4834
    %5153 = vmatpush1.bf16.msra.mxu0 %v4833
    %5154 = vmatprep.subr.bf16.mxu0 %v4838
    %5155 = vmatpush1.bf16.msra.mxu0 %v4837
    %5156 = vmatprep.subr.bf16.mxu0 %v4842
    %5157 = vmatpush1.bf16.msra.mxu0 %v4841
    %5158 = vmatprep.subr.bf16.mxu0 %v4846
    %5159 = vmatpush1.bf16.msra.mxu0 %v4845
    %5160 = vmatprep.subr.bf16.mxu0 %v4850
    %5161 = vmatpush1.bf16.msra.mxu0 %v4849
    %5162 = vmatprep.subr.bf16.mxu0 %v4854
    %5163 = vmatpush1.bf16.msra.mxu0 %v4853
    %5164 = vmatprep.subr.bf16.mxu0 0
    %5165 = vmatpush1.bf16.msra.mxu0 0
    %5166 = vmatprep.subr.bf16.mxu0 0
    %5167 = vmatpush1.bf16.msra.mxu0 0
    %5168 = vmatprep.subr.bf16.mxu0 0
    %5169 = vmatpush1.bf16.msra.mxu0 0
    %5170 = vmatprep.subr.bf16.mxu0 0
    %5171 = vmatpush1.bf16.msra.mxu0 0
    %5172 = vmatprep.subr.bf16.mxu0 0
    %5173 = vmatpush1.bf16.msra.mxu0 0
    %5174 = vmatprep.subr.bf16.mxu0 0
    %5175 = vmatpush1.bf16.msra.mxu0 0
    %5176 = vmatprep.subr.bf16.mxu0 0
    %5177 = vmatpush1.bf16.msra.mxu0 0
    %5178 = vmatprep.subr.bf16.mxu0 0
    %5179 = vmatpush1.bf16.msra.mxu0 0
    %5180 = vmatprep.mubr.bf16.mxu0 0
    %5181 = vmatmul.mubr.bf16.gmra.mrb[0].mxu0 %v5010
    %v5182 = vpop.f32.mrb[0].mxu0
    %v5183 = vadd.f32 0.0, %v5182
    %v5184 = vpop.f32.mrb[0].mxu0
    %v5185 = vadd.f32 0.0, %v5184
    %v5186 = vpop.f32.mrb[0].mxu0
    %v5187 = vpop.f32.mrb[0].mxu0
    %5188 = vdwg.mxu0
    %v5189 = vadd.f32 %v5103, %v5142
    %v5190 = vadd.f32 %v5104, %v5144
    %v5191 = vadd.f32 %v5105, %v5183
    %v5192 = vadd.f32 %v5106, %v5185
    %v5193 = vmul.f32 %v5099, 0.5
    %v5194 = vtanh.pop %v5193
    %v5195 = vmul.f32 %v5194, 0.5
    %v5196 = vadd.f32 %v5195, 0.5
    %v5197 = vmul.f32 %v5100, 0.5
    %v5198 = vtanh.pop %v5197
    %v5199 = vmul.f32 %v5198, 0.5
    %v5200 = vadd.f32 %v5199, 0.5
    %v5201 = vtanh.pop %v5101
    %v5202 = vmul.f32 %v5102, 0.5
    %v5203 = vtanh.pop %v5202
    %v5204 = vmul.f32 %v5203, 0.5
    %v5205 = vadd.f32 %v5204, 0.5
    %v5206 = vmul.f32 %v5200, %v4988
    %v5207 = vmul.f32 %v5196, %v5201
    %v5208 = vadd.f32 %v5206, %v5207
    %v5209 = vtanh.pop %v5208
    %v5210 = vmul.f32 %v5205, %v5209
    %v5211 = vpack.c.bf16 %v5210, %v5210
    %v5212 = vmul.f32 %v5189, 0.5
    %v5213 = vtanh.pop %v5212
    %v5214 = vmul.f32 %v5213, 0.5
    %v5215 = vadd.f32 %v5214, 0.5
    %v5216 = vmul.f32 %v5190, 0.5
    %v5217 = vtanh.pop %v5216
    %v5218 = vmul.f32 %v5217, 0.5
    %v5219 = vadd.f32 %v5218, 0.5
    %v5220 = vtanh.pop %v5191
    %v5221 = vmul.f32 %v5192, 0.5
    %v5222 = vtanh.pop %v5221
    %v5223 = vmul.f32 %v5222, 0.5
    %v5224 = vadd.f32 %v5223, 0.5
    %v5225 = vmul.f32 %v5219, %v5007
    %v5226 = vmul.f32 %v5215, %v5220
    %v5227 = vadd.f32 %v5225, %v5226
    %v5228 = vtanh.pop %v5227
    %v5229 = vmul.f32 %v5224, %v5228
    %v5230 = vpack.c.bf16 %v5229, %v5229
    %5231 = vst [vmem:[%s1854] sm:$0xf] %v5211
    %5232 = vst [vmem:[%s1856 + $0x4] sm:$0xf] %v5230
    %v5233 = vld [vmem:[%s1858] sm:$0xff]
    %v5234 = vld [vmem:[%s1858 + $0x8] sm:$0xff]
    %v5235 = vld [vmem:[%s1858 + $0x10] sm:$0xff]
    %v5236 = vld [vmem:[%s1858 + $0x18] sm:$0xff]
    %5237 = vmatprep.subr.bf16.mxu0 %v4574
    %5238 = vmatpush1.bf16.msra.mxu0 %v4573
    %5239 = vmatprep.subr.bf16.mxu0 %v4578
    %5240 = vmatpush1.bf16.msra.mxu0 %v4577
    %5241 = vmatprep.subr.bf16.mxu0 %v4582
    %5242 = vmatpush1.bf16.msra.mxu0 %v4581
    %5243 = vmatprep.subr.bf16.mxu0 %v4586
    %5244 = vmatpush1.bf16.msra.mxu0 %v4585
    %5245 = vmatprep.subr.bf16.mxu0 %v4590
    %5246 = vmatpush1.bf16.msra.mxu0 %v4589
    %5247 = vmatprep.subr.bf16.mxu0 %v4594
    %5248 = vmatpush1.bf16.msra.mxu0 %v4593
    %5249 = vmatprep.subr.bf16.mxu0 %v4598
    %5250 = vmatpush1.bf16.msra.mxu0 %v4597
    %5251 = vmatprep.subr.bf16.mxu0 %v4602
    %5252 = vmatpush1.bf16.msra.mxu0 %v4601
    %5253 = vmatprep.subr.bf16.mxu0 0
    %5254 = vmatpush1.bf16.msra.mxu0 0
    %5255 = vmatprep.subr.bf16.mxu0 0
    %5256 = vmatpush1.bf16.msra.mxu0 0
    %5257 = vmatprep.subr.bf16.mxu0 0
    %5258 = vmatpush1.bf16.msra.mxu0 0
    %5259 = vmatprep.subr.bf16.mxu0 0
    %5260 = vmatpush1.bf16.msra.mxu0 0
    %5261 = vmatprep.subr.bf16.mxu0 0
    %5262 = vmatpush1.bf16.msra.mxu0 0
    %5263 = vmatprep.subr.bf16.mxu0 0
    %5264 = vmatpush1.bf16.msra.mxu0 0
    %5265 = vmatprep.subr.bf16.mxu0 0
    %5266 = vmatpush1.bf16.msra.mxu0 0
    %5267 = vmatprep.subr.bf16.mxu0 0
    %5268 = vmatpush1.bf16.msra.mxu0 0
    %5269 = vmatprep.mubr.bf16.mxu0 0
    %5270 = vmatmul.mubr.bf16.gmra.mrb[0].mxu0 %v5211
    %v5271 = vpop.f32.mrb[0].mxu0
    %v5272 = vadd.f32 0.0, %v5271
    %v5273 = vpop.f32.mrb[0].mxu0
    %v5274 = vadd.f32 0.0, %v5273
    %v5275 = vpop.f32.mrb[0].mxu0
    %v5276 = vpop.f32.mrb[0].mxu0
    %5277 = vdwg.mxu0
    %5278 = vmatprep.subr.bf16.mxu0 %v4576
    %5279 = vmatpush1.bf16.msra.mxu0 %v4575
    %5280 = vmatprep.subr.bf16.mxu0 %v4580
    %5281 = vmatpush1.bf16.msra.mxu0 %v4579
    %5282 = vmatprep.subr.bf16.mxu0 %v4584
    %5283 = vmatpush1.bf16.msra.mxu0 %v4583
    %5284 = vmatprep.subr.bf16.mxu0 %v4588
    %5285 = vmatpush1.bf16.msra.mxu0 %v4587
    %5286 = vmatprep.subr.bf16.mxu0 %v4592
    %5287 = vmatpush1.bf16.msra.mxu0 %v4591
    %5288 = vmatprep.subr.bf16.mxu0 %v4596
    %5289 = vmatpush1.bf16.msra.mxu0 %v4595
    %5290 = vmatprep.subr.bf16.mxu0 %v4600
    %5291 = vmatpush1.bf16.msra.mxu0 %v4599
    %5292 = vmatprep.subr.bf16.mxu0 %v4604
    %5293 = vmatpush1.bf16.msra.mxu0 %v4603
    %5294 = vmatprep.subr.bf16.mxu0 0
    %5295 = vmatpush1.bf16.msra.mxu0 0
    %5296 = vmatprep.subr.bf16.mxu0 0
    %5297 = vmatpush1.bf16.msra.mxu0 0
    %5298 = vmatprep.subr.bf16.mxu0 0
    %5299 = vmatpush1.bf16.msra.mxu0 0
    %5300 = vmatprep.subr.bf16.mxu0 0
    %5301 = vmatpush1.bf16.msra.mxu0 0
    %5302 = vmatprep.subr.bf16.mxu0 0
    %5303 = vmatpush1.bf16.msra.mxu0 0
    %5304 = vmatprep.subr.bf16.mxu0 0
    %5305 = vmatpush1.bf16.msra.mxu0 0
    %5306 = vmatprep.subr.bf16.mxu0 0
    %5307 = vmatpush1.bf16.msra.mxu0 0
    %5308 = vmatprep.subr.bf16.mxu0 0
    %5309 = vmatpush1.bf16.msra.mxu0 0
    %5310 = vmatprep.mubr.bf16.mxu0 0
    %5311 = vmatmul.mubr.bf16.gmra.mrb[0].mxu0 %v5211
    %v5312 = vpop.f32.mrb[0].mxu0
    %v5313 = vadd.f32 0.0, %v5312
    %v5314 = vpop.f32.mrb[0].mxu0
    %v5315 = vadd.f32 0.0, %v5314
    %v5316 = vpop.f32.mrb[0].mxu0
    %v5317 = vpop.f32.mrb[0].mxu0
    %5318 = vdwg.mxu0
    %v5319 = vadd.f32 %v5233, %v5272
    %v5320 = vadd.f32 %v5234, %v5274
    %v5321 = vadd.f32 %v5235, %v5313
    %v5322 = vadd.f32 %v5236, %v5315
    %v5323 = vld [vmem:[%s1949] sm:$0xff]
    %v5324 = vld [vmem:[%s1949 + $0x8] sm:$0xff]
    %v5325 = vld [vmem:[%s1949 + $0x10] sm:$0xff]
    %v5326 = vld [vmem:[%s1949 + $0x18] sm:$0xff]
    %5327 = vmatprep.subr.bf16.mxu0 %v4824
    %5328 = vmatpush1.bf16.msra.mxu0 %v4823
    %5329 = vmatprep.subr.bf16.mxu0 %v4828
    %5330 = vmatpush1.bf16.msra.mxu0 %v4827
    %5331 = vmatprep.subr.bf16.mxu0 %v4832
    %5332 = vmatpush1.bf16.msra.mxu0 %v4831
    %5333 = vmatprep.subr.bf16.mxu0 %v4836
    %5334 = vmatpush1.bf16.msra.mxu0 %v4835
    %5335 = vmatprep.subr.bf16.mxu0 %v4840
    %5336 = vmatpush1.bf16.msra.mxu0 %v4839
    %5337 = vmatprep.subr.bf16.mxu0 %v4844
    %5338 = vmatpush1.bf16.msra.mxu0 %v4843
    %5339 = vmatprep.subr.bf16.mxu0 %v4848
    %5340 = vmatpush1.bf16.msra.mxu0 %v4847
    %5341 = vmatprep.subr.bf16.mxu0 %v4852
    %5342 = vmatpush1.bf16.msra.mxu0 %v4851
    %5343 = vmatprep.subr.bf16.mxu0 0
    %5344 = vmatpush1.bf16.msra.mxu0 0
    %5345 = vmatprep.subr.bf16.mxu0 0
    %5346 = vmatpush1.bf16.msra.mxu0 0
    %5347 = vmatprep.subr.bf16.mxu0 0
    %5348 = vmatpush1.bf16.msra.mxu0 0
    %5349 = vmatprep.subr.bf16.mxu0 0
    %5350 = vmatpush1.bf16.msra.mxu0 0
    %5351 = vmatprep.subr.bf16.mxu0 0
    %5352 = vmatpush1.bf16.msra.mxu0 0
    %5353 = vmatprep.subr.bf16.mxu0 0
    %5354 = vmatpush1.bf16.msra.mxu0 0
    %5355 = vmatprep.subr.bf16.mxu0 0
    %5356 = vmatpush1.bf16.msra.mxu0 0
    %5357 = vmatprep.subr.bf16.mxu0 0
    %5358 = vmatpush1.bf16.msra.mxu0 0
    %5359 = vmatprep.mubr.bf16.mxu0 0
    %5360 = vmatmul.mubr.bf16.gmra.mrb[0].mxu0 %v5230
    %v5361 = vpop.f32.mrb[0].mxu0
    %v5362 = vadd.f32 0.0, %v5361
    %v5363 = vpop.f32.mrb[0].mxu0
    %v5364 = vadd.f32 0.0, %v5363
    %v5365 = vpop.f32.mrb[0].mxu0
    %v5366 = vpop.f32.mrb[0].mxu0
    %5367 = vdwg.mxu0
    %5368 = vmatprep.subr.bf16.mxu0 %v4826
    %5369 = vmatpush1.bf16.msra.mxu0 %v4825
    %5370 = vmatprep.subr.bf16.mxu0 %v4830
    %5371 = vmatpush1.bf16.msra.mxu0 %v4829
    %5372 = vmatprep.subr.bf16.mxu0 %v4834
    %5373 = vmatpush1.bf16.msra.mxu0 %v4833
    %5374 = vmatprep.subr.bf16.mxu0 %v4838
    %5375 = vmatpush1.bf16.msra.mxu0 %v4837
    %5376 = vmatprep.subr.bf16.mxu0 %v4842
    %5377 = vmatpush1.bf16.msra.mxu0 %v4841
    %5378 = vmatprep.subr.bf16.mxu0 %v4846
    %5379 = vmatpush1.bf16.msra.mxu0 %v4845
    %5380 = vmatprep.subr.bf16.mxu0 %v4850
    %5381 = vmatpush1.bf16.msra.mxu0 %v4849
    %5382 = vmatprep.subr.bf16.mxu0 %v4854
    %5383 = vmatpush1.bf16.msra.mxu0 %v4853
    %5384 = vmatprep.subr.bf16.mxu0 0
    %5385 = vmatpush1.bf16.msra.mxu0 0
    %5386 = vmatprep.subr.bf16.mxu0 0
    %5387 = vmatpush1.bf16.msra.mxu0 0
    %5388 = vmatprep.subr.bf16.mxu0 0
    %5389 = vmatpush1.bf16.msra.mxu0 0
    %5390 = vmatprep.subr.bf16.mxu0 0
    %5391 = vmatpush1.bf16.msra.mxu0 0
    %5392 = vmatprep.subr.bf16.mxu0 0
    %5393 = vmatpush1.bf16.msra.mxu0 0
    %5394 = vmatprep.subr.bf16.mxu0 0
    %5395 = vmatpush1.bf16.msra.mxu0 0
    %5396 = vmatprep.subr.bf16.mxu0 0
    %5397 = vmatpush1.bf16.msra.mxu0 0
    %5398 = vmatprep.subr.bf16.mxu0 0
    %5399 = vmatpush1.bf16.msra.mxu0 0
    %5400 = vmatprep.mubr.bf16.mxu0 0
    %5401 = vmatmul.mubr.bf16.gmra.mrb[0].mxu0 %v5230
    %v5402 = vpop.f32.mrb[0].mxu0
    %v5403 = vadd.f32 0.0, %v5402
    %v5404 = vpop.f32.mrb[0].mxu0
    %v5405 = vadd.f32 0.0, %v5404
    %v5406 = vpop.f32.mrb[0].mxu0
    %v5407 = vpop.f32.mrb[0].mxu0
    %5408 = vdwg.mxu0
    %v5409 = vadd.f32 %v5323, %v5362
    %v5410 = vadd.f32 %v5324, %v5364
    %v5411 = vadd.f32 %v5325, %v5403
    %v5412 = vadd.f32 %v5326, %v5405
    %v5413 = vmul.f32 %v5319, 0.5
    %v5414 = vtanh.pop %v5413
    %v5415 = vmul.f32 %v5414, 0.5
    %v5416 = vadd.f32 %v5415, 0.5
    %v5417 = vmul.f32 %v5320, 0.5
    %v5418 = vtanh.pop %v5417
    %v5419 = vmul.f32 %v5418, 0.5
    %v5420 = vadd.f32 %v5419, 0.5
    %v5421 = vtanh.pop %v5321
    %v5422 = vmul.f32 %v5322, 0.5
    %v5423 = vtanh.pop %v5422
    %v5424 = vmul.f32 %v5423, 0.5
    %v5425 = vadd.f32 %v5424, 0.5
    %v5426 = vmul.f32 %v5420, %v5208
    %v5427 = vmul.f32 %v5416, %v5421
    %v5428 = vadd.f32 %v5426, %v5427
    %v5429 = vtanh.pop %v5428
    %v5430 = vmul.f32 %v5425, %v5429
    %v5431 = vpack.c.bf16 %v5430, %v5430
    %v5432 = vmul.f32 %v5409, 0.5
    %v5433 = vtanh.pop %v5432
    %v5434 = vmul.f32 %v5433, 0.5
    %v5435 = vadd.f32 %v5434, 0.5
    %v5436 = vmul.f32 %v5410, 0.5
    %v5437 = vtanh.pop %v5436
    %v5438 = vmul.f32 %v5437, 0.5
    %v5439 = vadd.f32 %v5438, 0.5
    %v5440 = vtanh.pop %v5411
    %v5441 = vmul.f32 %v5412, 0.5
    %v5442 = vtanh.pop %v5441
    %v5443 = vmul.f32 %v5442, 0.5
    %v5444 = vadd.f32 %v5443, 0.5
    %v5445 = vmul.f32 %v5439, %v5227
    %v5446 = vmul.f32 %v5435, %v5440
    %v5447 = vadd.f32 %v5445, %v5446
    %v5448 = vtanh.pop %v5447
    %v5449 = vmul.f32 %v5444, %v5448
    %v5450 = vpack.c.bf16 %v5449, %v5449
    %5451 = vst [vmem:[%s2078] sm:$0xf] %v5431
    %5452 = vst [vmem:[%s2080 + $0x4] sm:$0xf] %v5450
    %v5453 = vld [vmem:[%s2082] sm:$0xff]
    %v5454 = vld [vmem:[%s2082 + $0x8] sm:$0xff]
    %v5455 = vld [vmem:[%s2082 + $0x10] sm:$0xff]
    %v5456 = vld [vmem:[%s2082 + $0x18] sm:$0xff]
    %5457 = vmatprep.subr.bf16.mxu0 %v4574
    %5458 = vmatpush1.bf16.msra.mxu0 %v4573
    %5459 = vmatprep.subr.bf16.mxu0 %v4578
    %5460 = vmatpush1.bf16.msra.mxu0 %v4577
    %5461 = vmatprep.subr.bf16.mxu0 %v4582
    %5462 = vmatpush1.bf16.msra.mxu0 %v4581
    %5463 = vmatprep.subr.bf16.mxu0 %v4586
    %5464 = vmatpush1.bf16.msra.mxu0 %v4585
    %5465 = vmatprep.subr.bf16.mxu0 %v4590
    %5466 = vmatpush1.bf16.msra.mxu0 %v4589
    %5467 = vmatprep.subr.bf16.mxu0 %v4594
    %5468 = vmatpush1.bf16.msra.mxu0 %v4593
    %5469 = vmatprep.subr.bf16.mxu0 %v4598
    %5470 = vmatpush1.bf16.msra.mxu0 %v4597
    %5471 = vmatprep.subr.bf16.mxu0 %v4602
    %5472 = vmatpush1.bf16.msra.mxu0 %v4601
    %5473 = vmatprep.subr.bf16.mxu0 0
    %5474 = vmatpush1.bf16.msra.mxu0 0
    %5475 = vmatprep.subr.bf16.mxu0 0
    %5476 = vmatpush1.bf16.msra.mxu0 0
    %5477 = vmatprep.subr.bf16.mxu0 0
    %5478 = vmatpush1.bf16.msra.mxu0 0
    %5479 = vmatprep.subr.bf16.mxu0 0
    %5480 = vmatpush1.bf16.msra.mxu0 0
    %5481 = vmatprep.subr.bf16.mxu0 0
    %5482 = vmatpush1.bf16.msra.mxu0 0
    %5483 = vmatprep.subr.bf16.mxu0 0
    %5484 = vmatpush1.bf16.msra.mxu0 0
    %5485 = vmatprep.subr.bf16.mxu0 0
    %5486 = vmatpush1.bf16.msra.mxu0 0
    %5487 = vmatprep.subr.bf16.mxu0 0
    %5488 = vmatpush1.bf16.msra.mxu0 0
    %5489 = vmatprep.mubr.bf16.mxu0 0
    %5490 = vmatmul.mubr.bf16.gmra.mrb[0].mxu0 %v5431
    %v5491 = vpop.f32.mrb[0].mxu0
    %v5492 = vadd.f32 0.0, %v5491
    %v5493 = vpop.f32.mrb[0].mxu0
    %v5494 = vadd.f32 0.0, %v5493
    %v5495 = vpop.f32.mrb[0].mxu0
    %v5496 = vpop.f32.mrb[0].mxu0
    %5497 = vdwg.mxu0
    %5498 = vmatprep.subr.bf16.mxu0 %v4576
    %5499 = vmatpush1.bf16.msra.mxu0 %v4575
    %5500 = vmatprep.subr.bf16.mxu0 %v4580
    %5501 = vmatpush1.bf16.msra.mxu0 %v4579
    %5502 = vmatprep.subr.bf16.mxu0 %v4584
    %5503 = vmatpush1.bf16.msra.mxu0 %v4583
    %5504 = vmatprep.subr.bf16.mxu0 %v4588
    %5505 = vmatpush1.bf16.msra.mxu0 %v4587
    %5506 = vmatprep.subr.bf16.mxu0 %v4592
    %5507 = vmatpush1.bf16.msra.mxu0 %v4591
    %5508 = vmatprep.subr.bf16.mxu0 %v4596
    %5509 = vmatpush1.bf16.msra.mxu0 %v4595
    %5510 = vmatprep.subr.bf16.mxu0 %v4600
    %5511 = vmatpush1.bf16.msra.mxu0 %v4599
    %5512 = vmatprep.subr.bf16.mxu0 %v4604
    %5513 = vmatpush1.bf16.msra.mxu0 %v4603
    %5514 = vmatprep.subr.bf16.mxu0 0
    %5515 = vmatpush1.bf16.msra.mxu0 0
    %5516 = vmatprep.subr.bf16.mxu0 0
    %5517 = vmatpush1.bf16.msra.mxu0 0
    %5518 = vmatprep.subr.bf16.mxu0 0
    %5519 = vmatpush1.bf16.msra.mxu0 0
    %5520 = vmatprep.subr.bf16.mxu0 0
    %5521 = vmatpush1.bf16.msra.mxu0 0
    %5522 = vmatprep.subr.bf16.mxu0 0
    %5523 = vmatpush1.bf16.msra.mxu0 0
    %5524 = vmatprep.subr.bf16.mxu0 0
    %5525 = vmatpush1.bf16.msra.mxu0 0
    %5526 = vmatprep.subr.bf16.mxu0 0
    %5527 = vmatpush1.bf16.msra.mxu0 0
    %5528 = vmatprep.subr.bf16.mxu0 0
    %5529 = vmatpush1.bf16.msra.mxu0 0
    %5530 = vmatprep.mubr.bf16.mxu0 0
    %5531 = vmatmul.mubr.bf16.gmra.mrb[0].mxu0 %v5431
    %v5532 = vpop.f32.mrb[0].mxu0
    %v5533 = vadd.f32 0.0, %v5532
    %v5534 = vpop.f32.mrb[0].mxu0
    %v5535 = vadd.f32 0.0, %v5534
    %v5536 = vpop.f32.mrb[0].mxu0
    %v5537 = vpop.f32.mrb[0].mxu0
    %5538 = vdwg.mxu0
    %v5539 = vadd.f32 %v5453, %v5492
    %v5540 = vadd.f32 %v5454, %v5494
    %v5541 = vadd.f32 %v5455, %v5533
    %v5542 = vadd.f32 %v5456, %v5535
    %v5543 = vld [vmem:[%s2173] sm:$0xff]
    %v5544 = vld [vmem:[%s2173 + $0x8] sm:$0xff]
    %v5545 = vld [vmem:[%s2173 + $0x10] sm:$0xff]
    %v5546 = vld [vmem:[%s2173 + $0x18] sm:$0xff]
    %5547 = vmatprep.subr.bf16.mxu0 %v4824
    %5548 = vmatpush1.bf16.msra.mxu0 %v4823
    %5549 = vmatprep.subr.bf16.mxu0 %v4828
    %5550 = vmatpush1.bf16.msra.mxu0 %v4827
    %5551 = vmatprep.subr.bf16.mxu0 %v4832
    %5552 = vmatpush1.bf16.msra.mxu0 %v4831
    %5553 = vmatprep.subr.bf16.mxu0 %v4836
    %5554 = vmatpush1.bf16.msra.mxu0 %v4835
    %5555 = vmatprep.subr.bf16.mxu0 %v4840
    %5556 = vmatpush1.bf16.msra.mxu0 %v4839
    %5557 = vmatprep.subr.bf16.mxu0 %v4844
    %5558 = vmatpush1.bf16.msra.mxu0 %v4843
    %5559 = vmatprep.subr.bf16.mxu0 %v4848
    %5560 = vmatpush1.bf16.msra.mxu0 %v4847
    %5561 = vmatprep.subr.bf16.mxu0 %v4852
    %5562 = vmatpush1.bf16.msra.mxu0 %v4851
    %5563 = vmatprep.subr.bf16.mxu0 0
    %5564 = vmatpush1.bf16.msra.mxu0 0
    %5565 = vmatprep.subr.bf16.mxu0 0
    %5566 = vmatpush1.bf16.msra.mxu0 0
    %5567 = vmatprep.subr.bf16.mxu0 0
    %5568 = vmatpush1.bf16.msra.mxu0 0
    %5569 = vmatprep.subr.bf16.mxu0 0
    %5570 = vmatpush1.bf16.msra.mxu0 0
    %5571 = vmatprep.subr.bf16.mxu0 0
    %5572 = vmatpush1.bf16.msra.mxu0 0
    %5573 = vmatprep.subr.bf16.mxu0 0
    %5574 = vmatpush1.bf16.msra.mxu0 0
    %5575 = vmatprep.subr.bf16.mxu0 0
    %5576 = vmatpush1.bf16.msra.mxu0 0
    %5577 = vmatprep.subr.bf16.mxu0 0
    %5578 = vmatpush1.bf16.msra.mxu0 0
    %5579 = vmatprep.mubr.bf16.mxu0 0
    %5580 = vmatmul.mubr.bf16.gmra.mrb[0].mxu0 %v5450
    %v5581 = vpop.f32.mrb[0].mxu0
    %v5582 = vadd.f32 0.0, %v5581
    %v5583 = vpop.f32.mrb[0].mxu0
    %v5584 = vadd.f32 0.0, %v5583
    %v5585 = vpop.f32.mrb[0].mxu0
    %v5586 = vpop.f32.mrb[0].mxu0
    %5587 = vdwg.mxu0
    %5588 = vmatprep.subr.bf16.mxu0 %v4826
    %5589 = vmatpush1.bf16.msra.mxu0 %v4825
    %5590 = vmatprep.subr.bf16.mxu0 %v4830
    %5591 = vmatpush1.bf16.msra.mxu0 %v4829
    %5592 = vmatprep.subr.bf16.mxu0 %v4834
    %5593 = vmatpush1.bf16.msra.mxu0 %v4833
    %5594 = vmatprep.subr.bf16.mxu0 %v4838
    %5595 = vmatpush1.bf16.msra.mxu0 %v4837
    %5596 = vmatprep.subr.bf16.mxu0 %v4842
    %5597 = vmatpush1.bf16.msra.mxu0 %v4841
    %5598 = vmatprep.subr.bf16.mxu0 %v4846
    %5599 = vmatpush1.bf16.msra.mxu0 %v4845
    %5600 = vmatprep.subr.bf16.mxu0 %v4850
    %5601 = vmatpush1.bf16.msra.mxu0 %v4849
    %5602 = vmatprep.subr.bf16.mxu0 %v4854
    %5603 = vmatpush1.bf16.msra.mxu0 %v4853
    %5604 = vmatprep.subr.bf16.mxu0 0
    %5605 = vmatpush1.bf16.msra.mxu0 0
    %5606 = vmatprep.subr.bf16.mxu0 0
    %5607 = vmatpush1.bf16.msra.mxu0 0
    %5608 = vmatprep.subr.bf16.mxu0 0
    %5609 = vmatpush1.bf16.msra.mxu0 0
    %5610 = vmatprep.subr.bf16.mxu0 0
    %5611 = vmatpush1.bf16.msra.mxu0 0
    %5612 = vmatprep.subr.bf16.mxu0 0
    %5613 = vmatpush1.bf16.msra.mxu0 0
    %5614 = vmatprep.subr.bf16.mxu0 0
    %5615 = vmatpush1.bf16.msra.mxu0 0
    %5616 = vmatprep.subr.bf16.mxu0 0
    %5617 = vmatpush1.bf16.msra.mxu0 0
    %5618 = vmatprep.subr.bf16.mxu0 0
    %5619 = vmatpush1.bf16.msra.mxu0 0
    %5620 = vmatprep.mubr.bf16.mxu0 0
    %5621 = vmatmul.mubr.bf16.gmra.mrb[0].mxu0 %v5450
    %v5622 = vpop.f32.mrb[0].mxu0
    %v5623 = vadd.f32 0.0, %v5622
    %v5624 = vpop.f32.mrb[0].mxu0
    %v5625 = vadd.f32 0.0, %v5624
    %v5626 = vpop.f32.mrb[0].mxu0
    %v5627 = vpop.f32.mrb[0].mxu0
    %5628 = vdwg.mxu0
    %v5629 = vadd.f32 %v5543, %v5582
    %v5630 = vadd.f32 %v5544, %v5584
    %v5631 = vadd.f32 %v5545, %v5623
    %v5632 = vadd.f32 %v5546, %v5625
    %v5633 = vmul.f32 %v5539, 0.5
    %v5634 = vtanh.pop %v5633
    %v5635 = vmul.f32 %v5634, 0.5
    %v5636 = vadd.f32 %v5635, 0.5
    %v5637 = vmul.f32 %v5540, 0.5
    %v5638 = vtanh.pop %v5637
    %v5639 = vmul.f32 %v5638, 0.5
    %v5640 = vadd.f32 %v5639, 0.5
    %v5641 = vtanh.pop %v5541
    %v5642 = vmul.f32 %v5542, 0.5
    %v5643 = vtanh.pop %v5642
    %v5644 = vmul.f32 %v5643, 0.5
    %v5645 = vadd.f32 %v5644, 0.5
    %v5646 = vmul.f32 %v5640, %v5428
    %v5647 = vmul.f32 %v5636, %v5641
    %v5648 = vadd.f32 %v5646, %v5647
    %v5649 = vtanh.pop %v5648
    %v5650 = vmul.f32 %v5645, %v5649
    %v5651 = vpack.c.bf16 %v5650, %v5650
    %v5652 = vmul.f32 %v5629, 0.5
    %v5653 = vtanh.pop %v5652
    %v5654 = vmul.f32 %v5653, 0.5
    %v5655 = vadd.f32 %v5654, 0.5
    %v5656 = vmul.f32 %v5630, 0.5
    %v5657 = vtanh.pop %v5656
    %v5658 = vmul.f32 %v5657, 0.5
    %v5659 = vadd.f32 %v5658, 0.5
    %v5660 = vtanh.pop %v5631
    %v5661 = vmul.f32 %v5632, 0.5
    %v5662 = vtanh.pop %v5661
    %v5663 = vmul.f32 %v5662, 0.5
    %v5664 = vadd.f32 %v5663, 0.5
    %v5665 = vmul.f32 %v5659, %v5447
    %v5666 = vmul.f32 %v5655, %v5660
    %v5667 = vadd.f32 %v5665, %v5666
    %v5668 = vtanh.pop %v5667
    %v5669 = vmul.f32 %v5664, %v5668
    %v5670 = vpack.c.bf16 %v5669, %v5669
    %5671 = vst [vmem:[%s2302] sm:$0xf] %v5651
    %5672 = vst [vmem:[%s2304 + $0x4] sm:$0xf] %v5670
    %v5673 = vld [vmem:[%s2306] sm:$0xff]
    %v5674 = vld [vmem:[%s2306 + $0x8] sm:$0xff]
    %v5675 = vld [vmem:[%s2306 + $0x10] sm:$0xff]
    %v5676 = vld [vmem:[%s2306 + $0x18] sm:$0xff]
    %5677 = vmatprep.subr.bf16.mxu0 %v4574
    %5678 = vmatpush1.bf16.msra.mxu0 %v4573
    %5679 = vmatprep.subr.bf16.mxu0 %v4578
    %5680 = vmatpush1.bf16.msra.mxu0 %v4577
    %5681 = vmatprep.subr.bf16.mxu0 %v4582
    %5682 = vmatpush1.bf16.msra.mxu0 %v4581
    %5683 = vmatprep.subr.bf16.mxu0 %v4586
    %5684 = vmatpush1.bf16.msra.mxu0 %v4585
    %5685 = vmatprep.subr.bf16.mxu0 %v4590
    %5686 = vmatpush1.bf16.msra.mxu0 %v4589
    %5687 = vmatprep.subr.bf16.mxu0 %v4594
    %5688 = vmatpush1.bf16.msra.mxu0 %v4593
    %5689 = vmatprep.subr.bf16.mxu0 %v4598
    %5690 = vmatpush1.bf16.msra.mxu0 %v4597
    %5691 = vmatprep.subr.bf16.mxu0 %v4602
    %5692 = vmatpush1.bf16.msra.mxu0 %v4601
    %5693 = vmatprep.subr.bf16.mxu0 0
    %5694 = vmatpush1.bf16.msra.mxu0 0
    %5695 = vmatprep.subr.bf16.mxu0 0
    %5696 = vmatpush1.bf16.msra.mxu0 0
    %5697 = vmatprep.subr.bf16.mxu0 0
    %5698 = vmatpush1.bf16.msra.mxu0 0
    %5699 = vmatprep.subr.bf16.mxu0 0
    %5700 = vmatpush1.bf16.msra.mxu0 0
    %5701 = vmatprep.subr.bf16.mxu0 0
    %5702 = vmatpush1.bf16.msra.mxu0 0
    %5703 = vmatprep.subr.bf16.mxu0 0
    %5704 = vmatpush1.bf16.msra.mxu0 0
    %5705 = vmatprep.subr.bf16.mxu0 0
    %5706 = vmatpush1.bf16.msra.mxu0 0
    %5707 = vmatprep.subr.bf16.mxu0 0
    %5708 = vmatpush1.bf16.msra.mxu0 0
    %5709 = vmatprep.mubr.bf16.mxu0 0
    %5710 = vmatmul.mubr.bf16.gmra.mrb[0].mxu0 %v5651
    %v5711 = vpop.f32.mrb[0].mxu0
    %v5712 = vadd.f32 0.0, %v5711
    %v5713 = vpop.f32.mrb[0].mxu0
    %v5714 = vadd.f32 0.0, %v5713
    %v5715 = vpop.f32.mrb[0].mxu0
    %v5716 = vpop.f32.mrb[0].mxu0
    %5717 = vdwg.mxu0
    %5718 = vmatprep.subr.bf16.mxu0 %v4576
    %5719 = vmatpush1.bf16.msra.mxu0 %v4575
    %5720 = vmatprep.subr.bf16.mxu0 %v4580
    %5721 = vmatpush1.bf16.msra.mxu0 %v4579
    %5722 = vmatprep.subr.bf16.mxu0 %v4584
    %5723 = vmatpush1.bf16.msra.mxu0 %v4583
    %5724 = vmatprep.subr.bf16.mxu0 %v4588
    %5725 = vmatpush1.bf16.msra.mxu0 %v4587
    %5726 = vmatprep.subr.bf16.mxu0 %v4592
    %5727 = vmatpush1.bf16.msra.mxu0 %v4591
    %5728 = vmatprep.subr.bf16.mxu0 %v4596
    %5729 = vmatpush1.bf16.msra.mxu0 %v4595
    %5730 = vmatprep.subr.bf16.mxu0 %v4600
    %5731 = vmatpush1.bf16.msra.mxu0 %v4599
    %5732 = vmatprep.subr.bf16.mxu0 %v4604
    %5733 = vmatpush1.bf16.msra.mxu0 %v4603
    %5734 = vmatprep.subr.bf16.mxu0 0
    %5735 = vmatpush1.bf16.msra.mxu0 0
    %5736 = vmatprep.subr.bf16.mxu0 0
    %5737 = vmatpush1.bf16.msra.mxu0 0
    %5738 = vmatprep.subr.bf16.mxu0 0
    %5739 = vmatpush1.bf16.msra.mxu0 0
    %5740 = vmatprep.subr.bf16.mxu0 0
    %5741 = vmatpush1.bf16.msra.mxu0 0
    %5742 = vmatprep.subr.bf16.mxu0 0
    %5743 = vmatpush1.bf16.msra.mxu0 0
    %5744 = vmatprep.subr.bf16.mxu0 0
    %5745 = vmatpush1.bf16.msra.mxu0 0
    %5746 = vmatprep.subr.bf16.mxu0 0
    %5747 = vmatpush1.bf16.msra.mxu0 0
    %5748 = vmatprep.subr.bf16.mxu0 0
    %5749 = vmatpush1.bf16.msra.mxu0 0
    %5750 = vmatprep.mubr.bf16.mxu0 0
    %5751 = vmatmul.mubr.bf16.gmra.mrb[0].mxu0 %v5651
    %v5752 = vpop.f32.mrb[0].mxu0
    %v5753 = vadd.f32 0.0, %v5752
    %v5754 = vpop.f32.mrb[0].mxu0
    %v5755 = vadd.f32 0.0, %v5754
    %v5756 = vpop.f32.mrb[0].mxu0
    %v5757 = vpop.f32.mrb[0].mxu0
    %5758 = vdwg.mxu0
    %v5759 = vadd.f32 %v5673, %v5712
    %v5760 = vadd.f32 %v5674, %v5714
    %v5761 = vadd.f32 %v5675, %v5753
    %v5762 = vadd.f32 %v5676, %v5755
    %v5763 = vld [vmem:[%s2397] sm:$0xff]
    %v5764 = vld [vmem:[%s2397 + $0x8] sm:$0xff]
    %v5765 = vld [vmem:[%s2397 + $0x10] sm:$0xff]
    %v5766 = vld [vmem:[%s2397 + $0x18] sm:$0xff]
    %5767 = vmatprep.subr.bf16.mxu0 %v4824
    %5768 = vmatpush1.bf16.msra.mxu0 %v4823
    %5769 = vmatprep.subr.bf16.mxu0 %v4828
    %5770 = vmatpush1.bf16.msra.mxu0 %v4827
    %5771 = vmatprep.subr.bf16.mxu0 %v4832
    %5772 = vmatpush1.bf16.msra.mxu0 %v4831
    %5773 = vmatprep.subr.bf16.mxu0 %v4836
    %5774 = vmatpush1.bf16.msra.mxu0 %v4835
    %5775 = vmatprep.subr.bf16.mxu0 %v4840
    %5776 = vmatpush1.bf16.msra.mxu0 %v4839
    %5777 = vmatprep.subr.bf16.mxu0 %v4844
    %5778 = vmatpush1.bf16.msra.mxu0 %v4843
    %5779 = vmatprep.subr.bf16.mxu0 %v4848
    %5780 = vmatpush1.bf16.msra.mxu0 %v4847
    %5781 = vmatprep.subr.bf16.mxu0 %v4852
    %5782 = vmatpush1.bf16.msra.mxu0 %v4851
    %5783 = vmatprep.subr.bf16.mxu0 0
    %5784 = vmatpush1.bf16.msra.mxu0 0
    %5785 = vmatprep.subr.bf16.mxu0 0
    %5786 = vmatpush1.bf16.msra.mxu0 0
    %5787 = vmatprep.subr.bf16.mxu0 0
    %5788 = vmatpush1.bf16.msra.mxu0 0
    %5789 = vmatprep.subr.bf16.mxu0 0
    %5790 = vmatpush1.bf16.msra.mxu0 0
    %5791 = vmatprep.subr.bf16.mxu0 0
    %5792 = vmatpush1.bf16.msra.mxu0 0
    %5793 = vmatprep.subr.bf16.mxu0 0
    %5794 = vmatpush1.bf16.msra.mxu0 0
    %5795 = vmatprep.subr.bf16.mxu0 0
    %5796 = vmatpush1.bf16.msra.mxu0 0
    %5797 = vmatprep.subr.bf16.mxu0 0
    %5798 = vmatpush1.bf16.msra.mxu0 0
    %5799 = vmatprep.mubr.bf16.mxu0 0
    %5800 = vmatmul.mubr.bf16.gmra.mrb[0].mxu0 %v5670
    %v5801 = vpop.f32.mrb[0].mxu0
    %v5802 = vadd.f32 0.0, %v5801
    %v5803 = vpop.f32.mrb[0].mxu0
    %v5804 = vadd.f32 0.0, %v5803
    %v5805 = vpop.f32.mrb[0].mxu0
    %v5806 = vpop.f32.mrb[0].mxu0
    %5807 = vdwg.mxu0
    %5808 = vmatprep.subr.bf16.mxu0 %v4826
    %5809 = vmatpush1.bf16.msra.mxu0 %v4825
    %5810 = vmatprep.subr.bf16.mxu0 %v4830
    %5811 = vmatpush1.bf16.msra.mxu0 %v4829
    %5812 = vmatprep.subr.bf16.mxu0 %v4834
    %5813 = vmatpush1.bf16.msra.mxu0 %v4833
    %5814 = vmatprep.subr.bf16.mxu0 %v4838
    %5815 = vmatpush1.bf16.msra.mxu0 %v4837
    %5816 = vmatprep.subr.bf16.mxu0 %v4842
    %5817 = vmatpush1.bf16.msra.mxu0 %v4841
    %5818 = vmatprep.subr.bf16.mxu0 %v4846
    %5819 = vmatpush1.bf16.msra.mxu0 %v4845
    %5820 = vmatprep.subr.bf16.mxu0 %v4850
    %5821 = vmatpush1.bf16.msra.mxu0 %v4849
    %5822 = vmatprep.subr.bf16.mxu0 %v4854
    %5823 = vmatpush1.bf16.msra.mxu0 %v4853
    %5824 = vmatprep.subr.bf16.mxu0 0
    %5825 = vmatpush1.bf16.msra.mxu0 0
    %5826 = vmatprep.subr.bf16.mxu0 0
    %5827 = vmatpush1.bf16.msra.mxu0 0
    %5828 = vmatprep.subr.bf16.mxu0 0
    %5829 = vmatpush1.bf16.msra.mxu0 0
    %5830 = vmatprep.subr.bf16.mxu0 0
    %5831 = vmatpush1.bf16.msra.mxu0 0
    %5832 = vmatprep.subr.bf16.mxu0 0
    %5833 = vmatpush1.bf16.msra.mxu0 0
    %5834 = vmatprep.subr.bf16.mxu0 0
    %5835 = vmatpush1.bf16.msra.mxu0 0
    %5836 = vmatprep.subr.bf16.mxu0 0
    %5837 = vmatpush1.bf16.msra.mxu0 0
    %5838 = vmatprep.subr.bf16.mxu0 0
    %5839 = vmatpush1.bf16.msra.mxu0 0
    %5840 = vmatprep.mubr.bf16.mxu0 0
    %5841 = vmatmul.mubr.bf16.gmra.mrb[0].mxu0 %v5670
    %v5842 = vpop.f32.mrb[0].mxu0
    %v5843 = vadd.f32 0.0, %v5842
    %v5844 = vpop.f32.mrb[0].mxu0
    %v5845 = vadd.f32 0.0, %v5844
    %v5846 = vpop.f32.mrb[0].mxu0
    %v5847 = vpop.f32.mrb[0].mxu0
    %5848 = vdwg.mxu0
    %v5849 = vadd.f32 %v5763, %v5802
    %v5850 = vadd.f32 %v5764, %v5804
    %v5851 = vadd.f32 %v5765, %v5843
    %v5852 = vadd.f32 %v5766, %v5845
    %v5853 = vmul.f32 %v5759, 0.5
    %v5854 = vtanh.pop %v5853
    %v5855 = vmul.f32 %v5854, 0.5
    %v5856 = vadd.f32 %v5855, 0.5
    %v5857 = vmul.f32 %v5760, 0.5
    %v5858 = vtanh.pop %v5857
    %v5859 = vmul.f32 %v5858, 0.5
    %v5860 = vadd.f32 %v5859, 0.5
    %v5861 = vtanh.pop %v5761
    %v5862 = vmul.f32 %v5762, 0.5
    %v5863 = vtanh.pop %v5862
    %v5864 = vmul.f32 %v5863, 0.5
    %v5865 = vadd.f32 %v5864, 0.5
    %v5866 = vmul.f32 %v5860, %v5648
    %v5867 = vmul.f32 %v5856, %v5861
    %v5868 = vadd.f32 %v5866, %v5867
    %v5869 = vtanh.pop %v5868
    %v5870 = vmul.f32 %v5865, %v5869
    %v5871 = vpack.c.bf16 %v5870, %v5870
    %v5872 = vmul.f32 %v5849, 0.5
    %v5873 = vtanh.pop %v5872
    %v5874 = vmul.f32 %v5873, 0.5
    %v5875 = vadd.f32 %v5874, 0.5
    %v5876 = vmul.f32 %v5850, 0.5
    %v5877 = vtanh.pop %v5876
    %v5878 = vmul.f32 %v5877, 0.5
    %v5879 = vadd.f32 %v5878, 0.5
    %v5880 = vtanh.pop %v5851
    %v5881 = vmul.f32 %v5852, 0.5
    %v5882 = vtanh.pop %v5881
    %v5883 = vmul.f32 %v5882, 0.5
    %v5884 = vadd.f32 %v5883, 0.5
    %v5885 = vmul.f32 %v5879, %v5667
    %v5886 = vmul.f32 %v5875, %v5880
    %v5887 = vadd.f32 %v5885, %v5886
    %v5888 = vtanh.pop %v5887
    %v5889 = vmul.f32 %v5884, %v5888
    %v5890 = vpack.c.bf16 %v5889, %v5889
    %5891 = vst [vmem:[%s2304] sm:$0xf] %v5871
    %5892 = vst [vmem:[%s2302 + $0x4] sm:$0xf] %v5890
    %v5893 = vld [vmem:[%s2528] sm:$0xff]
    %v5894 = vld [vmem:[%s2528 + $0x8] sm:$0xff]
    %v5895 = vld [vmem:[%s2528 + $0x10] sm:$0xff]
    %v5896 = vld [vmem:[%s2528 + $0x18] sm:$0xff]
    %5897 = vmatprep.subr.bf16.mxu0 %v4574
    %5898 = vmatpush1.bf16.msra.mxu0 %v4573
    %5899 = vmatprep.subr.bf16.mxu0 %v4578
    %5900 = vmatpush1.bf16.msra.mxu0 %v4577
    %5901 = vmatprep.subr.bf16.mxu0 %v4582
    %5902 = vmatpush1.bf16.msra.mxu0 %v4581
    %5903 = vmatprep.subr.bf16.mxu0 %v4586
    %5904 = vmatpush1.bf16.msra.mxu0 %v4585
    %5905 = vmatprep.subr.bf16.mxu0 %v4590
    %5906 = vmatpush1.bf16.msra.mxu0 %v4589
    %5907 = vmatprep.subr.bf16.mxu0 %v4594
    %5908 = vmatpush1.bf16.msra.mxu0 %v4593
    %5909 = vmatprep.subr.bf16.mxu0 %v4598
    %5910 = vmatpush1.bf16.msra.mxu0 %v4597
    %5911 = vmatprep.subr.bf16.mxu0 %v4602
    %5912 = vmatpush1.bf16.msra.mxu0 %v4601
    %5913 = vmatprep.subr.bf16.mxu0 0
    %5914 = vmatpush1.bf16.msra.mxu0 0
    %5915 = vmatprep.subr.bf16.mxu0 0
    %5916 = vmatpush1.bf16.msra.mxu0 0
    %5917 = vmatprep.subr.bf16.mxu0 0
    %5918 = vmatpush1.bf16.msra.mxu0 0
    %5919 = vmatprep.subr.bf16.mxu0 0
    %5920 = vmatpush1.bf16.msra.mxu0 0
    %5921 = vmatprep.subr.bf16.mxu0 0
    %5922 = vmatpush1.bf16.msra.mxu0 0
    %5923 = vmatprep.subr.bf16.mxu0 0
    %5924 = vmatpush1.bf16.msra.mxu0 0
    %5925 = vmatprep.subr.bf16.mxu0 0
    %5926 = vmatpush1.bf16.msra.mxu0 0
    %5927 = vmatprep.subr.bf16.mxu0 0
    %5928 = vmatpush1.bf16.msra.mxu0 0
    %5929 = vmatprep.mubr.bf16.mxu0 0
    %5930 = vmatmul.mubr.bf16.gmra.mrb[0].mxu0 %v5871
    %v5931 = vpop.f32.mrb[0].mxu0
    %v5932 = vadd.f32 0.0, %v5931
    %v5933 = vpop.f32.mrb[0].mxu0
    %v5934 = vadd.f32 0.0, %v5933
    %v5935 = vpop.f32.mrb[0].mxu0
    %v5936 = vpop.f32.mrb[0].mxu0
    %5937 = vdwg.mxu0
    %5938 = vmatprep.subr.bf16.mxu0 %v4576
    %5939 = vmatpush1.bf16.msra.mxu0 %v4575
    %5940 = vmatprep.subr.bf16.mxu0 %v4580
    %5941 = vmatpush1.bf16.msra.mxu0 %v4579
    %5942 = vmatprep.subr.bf16.mxu0 %v4584
    %5943 = vmatpush1.bf16.msra.mxu0 %v4583
    %5944 = vmatprep.subr.bf16.mxu0 %v4588
    %5945 = vmatpush1.bf16.msra.mxu0 %v4587
    %5946 = vmatprep.subr.bf16.mxu0 %v4592
    %5947 = vmatpush1.bf16.msra.mxu0 %v4591
    %5948 = vmatprep.subr.bf16.mxu0 %v4596
    %5949 = vmatpush1.bf16.msra.mxu0 %v4595
    %5950 = vmatprep.subr.bf16.mxu0 %v4600
    %5951 = vmatpush1.bf16.msra.mxu0 %v4599
    %5952 = vmatprep.subr.bf16.mxu0 %v4604
    %5953 = vmatpush1.bf16.msra.mxu0 %v4603
    %5954 = vmatprep.subr.bf16.mxu0 0
    %5955 = vmatpush1.bf16.msra.mxu0 0
    %5956 = vmatprep.subr.bf16.mxu0 0
    %5957 = vmatpush1.bf16.msra.mxu0 0
    %5958 = vmatprep.subr.bf16.mxu0 0
    %5959 = vmatpush1.bf16.msra.mxu0 0
    %5960 = vmatprep.subr.bf16.mxu0 0
    %5961 = vmatpush1.bf16.msra.mxu0 0
    %5962 = vmatprep.subr.bf16.mxu0 0
    %5963 = vmatpush1.bf16.msra.mxu0 0
    %5964 = vmatprep.subr.bf16.mxu0 0
    %5965 = vmatpush1.bf16.msra.mxu0 0
    %5966 = vmatprep.subr.bf16.mxu0 0
    %5967 = vmatpush1.bf16.msra.mxu0 0
    %5968 = vmatprep.subr.bf16.mxu0 0
    %5969 = vmatpush1.bf16.msra.mxu0 0
    %5970 = vmatprep.mubr.bf16.mxu0 0
    %5971 = vmatmul.mubr.bf16.gmra.mrb[0].mxu0 %v5871
    %v5972 = vpop.f32.mrb[0].mxu0
    %v5973 = vadd.f32 0.0, %v5972
    %v5974 = vpop.f32.mrb[0].mxu0
    %v5975 = vadd.f32 0.0, %v5974
    %v5976 = vpop.f32.mrb[0].mxu0
    %v5977 = vpop.f32.mrb[0].mxu0
    %5978 = vdwg.mxu0
    %v5979 = vadd.f32 %v5893, %v5932
    %v5980 = vadd.f32 %v5894, %v5934
    %v5981 = vadd.f32 %v5895, %v5973
    %v5982 = vadd.f32 %v5896, %v5975
    %v5983 = vld [vmem:[%s2619] sm:$0xff]
    %v5984 = vld [vmem:[%s2619 + $0x8] sm:$0xff]
    %v5985 = vld [vmem:[%s2619 + $0x10] sm:$0xff]
    %v5986 = vld [vmem:[%s2619 + $0x18] sm:$0xff]
    %5987 = vmatprep.subr.bf16.mxu0 %v4824
    %5988 = vmatpush1.bf16.msra.mxu0 %v4823
    %5989 = vmatprep.subr.bf16.mxu0 %v4828
    %5990 = vmatpush1.bf16.msra.mxu0 %v4827
    %5991 = vmatprep.subr.bf16.mxu0 %v4832
    %5992 = vmatpush1.bf16.msra.mxu0 %v4831
    %5993 = vmatprep.subr.bf16.mxu0 %v4836
    %5994 = vmatpush1.bf16.msra.mxu0 %v4835
    %5995 = vmatprep.subr.bf16.mxu0 %v4840
    %5996 = vmatpush1.bf16.msra.mxu0 %v4839
    %5997 = vmatprep.subr.bf16.mxu0 %v4844
    %5998 = vmatpush1.bf16.msra.mxu0 %v4843
    %5999 = vmatprep.subr.bf16.mxu0 %v4848
    %6000 = vmatpush1.bf16.msra.mxu0 %v4847
    %6001 = vmatprep.subr.bf16.mxu0 %v4852
    %6002 = vmatpush1.bf16.msra.mxu0 %v4851
    %6003 = vmatprep.subr.bf16.mxu0 0
    %6004 = vmatpush1.bf16.msra.mxu0 0
    %6005 = vmatprep.subr.bf16.mxu0 0
    %6006 = vmatpush1.bf16.msra.mxu0 0
    %6007 = vmatprep.subr.bf16.mxu0 0
    %6008 = vmatpush1.bf16.msra.mxu0 0
    %6009 = vmatprep.subr.bf16.mxu0 0
    %6010 = vmatpush1.bf16.msra.mxu0 0
    %6011 = vmatprep.subr.bf16.mxu0 0
    %6012 = vmatpush1.bf16.msra.mxu0 0
    %6013 = vmatprep.subr.bf16.mxu0 0
    %6014 = vmatpush1.bf16.msra.mxu0 0
    %6015 = vmatprep.subr.bf16.mxu0 0
    %6016 = vmatpush1.bf16.msra.mxu0 0
    %6017 = vmatprep.subr.bf16.mxu0 0
    %6018 = vmatpush1.bf16.msra.mxu0 0
    %6019 = vmatprep.mubr.bf16.mxu0 0
    %6020 = vmatmul.mubr.bf16.gmra.mrb[0].mxu0 %v5890
    %v6021 = vpop.f32.mrb[0].mxu0
    %v6022 = vadd.f32 0.0, %v6021
    %v6023 = vpop.f32.mrb[0].mxu0
    %v6024 = vadd.f32 0.0, %v6023
    %v6025 = vpop.f32.mrb[0].mxu0
    %v6026 = vpop.f32.mrb[0].mxu0
    %6027 = vdwg.mxu0
    %6028 = vmatprep.subr.bf16.mxu0 %v4826
    %6029 = vmatpush1.bf16.msra.mxu0 %v4825
    %6030 = vmatprep.subr.bf16.mxu0 %v4830
    %6031 = vmatpush1.bf16.msra.mxu0 %v4829
    %6032 = vmatprep.subr.bf16.mxu0 %v4834
    %6033 = vmatpush1.bf16.msra.mxu0 %v4833
    %6034 = vmatprep.subr.bf16.mxu0 %v4838
    %6035 = vmatpush1.bf16.msra.mxu0 %v4837
    %6036 = vmatprep.subr.bf16.mxu0 %v4842
    %6037 = vmatpush1.bf16.msra.mxu0 %v4841
    %6038 = vmatprep.subr.bf16.mxu0 %v4846
    %6039 = vmatpush1.bf16.msra.mxu0 %v4845
    %6040 = vmatprep.subr.bf16.mxu0 %v4850
    %6041 = vmatpush1.bf16.msra.mxu0 %v4849
    %6042 = vmatprep.subr.bf16.mxu0 %v4854
    %6043 = vmatpush1.bf16.msra.mxu0 %v4853
    %6044 = vmatprep.subr.bf16.mxu0 0
    %6045 = vmatpush1.bf16.msra.mxu0 0
    %6046 = vmatprep.subr.bf16.mxu0 0
    %6047 = vmatpush1.bf16.msra.mxu0 0
    %6048 = vmatprep.subr.bf16.mxu0 0
    %6049 = vmatpush1.bf16.msra.mxu0 0
    %6050 = vmatprep.subr.bf16.mxu0 0
    %6051 = vmatpush1.bf16.msra.mxu0 0
    %6052 = vmatprep.subr.bf16.mxu0 0
    %6053 = vmatpush1.bf16.msra.mxu0 0
    %6054 = vmatprep.subr.bf16.mxu0 0
    %6055 = vmatpush1.bf16.msra.mxu0 0
    %6056 = vmatprep.subr.bf16.mxu0 0
    %6057 = vmatpush1.bf16.msra.mxu0 0
    %6058 = vmatprep.subr.bf16.mxu0 0
    %6059 = vmatpush1.bf16.msra.mxu0 0
    %6060 = vmatprep.mubr.bf16.mxu0 0
    %6061 = vmatmul.mubr.bf16.gmra.mrb[0].mxu0 %v5890
    %v6062 = vpop.f32.mrb[0].mxu0
    %v6063 = vadd.f32 0.0, %v6062
    %v6064 = vpop.f32.mrb[0].mxu0
    %v6065 = vadd.f32 0.0, %v6064
    %v6066 = vpop.f32.mrb[0].mxu0
    %v6067 = vpop.f32.mrb[0].mxu0
    %6068 = vdwg.mxu0
    %v6069 = vadd.f32 %v5983, %v6022
    %v6070 = vadd.f32 %v5984, %v6024
    %v6071 = vadd.f32 %v5985, %v6063
    %v6072 = vadd.f32 %v5986, %v6065
    %v6073 = vmul.f32 %v5979, 0.5
    %v6074 = vtanh.pop %v6073
    %v6075 = vmul.f32 %v6074, 0.5
    %v6076 = vadd.f32 %v6075, 0.5
    %v6077 = vmul.f32 %v5980, 0.5
    %v6078 = vtanh.pop %v6077
    %v6079 = vmul.f32 %v6078, 0.5
    %v6080 = vadd.f32 %v6079, 0.5
    %v6081 = vtanh.pop %v5981
    %v6082 = vmul.f32 %v5982, 0.5
    %v6083 = vtanh.pop %v6082
    %v6084 = vmul.f32 %v6083, 0.5
    %v6085 = vadd.f32 %v6084, 0.5
    %v6086 = vmul.f32 %v6080, %v5868
    %v6087 = vmul.f32 %v6076, %v6081
    %v6088 = vadd.f32 %v6086, %v6087
    %v6089 = vtanh.pop %v6088
    %v6090 = vmul.f32 %v6085, %v6089
    %v6091 = vpack.c.bf16 %v6090, %v6090
    %v6092 = vmul.f32 %v6069, 0.5
    %v6093 = vtanh.pop %v6092
    %v6094 = vmul.f32 %v6093, 0.5
    %v6095 = vadd.f32 %v6094, 0.5
    %v6096 = vmul.f32 %v6070, 0.5
    %v6097 = vtanh.pop %v6096
    %v6098 = vmul.f32 %v6097, 0.5
    %v6099 = vadd.f32 %v6098, 0.5
    %v6100 = vtanh.pop %v6071
    %v6101 = vmul.f32 %v6072, 0.5
    %v6102 = vtanh.pop %v6101
    %v6103 = vmul.f32 %v6102, 0.5
    %v6104 = vadd.f32 %v6103, 0.5
    %v6105 = vmul.f32 %v6099, %v5887
    %v6106 = vmul.f32 %v6095, %v6100
    %v6107 = vadd.f32 %v6105, %v6106
    %v6108 = vtanh.pop %v6107
    %v6109 = vmul.f32 %v6104, %v6108
    %v6110 = vpack.c.bf16 %v6109, %v6109
    %6111 = vst [vmem:[%s2080] sm:$0xf] %v6091
    %6112 = vst [vmem:[%s2078 + $0x4] sm:$0xf] %v6110
    %v6113 = vld [vmem:[%s2750] sm:$0xff]
    %v6114 = vld [vmem:[%s2750 + $0x8] sm:$0xff]
    %v6115 = vld [vmem:[%s2750 + $0x10] sm:$0xff]
    %v6116 = vld [vmem:[%s2750 + $0x18] sm:$0xff]
    %6117 = vmatprep.subr.bf16.mxu0 %v4574
    %6118 = vmatpush1.bf16.msra.mxu0 %v4573
    %6119 = vmatprep.subr.bf16.mxu0 %v4578
    %6120 = vmatpush1.bf16.msra.mxu0 %v4577
    %6121 = vmatprep.subr.bf16.mxu0 %v4582
    %6122 = vmatpush1.bf16.msra.mxu0 %v4581
    %6123 = vmatprep.subr.bf16.mxu0 %v4586
    %6124 = vmatpush1.bf16.msra.mxu0 %v4585
    %6125 = vmatprep.subr.bf16.mxu0 %v4590
    %6126 = vmatpush1.bf16.msra.mxu0 %v4589
    %6127 = vmatprep.subr.bf16.mxu0 %v4594
    %6128 = vmatpush1.bf16.msra.mxu0 %v4593
    %6129 = vmatprep.subr.bf16.mxu0 %v4598
    %6130 = vmatpush1.bf16.msra.mxu0 %v4597
    %6131 = vmatprep.subr.bf16.mxu0 %v4602
    %6132 = vmatpush1.bf16.msra.mxu0 %v4601
    %6133 = vmatprep.subr.bf16.mxu0 0
    %6134 = vmatpush1.bf16.msra.mxu0 0
    %6135 = vmatprep.subr.bf16.mxu0 0
    %6136 = vmatpush1.bf16.msra.mxu0 0
    %6137 = vmatprep.subr.bf16.mxu0 0
    %6138 = vmatpush1.bf16.msra.mxu0 0
    %6139 = vmatprep.subr.bf16.mxu0 0
    %6140 = vmatpush1.bf16.msra.mxu0 0
    %6141 = vmatprep.subr.bf16.mxu0 0
    %6142 = vmatpush1.bf16.msra.mxu0 0
    %6143 = vmatprep.subr.bf16.mxu0 0
    %6144 = vmatpush1.bf16.msra.mxu0 0
    %6145 = vmatprep.subr.bf16.mxu0 0
    %6146 = vmatpush1.bf16.msra.mxu0 0
    %6147 = vmatprep.subr.bf16.mxu0 0
    %6148 = vmatpush1.bf16.msra.mxu0 0
    %6149 = vmatprep.mubr.bf16.mxu0 0
    %6150 = vmatmul.mubr.bf16.gmra.mrb[0].mxu0 %v6091
    %v6151 = vpop.f32.mrb[0].mxu0
    %v6152 = vadd.f32 0.0, %v6151
    %v6153 = vpop.f32.mrb[0].mxu0
    %v6154 = vadd.f32 0.0, %v6153
    %v6155 = vpop.f32.mrb[0].mxu0
    %v6156 = vpop.f32.mrb[0].mxu0
    %6157 = vdwg.mxu0
    %6158 = vmatprep.subr.bf16.mxu0 %v4576
    %6159 = vmatpush1.bf16.msra.mxu0 %v4575
    %6160 = vmatprep.subr.bf16.mxu0 %v4580
    %6161 = vmatpush1.bf16.msra.mxu0 %v4579
    %6162 = vmatprep.subr.bf16.mxu0 %v4584
    %6163 = vmatpush1.bf16.msra.mxu0 %v4583
    %6164 = vmatprep.subr.bf16.mxu0 %v4588
    %6165 = vmatpush1.bf16.msra.mxu0 %v4587
    %6166 = vmatprep.subr.bf16.mxu0 %v4592
    %6167 = vmatpush1.bf16.msra.mxu0 %v4591
    %6168 = vmatprep.subr.bf16.mxu0 %v4596
    %6169 = vmatpush1.bf16.msra.mxu0 %v4595
    %6170 = vmatprep.subr.bf16.mxu0 %v4600
    %6171 = vmatpush1.bf16.msra.mxu0 %v4599
    %6172 = vmatprep.subr.bf16.mxu0 %v4604
    %6173 = vmatpush1.bf16.msra.mxu0 %v4603
    %6174 = vmatprep.subr.bf16.mxu0 0
    %6175 = vmatpush1.bf16.msra.mxu0 0
    %6176 = vmatprep.subr.bf16.mxu0 0
    %6177 = vmatpush1.bf16.msra.mxu0 0
    %6178 = vmatprep.subr.bf16.mxu0 0
    %6179 = vmatpush1.bf16.msra.mxu0 0
    %6180 = vmatprep.subr.bf16.mxu0 0
    %6181 = vmatpush1.bf16.msra.mxu0 0
    %6182 = vmatprep.subr.bf16.mxu0 0
    %6183 = vmatpush1.bf16.msra.mxu0 0
    %6184 = vmatprep.subr.bf16.mxu0 0
    %6185 = vmatpush1.bf16.msra.mxu0 0
    %6186 = vmatprep.subr.bf16.mxu0 0
    %6187 = vmatpush1.bf16.msra.mxu0 0
    %6188 = vmatprep.subr.bf16.mxu0 0
    %6189 = vmatpush1.bf16.msra.mxu0 0
    %6190 = vmatprep.mubr.bf16.mxu0 0
    %6191 = vmatmul.mubr.bf16.gmra.mrb[0].mxu0 %v6091
    %v6192 = vpop.f32.mrb[0].mxu0
    %v6193 = vadd.f32 0.0, %v6192
    %v6194 = vpop.f32.mrb[0].mxu0
    %v6195 = vadd.f32 0.0, %v6194
    %v6196 = vpop.f32.mrb[0].mxu0
    %v6197 = vpop.f32.mrb[0].mxu0
    %6198 = vdwg.mxu0
    %v6199 = vadd.f32 %v6113, %v6152
    %v6200 = vadd.f32 %v6114, %v6154
    %v6201 = vadd.f32 %v6115, %v6193
    %v6202 = vadd.f32 %v6116, %v6195
    %v6203 = vld [vmem:[%s2841] sm:$0xff]
    %v6204 = vld [vmem:[%s2841 + $0x8] sm:$0xff]
    %v6205 = vld [vmem:[%s2841 + $0x10] sm:$0xff]
    %v6206 = vld [vmem:[%s2841 + $0x18] sm:$0xff]
    %6207 = vmatprep.subr.bf16.mxu0 %v4824
    %6208 = vmatpush1.bf16.msra.mxu0 %v4823
    %6209 = vmatprep.subr.bf16.mxu0 %v4828
    %6210 = vmatpush1.bf16.msra.mxu0 %v4827
    %6211 = vmatprep.subr.bf16.mxu0 %v4832
    %6212 = vmatpush1.bf16.msra.mxu0 %v4831
    %6213 = vmatprep.subr.bf16.mxu0 %v4836
    %6214 = vmatpush1.bf16.msra.mxu0 %v4835
    %6215 = vmatprep.subr.bf16.mxu0 %v4840
    %6216 = vmatpush1.bf16.msra.mxu0 %v4839
    %6217 = vmatprep.subr.bf16.mxu0 %v4844
    %6218 = vmatpush1.bf16.msra.mxu0 %v4843
    %6219 = vmatprep.subr.bf16.mxu0 %v4848
    %6220 = vmatpush1.bf16.msra.mxu0 %v4847
    %6221 = vmatprep.subr.bf16.mxu0 %v4852
    %6222 = vmatpush1.bf16.msra.mxu0 %v4851
    %6223 = vmatprep.subr.bf16.mxu0 0
    %6224 = vmatpush1.bf16.msra.mxu0 0
    %6225 = vmatprep.subr.bf16.mxu0 0
    %6226 = vmatpush1.bf16.msra.mxu0 0
    %6227 = vmatprep.subr.bf16.mxu0 0
    %6228 = vmatpush1.bf16.msra.mxu0 0
    %6229 = vmatprep.subr.bf16.mxu0 0
    %6230 = vmatpush1.bf16.msra.mxu0 0
    %6231 = vmatprep.subr.bf16.mxu0 0
    %6232 = vmatpush1.bf16.msra.mxu0 0
    %6233 = vmatprep.subr.bf16.mxu0 0
    %6234 = vmatpush1.bf16.msra.mxu0 0
    %6235 = vmatprep.subr.bf16.mxu0 0
    %6236 = vmatpush1.bf16.msra.mxu0 0
    %6237 = vmatprep.subr.bf16.mxu0 0
    %6238 = vmatpush1.bf16.msra.mxu0 0
    %6239 = vmatprep.mubr.bf16.mxu0 0
    %6240 = vmatmul.mubr.bf16.gmra.mrb[0].mxu0 %v6110
    %v6241 = vpop.f32.mrb[0].mxu0
    %v6242 = vadd.f32 0.0, %v6241
    %v6243 = vpop.f32.mrb[0].mxu0
    %v6244 = vadd.f32 0.0, %v6243
    %v6245 = vpop.f32.mrb[0].mxu0
    %v6246 = vpop.f32.mrb[0].mxu0
    %6247 = vdwg.mxu0
    %6248 = vmatprep.subr.bf16.mxu0 %v4826
    %6249 = vmatpush1.bf16.msra.mxu0 %v4825
    %6250 = vmatprep.subr.bf16.mxu0 %v4830
    %6251 = vmatpush1.bf16.msra.mxu0 %v4829
    %6252 = vmatprep.subr.bf16.mxu0 %v4834
    %6253 = vmatpush1.bf16.msra.mxu0 %v4833
    %6254 = vmatprep.subr.bf16.mxu0 %v4838
    %6255 = vmatpush1.bf16.msra.mxu0 %v4837
    %6256 = vmatprep.subr.bf16.mxu0 %v4842
    %6257 = vmatpush1.bf16.msra.mxu0 %v4841
    %6258 = vmatprep.subr.bf16.mxu0 %v4846
    %6259 = vmatpush1.bf16.msra.mxu0 %v4845
    %6260 = vmatprep.subr.bf16.mxu0 %v4850
    %6261 = vmatpush1.bf16.msra.mxu0 %v4849
    %6262 = vmatprep.subr.bf16.mxu0 %v4854
    %6263 = vmatpush1.bf16.msra.mxu0 %v4853
    %6264 = vmatprep.subr.bf16.mxu0 0
    %6265 = vmatpush1.bf16.msra.mxu0 0
    %6266 = vmatprep.subr.bf16.mxu0 0
    %6267 = vmatpush1.bf16.msra.mxu0 0
    %6268 = vmatprep.subr.bf16.mxu0 0
    %6269 = vmatpush1.bf16.msra.mxu0 0
    %6270 = vmatprep.subr.bf16.mxu0 0
    %6271 = vmatpush1.bf16.msra.mxu0 0
    %6272 = vmatprep.subr.bf16.mxu0 0
    %6273 = vmatpush1.bf16.msra.mxu0 0
    %6274 = vmatprep.subr.bf16.mxu0 0
    %6275 = vmatpush1.bf16.msra.mxu0 0
    %6276 = vmatprep.subr.bf16.mxu0 0
    %6277 = vmatpush1.bf16.msra.mxu0 0
    %6278 = vmatprep.subr.bf16.mxu0 0
    %6279 = vmatpush1.bf16.msra.mxu0 0
    %6280 = vmatprep.mubr.bf16.mxu0 0
    %6281 = vmatmul.mubr.bf16.gmra.mrb[0].mxu0 %v6110
    %v6282 = vpop.f32.mrb[0].mxu0
    %v6283 = vadd.f32 0.0, %v6282
    %v6284 = vpop.f32.mrb[0].mxu0
    %v6285 = vadd.f32 0.0, %v6284
    %v6286 = vpop.f32.mrb[0].mxu0
    %v6287 = vpop.f32.mrb[0].mxu0
    %6288 = vdwg.mxu0
    %v6289 = vadd.f32 %v6203, %v6242
    %v6290 = vadd.f32 %v6204, %v6244
    %v6291 = vadd.f32 %v6205, %v6283
    %v6292 = vadd.f32 %v6206, %v6285
    %v6293 = vmul.f32 %v6199, 0.5
    %v6294 = vtanh.pop %v6293
    %v6295 = vmul.f32 %v6294, 0.5
    %v6296 = vadd.f32 %v6295, 0.5
    %v6297 = vmul.f32 %v6200, 0.5
    %v6298 = vtanh.pop %v6297
    %v6299 = vmul.f32 %v6298, 0.5
    %v6300 = vadd.f32 %v6299, 0.5
    %v6301 = vtanh.pop %v6201
    %v6302 = vmul.f32 %v6202, 0.5
    %v6303 = vtanh.pop %v6302
    %v6304 = vmul.f32 %v6303, 0.5
    %v6305 = vadd.f32 %v6304, 0.5
    %v6306 = vmul.f32 %v6300, %v6088
    %v6307 = vmul.f32 %v6296, %v6301
    %v6308 = vadd.f32 %v6306, %v6307
    %v6309 = vtanh.pop %v6308
    %v6310 = vmul.f32 %v6305, %v6309
    %v6311 = vpack.c.bf16 %v6310, %v6310
    %v6312 = vmul.f32 %v6289, 0.5
    %v6313 = vtanh.pop %v6312
    %v6314 = vmul.f32 %v6313, 0.5
    %v6315 = vadd.f32 %v6314, 0.5
    %v6316 = vmul.f32 %v6290, 0.5
    %v6317 = vtanh.pop %v6316
    %v6318 = vmul.f32 %v6317, 0.5
    %v6319 = vadd.f32 %v6318, 0.5
    %v6320 = vtanh.pop %v6291
    %v6321 = vmul.f32 %v6292, 0.5
    %v6322 = vtanh.pop %v6321
    %v6323 = vmul.f32 %v6322, 0.5
    %v6324 = vadd.f32 %v6323, 0.5
    %v6325 = vmul.f32 %v6319, %v6107
    %v6326 = vmul.f32 %v6315, %v6320
    %v6327 = vadd.f32 %v6325, %v6326
    %v6328 = vtanh.pop %v6327
    %v6329 = vmul.f32 %v6324, %v6328
    %v6330 = vpack.c.bf16 %v6329, %v6329
    %6331 = vst [vmem:[%s1856] sm:$0xf] %v6311
    %6332 = vst [vmem:[%s1854 + $0x4] sm:$0xf] %v6330
    %v6333 = vld [vmem:[%s2972] sm:$0xff]
    %v6334 = vld [vmem:[%s2972 + $0x8] sm:$0xff]
    %v6335 = vld [vmem:[%s2972 + $0x10] sm:$0xff]
    %v6336 = vld [vmem:[%s2972 + $0x18] sm:$0xff]
    %6337 = vmatprep.subr.bf16.mxu0 %v4574
    %6338 = vmatpush1.bf16.msra.mxu0 %v4573
    %6339 = vmatprep.subr.bf16.mxu0 %v4578
    %6340 = vmatpush1.bf16.msra.mxu0 %v4577
    %6341 = vmatprep.subr.bf16.mxu0 %v4582
    %6342 = vmatpush1.bf16.msra.mxu0 %v4581
    %6343 = vmatprep.subr.bf16.mxu0 %v4586
    %6344 = vmatpush1.bf16.msra.mxu0 %v4585
    %6345 = vmatprep.subr.bf16.mxu0 %v4590
    %6346 = vmatpush1.bf16.msra.mxu0 %v4589
    %6347 = vmatprep.subr.bf16.mxu0 %v4594
    %6348 = vmatpush1.bf16.msra.mxu0 %v4593
    %6349 = vmatprep.subr.bf16.mxu0 %v4598
    %6350 = vmatpush1.bf16.msra.mxu0 %v4597
    %6351 = vmatprep.subr.bf16.mxu0 %v4602
    %6352 = vmatpush1.bf16.msra.mxu0 %v4601
    %6353 = vmatprep.subr.bf16.mxu0 0
    %6354 = vmatpush1.bf16.msra.mxu0 0
    %6355 = vmatprep.subr.bf16.mxu0 0
    %6356 = vmatpush1.bf16.msra.mxu0 0
    %6357 = vmatprep.subr.bf16.mxu0 0
    %6358 = vmatpush1.bf16.msra.mxu0 0
    %6359 = vmatprep.subr.bf16.mxu0 0
    %6360 = vmatpush1.bf16.msra.mxu0 0
    %6361 = vmatprep.subr.bf16.mxu0 0
    %6362 = vmatpush1.bf16.msra.mxu0 0
    %6363 = vmatprep.subr.bf16.mxu0 0
    %6364 = vmatpush1.bf16.msra.mxu0 0
    %6365 = vmatprep.subr.bf16.mxu0 0
    %6366 = vmatpush1.bf16.msra.mxu0 0
    %6367 = vmatprep.subr.bf16.mxu0 0
    %6368 = vmatpush1.bf16.msra.mxu0 0
    %6369 = vmatprep.mubr.bf16.mxu0 0
    %6370 = vmatmul.mubr.bf16.gmra.mrb[0].mxu0 %v6311
    %v6371 = vpop.f32.mrb[0].mxu0
    %v6372 = vadd.f32 0.0, %v6371
    %v6373 = vpop.f32.mrb[0].mxu0
    %v6374 = vadd.f32 0.0, %v6373
    %v6375 = vpop.f32.mrb[0].mxu0
    %v6376 = vpop.f32.mrb[0].mxu0
    %6377 = vdwg.mxu0
    %6378 = vmatprep.subr.bf16.mxu0 %v4576
    %6379 = vmatpush1.bf16.msra.mxu0 %v4575
    %6380 = vmatprep.subr.bf16.mxu0 %v4580
    %6381 = vmatpush1.bf16.msra.mxu0 %v4579
    %6382 = vmatprep.subr.bf16.mxu0 %v4584
    %6383 = vmatpush1.bf16.msra.mxu0 %v4583
    %6384 = vmatprep.subr.bf16.mxu0 %v4588
    %6385 = vmatpush1.bf16.msra.mxu0 %v4587
    %6386 = vmatprep.subr.bf16.mxu0 %v4592
    %6387 = vmatpush1.bf16.msra.mxu0 %v4591
    %6388 = vmatprep.subr.bf16.mxu0 %v4596
    %6389 = vmatpush1.bf16.msra.mxu0 %v4595
    %6390 = vmatprep.subr.bf16.mxu0 %v4600
    %6391 = vmatpush1.bf16.msra.mxu0 %v4599
    %6392 = vmatprep.subr.bf16.mxu0 %v4604
    %6393 = vmatpush1.bf16.msra.mxu0 %v4603
    %6394 = vmatprep.subr.bf16.mxu0 0
    %6395 = vmatpush1.bf16.msra.mxu0 0
    %6396 = vmatprep.subr.bf16.mxu0 0
    %6397 = vmatpush1.bf16.msra.mxu0 0
    %6398 = vmatprep.subr.bf16.mxu0 0
    %6399 = vmatpush1.bf16.msra.mxu0 0
    %6400 = vmatprep.subr.bf16.mxu0 0
    %6401 = vmatpush1.bf16.msra.mxu0 0
    %6402 = vmatprep.subr.bf16.mxu0 0
    %6403 = vmatpush1.bf16.msra.mxu0 0
    %6404 = vmatprep.subr.bf16.mxu0 0
    %6405 = vmatpush1.bf16.msra.mxu0 0
    %6406 = vmatprep.subr.bf16.mxu0 0
    %6407 = vmatpush1.bf16.msra.mxu0 0
    %6408 = vmatprep.subr.bf16.mxu0 0
    %6409 = vmatpush1.bf16.msra.mxu0 0
    %6410 = vmatprep.mubr.bf16.mxu0 0
    %6411 = vmatmul.mubr.bf16.gmra.mrb[0].mxu0 %v6311
    %v6412 = vpop.f32.mrb[0].mxu0
    %v6413 = vadd.f32 0.0, %v6412
    %v6414 = vpop.f32.mrb[0].mxu0
    %v6415 = vadd.f32 0.0, %v6414
    %v6416 = vpop.f32.mrb[0].mxu0
    %v6417 = vpop.f32.mrb[0].mxu0
    %6418 = vdwg.mxu0
    %v6419 = vadd.f32 %v6333, %v6372
    %v6420 = vadd.f32 %v6334, %v6374
    %v6421 = vadd.f32 %v6335, %v6413
    %v6422 = vadd.f32 %v6336, %v6415
    %v6423 = vld [vmem:[#allocation3] sm:$0xff]
    %v6424 = vld [vmem:[#allocation3 + $0x8] sm:$0xff]
    %v6425 = vld [vmem:[#allocation3 + $0x10] sm:$0xff]
    %v6426 = vld [vmem:[#allocation3 + $0x18] sm:$0xff]
    %6427 = vmatprep.subr.bf16.mxu0 %v4824
    %6428 = vmatpush1.bf16.msra.mxu0 %v4823
    %6429 = vmatprep.subr.bf16.mxu0 %v4828
    %6430 = vmatpush1.bf16.msra.mxu0 %v4827
    %6431 = vmatprep.subr.bf16.mxu0 %v4832
    %6432 = vmatpush1.bf16.msra.mxu0 %v4831
    %6433 = vmatprep.subr.bf16.mxu0 %v4836
    %6434 = vmatpush1.bf16.msra.mxu0 %v4835
    %6435 = vmatprep.subr.bf16.mxu0 %v4840
    %6436 = vmatpush1.bf16.msra.mxu0 %v4839
    %6437 = vmatprep.subr.bf16.mxu0 %v4844
    %6438 = vmatpush1.bf16.msra.mxu0 %v4843
    %6439 = vmatprep.subr.bf16.mxu0 %v4848
    %6440 = vmatpush1.bf16.msra.mxu0 %v4847
    %6441 = vmatprep.subr.bf16.mxu0 %v4852
    %6442 = vmatpush1.bf16.msra.mxu0 %v4851
    %6443 = vmatprep.subr.bf16.mxu0 0
    %6444 = vmatpush1.bf16.msra.mxu0 0
    %6445 = vmatprep.subr.bf16.mxu0 0
    %6446 = vmatpush1.bf16.msra.mxu0 0
    %6447 = vmatprep.subr.bf16.mxu0 0
    %6448 = vmatpush1.bf16.msra.mxu0 0
    %6449 = vmatprep.subr.bf16.mxu0 0
    %6450 = vmatpush1.bf16.msra.mxu0 0
    %6451 = vmatprep.subr.bf16.mxu0 0
    %6452 = vmatpush1.bf16.msra.mxu0 0
    %6453 = vmatprep.subr.bf16.mxu0 0
    %6454 = vmatpush1.bf16.msra.mxu0 0
    %6455 = vmatprep.subr.bf16.mxu0 0
    %6456 = vmatpush1.bf16.msra.mxu0 0
    %6457 = vmatprep.subr.bf16.mxu0 0
    %6458 = vmatpush1.bf16.msra.mxu0 0
    %6459 = vmatprep.mubr.bf16.mxu0 0
    %6460 = vmatmul.mubr.bf16.gmra.mrb[0].mxu0 %v6330
    %v6461 = vpop.f32.mrb[0].mxu0
    %v6462 = vadd.f32 0.0, %v6461
    %v6463 = vpop.f32.mrb[0].mxu0
    %v6464 = vadd.f32 0.0, %v6463
    %v6465 = vpop.f32.mrb[0].mxu0
    %v6466 = vpop.f32.mrb[0].mxu0
    %6467 = vdwg.mxu0
    %6468 = vmatprep.subr.bf16.mxu0 %v4826
    %6469 = vmatpush1.bf16.msra.mxu0 %v4825
    %6470 = vmatprep.subr.bf16.mxu0 %v4830
    %6471 = vmatpush1.bf16.msra.mxu0 %v4829
    %6472 = vmatprep.subr.bf16.mxu0 %v4834
    %6473 = vmatpush1.bf16.msra.mxu0 %v4833
    %6474 = vmatprep.subr.bf16.mxu0 %v4838
    %6475 = vmatpush1.bf16.msra.mxu0 %v4837
    %6476 = vmatprep.subr.bf16.mxu0 %v4842
    %6477 = vmatpush1.bf16.msra.mxu0 %v4841
    %6478 = vmatprep.subr.bf16.mxu0 %v4846
    %6479 = vmatpush1.bf16.msra.mxu0 %v4845
    %6480 = vmatprep.subr.bf16.mxu0 %v4850
    %6481 = vmatpush1.bf16.msra.mxu0 %v4849
    %6482 = vmatprep.subr.bf16.mxu0 %v4854
    %6483 = vmatpush1.bf16.msra.mxu0 %v4853
    %6484 = vmatprep.subr.bf16.mxu0 0
    %6485 = vmatpush1.bf16.msra.mxu0 0
    %6486 = vmatprep.subr.bf16.mxu0 0
    %6487 = vmatpush1.bf16.msra.mxu0 0
    %6488 = vmatprep.subr.bf16.mxu0 0
    %6489 = vmatpush1.bf16.msra.mxu0 0
    %6490 = vmatprep.subr.bf16.mxu0 0
    %6491 = vmatpush1.bf16.msra.mxu0 0
    %6492 = vmatprep.subr.bf16.mxu0 0
    %6493 = vmatpush1.bf16.msra.mxu0 0
    %6494 = vmatprep.subr.bf16.mxu0 0
    %6495 = vmatpush1.bf16.msra.mxu0 0
    %6496 = vmatprep.subr.bf16.mxu0 0
    %6497 = vmatpush1.bf16.msra.mxu0 0
    %6498 = vmatprep.subr.bf16.mxu0 0
    %6499 = vmatpush1.bf16.msra.mxu0 0
    %6500 = vmatprep.mubr.bf16.mxu0 0
    %6501 = vmatmul.mubr.bf16.gmra.mrb[0].mxu0 %v6330
    %v6502 = vpop.f32.mrb[0].mxu0
    %v6503 = vadd.f32 0.0, %v6502
    %v6504 = vpop.f32.mrb[0].mxu0
    %v6505 = vadd.f32 0.0, %v6504
    %v6506 = vpop.f32.mrb[0].mxu0
    %v6507 = vpop.f32.mrb[0].mxu0
    %6508 = vdwg.mxu0
    %v6509 = vadd.f32 %v6423, %v6462
    %v6510 = vadd.f32 %v6424, %v6464
    %v6511 = vadd.f32 %v6425, %v6503
    %v6512 = vadd.f32 %v6426, %v6505
    %v6513 = vmul.f32 %v6419, 0.5
    %v6514 = vtanh.pop %v6513
    %v6515 = vmul.f32 %v6514, 0.5
    %v6516 = vadd.f32 %v6515, 0.5
    %v6517 = vmul.f32 %v6420, 0.5
    %v6518 = vtanh.pop %v6517
    %v6519 = vmul.f32 %v6518, 0.5
    %v6520 = vadd.f32 %v6519, 0.5
    %v6521 = vtanh.pop %v6421
    %v6522 = vmul.f32 %v6422, 0.5
    %v6523 = vtanh.pop %v6522
    %v6524 = vmul.f32 %v6523, 0.5
    %v6525 = vadd.f32 %v6524, 0.5
    %v6526 = vmul.f32 %v6520, %v6308
    %v6527 = vmul.f32 %v6516, %v6521
    %v6528 = vadd.f32 %v6526, %v6527
    %v6529 = vtanh.pop %v6528
    %v6530 = vmul.f32 %v6525, %v6529
    %v6531 = vpack.c.bf16 %v6530, %v6530
    %v6532 = vmul.f32 %v6509, 0.5
    %v6533 = vtanh.pop %v6532
    %v6534 = vmul.f32 %v6533, 0.5
    %v6535 = vadd.f32 %v6534, 0.5
    %v6536 = vmul.f32 %v6510, 0.5
    %v6537 = vtanh.pop %v6536
    %v6538 = vmul.f32 %v6537, 0.5
    %v6539 = vadd.f32 %v6538, 0.5
    %v6540 = vtanh.pop %v6511
    %v6541 = vmul.f32 %v6512, 0.5
    %v6542 = vtanh.pop %v6541
    %v6543 = vmul.f32 %v6542, 0.5
    %v6544 = vadd.f32 %v6543, 0.5
    %v6545 = vmul.f32 %v6539, %v6327
    %v6546 = vmul.f32 %v6535, %v6540
    %v6547 = vadd.f32 %v6545, %v6546
    %v6548 = vtanh.pop %v6547
    %v6549 = vmul.f32 %v6544, %v6548
    %v6550 = vpack.c.bf16 %v6549, %v6549
    %6551 = vst [vmem:[%s1632] sm:$0xf] %v6531
    %6552 = vst [vmem:[#allocation4 + $0x4] sm:$0xf] %v6550
    %v6553 = vld [vmem:[#allocation4] sm:$0xff]
    %v6554 = vld [vmem:[#allocation4 + $0x8] sm:$0xff]
    %v6555 = vld [vmem:[#allocation4 + $0x10] sm:$0xff]
    %v6556 = vld [vmem:[#allocation4 + $0x18] sm:$0xff]
    %v6557 = vld [vmem:[#allocation4 + $0x20] sm:$0xff]
    %v6558 = vld [vmem:[#allocation4 + $0x28] sm:$0xff]
    %v6559 = vld [vmem:[#allocation4 + $0x30] sm:$0xff]
    %v6560 = vld [vmem:[#allocation4 + $0x38] sm:$0xff]
    %v6561 = vld [vmem:[#allocation22] sm:$0xf]
    %v6562 = vld [vmem:[#allocation22 + $0x4] sm:$0xf]
    %v6563 = vld [vmem:[#allocation22 + $0x8] sm:$0xf]
    %v6564 = vld [vmem:[#allocation22 + $0xc] sm:$0xf]
    %v6565 = vld [vmem:[#allocation22 + $0x10] sm:$0xf]
    %v6566 = vld [vmem:[#allocation22 + $0x14] sm:$0xf]
    %v6567 = vld [vmem:[#allocation22 + $0x18] sm:$0xf]
    %v6568 = vld [vmem:[#allocation22 + $0x1c] sm:$0xf]
    %v6569 = vld [vmem:[#allocation22 + $0x20] sm:$0xf]
    %v6570 = vld [vmem:[#allocation22 + $0x24] sm:$0xf]
    %v6571 = vld [vmem:[#allocation22 + $0x28] sm:$0xf]
    %v6572 = vld [vmem:[#allocation22 + $0x2c] sm:$0xf]
    %v6573 = vld [vmem:[#allocation22 + $0x30] sm:$0xf]
    %v6574 = vld [vmem:[#allocation22 + $0x34] sm:$0xf]
    %v6575 = vld [vmem:[#allocation22 + $0x38] sm:$0xf]
    %v6576 = vld [vmem:[#allocation22 + $0x3c] sm:$0xf]
    %v6577 = vld [vmem:[#allocation22 + $0x40] sm:$0xf]
    %v6578 = vld [vmem:[#allocation22 + $0x44] sm:$0xf]
    %v6579 = vld [vmem:[#allocation22 + $0x48] sm:$0xf]
    %v6580 = vld [vmem:[#allocation22 + $0x4c] sm:$0xf]
    %v6581 = vld [vmem:[#allocation22 + $0x50] sm:$0xf]
    %v6582 = vld [vmem:[#allocation22 + $0x54] sm:$0xf]
    %v6583 = vld [vmem:[#allocation22 + $0x58] sm:$0xf]
    %v6584 = vld [vmem:[#allocation22 + $0x5c] sm:$0xf]
    %v6585 = vld [vmem:[#allocation22 + $0x60] sm:$0xf]
    %v6586 = vld [vmem:[#allocation22 + $0x64] sm:$0xf]
    %v6587 = vld [vmem:[#allocation22 + $0x68] sm:$0xf]
    %v6588 = vld [vmem:[#allocation22 + $0x6c] sm:$0xf]
    %v6589 = vld [vmem:[#allocation22 + $0x70] sm:$0xf]
    %v6590 = vld [vmem:[#allocation22 + $0x74] sm:$0xf]
    %v6591 = vld [vmem:[#allocation22 + $0x78] sm:$0xf]
    %v6592 = vld [vmem:[#allocation22 + $0x7c] sm:$0xf]
    %v6593 = vld [vmem:[%s14] sm:$0x1]
    %v6595 = vlaneseq
    %v6596 = vshrl.u32 %v6595, 7
    %v6597 = vsub.s32 0, %v6596
    %v6598 = vrot.slane %v6593, %v6597
    %v6608 = vunpack.c.l.b16 %v6553
    %v6609 = vunpack.c.h.b16 %v6553
    %v6610 = vunpack.c.l.b16 %v6554
    %v6611 = vunpack.c.h.b16 %v6554
    %v6612 = vunpack.c.l.b16 %v6555
    %v6613 = vunpack.c.h.b16 %v6555
    %v6614 = vunpack.c.l.b16 %v6556
    %v6615 = vunpack.c.h.b16 %v6556
    %v6616 = vunpack.c.l.b16 %v6557
    %v6617 = vunpack.c.h.b16 %v6557
    %v6618 = vunpack.c.l.b16 %v6558
    %v6619 = vunpack.c.h.b16 %v6558
    %v6620 = vunpack.c.l.b16 %v6559
    %v6621 = vunpack.c.h.b16 %v6559
    %v6622 = vunpack.c.l.b16 %v6560
    %v6623 = vunpack.c.h.b16 %v6560
    %v6624 = vpack.c.b16 %v6610, %v6608
    %v6625 = vpack.c.b16 %v6611, %v6609
    %v6626 = vpack.c.b16 %v6614, %v6612
    %v6627 = vpack.c.b16 %v6615, %v6613
    %v6628 = vpack.c.b16 %v6618, %v6616
    %v6629 = vpack.c.b16 %v6619, %v6617
    %v6630 = vpack.c.b16 %v6622, %v6620
    %v6631 = vpack.c.b16 %v6623, %v6621
    %v6672 = vunpack.c.l.b16 %v6561
    %v6673 = vunpack.c.l.b16 %v6562
    %v6674 = vunpack.c.l.b16 %v6563
    %v6675 = vunpack.c.l.b16 %v6564
    %v6676 = vunpack.c.l.b16 %v6565
    %v6677 = vunpack.c.l.b16 %v6566
    %v6678 = vunpack.c.l.b16 %v6567
    %v6679 = vunpack.c.l.b16 %v6568
    %v6680 = vunpack.c.l.b16 %v6569
    %v6681 = vunpack.c.l.b16 %v6570
    %v6682 = vunpack.c.l.b16 %v6571
    %v6683 = vunpack.c.l.b16 %v6572
    %v6684 = vunpack.c.l.b16 %v6573
    %v6685 = vunpack.c.l.b16 %v6574
    %v6686 = vunpack.c.l.b16 %v6575
    %v6687 = vunpack.c.l.b16 %v6576
    %v6688 = vunpack.c.l.b16 %v6577
    %v6689 = vunpack.c.l.b16 %v6578
    %v6690 = vunpack.c.l.b16 %v6579
    %v6691 = vunpack.c.l.b16 %v6580
    %v6692 = vunpack.c.l.b16 %v6581
    %v6693 = vunpack.c.l.b16 %v6582
    %v6694 = vunpack.c.l.b16 %v6583
    %v6695 = vunpack.c.l.b16 %v6584
    %v6696 = vunpack.c.l.b16 %v6585
    %v6697 = vunpack.c.l.b16 %v6586
    %v6698 = vunpack.c.l.b16 %v6587
    %v6699 = vunpack.c.l.b16 %v6588
    %v6700 = vunpack.c.l.b16 %v6589
    %v6701 = vunpack.c.l.b16 %v6590
    %v6702 = vunpack.c.l.b16 %v6591
    %v6703 = vunpack.c.l.b16 %v6592
    %v6704 = vpack.c.b16 %v6673, %v6672
    %v6705 = vpack.c.b16 %v6675, %v6674
    %v6706 = vpack.c.b16 %v6677, %v6676
    %v6707 = vpack.c.b16 %v6679, %v6678
    %v6708 = vpack.c.b16 %v6681, %v6680
    %v6709 = vpack.c.b16 %v6683, %v6682
    %v6710 = vpack.c.b16 %v6685, %v6684
    %v6711 = vpack.c.b16 %v6687, %v6686
    %v6712 = vpack.c.b16 %v6689, %v6688
    %v6713 = vpack.c.b16 %v6691, %v6690
    %v6714 = vpack.c.b16 %v6693, %v6692
    %v6715 = vpack.c.b16 %v6695, %v6694
    %v6716 = vpack.c.b16 %v6697, %v6696
    %v6717 = vpack.c.b16 %v6699, %v6698
    %v6718 = vpack.c.b16 %v6701, %v6700
    %v6719 = vpack.c.b16 %v6703, %v6702
    %6736 = vmatprep.subr.bf16.mxu0 0
    %6737 = vmatpush1.bf16.msra.mxu0 %v6704
    %6738 = vmatprep.subr.bf16.mxu0 0
    %6739 = vmatpush1.bf16.msra.mxu0 %v6705
    %6740 = vmatprep.subr.bf16.mxu0 0
    %6741 = vmatpush1.bf16.msra.mxu0 %v6706
    %6742 = vmatprep.subr.bf16.mxu0 0
    %6743 = vmatpush1.bf16.msra.mxu0 %v6707
    %6744 = vmatprep.subr.bf16.mxu0 0
    %6745 = vmatpush1.bf16.msra.mxu0 %v6708
    %6746 = vmatprep.subr.bf16.mxu0 0
    %6747 = vmatpush1.bf16.msra.mxu0 %v6709
    %6748 = vmatprep.subr.bf16.mxu0 0
    %6749 = vmatpush1.bf16.msra.mxu0 %v6710
    %6750 = vmatprep.subr.bf16.mxu0 0
    %6751 = vmatpush1.bf16.msra.mxu0 %v6711
    %6752 = vmatprep.subr.bf16.mxu0 0
    %6753 = vmatpush1.bf16.msra.mxu0 %v6712
    %6754 = vmatprep.subr.bf16.mxu0 0
    %6755 = vmatpush1.bf16.msra.mxu0 %v6713
    %6756 = vmatprep.subr.bf16.mxu0 0
    %6757 = vmatpush1.bf16.msra.mxu0 %v6714
    %6758 = vmatprep.subr.bf16.mxu0 0
    %6759 = vmatpush1.bf16.msra.mxu0 %v6715
    %6760 = vmatprep.subr.bf16.mxu0 0
    %6761 = vmatpush1.bf16.msra.mxu0 %v6716
    %6762 = vmatprep.subr.bf16.mxu0 0
    %6763 = vmatpush1.bf16.msra.mxu0 %v6717
    %6764 = vmatprep.subr.bf16.mxu0 0
    %6765 = vmatpush1.bf16.msra.mxu0 %v6718
    %6766 = vmatprep.subr.bf16.mxu0 0
    %6767 = vmatpush1.bf16.msra.mxu0 %v6719
    %6768 = vmatprep.mubr.bf16.mxu0 %v6625
    %6769 = vmatmul.mubr.bf16.gmra.mrb[0].mxu0 %v6624
    %v6770 = vpop.f32.mrb[0].mxu0
    %v6771 = vadd.f32 %v6598, %v6770
    %v6772 = vpop.f32.mrb[0].mxu0
    %v6773 = vpop.f32.mrb[0].mxu0
    %v6774 = vadd.f32 %v6598, %v6773
    %v6775 = vpop.f32.mrb[0].mxu0
    %6776 = vmatprep.mubr.bf16.mxu0 %v6627
    %6777 = vmatmul.mubr.bf16.gmra.mrb[0].mxu0 %v6626
    %v6778 = vpop.f32.mrb[0].mxu0
    %v6779 = vadd.f32 %v6598, %v6778
    %v6780 = vpop.f32.mrb[0].mxu0
    %v6781 = vpop.f32.mrb[0].mxu0
    %v6782 = vadd.f32 %v6598, %v6781
    %v6783 = vpop.f32.mrb[0].mxu0
    %6784 = vmatprep.mubr.bf16.mxu0 %v6629
    %6785 = vmatmul.mubr.bf16.gmra.mrb[0].mxu0 %v6628
    %v6786 = vpop.f32.mrb[0].mxu0
    %v6787 = vadd.f32 %v6598, %v6786
    %v6788 = vpop.f32.mrb[0].mxu0
    %v6789 = vpop.f32.mrb[0].mxu0
    %v6790 = vadd.f32 %v6598, %v6789
    %v6791 = vpop.f32.mrb[0].mxu0
    %6792 = vmatprep.mubr.bf16.mxu0 %v6631
    %6793 = vmatmul.mubr.bf16.gmra.mrb[0].mxu0 %v6630
    %v6794 = vpop.f32.mrb[0].mxu0
    %v6795 = vadd.f32 %v6598, %v6794
    %v6796 = vpop.f32.mrb[0].mxu0
    %v6797 = vpop.f32.mrb[0].mxu0
    %v6798 = vadd.f32 %v6598, %v6797
    %v6799 = vpop.f32.mrb[0].mxu0
    %6800 = vdwg.mxu0
    %v6801 = vmax.f32 %v6771, 0.0
    %v6802 = vmax.f32 %v6774, 0.0
    %v6803 = vmax.f32 %v6779, 0.0
    %v6804 = vmax.f32 %v6782, 0.0
    %v6805 = vmax.f32 %v6787, 0.0
    %v6806 = vmax.f32 %v6790, 0.0
    %v6807 = vmax.f32 %v6795, 0.0
    %v6808 = vmax.f32 %v6798, 0.0
    %v6809 = vpack.c.bf16 %v6802, %v6801
    %v6810 = vpack.c.bf16 %v6804, %v6803
    %v6811 = vpack.c.bf16 %v6806, %v6805
    %v6812 = vpack.c.bf16 %v6808, %v6807
    %v6813 = vld [vmem:[%s15] sm:$0xf]
    %v6814 = vld [vmem:[%s15 + $0x4] sm:$0xf]
    %v6815 = vld [vmem:[%s15 + $0x8] sm:$0xf]
    %v6816 = vld [vmem:[%s15 + $0xc] sm:$0xf]
    %v6817 = vld [vmem:[%s15 + $0x10] sm:$0xf]
    %v6818 = vld [vmem:[%s15 + $0x14] sm:$0xf]
    %v6819 = vld [vmem:[%s15 + $0x18] sm:$0xf]
    %v6820 = vld [vmem:[%s15 + $0x1c] sm:$0xf]
    %v6821 = vld [vmem:[%s15 + $0x20] sm:$0xf]
    %v6822 = vld [vmem:[%s15 + $0x24] sm:$0xf]
    %v6823 = vld [vmem:[%s15 + $0x28] sm:$0xf]
    %v6824 = vld [vmem:[%s15 + $0x2c] sm:$0xf]
    %v6825 = vld [vmem:[%s15 + $0x30] sm:$0xf]
    %v6826 = vld [vmem:[%s15 + $0x34] sm:$0xf]
    %v6827 = vld [vmem:[%s15 + $0x38] sm:$0xf]
    %v6828 = vld [vmem:[%s15 + $0x3c] sm:$0xf]
    %v6829 = vld [vmem:[%s16] sm:$0x1]
    %v6831 = vlaneseq
    %v6832 = vshrl.u32 %v6831, 7
    %v6833 = vsub.s32 0, %v6832
    %v6834 = vrot.slane %v6829, %v6833
    %v6852 = vunpack.c.l.b16 %v6813
    %v6853 = vunpack.c.l.b16 %v6814
    %v6854 = vunpack.c.l.b16 %v6815
    %v6855 = vunpack.c.l.b16 %v6816
    %v6856 = vunpack.c.l.b16 %v6817
    %v6857 = vunpack.c.l.b16 %v6818
    %v6858 = vunpack.c.l.b16 %v6819
    %v6859 = vunpack.c.l.b16 %v6820
    %v6860 = vunpack.c.l.b16 %v6821
    %v6861 = vunpack.c.l.b16 %v6822
    %v6862 = vunpack.c.l.b16 %v6823
    %v6863 = vunpack.c.l.b16 %v6824
    %v6864 = vunpack.c.l.b16 %v6825
    %v6865 = vunpack.c.l.b16 %v6826
    %v6866 = vunpack.c.l.b16 %v6827
    %v6867 = vunpack.c.l.b16 %v6828
    %v6868 = vpack.c.b16 %v6853, %v6852
    %v6869 = vpack.c.b16 %v6855, %v6854
    %v6870 = vpack.c.b16 %v6857, %v6856
    %v6871 = vpack.c.b16 %v6859, %v6858
    %v6872 = vpack.c.b16 %v6861, %v6860
    %v6873 = vpack.c.b16 %v6863, %v6862
    %v6874 = vpack.c.b16 %v6865, %v6864
    %v6875 = vpack.c.b16 %v6867, %v6866
    %6884 = vmatprep.subr.bf16.mxu0 0
    %6885 = vmatpush1.bf16.msra.mxu0 %v6868
    %6886 = vmatprep.subr.bf16.mxu0 0
    %6887 = vmatpush1.bf16.msra.mxu0 %v6869
    %6888 = vmatprep.subr.bf16.mxu0 0
    %6889 = vmatpush1.bf16.msra.mxu0 %v6870
    %6890 = vmatprep.subr.bf16.mxu0 0
    %6891 = vmatpush1.bf16.msra.mxu0 %v6871
    %6892 = vmatprep.subr.bf16.mxu0 0
    %6893 = vmatpush1.bf16.msra.mxu0 %v6872
    %6894 = vmatprep.subr.bf16.mxu0 0
    %6895 = vmatpush1.bf16.msra.mxu0 %v6873
    %6896 = vmatprep.subr.bf16.mxu0 0
    %6897 = vmatpush1.bf16.msra.mxu0 %v6874
    %6898 = vmatprep.subr.bf16.mxu0 0
    %6899 = vmatpush1.bf16.msra.mxu0 %v6875
    %6900 = vmatprep.subr.bf16.mxu0 0
    %6901 = vmatpush1.bf16.msra.mxu0 0
    %6902 = vmatprep.subr.bf16.mxu0 0
    %6903 = vmatpush1.bf16.msra.mxu0 0
    %6904 = vmatprep.subr.bf16.mxu0 0
    %6905 = vmatpush1.bf16.msra.mxu0 0
    %6906 = vmatprep.subr.bf16.mxu0 0
    %6907 = vmatpush1.bf16.msra.mxu0 0
    %6908 = vmatprep.subr.bf16.mxu0 0
    %6909 = vmatpush1.bf16.msra.mxu0 0
    %6910 = vmatprep.subr.bf16.mxu0 0
    %6911 = vmatpush1.bf16.msra.mxu0 0
    %6912 = vmatprep.subr.bf16.mxu0 0
    %6913 = vmatpush1.bf16.msra.mxu0 0
    %6914 = vmatprep.subr.bf16.mxu0 0
    %6915 = vmatpush1.bf16.msra.mxu0 0
    %6916 = vmatprep.mubr.bf16.mxu0 0
    %6917 = vmatmul.mubr.bf16.gmra.mrb[0].mxu0 %v6809
    %v6918 = vpop.f32.mrb[0].mxu0
    %v6919 = vadd.f32 %v6834, %v6918
    %v6920 = vpop.f32.mrb[0].mxu0
    %v6921 = vpop.f32.mrb[0].mxu0
    %v6922 = vadd.f32 %v6834, %v6921
    %v6923 = vpop.f32.mrb[0].mxu0
    %6924 = vmatprep.mubr.bf16.mxu0 0
    %6925 = vmatmul.mubr.bf16.gmra.mrb[0].mxu0 %v6810
    %v6926 = vpop.f32.mrb[0].mxu0
    %v6927 = vadd.f32 %v6834, %v6926
    %v6928 = vpop.f32.mrb[0].mxu0
    %v6929 = vpop.f32.mrb[0].mxu0
    %v6930 = vadd.f32 %v6834, %v6929
    %v6931 = vpop.f32.mrb[0].mxu0
    %6932 = vmatprep.mubr.bf16.mxu0 0
    %6933 = vmatmul.mubr.bf16.gmra.mrb[0].mxu0 %v6811
    %v6934 = vpop.f32.mrb[0].mxu0
    %v6935 = vadd.f32 %v6834, %v6934
    %v6936 = vpop.f32.mrb[0].mxu0
    %v6937 = vpop.f32.mrb[0].mxu0
    %v6938 = vadd.f32 %v6834, %v6937
    %v6939 = vpop.f32.mrb[0].mxu0
    %6940 = vmatprep.mubr.bf16.mxu0 0
    %6941 = vmatmul.mubr.bf16.gmra.mrb[0].mxu0 %v6812
    %v6942 = vpop.f32.mrb[0].mxu0
    %v6943 = vadd.f32 %v6834, %v6942
    %v6944 = vpop.f32.mrb[0].mxu0
    %v6945 = vpop.f32.mrb[0].mxu0
    %v6946 = vadd.f32 %v6834, %v6945
    %v6947 = vpop.f32.mrb[0].mxu0
    %6948 = vdwg.mxu0
    %6949 = vst [vmem:[%s17] sm:$0xff] %v6919
    %6950 = vst [vmem:[%s17 + $0x8] sm:$0xff] %v6922
    %6951 = vst [vmem:[%s17 + $0x10] sm:$0xff] %v6927
    %6952 = vst [vmem:[%s17 + $0x18] sm:$0xff] %v6930
    %6953 = vst [vmem:[%s17 + $0x20] sm:$0xff] %v6935
    %6954 = vst [vmem:[%s17 + $0x28] sm:$0xff] %v6938
    %6955 = vst [vmem:[%s17 + $0x30] sm:$0xff] %v6943
    %6956 = vst [vmem:[%s17 + $0x38] sm:$0xff] %v6946
    // Predicated region
    $region118: #{prompt_encoder_forward.1} parent=1 // pred_check
      _
    $region119: #{prompt_encoder_forward.1} parent=1 // pred_check_branch
      %6958 = sbr.rel (0) target = $region121
    $region120: #{prompt_encoder_forward.1} parent=1 // pred_region
      _
    $region121: #{prompt_encoder_forward.1} parent=1 // pred_fallthru
      _
    // Predicated region
    $region122: #{prompt_encoder_forward.1} parent=1 // pred_check
      _
    $region123: #{prompt_encoder_forward.1} parent=1 // pred_check_branch
      %6960 = sbr.rel (0) target = $region125
    $region124: #{prompt_encoder_forward.1} parent=1 // pred_region
      _
    $region125: #{prompt_encoder_forward.1} parent=1 // pred_fallthru
      _
    %6961 = vsyncpa [#allocation6], 1
    %6962 = vsyncpa [#allocation8], 1
    %6963 = vsyncpa [#allocation11], 1
    %6964 = vsyncpa [#allocation14], 1
    %6965 = vsyncpa [#allocation17], 1
    %6966 = vsyncpa [#allocation20], 1
    %6967 = vsyncpa [#allocation23], 1

</llo_original>
